<compile_context>
chip_gen: v6e
topology: v6e:2x2x1
jax: 0.10.0
libtpu: 0.0.40
codegen_flags: <defaults>
</compile_context>

<pallas_src>
import functools
import math

import jax
import jax.numpy as jnp
from jax import lax
from jax.experimental import pallas as pl

# ----- small synthetic GPT-2 config (module __init__ defines the structure) --
VOCAB = 128                  # vocab_size
D = 32                       # n_embd (hidden_size)
NH = 4                       # n_head
HD = D // NH                 # head dim
SEQ = 8                      # sequence length used in the example
BATCH = 2
MAX_POS = 16                 # n_positions (>= SEQ)
TRUNK_LAYERS = 2             # shared_trunk.h
NUM_TOKENS_TO_PREDICT = 4    # first_head + extra_heads
LN_EPS = 1e-5
NEG_INF = jnp.finfo(jnp.float32).min   # HF-style padding-mask bias (reference)
NEG_BIG = -1e9                         # finite additive mask used in-kernel


# --------------------------- shared math helpers ----------------------------
def _layernorm(x, g, b):
    mu = jnp.mean(x, axis=-1, keepdims=True)
    xc = x - mu
    var = jnp.mean(xc * xc, axis=-1, keepdims=True)
    return xc * lax.rsqrt(var + LN_EPS) * g + b


def _gelu_new(x):
    c = math.sqrt(2.0 / math.pi)
    return 0.5 * x * (1.0 + jnp.tanh(c * (x + 0.044715 * x * x * x)))


# --------------------------- fused Pallas kernel -----------------------------
def fused_forward_kernel(x_ref, mask_ref,
                         ln1g_s, ln1b_s, wqkv_s, bqkv_s, wao_s, bao_s,
                         ln2g_s, ln2b_s, wfc_s, bfc_s, wpo_s, bpo_s,
                         lnfg_ref, lnfb_ref, wlm_ref,
                         logits_ref, htrunk_ref, *, n_heads):
    """Full multi-token GPT-2 forward, batch folded into rows.

    x_ref:      (B*S, D)  f32   embedded hidden states (all batches)
    mask_ref:   (B*S, B*S) f32  finite additive mask:
                                causal + same-batch block-diag + key padding
    *_s refs:   (L, ...)  per-layer weights stacked over
                          L = TRUNK_LAYERS + n_heads layers (matmul wts bf16)
    wlm_ref:    (D, V) bf16     transposed tied LM / wte weight
    logits_ref: (n_heads*B*S, V) f32  head-major logits (one lane-dense store)
    htrunk_ref: (B*S, D) f32    trunk output (hidden_states)
    """
    bf16 = jnp.bfloat16
    x = x_ref[...]                        # (BS, D) f32
    mask_add = mask_ref[...]              # (BS, BS) f32, finite (-1e9)
    scale = 1.0 / math.sqrt(HD)

    def block(x, li):
        # --- attention ---
        h = _layernorm(x, ln1g_s[li], ln1b_s[li])
        qkv = jnp.dot(h.astype(bf16), wqkv_s[li],
                      preferred_element_type=jnp.float32) + bqkv_s[li]
        q_all = (qkv[:, 0 * D:1 * D] * scale).astype(bf16)
        k_all = qkv[:, 1 * D:2 * D].astype(bf16)
        v_all = qkv[:, 2 * D:3 * D].astype(bf16)

        # Per-head scores, contracting the last dims (no materialized k.T).
        scores = []
        for hi in range(NH):
            sl = slice(hi * HD, (hi + 1) * HD)
            s = lax.dot_general(q_all[:, sl], k_all[:, sl],
                                dimension_numbers=(((1,), (1,)), ((), ())),
                                preferred_element_type=jnp.float32)
            scores.append(s + mask_add)
        s_all = jnp.stack(scores, axis=0)                 # (NH, BS, BS)

        # One softmax reduction pass for all heads at once.
        s_all = s_all - jnp.max(s_all, axis=-1, keepdims=True)
        p_all = jnp.exp(s_all)
        inv = pl.reciprocal(jnp.sum(p_all, axis=-1, keepdims=True),
                            approx=True)                  # (NH, BS, 1)

        o_heads = []
        for hi in range(NH):
            sl = slice(hi * HD, (hi + 1) * HD)
            o = jnp.dot(p_all[hi].astype(bf16), v_all[:, sl],
                        preferred_element_type=jnp.float32)
            o_heads.append(o * inv[hi])                   # deferred normalize
        o_cat = jnp.concatenate(o_heads, axis=-1)         # (BS, D)
        attn = jnp.dot(o_cat.astype(bf16), wao_s[li],
                       preferred_element_type=jnp.float32) + bao_s[li]
        x = x + attn

        # --- MLP ---
        h2 = _layernorm(x, ln2g_s[li], ln2b_s[li])
        f = jnp.dot(h2.astype(bf16), wfc_s[li],
                    preferred_element_type=jnp.float32) + bfc_s[li]
        f = _gelu_new(f)
        f = jnp.dot(f.astype(bf16), wpo_s[li],
                    preferred_element_type=jnp.float32) + bpo_s[li]
        return x + f

    # Shared trunk (statically unrolled).
    for li in range(TRUNK_LAYERS):
        x = block(x, li)
    htrunk_ref[...] = x

    # Prediction heads; final LayerNorm + tied LM projection batched over all
    # heads as a single (n_heads*BS, D) slab -> one LN, one matmul, one store.
    ys = [block(x, TRUNK_LAYERS + hi) for hi in range(n_heads)]
    y_all = jnp.concatenate(ys, axis=0)                   # (n_heads*BS, D)
    y_all = _layernorm(y_all, lnfg_ref[...], lnfb_ref[...])
    logits_ref[...] = jnp.dot(y_all.astype(bf16), wlm_ref[...],
                              preferred_element_type=jnp.float32)


# --------------------------- pallas_call wrapper ------------------------------
_BLOCK_KEYS = ['ln1_g', 'ln1_b', 'w_qkv', 'b_qkv', 'w_ao', 'b_ao',
               'ln2_g', 'ln2_b', 'w_fc', 'b_fc', 'w_po', 'b_po']
_BF16_KEYS = {'w_qkv', 'w_ao', 'w_fc', 'w_po'}


def run_fused_forward(hidden, mask_add, blocks, lnf_g, lnf_b, wte, n_heads):
    """Single grid-less pallas_call for the whole forward. hidden: (B, S, D)."""
    B, S, Dm = hidden.shape
    V = wte.shape[0]
    BS = B * S
    x2d = hidden.reshape(BS, Dm)

    # Stack per-layer weights (VMEM-resident); matmul operands in bf16.
    stacked = []
    for k in _BLOCK_KEYS:
        w = jnp.stack([blk[k] for blk in blocks], axis=0)
        if k in _BF16_KEYS:
            w = w.astype(jnp.bfloat16)
        stacked.append(w)
    wlm_t = wte.T.astype(jnp.bfloat16)                    # (D, V) tied LM wt

    inputs = [x2d, mask_add] + stacked + [lnf_g, lnf_b, wlm_t]

    # Advisory cost estimate so XLA schedules surrounding glue sensibly.
    n_layers = TRUNK_LAYERS + n_heads
    flops_block = (2 * BS * Dm * 3 * Dm          # qkv
                   + 4 * NH * BS * BS * HD       # scores + p@v
                   + 2 * BS * Dm * Dm            # out proj
                   + 4 * BS * Dm * 4 * Dm)       # fc + proj
    flops = n_layers * flops_block + 2 * n_heads * BS * Dm * V
    transcendentals = n_layers * (NH * BS * BS + BS * 4 * Dm)
    bytes_accessed = int(sum(a.size * a.dtype.itemsize for a in inputs)
                         + n_heads * BS * V * 4 + BS * Dm * 4)

    out_shapes = (jax.ShapeDtypeStruct((n_heads * BS, V), jnp.float32),
                  jax.ShapeDtypeStruct((BS, Dm), jnp.float32))

    kern = functools.partial(fused_forward_kernel, n_heads=n_heads)
    logits_flat, htrunk_flat = pl.pallas_call(
        kern,
        out_shape=out_shapes,
        cost_estimate=pl.CostEstimate(flops=flops,
                                      transcendentals=transcendentals,
                                      bytes_accessed=bytes_accessed),
    )(*inputs)

    # (n, B, S, V) head-major slab -> (B, S, n, V) stacked-head torch layout.
    logits = logits_flat.reshape(n_heads, B, S, V).transpose(1, 2, 0, 3)
    return logits, htrunk_flat.reshape(B, S, Dm)


# --------------------------- full forward -----------------------------------
def multi_token_gpt2_forward(params, input_ids, attention_mask=None,
                             return_all_heads=True):
    B, S = input_ids.shape
    if attention_mask is None:
        attention_mask = jnp.ones_like(input_ids)

    # Embedding gather (glue, plain JAX). Dropout is identity in eval mode.
    tok = jnp.take(params['wte'], input_ids, axis=0)            # (B, S, D)
    pos = params['wpe'][:S][None, :, :]                         # (1, S, D)
    hidden = (tok + pos).astype(jnp.float32)

    # Combined causal + same-batch block-diagonal + key-padding additive mask,
    # built once outside the kernel, finite (-1e9) so no -inf/NaN arithmetic.
    # (Fully-masked query rows are garbage rows in both kernel and reference.)
    idx = jnp.arange(B * S)
    b_idx = idx // S
    p_idx = idx % S
    same_batch = b_idx[:, None] == b_idx[None, :]
    causal = p_idx[None, :] <= p_idx[:, None]
    key_valid = attention_mask.reshape(-1) > 0
    allowed = same_batch & causal & key_valid[None, :]
    mask_add = jnp.where(allowed, 0.0, NEG_BIG).astype(jnp.float32)

    n_heads_to_use = NUM_TOKENS_TO_PREDICT if return_all_heads else 1
    blocks = list(params['trunk']) + [params['heads'][i]
                                      for i in range(n_heads_to_use)]

    logits, h_trunk = run_fused_forward(
        hidden, mask_add, blocks,
        params['lnf_g'], params['lnf_b'], params['wte'], n_heads_to_use)

    # TODO(synk): cross-entropy training loss (labels path) and the
    # speculative/standard generation loops are host-side control flow and are
    # not implemented as kernels.
    if n_heads_to_use == 1:
        return {'loss': None, 'logits': logits[:, :, 0, :],
                'hidden_states': h_trunk}
    return {'loss': None, 'logits': logits[:, :, 0, :],
            'all_head_logits': logits, 'hidden_states': h_trunk}


# --------------------------- parameter init ---------------------------------
def init_params(key):
    keys = iter(jax.random.split(key, 64))

    def norm(shape, std=0.02):
        return std * jax.random.normal(next(keys), shape, jnp.float32)

    def block_params():
        return dict(
            ln1_g=jnp.ones((1, D), jnp.float32),
            ln1_b=jnp.zeros((1, D), jnp.float32),
            w_qkv=norm((D, 3 * D)), b_qkv=jnp.zeros((1, 3 * D), jnp.float32),
            w_ao=norm((D, D)), b_ao=jnp.zeros((1, D), jnp.float32),
            ln2_g=jnp.ones((1, D), jnp.float32),
            ln2_b=jnp.zeros((1, D), jnp.float32),
            w_fc=norm((D, 4 * D)), b_fc=jnp.zeros((1, 4 * D), jnp.float32),
            w_po=norm((4 * D, D)), b_po=jnp.zeros((1, D), jnp.float32),
        )

    return dict(
        wte=norm((VOCAB, D)),
        wpe=norm((MAX_POS, D), std=0.01),
        trunk=[block_params() for _ in range(TRUNK_LAYERS)],
        heads=[block_params() for _ in range(NUM_TOKENS_TO_PREDICT)],
        lnf_g=jnp.ones((1, D), jnp.float32),
        lnf_b=jnp.zeros((1, D), jnp.float32),
    )


# --------------------------- pure-JAX reference -----------------------------
def reference_forward(params, input_ids, attention_mask=None):
    B, S = input_ids.shape
    if attention_mask is None:
        attention_mask = jnp.ones_like(input_ids)
    tok = jnp.take(params['wte'], input_ids, axis=0)
    pos = params['wpe'][:S][None]
    x = (tok + pos).astype(jnp.float32)
    bias = ((1.0 - attention_mask.astype(jnp.float32)) * NEG_INF)[:, None, None, :]
    causal = jnp.tril(jnp.ones((S, S), dtype=bool))

    def block(x, p):
        h = _layernorm(x, p['ln1_g'], p['ln1_b'])
        qkv = h @ p['w_qkv'] + p['b_qkv']
        q, k, v = jnp.split(qkv, 3, axis=-1)

        def split_heads(t):
            return t.reshape(B, S, NH, HD).transpose(0, 2, 1, 3)

        q, k, v = split_heads(q), split_heads(k), split_heads(v)
        s = jnp.einsum('bhqd,bhkd->bhqk', q, k) / math.sqrt(HD)
        s = jnp.where(causal[None, None], s, NEG_INF)
        s = s + bias
        probs = jax.nn.softmax(s, axis=-1)
        o = jnp.einsum('bhqk,bhkd->bhqd', probs, v)
        o = o.transpose(0, 2, 1, 3).reshape(B, S, D)
        o = o @ p['w_ao'] + p['b_ao']
        x = x + o
        h2 = _layernorm(x, p['ln2_g'], p['ln2_b'])
        f = _gelu_new(h2 @ p['w_fc'] + p['b_fc']) @ p['w_po'] + p['b_po']
        return x + f

    for blk in params['trunk']:
        x = block(x, blk)
    latents = [block(x, params['heads'][i]) for i in range(NUM_TOKENS_TO_PREDICT)]
    h = jnp.stack(latents, axis=-2)
    h = _layernorm(h, params['lnf_g'], params['lnf_b'])
    return jnp.einsum('bsnd,vd->bsnv', h, params['wte']).astype(jnp.float32)


# --------------------------- main -------------------------------------------
if __name__ == "__main__":
    root = jax.random.PRNGKey(0)
    pkey, dkey = jax.random.split(root)
    params = init_params(pkey)
    input_ids = jax.random.randint(dkey, (BATCH, SEQ), 0, VOCAB, dtype=jnp.int32)

    fwd = jax.jit(functools.partial(multi_token_gpt2_forward,
                                    return_all_heads=True))
    out = fwd(params, input_ids)
    jax.block_until_ready(out['all_head_logits'])

    ref = reference_forward(params, input_ids)
    assert out['all_head_logits'].shape == (BATCH, SEQ, NUM_TOKENS_TO_PREDICT, VOCAB)
    assert out['logits'].shape == (BATCH, SEQ, VOCAB)
    assert out['hidden_states'].shape == (BATCH, SEQ, D)
    assert jnp.allclose(out['all_head_logits'], ref, atol=5e-2, rtol=5e-2), \
        "Pallas output mismatch vs JAX reference"
    print("KERNEL_OK")
</pallas_src>

<mosaic_0001>
module attributes {stable_mosaic.version = 11 : i64} {
  func.func @fused_forward_kernel(%arg0: memref<16x32xf32, #tpu.memory_space<vmem>>, %arg1: memref<16x16xf32, #tpu.memory_space<vmem>>, %arg2: memref<6x1x32xf32, #tpu.memory_space<vmem>>, %arg3: memref<6x1x32xf32, #tpu.memory_space<vmem>>, %arg4: memref<6x32x96xbf16, #tpu.memory_space<vmem>>, %arg5: memref<6x1x96xf32, #tpu.memory_space<vmem>>, %arg6: memref<6x32x32xbf16, #tpu.memory_space<vmem>>, %arg7: memref<6x1x32xf32, #tpu.memory_space<vmem>>, %arg8: memref<6x1x32xf32, #tpu.memory_space<vmem>>, %arg9: memref<6x1x32xf32, #tpu.memory_space<vmem>>, %arg10: memref<6x32x128xbf16, #tpu.memory_space<vmem>>, %arg11: memref<6x1x128xf32, #tpu.memory_space<vmem>>, %arg12: memref<6x128x32xbf16, #tpu.memory_space<vmem>>, %arg13: memref<6x1x32xf32, #tpu.memory_space<vmem>>, %arg14: memref<1x32xf32, #tpu.memory_space<vmem>>, %arg15: memref<1x32xf32, #tpu.memory_space<vmem>>, %arg16: memref<32x128xbf16, #tpu.memory_space<vmem>>, %arg17: memref<64x128xf32, #tpu.memory_space<vmem>>, %arg18: memref<16x32xf32, #tpu.memory_space<vmem>>) attributes {dimension_semantics = [], scalar_prefetch = 0 : i64, scratch_operands = 0 : i64, tpu.core_type = #tpu.core_type<tc>} {
    %c0 = arith.constant 0 : index
    %c0_0 = arith.constant 0 : index
    %0 = vector.load %arg0[%c0, %c0_0] : memref<16x32xf32, #tpu.memory_space<vmem>>, vector<16x32xf32>
    %c0_1 = arith.constant 0 : index
    %c0_2 = arith.constant 0 : index
    %1 = vector.load %arg1[%c0_1, %c0_2] : memref<16x16xf32, #tpu.memory_space<vmem>>, vector<16x16xf32>
    %c0_3 = arith.constant 0 : index
    %c0_4 = arith.constant 0 : index
    %c0_5 = arith.constant 0 : index
    %2 = vector.load %arg2[%c0_3, %c0_4, %c0_5] : memref<6x1x32xf32, #tpu.memory_space<vmem>>, vector<1x1x32xf32>
    %3 = vector.shape_cast %2 : vector<1x1x32xf32> to vector<1x32xf32>
    %c0_6 = arith.constant 0 : index
    %c0_7 = arith.constant 0 : index
    %c0_8 = arith.constant 0 : index
    %4 = vector.load %arg3[%c0_6, %c0_7, %c0_8] : memref<6x1x32xf32, #tpu.memory_space<vmem>>, vector<1x1x32xf32>
    %5 = vector.shape_cast %4 : vector<1x1x32xf32> to vector<1x32xf32>
    %cst = arith.constant dense<0.000000e+00> : vector<16xf32>
    %6 = vector.multi_reduction <add>, %0, %cst [1] : vector<16x32xf32> to vector<16xf32>
    %7 = vector.shape_cast %6 : vector<16xf32> to vector<16x1xf32>
    %cst_9 = arith.constant 3.200000e+01 : f32
    %8 = vector.broadcast %cst_9 : f32 to vector<16x1xf32>
    %9 = arith.divf %7, %8 : vector<16x1xf32>
    %10 = vector.broadcast %9 : vector<16x1xf32> to vector<16x32xf32>
    %11 = arith.subf %0, %10 : vector<16x32xf32>
    %12 = arith.mulf %11, %11 : vector<16x32xf32>
    %cst_10 = arith.constant dense<0.000000e+00> : vector<16xf32>
    %13 = vector.multi_reduction <add>, %12, %cst_10 [1] : vector<16x32xf32> to vector<16xf32>
    %14 = vector.shape_cast %13 : vector<16xf32> to vector<16x1xf32>
    %cst_11 = arith.constant 3.200000e+01 : f32
    %15 = vector.broadcast %cst_11 : f32 to vector<16x1xf32>
    %16 = arith.divf %14, %15 : vector<16x1xf32>
    %cst_12 = arith.constant 9.99999974E-6 : f32
    %17 = vector.broadcast %cst_12 : f32 to vector<16x1xf32>
    %18 = arith.addf %16, %17 : vector<16x1xf32>
    %19 = math.rsqrt %18 : vector<16x1xf32>
    %20 = vector.broadcast %19 : vector<16x1xf32> to vector<16x32xf32>
    %21 = arith.mulf %11, %20 : vector<16x32xf32>
    %22 = vector.broadcast %3 : vector<1x32xf32> to vector<16x32xf32>
    %23 = arith.mulf %21, %22 : vector<16x32xf32>
    %24 = vector.broadcast %5 : vector<1x32xf32> to vector<16x32xf32>
    %25 = arith.addf %23, %24 : vector<16x32xf32>
    %26 = arith.truncf %25 : vector<16x32xf32> to vector<16x32xbf16>
    %c0_13 = arith.constant 0 : index
    %c0_14 = arith.constant 0 : index
    %c0_15 = arith.constant 0 : index
    %27 = vector.load %arg4[%c0_13, %c0_14, %c0_15] : memref<6x32x96xbf16, #tpu.memory_space<vmem>>, vector<1x32x96xbf16>
    %28 = vector.shape_cast %27 : vector<1x32x96xbf16> to vector<32x96xbf16>
    %cst_16 = arith.constant dense<0.000000e+00> : vector<16x96xf32>
    %29 = tpu.matmul %26, %28, %cst_16 {dimension_numbers = #tpu.dot_dimension_numbers<[1], [0], [0], [1], [0, 0, 1, 1], [], []>} : vector<16x32xbf16>, vector<32x96xbf16>, vector<16x96xf32> -> vector<16x96xf32>
    %c0_17 = arith.constant 0 : index
    %c0_18 = arith.constant 0 : index
    %c0_19 = arith.constant 0 : index
    %30 = vector.load %arg5[%c0_17, %c0_18, %c0_19] : memref<6x1x96xf32, #tpu.memory_space<vmem>>, vector<1x1x96xf32>
    %31 = vector.shape_cast %30 : vector<1x1x96xf32> to vector<1x96xf32>
    %32 = vector.broadcast %31 : vector<1x96xf32> to vector<16x96xf32>
    %33 = arith.addf %29, %32 : vector<16x96xf32>
    %34 = vector.extract_strided_slice %33 {offsets = [0, 0], sizes = [16, 32], strides = [1, 1]} : vector<16x96xf32> to vector<16x32xf32>
    %cst_20 = arith.constant 0.353553385 : f32
    %35 = vector.broadcast %cst_20 : f32 to vector<16x32xf32>
    %36 = arith.mulf %34, %35 : vector<16x32xf32>
    %37 = arith.truncf %36 : vector<16x32xf32> to vector<16x32xbf16>
    %38 = vector.extract_strided_slice %33 {offsets = [0, 32], sizes = [16, 32], strides = [1, 1]} : vector<16x96xf32> to vector<16x32xf32>
    %39 = arith.truncf %38 : vector<16x32xf32> to vector<16x32xbf16>
    %40 = vector.extract_strided_slice %33 {offsets = [0, 64], sizes = [16, 32], strides = [1, 1]} : vector<16x96xf32> to vector<16x32xf32>
    %41 = arith.truncf %40 : vector<16x32xf32> to vector<16x32xbf16>
    %42 = vector.extract_strided_slice %37 {offsets = [0, 0], sizes = [16, 8], strides = [1, 1]} : vector<16x32xbf16> to vector<16x8xbf16>
    %43 = vector.extract_strided_slice %39 {offsets = [0, 0], sizes = [16, 8], strides = [1, 1]} : vector<16x32xbf16> to vector<16x8xbf16>
    %cst_21 = arith.constant dense<0.000000e+00> : vector<16x16xf32>
    %44 = tpu.matmul %42, %43, %cst_21 {dimension_numbers = #tpu.dot_dimension_numbers<[1], [1], [0], [0], [0, 0, 1, 0], [], []>} : vector<16x8xbf16>, vector<16x8xbf16>, vector<16x16xf32> -> vector<16x16xf32>
    %45 = arith.addf %44, %1 : vector<16x16xf32>
    %46 = vector.extract_strided_slice %37 {offsets = [0, 8], sizes = [16, 8], strides = [1, 1]} : vector<16x32xbf16> to vector<16x8xbf16>
    %47 = vector.extract_strided_slice %39 {offsets = [0, 8], sizes = [16, 8], strides = [1, 1]} : vector<16x32xbf16> to vector<16x8xbf16>
    %cst_22 = arith.constant dense<0.000000e+00> : vector<16x16xf32>
    %48 = tpu.matmul %46, %47, %cst_22 {dimension_numbers = #tpu.dot_dimension_numbers<[1], [1], [0], [0], [0, 0, 1, 0], [], []>} : vector<16x8xbf16>, vector<16x8xbf16>, vector<16x16xf32> -> vector<16x16xf32>
    %49 = arith.addf %48, %1 : vector<16x16xf32>
    %50 = vector.extract_strided_slice %37 {offsets = [0, 16], sizes = [16, 8], strides = [1, 1]} : vector<16x32xbf16> to vector<16x8xbf16>
    %51 = vector.extract_strided_slice %39 {offsets = [0, 16], sizes = [16, 8], strides = [1, 1]} : vector<16x32xbf16> to vector<16x8xbf16>
    %cst_23 = arith.constant dense<0.000000e+00> : vector<16x16xf32>
    %52 = tpu.matmul %50, %51, %cst_23 {dimension_numbers = #tpu.dot_dimension_numbers<[1], [1], [0], [0], [0, 0, 1, 0], [], []>} : vector<16x8xbf16>, vector<16x8xbf16>, vector<16x16xf32> -> vector<16x16xf32>
    %53 = arith.addf %52, %1 : vector<16x16xf32>
    %54 = vector.extract_strided_slice %37 {offsets = [0, 24], sizes = [16, 8], strides = [1, 1]} : vector<16x32xbf16> to vector<16x8xbf16>
    %55 = vector.extract_strided_slice %39 {offsets = [0, 24], sizes = [16, 8], strides = [1, 1]} : vector<16x32xbf16> to vector<16x8xbf16>
    %cst_24 = arith.constant dense<0.000000e+00> : vector<16x16xf32>
    %56 = tpu.matmul %54, %55, %cst_24 {dimension_numbers = #tpu.dot_dimension_numbers<[1], [1], [0], [0], [0, 0, 1, 0], [], []>} : vector<16x8xbf16>, vector<16x8xbf16>, vector<16x16xf32> -> vector<16x16xf32>
    %57 = arith.addf %56, %1 : vector<16x16xf32>
    %58 = vector.shape_cast %45 : vector<16x16xf32> to vector<1x16x16xf32>
    %59 = vector.shape_cast %49 : vector<16x16xf32> to vector<1x16x16xf32>
    %60 = vector.shape_cast %53 : vector<16x16xf32> to vector<1x16x16xf32>
    %61 = vector.shape_cast %57 : vector<16x16xf32> to vector<1x16x16xf32>
    %62 = tpu.concatenate %58, %59, %60, %61 in 0 : vector<1x16x16xf32>, vector<1x16x16xf32>, vector<1x16x16xf32>, vector<1x16x16xf32> -> vector<4x16x16xf32>
    %cst_25 = arith.constant dense<0xFF800000> : vector<4x16xf32>
    %63 = vector.multi_reduction <maximumf>, %62, %cst_25 [2] : vector<4x16x16xf32> to vector<4x16xf32>
    %64 = vector.shape_cast %63 : vector<4x16xf32> to vector<4x16x1xf32>
    %65 = vector.broadcast %64 : vector<4x16x1xf32> to vector<4x16x16xf32>
    %66 = arith.subf %62, %65 : vector<4x16x16xf32>
    %67 = math.exp %66 : vector<4x16x16xf32>
    %cst_26 = arith.constant dense<0.000000e+00> : vector<4x16xf32>
    %68 = vector.multi_reduction <add>, %67, %cst_26 [2] : vector<4x16x16xf32> to vector<4x16xf32>
    %69 = vector.shape_cast %68 : vector<4x16xf32> to vector<4x16x1xf32>
    %70 = tpu.reciprocal %69 {approx = true} : vector<4x16x1xf32> -> vector<4x16x1xf32>
    %71 = vector.extract_strided_slice %67 {offsets = [0, 0, 0], sizes = [1, 16, 16], strides = [1, 1, 1]} : vector<4x16x16xf32> to vector<1x16x16xf32>
    %72 = vector.shape_cast %71 : vector<1x16x16xf32> to vector<16x16xf32>
    %73 = arith.truncf %72 : vector<16x16xf32> to vector<16x16xbf16>
    %74 = vector.extract_strided_slice %41 {offsets = [0, 0], sizes = [16, 8], strides = [1, 1]} : vector<16x32xbf16> to vector<16x8xbf16>
    %cst_27 = arith.constant dense<0.000000e+00> : vector<16x8xf32>
    %75 = tpu.matmul %73, %74, %cst_27 {dimension_numbers = #tpu.dot_dimension_numbers<[1], [0], [0], [1], [0, 0, 1, 1], [], []>} : vector<16x16xbf16>, vector<16x8xbf16>, vector<16x8xf32> -> vector<16x8xf32>
    %76 = vector.extract_strided_slice %70 {offsets = [0, 0, 0], sizes = [1, 16, 1], strides = [1, 1, 1]} : vector<4x16x1xf32> to vector<1x16x1xf32>
    %77 = vector.shape_cast %76 : vector<1x16x1xf32> to vector<16x1xf32>
    %78 = vector.broadcast %77 : vector<16x1xf32> to vector<16x8xf32>
    %79 = arith.mulf %75, %78 : vector<16x8xf32>
    %80 = vector.extract_strided_slice %67 {offsets = [1, 0, 0], sizes = [1, 16, 16], strides = [1, 1, 1]} : vector<4x16x16xf32> to vector<1x16x16xf32>
    %81 = vector.shape_cast %80 : vector<1x16x16xf32> to vector<16x16xf32>
    %82 = arith.truncf %81 : vector<16x16xf32> to vector<16x16xbf16>
    %83 = vector.extract_strided_slice %41 {offsets = [0, 8], sizes = [16, 8], strides = [1, 1]} : vector<16x32xbf16> to vector<16x8xbf16>
    %cst_28 = arith.constant dense<0.000000e+00> : vector<16x8xf32>
    %84 = tpu.matmul %82, %83, %cst_28 {dimension_numbers = #tpu.dot_dimension_numbers<[1], [0], [0], [1], [0, 0, 1, 1], [], []>} : vector<16x16xbf16>, vector<16x8xbf16>, vector<16x8xf32> -> vector<16x8xf32>
    %85 = vector.extract_strided_slice %70 {offsets = [1, 0, 0], sizes = [1, 16, 1], strides = [1, 1, 1]} : vector<4x16x1xf32> to vector<1x16x1xf32>
    %86 = vector.shape_cast %85 : vector<1x16x1xf32> to vector<16x1xf32>
    %87 = vector.broadcast %86 : vector<16x1xf32> to vector<16x8xf32>
    %88 = arith.mulf %84, %87 : vector<16x8xf32>
    %89 = vector.extract_strided_slice %67 {offsets = [2, 0, 0], sizes = [1, 16, 16], strides = [1, 1, 1]} : vector<4x16x16xf32> to vector<1x16x16xf32>
    %90 = vector.shape_cast %89 : vector<1x16x16xf32> to vector<16x16xf32>
    %91 = arith.truncf %90 : vector<16x16xf32> to vector<16x16xbf16>
    %92 = vector.extract_strided_slice %41 {offsets = [0, 16], sizes = [16, 8], strides = [1, 1]} : vector<16x32xbf16> to vector<16x8xbf16>
    %cst_29 = arith.constant dense<0.000000e+00> : vector<16x8xf32>
    %93 = tpu.matmul %91, %92, %cst_29 {dimension_numbers = #tpu.dot_dimension_numbers<[1], [0], [0], [1], [0, 0, 1, 1], [], []>} : vector<16x16xbf16>, vector<16x8xbf16>, vector<16x8xf32> -> vector<16x8xf32>
    %94 = vector.extract_strided_slice %70 {offsets = [2, 0, 0], sizes = [1, 16, 1], strides = [1, 1, 1]} : vector<4x16x1xf32> to vector<1x16x1xf32>
    %95 = vector.shape_cast %94 : vector<1x16x1xf32> to vector<16x1xf32>
    %96 = vector.broadcast %95 : vector<16x1xf32> to vector<16x8xf32>
    %97 = arith.mulf %93, %96 : vector<16x8xf32>
    %98 = vector.extract_strided_slice %67 {offsets = [3, 0, 0], sizes = [1, 16, 16], strides = [1, 1, 1]} : vector<4x16x16xf32> to vector<1x16x16xf32>
    %99 = vector.shape_cast %98 : vector<1x16x16xf32> to vector<16x16xf32>
    %100 = arith.truncf %99 : vector<16x16xf32> to vector<16x16xbf16>
    %101 = vector.extract_strided_slice %41 {offsets = [0, 24], sizes = [16, 8], strides = [1, 1]} : vector<16x32xbf16> to vector<16x8xbf16>
    %cst_30 = arith.constant dense<0.000000e+00> : vector<16x8xf32>
    %102 = tpu.matmul %100, %101, %cst_30 {dimension_numbers = #tpu.dot_dimension_numbers<[1], [0], [0], [1], [0, 0, 1, 1], [], []>} : vector<16x16xbf16>, vector<16x8xbf16>, vector<16x8xf32> -> vector<16x8xf32>
    %103 = vector.extract_strided_slice %70 {offsets = [3, 0, 0], sizes = [1, 16, 1], strides = [1, 1, 1]} : vector<4x16x1xf32> to vector<1x16x1xf32>
    %104 = vector.shape_cast %103 : vector<1x16x1xf32> to vector<16x1xf32>
    %105 = vector.broadcast %104 : vector<16x1xf32> to vector<16x8xf32>
    %106 = arith.mulf %102, %105 : vector<16x8xf32>
    %107 = tpu.concatenate %79, %88, %97, %106 in 1 : vector<16x8xf32>, vector<16x8xf32>, vector<16x8xf32>, vector<16x8xf32> -> vector<16x32xf32>
    %108 = arith.truncf %107 : vector<16x32xf32> to vector<16x32xbf16>
    %c0_31 = arith.constant 0 : index
    %c0_32 = arith.constant 0 : index
    %c0_33 = arith.constant 0 : index
    %109 = vector.load %arg6[%c0_31, %c0_32, %c0_33] : memref<6x32x32xbf16, #tpu.memory_space<vmem>>, vector<1x32x32xbf16>
    %110 = vector.shape_cast %109 : vector<1x32x32xbf16> to vector<32x32xbf16>
    %cst_34 = arith.constant dense<0.000000e+00> : vector<16x32xf32>
    %111 = tpu.matmul %108, %110, %cst_34 {dimension_numbers = #tpu.dot_dimension_numbers<[1], [0], [0], [1], [0, 0, 1, 1], [], []>} : vector<16x32xbf16>, vector<32x32xbf16>, vector<16x32xf32> -> vector<16x32xf32>
    %c0_35 = arith.constant 0 : index
    %c0_36 = arith.constant 0 : index
    %c0_37 = arith.constant 0 : index
    %112 = vector.load %arg7[%c0_35, %c0_36, %c0_37] : memref<6x1x32xf32, #tpu.memory_space<vmem>>, vector<1x1x32xf32>
    %113 = vector.shape_cast %112 : vector<1x1x32xf32> to vector<1x32xf32>
    %114 = vector.broadcast %113 : vector<1x32xf32> to vector<16x32xf32>
    %115 = arith.addf %111, %114 : vector<16x32xf32>
    %116 = arith.addf %0, %115 : vector<16x32xf32>
    %c0_38 = arith.constant 0 : index
    %c0_39 = arith.constant 0 : index
    %c0_40 = arith.constant 0 : index
    %117 = vector.load %arg8[%c0_38, %c0_39, %c0_40] : memref<6x1x32xf32, #tpu.memory_space<vmem>>, vector<1x1x32xf32>
    %118 = vector.shape_cast %117 : vector<1x1x32xf32> to vector<1x32xf32>
    %c0_41 = arith.constant 0 : index
    %c0_42 = arith.constant 0 : index
    %c0_43 = arith.constant 0 : index
    %119 = vector.load %arg9[%c0_41, %c0_42, %c0_43] : memref<6x1x32xf32, #tpu.memory_space<vmem>>, vector<1x1x32xf32>
    %120 = vector.shape_cast %119 : vector<1x1x32xf32> to vector<1x32xf32>
    %cst_44 = arith.constant dense<0.000000e+00> : vector<16xf32>
    %121 = vector.multi_reduction <add>, %116, %cst_44 [1] : vector<16x32xf32> to vector<16xf32>
    %122 = vector.shape_cast %121 : vector<16xf32> to vector<16x1xf32>
    %cst_45 = arith.constant 3.200000e+01 : f32
    %123 = vector.broadcast %cst_45 : f32 to vector<16x1xf32>
    %124 = arith.divf %122, %123 : vector<16x1xf32>
    %125 = vector.broadcast %124 : vector<16x1xf32> to vector<16x32xf32>
    %126 = arith.subf %116, %125 : vector<16x32xf32>
    %127 = arith.mulf %126, %126 : vector<16x32xf32>
    %cst_46 = arith.constant dense<0.000000e+00> : vector<16xf32>
    %128 = vector.multi_reduction <add>, %127, %cst_46 [1] : vector<16x32xf32> to vector<16xf32>
    %129 = vector.shape_cast %128 : vector<16xf32> to vector<16x1xf32>
    %cst_47 = arith.constant 3.200000e+01 : f32
    %130 = vector.broadcast %cst_47 : f32 to vector<16x1xf32>
    %131 = arith.divf %129, %130 : vector<16x1xf32>
    %cst_48 = arith.constant 9.99999974E-6 : f32
    %132 = vector.broadcast %cst_48 : f32 to vector<16x1xf32>
    %133 = arith.addf %131, %132 : vector<16x1xf32>
    %134 = math.rsqrt %133 : vector<16x1xf32>
    %135 = vector.broadcast %134 : vector<16x1xf32> to vector<16x32xf32>
    %136 = arith.mulf %126, %135 : vector<16x32xf32>
    %137 = vector.broadcast %118 : vector<1x32xf32> to vector<16x32xf32>
    %138 = arith.mulf %136, %137 : vector<16x32xf32>
    %139 = vector.broadcast %120 : vector<1x32xf32> to vector<16x32xf32>
    %140 = arith.addf %138, %139 : vector<16x32xf32>
    %141 = arith.truncf %140 : vector<16x32xf32> to vector<16x32xbf16>
    %c0_49 = arith.constant 0 : index
    %c0_50 = arith.constant 0 : index
    %c0_51 = arith.constant 0 : index
    %142 = vector.load %arg10[%c0_49, %c0_50, %c0_51] : memref<6x32x128xbf16, #tpu.memory_space<vmem>>, vector<1x32x128xbf16>
    %143 = vector.shape_cast %142 : vector<1x32x128xbf16> to vector<32x128xbf16>
    %cst_52 = arith.constant dense<0.000000e+00> : vector<16x128xf32>
    %144 = tpu.matmul %141, %143, %cst_52 {dimension_numbers = #tpu.dot_dimension_numbers<[1], [0], [0], [1], [0, 0, 1, 1], [], []>} : vector<16x32xbf16>, vector<32x128xbf16>, vector<16x128xf32> -> vector<16x128xf32>
    %c0_53 = arith.constant 0 : index
    %c0_54 = arith.constant 0 : index
    %c0_55 = arith.constant 0 : index
    %145 = vector.load %arg11[%c0_53, %c0_54, %c0_55] : memref<6x1x128xf32, #tpu.memory_space<vmem>>, vector<1x1x128xf32>
    %146 = vector.shape_cast %145 : vector<1x1x128xf32> to vector<1x128xf32>
    %147 = vector.broadcast %146 : vector<1x128xf32> to vector<16x128xf32>
    %148 = arith.addf %144, %147 : vector<16x128xf32>
    %cst_56 = arith.constant 5.000000e-01 : f32
    %149 = vector.broadcast %cst_56 : f32 to vector<16x128xf32>
    %150 = arith.mulf %149, %148 : vector<16x128xf32>
    %cst_57 = arith.constant 4.471500e-02 : f32
    %151 = vector.broadcast %cst_57 : f32 to vector<16x128xf32>
    %152 = arith.mulf %151, %148 : vector<16x128xf32>
    %153 = arith.mulf %152, %148 : vector<16x128xf32>
    %154 = arith.mulf %153, %148 : vector<16x128xf32>
    %155 = arith.addf %148, %154 : vector<16x128xf32>
    %cst_58 = arith.constant 0.797884583 : f32
    %156 = vector.broadcast %cst_58 : f32 to vector<16x128xf32>
    %157 = arith.mulf %156, %155 : vector<16x128xf32>
    %158 = math.tanh %157 : vector<16x128xf32>
    %cst_59 = arith.constant 1.000000e+00 : f32
    %159 = vector.broadcast %cst_59 : f32 to vector<16x128xf32>
    %160 = arith.addf %159, %158 : vector<16x128xf32>
    %161 = arith.mulf %150, %160 : vector<16x128xf32>
    %162 = arith.truncf %161 : vector<16x128xf32> to vector<16x128xbf16>
    %c0_60 = arith.constant 0 : index
    %c0_61 = arith.constant 0 : index
    %c0_62 = arith.constant 0 : index
    %163 = vector.load %arg12[%c0_60, %c0_61, %c0_62] : memref<6x128x32xbf16, #tpu.memory_space<vmem>>, vector<1x128x32xbf16>
    %164 = vector.shape_cast %163 : vector<1x128x32xbf16> to vector<128x32xbf16>
    %cst_63 = arith.constant dense<0.000000e+00> : vector<16x32xf32>
    %165 = tpu.matmul %162, %164, %cst_63 {dimension_numbers = #tpu.dot_dimension_numbers<[1], [0], [0], [1], [0, 0, 1, 1], [], []>} : vector<16x128xbf16>, vector<128x32xbf16>, vector<16x32xf32> -> vector<16x32xf32>
    %c0_64 = arith.constant 0 : index
    %c0_65 = arith.constant 0 : index
    %c0_66 = arith.constant 0 : index
    %166 = vector.load %arg13[%c0_64, %c0_65, %c0_66] : memref<6x1x32xf32, #tpu.memory_space<vmem>>, vector<1x1x32xf32>
    %167 = vector.shape_cast %166 : vector<1x1x32xf32> to vector<1x32xf32>
    %168 = vector.broadcast %167 : vector<1x32xf32> to vector<16x32xf32>
    %169 = arith.addf %165, %168 : vector<16x32xf32>
    %170 = arith.addf %116, %169 : vector<16x32xf32>
    %c1 = arith.constant 1 : index
    %c0_67 = arith.constant 0 : index
    %c0_68 = arith.constant 0 : index
    %171 = vector.load %arg2[%c1, %c0_67, %c0_68] : memref<6x1x32xf32, #tpu.memory_space<vmem>>, vector<1x1x32xf32>
    %172 = vector.shape_cast %171 : vector<1x1x32xf32> to vector<1x32xf32>
    %c1_69 = arith.constant 1 : index
    %c0_70 = arith.constant 0 : index
    %c0_71 = arith.constant 0 : index
    %173 = vector.load %arg3[%c1_69, %c0_70, %c0_71] : memref<6x1x32xf32, #tpu.memory_space<vmem>>, vector<1x1x32xf32>
    %174 = vector.shape_cast %173 : vector<1x1x32xf32> to vector<1x32xf32>
    %cst_72 = arith.constant dense<0.000000e+00> : vector<16xf32>
    %175 = vector.multi_reduction <add>, %170, %cst_72 [1] : vector<16x32xf32> to vector<16xf32>
    %176 = vector.shape_cast %175 : vector<16xf32> to vector<16x1xf32>
    %cst_73 = arith.constant 3.200000e+01 : f32
    %177 = vector.broadcast %cst_73 : f32 to vector<16x1xf32>
    %178 = arith.divf %176, %177 : vector<16x1xf32>
    %179 = vector.broadcast %178 : vector<16x1xf32> to vector<16x32xf32>
    %180 = arith.subf %170, %179 : vector<16x32xf32>
    %181 = arith.mulf %180, %180 : vector<16x32xf32>
    %cst_74 = arith.constant dense<0.000000e+00> : vector<16xf32>
    %182 = vector.multi_reduction <add>, %181, %cst_74 [1] : vector<16x32xf32> to vector<16xf32>
    %183 = vector.shape_cast %182 : vector<16xf32> to vector<16x1xf32>
    %cst_75 = arith.constant 3.200000e+01 : f32
    %184 = vector.broadcast %cst_75 : f32 to vector<16x1xf32>
    %185 = arith.divf %183, %184 : vector<16x1xf32>
    %cst_76 = arith.constant 9.99999974E-6 : f32
    %186 = vector.broadcast %cst_76 : f32 to vector<16x1xf32>
    %187 = arith.addf %185, %186 : vector<16x1xf32>
    %188 = math.rsqrt %187 : vector<16x1xf32>
    %189 = vector.broadcast %188 : vector<16x1xf32> to vector<16x32xf32>
    %190 = arith.mulf %180, %189 : vector<16x32xf32>
    %191 = vector.broadcast %172 : vector<1x32xf32> to vector<16x32xf32>
    %192 = arith.mulf %190, %191 : vector<16x32xf32>
    %193 = vector.broadcast %174 : vector<1x32xf32> to vector<16x32xf32>
    %194 = arith.addf %192, %193 : vector<16x32xf32>
    %195 = arith.truncf %194 : vector<16x32xf32> to vector<16x32xbf16>
    %c1_77 = arith.constant 1 : index
    %c0_78 = arith.constant 0 : index
    %c0_79 = arith.constant 0 : index
    %196 = vector.load %arg4[%c1_77, %c0_78, %c0_79] : memref<6x32x96xbf16, #tpu.memory_space<vmem>>, vector<1x32x96xbf16>
    %197 = vector.shape_cast %196 : vector<1x32x96xbf16> to vector<32x96xbf16>
    %cst_80 = arith.constant dense<0.000000e+00> : vector<16x96xf32>
    %198 = tpu.matmul %195, %197, %cst_80 {dimension_numbers = #tpu.dot_dimension_numbers<[1], [0], [0], [1], [0, 0, 1, 1], [], []>} : vector<16x32xbf16>, vector<32x96xbf16>, vector<16x96xf32> -> vector<16x96xf32>
    %c1_81 = arith.constant 1 : index
    %c0_82 = arith.constant 0 : index
    %c0_83 = arith.constant 0 : index
    %199 = vector.load %arg5[%c1_81, %c0_82, %c0_83] : memref<6x1x96xf32, #tpu.memory_space<vmem>>, vector<1x1x96xf32>
    %200 = vector.shape_cast %199 : vector<1x1x96xf32> to vector<1x96xf32>
    %201 = vector.broadcast %200 : vector<1x96xf32> to vector<16x96xf32>
    %202 = arith.addf %198, %201 : vector<16x96xf32>
    %203 = vector.extract_strided_slice %202 {offsets = [0, 0], sizes = [16, 32], strides = [1, 1]} : vector<16x96xf32> to vector<16x32xf32>
    %cst_84 = arith.constant 0.353553385 : f32
    %204 = vector.broadcast %cst_84 : f32 to vector<16x32xf32>
    %205 = arith.mulf %203, %204 : vector<16x32xf32>
    %206 = arith.truncf %205 : vector<16x32xf32> to vector<16x32xbf16>
    %207 = vector.extract_strided_slice %202 {offsets = [0, 32], sizes = [16, 32], strides = [1, 1]} : vector<16x96xf32> to vector<16x32xf32>
    %208 = arith.truncf %207 : vector<16x32xf32> to vector<16x32xbf16>
    %209 = vector.extract_strided_slice %202 {offsets = [0, 64], sizes = [16, 32], strides = [1, 1]} : vector<16x96xf32> to vector<16x32xf32>
    %210 = arith.truncf %209 : vector<16x32xf32> to vector<16x32xbf16>
    %211 = vector.extract_strided_slice %206 {offsets = [0, 0], sizes = [16, 8], strides = [1, 1]} : vector<16x32xbf16> to vector<16x8xbf16>
    %212 = vector.extract_strided_slice %208 {offsets = [0, 0], sizes = [16, 8], strides = [1, 1]} : vector<16x32xbf16> to vector<16x8xbf16>
    %cst_85 = arith.constant dense<0.000000e+00> : vector<16x16xf32>
    %213 = tpu.matmul %211, %212, %cst_85 {dimension_numbers = #tpu.dot_dimension_numbers<[1], [1], [0], [0], [0, 0, 1, 0], [], []>} : vector<16x8xbf16>, vector<16x8xbf16>, vector<16x16xf32> -> vector<16x16xf32>
    %214 = arith.addf %213, %1 : vector<16x16xf32>
    %215 = vector.extract_strided_slice %206 {offsets = [0, 8], sizes = [16, 8], strides = [1, 1]} : vector<16x32xbf16> to vector<16x8xbf16>
    %216 = vector.extract_strided_slice %208 {offsets = [0, 8], sizes = [16, 8], strides = [1, 1]} : vector<16x32xbf16> to vector<16x8xbf16>
    %cst_86 = arith.constant dense<0.000000e+00> : vector<16x16xf32>
    %217 = tpu.matmul %215, %216, %cst_86 {dimension_numbers = #tpu.dot_dimension_numbers<[1], [1], [0], [0], [0, 0, 1, 0], [], []>} : vector<16x8xbf16>, vector<16x8xbf16>, vector<16x16xf32> -> vector<16x16xf32>
    %218 = arith.addf %217, %1 : vector<16x16xf32>
    %219 = vector.extract_strided_slice %206 {offsets = [0, 16], sizes = [16, 8], strides = [1, 1]} : vector<16x32xbf16> to vector<16x8xbf16>
    %220 = vector.extract_strided_slice %208 {offsets = [0, 16], sizes = [16, 8], strides = [1, 1]} : vector<16x32xbf16> to vector<16x8xbf16>
    %cst_87 = arith.constant dense<0.000000e+00> : vector<16x16xf32>
    %221 = tpu.matmul %219, %220, %cst_87 {dimension_numbers = #tpu.dot_dimension_numbers<[1], [1], [0], [0], [0, 0, 1, 0], [], []>} : vector<16x8xbf16>, vector<16x8xbf16>, vector<16x16xf32> -> vector<16x16xf32>
    %222 = arith.addf %221, %1 : vector<16x16xf32>
    %223 = vector.extract_strided_slice %206 {offsets = [0, 24], sizes = [16, 8], strides = [1, 1]} : vector<16x32xbf16> to vector<16x8xbf16>
    %224 = vector.extract_strided_slice %208 {offsets = [0, 24], sizes = [16, 8], strides = [1, 1]} : vector<16x32xbf16> to vector<16x8xbf16>
    %cst_88 = arith.constant dense<0.000000e+00> : vector<16x16xf32>
    %225 = tpu.matmul %223, %224, %cst_88 {dimension_numbers = #tpu.dot_dimension_numbers<[1], [1], [0], [0], [0, 0, 1, 0], [], []>} : vector<16x8xbf16>, vector<16x8xbf16>, vector<16x16xf32> -> vector<16x16xf32>
    %226 = arith.addf %225, %1 : vector<16x16xf32>
    %227 = vector.shape_cast %214 : vector<16x16xf32> to vector<1x16x16xf32>
    %228 = vector.shape_cast %218 : vector<16x16xf32> to vector<1x16x16xf32>
    %229 = vector.shape_cast %222 : vector<16x16xf32> to vector<1x16x16xf32>
    %230 = vector.shape_cast %226 : vector<16x16xf32> to vector<1x16x16xf32>
    %231 = tpu.concatenate %227, %228, %229, %230 in 0 : vector<1x16x16xf32>, vector<1x16x16xf32>, vector<1x16x16xf32>, vector<1x16x16xf32> -> vector<4x16x16xf32>
    %cst_89 = arith.constant dense<0xFF800000> : vector<4x16xf32>
    %232 = vector.multi_reduction <maximumf>, %231, %cst_89 [2] : vector<4x16x16xf32> to vector<4x16xf32>
    %233 = vector.shape_cast %232 : vector<4x16xf32> to vector<4x16x1xf32>
    %234 = vector.broadcast %233 : vector<4x16x1xf32> to vector<4x16x16xf32>
    %235 = arith.subf %231, %234 : vector<4x16x16xf32>
    %236 = math.exp %235 : vector<4x16x16xf32>
    %cst_90 = arith.constant dense<0.000000e+00> : vector<4x16xf32>
    %237 = vector.multi_reduction <add>, %236, %cst_90 [2] : vector<4x16x16xf32> to vector<4x16xf32>
    %238 = vector.shape_cast %237 : vector<4x16xf32> to vector<4x16x1xf32>
    %239 = tpu.reciprocal %238 {approx = true} : vector<4x16x1xf32> -> vector<4x16x1xf32>
    %240 = vector.extract_strided_slice %236 {offsets = [0, 0, 0], sizes = [1, 16, 16], strides = [1, 1, 1]} : vector<4x16x16xf32> to vector<1x16x16xf32>
    %241 = vector.shape_cast %240 : vector<1x16x16xf32> to vector<16x16xf32>
    %242 = arith.truncf %241 : vector<16x16xf32> to vector<16x16xbf16>
    %243 = vector.extract_strided_slice %210 {offsets = [0, 0], sizes = [16, 8], strides = [1, 1]} : vector<16x32xbf16> to vector<16x8xbf16>
    %cst_91 = arith.constant dense<0.000000e+00> : vector<16x8xf32>
    %244 = tpu.matmul %242, %243, %cst_91 {dimension_numbers = #tpu.dot_dimension_numbers<[1], [0], [0], [1], [0, 0, 1, 1], [], []>} : vector<16x16xbf16>, vector<16x8xbf16>, vector<16x8xf32> -> vector<16x8xf32>
    %245 = vector.extract_strided_slice %239 {offsets = [0, 0, 0], sizes = [1, 16, 1], strides = [1, 1, 1]} : vector<4x16x1xf32> to vector<1x16x1xf32>
    %246 = vector.shape_cast %245 : vector<1x16x1xf32> to vector<16x1xf32>
    %247 = vector.broadcast %246 : vector<16x1xf32> to vector<16x8xf32>
    %248 = arith.mulf %244, %247 : vector<16x8xf32>
    %249 = vector.extract_strided_slice %236 {offsets = [1, 0, 0], sizes = [1, 16, 16], strides = [1, 1, 1]} : vector<4x16x16xf32> to vector<1x16x16xf32>
    %250 = vector.shape_cast %249 : vector<1x16x16xf32> to vector<16x16xf32>
    %251 = arith.truncf %250 : vector<16x16xf32> to vector<16x16xbf16>
    %252 = vector.extract_strided_slice %210 {offsets = [0, 8], sizes = [16, 8], strides = [1, 1]} : vector<16x32xbf16> to vector<16x8xbf16>
    %cst_92 = arith.constant dense<0.000000e+00> : vector<16x8xf32>
    %253 = tpu.matmul %251, %252, %cst_92 {dimension_numbers = #tpu.dot_dimension_numbers<[1], [0], [0], [1], [0, 0, 1, 1], [], []>} : vector<16x16xbf16>, vector<16x8xbf16>, vector<16x8xf32> -> vector<16x8xf32>
    %254 = vector.extract_strided_slice %239 {offsets = [1, 0, 0], sizes = [1, 16, 1], strides = [1, 1, 1]} : vector<4x16x1xf32> to vector<1x16x1xf32>
    %255 = vector.shape_cast %254 : vector<1x16x1xf32> to vector<16x1xf32>
    %256 = vector.broadcast %255 : vector<16x1xf32> to vector<16x8xf32>
    %257 = arith.mulf %253, %256 : vector<16x8xf32>
    %258 = vector.extract_strided_slice %236 {offsets = [2, 0, 0], sizes = [1, 16, 16], strides = [1, 1, 1]} : vector<4x16x16xf32> to vector<1x16x16xf32>
    %259 = vector.shape_cast %258 : vector<1x16x16xf32> to vector<16x16xf32>
    %260 = arith.truncf %259 : vector<16x16xf32> to vector<16x16xbf16>
    %261 = vector.extract_strided_slice %210 {offsets = [0, 16], sizes = [16, 8], strides = [1, 1]} : vector<16x32xbf16> to vector<16x8xbf16>
    %cst_93 = arith.constant dense<0.000000e+00> : vector<16x8xf32>
    %262 = tpu.matmul %260, %261, %cst_93 {dimension_numbers = #tpu.dot_dimension_numbers<[1], [0], [0], [1], [0, 0, 1, 1], [], []>} : vector<16x16xbf16>, vector<16x8xbf16>, vector<16x8xf32> -> vector<16x8xf32>
    %263 = vector.extract_strided_slice %239 {offsets = [2, 0, 0], sizes = [1, 16, 1], strides = [1, 1, 1]} : vector<4x16x1xf32> to vector<1x16x1xf32>
    %264 = vector.shape_cast %263 : vector<1x16x1xf32> to vector<16x1xf32>
    %265 = vector.broadcast %264 : vector<16x1xf32> to vector<16x8xf32>
    %266 = arith.mulf %262, %265 : vector<16x8xf32>
    %267 = vector.extract_strided_slice %236 {offsets = [3, 0, 0], sizes = [1, 16, 16], strides = [1, 1, 1]} : vector<4x16x16xf32> to vector<1x16x16xf32>
    %268 = vector.shape_cast %267 : vector<1x16x16xf32> to vector<16x16xf32>
    %269 = arith.truncf %268 : vector<16x16xf32> to vector<16x16xbf16>
    %270 = vector.extract_strided_slice %210 {offsets = [0, 24], sizes = [16, 8], strides = [1, 1]} : vector<16x32xbf16> to vector<16x8xbf16>
    %cst_94 = arith.constant dense<0.000000e+00> : vector<16x8xf32>
    %271 = tpu.matmul %269, %270, %cst_94 {dimension_numbers = #tpu.dot_dimension_numbers<[1], [0], [0], [1], [0, 0, 1, 1], [], []>} : vector<16x16xbf16>, vector<16x8xbf16>, vector<16x8xf32> -> vector<16x8xf32>
    %272 = vector.extract_strided_slice %239 {offsets = [3, 0, 0], sizes = [1, 16, 1], strides = [1, 1, 1]} : vector<4x16x1xf32> to vector<1x16x1xf32>
    %273 = vector.shape_cast %272 : vector<1x16x1xf32> to vector<16x1xf32>
    %274 = vector.broadcast %273 : vector<16x1xf32> to vector<16x8xf32>
    %275 = arith.mulf %271, %274 : vector<16x8xf32>
    %276 = tpu.concatenate %248, %257, %266, %275 in 1 : vector<16x8xf32>, vector<16x8xf32>, vector<16x8xf32>, vector<16x8xf32> -> vector<16x32xf32>
    %277 = arith.truncf %276 : vector<16x32xf32> to vector<16x32xbf16>
    %c1_95 = arith.constant 1 : index
    %c0_96 = arith.constant 0 : index
    %c0_97 = arith.constant 0 : index
    %278 = vector.load %arg6[%c1_95, %c0_96, %c0_97] : memref<6x32x32xbf16, #tpu.memory_space<vmem>>, vector<1x32x32xbf16>
    %279 = vector.shape_cast %278 : vector<1x32x32xbf16> to vector<32x32xbf16>
    %cst_98 = arith.constant dense<0.000000e+00> : vector<16x32xf32>
    %280 = tpu.matmul %277, %279, %cst_98 {dimension_numbers = #tpu.dot_dimension_numbers<[1], [0], [0], [1], [0, 0, 1, 1], [], []>} : vector<16x32xbf16>, vector<32x32xbf16>, vector<16x32xf32> -> vector<16x32xf32>
    %c1_99 = arith.constant 1 : index
    %c0_100 = arith.constant 0 : index
    %c0_101 = arith.constant 0 : index
    %281 = vector.load %arg7[%c1_99, %c0_100, %c0_101] : memref<6x1x32xf32, #tpu.memory_space<vmem>>, vector<1x1x32xf32>
    %282 = vector.shape_cast %281 : vector<1x1x32xf32> to vector<1x32xf32>
    %283 = vector.broadcast %282 : vector<1x32xf32> to vector<16x32xf32>
    %284 = arith.addf %280, %283 : vector<16x32xf32>
    %285 = arith.addf %170, %284 : vector<16x32xf32>
    %c1_102 = arith.constant 1 : index
    %c0_103 = arith.constant 0 : index
    %c0_104 = arith.constant 0 : index
    %286 = vector.load %arg8[%c1_102, %c0_103, %c0_104] : memref<6x1x32xf32, #tpu.memory_space<vmem>>, vector<1x1x32xf32>
    %287 = vector.shape_cast %286 : vector<1x1x32xf32> to vector<1x32xf32>
    %c1_105 = arith.constant 1 : index
    %c0_106 = arith.constant 0 : index
    %c0_107 = arith.constant 0 : index
    %288 = vector.load %arg9[%c1_105, %c0_106, %c0_107] : memref<6x1x32xf32, #tpu.memory_space<vmem>>, vector<1x1x32xf32>
    %289 = vector.shape_cast %288 : vector<1x1x32xf32> to vector<1x32xf32>
    %cst_108 = arith.constant dense<0.000000e+00> : vector<16xf32>
    %290 = vector.multi_reduction <add>, %285, %cst_108 [1] : vector<16x32xf32> to vector<16xf32>
    %291 = vector.shape_cast %290 : vector<16xf32> to vector<16x1xf32>
    %cst_109 = arith.constant 3.200000e+01 : f32
    %292 = vector.broadcast %cst_109 : f32 to vector<16x1xf32>
    %293 = arith.divf %291, %292 : vector<16x1xf32>
    %294 = vector.broadcast %293 : vector<16x1xf32> to vector<16x32xf32>
    %295 = arith.subf %285, %294 : vector<16x32xf32>
    %296 = arith.mulf %295, %295 : vector<16x32xf32>
    %cst_110 = arith.constant dense<0.000000e+00> : vector<16xf32>
    %297 = vector.multi_reduction <add>, %296, %cst_110 [1] : vector<16x32xf32> to vector<16xf32>
    %298 = vector.shape_cast %297 : vector<16xf32> to vector<16x1xf32>
    %cst_111 = arith.constant 3.200000e+01 : f32
    %299 = vector.broadcast %cst_111 : f32 to vector<16x1xf32>
    %300 = arith.divf %298, %299 : vector<16x1xf32>
    %cst_112 = arith.constant 9.99999974E-6 : f32
    %301 = vector.broadcast %cst_112 : f32 to vector<16x1xf32>
    %302 = arith.addf %300, %301 : vector<16x1xf32>
    %303 = math.rsqrt %302 : vector<16x1xf32>
    %304 = vector.broadcast %303 : vector<16x1xf32> to vector<16x32xf32>
    %305 = arith.mulf %295, %304 : vector<16x32xf32>
    %306 = vector.broadcast %287 : vector<1x32xf32> to vector<16x32xf32>
    %307 = arith.mulf %305, %306 : vector<16x32xf32>
    %308 = vector.broadcast %289 : vector<1x32xf32> to vector<16x32xf32>
    %309 = arith.addf %307, %308 : vector<16x32xf32>
    %310 = arith.truncf %309 : vector<16x32xf32> to vector<16x32xbf16>
    %c1_113 = arith.constant 1 : index
    %c0_114 = arith.constant 0 : index
    %c0_115 = arith.constant 0 : index
    %311 = vector.load %arg10[%c1_113, %c0_114, %c0_115] : memref<6x32x128xbf16, #tpu.memory_space<vmem>>, vector<1x32x128xbf16>
    %312 = vector.shape_cast %311 : vector<1x32x128xbf16> to vector<32x128xbf16>
    %cst_116 = arith.constant dense<0.000000e+00> : vector<16x128xf32>
    %313 = tpu.matmul %310, %312, %cst_116 {dimension_numbers = #tpu.dot_dimension_numbers<[1], [0], [0], [1], [0, 0, 1, 1], [], []>} : vector<16x32xbf16>, vector<32x128xbf16>, vector<16x128xf32> -> vector<16x128xf32>
    %c1_117 = arith.constant 1 : index
    %c0_118 = arith.constant 0 : index
    %c0_119 = arith.constant 0 : index
    %314 = vector.load %arg11[%c1_117, %c0_118, %c0_119] : memref<6x1x128xf32, #tpu.memory_space<vmem>>, vector<1x1x128xf32>
    %315 = vector.shape_cast %314 : vector<1x1x128xf32> to vector<1x128xf32>
    %316 = vector.broadcast %315 : vector<1x128xf32> to vector<16x128xf32>
    %317 = arith.addf %313, %316 : vector<16x128xf32>
    %cst_120 = arith.constant 5.000000e-01 : f32
    %318 = vector.broadcast %cst_120 : f32 to vector<16x128xf32>
    %319 = arith.mulf %318, %317 : vector<16x128xf32>
    %cst_121 = arith.constant 4.471500e-02 : f32
    %320 = vector.broadcast %cst_121 : f32 to vector<16x128xf32>
    %321 = arith.mulf %320, %317 : vector<16x128xf32>
    %322 = arith.mulf %321, %317 : vector<16x128xf32>
    %323 = arith.mulf %322, %317 : vector<16x128xf32>
    %324 = arith.addf %317, %323 : vector<16x128xf32>
    %cst_122 = arith.constant 0.797884583 : f32
    %325 = vector.broadcast %cst_122 : f32 to vector<16x128xf32>
    %326 = arith.mulf %325, %324 : vector<16x128xf32>
    %327 = math.tanh %326 : vector<16x128xf32>
    %cst_123 = arith.constant 1.000000e+00 : f32
    %328 = vector.broadcast %cst_123 : f32 to vector<16x128xf32>
    %329 = arith.addf %328, %327 : vector<16x128xf32>
    %330 = arith.mulf %319, %329 : vector<16x128xf32>
    %331 = arith.truncf %330 : vector<16x128xf32> to vector<16x128xbf16>
    %c1_124 = arith.constant 1 : index
    %c0_125 = arith.constant 0 : index
    %c0_126 = arith.constant 0 : index
    %332 = vector.load %arg12[%c1_124, %c0_125, %c0_126] : memref<6x128x32xbf16, #tpu.memory_space<vmem>>, vector<1x128x32xbf16>
    %333 = vector.shape_cast %332 : vector<1x128x32xbf16> to vector<128x32xbf16>
    %cst_127 = arith.constant dense<0.000000e+00> : vector<16x32xf32>
    %334 = tpu.matmul %331, %333, %cst_127 {dimension_numbers = #tpu.dot_dimension_numbers<[1], [0], [0], [1], [0, 0, 1, 1], [], []>} : vector<16x128xbf16>, vector<128x32xbf16>, vector<16x32xf32> -> vector<16x32xf32>
    %c1_128 = arith.constant 1 : index
    %c0_129 = arith.constant 0 : index
    %c0_130 = arith.constant 0 : index
    %335 = vector.load %arg13[%c1_128, %c0_129, %c0_130] : memref<6x1x32xf32, #tpu.memory_space<vmem>>, vector<1x1x32xf32>
    %336 = vector.shape_cast %335 : vector<1x1x32xf32> to vector<1x32xf32>
    %337 = vector.broadcast %336 : vector<1x32xf32> to vector<16x32xf32>
    %338 = arith.addf %334, %337 : vector<16x32xf32>
    %339 = arith.addf %285, %338 : vector<16x32xf32>
    %c0_131 = arith.constant 0 : index
    %c0_132 = arith.constant 0 : index
    %340 = vector.load %arg18[%c0_131, %c0_132] : memref<16x32xf32, #tpu.memory_space<vmem>>, vector<16x32xf32>
    tpu.vector_store %arg18[%c0_131, %c0_132], %339 {strides = array<i32>} : memref<16x32xf32, #tpu.memory_space<vmem>>, vector<16x32xf32>,
    %c2 = arith.constant 2 : index
    %c0_133 = arith.constant 0 : index
    %c0_134 = arith.constant 0 : index
    %341 = vector.load %arg2[%c2, %c0_133, %c0_134] : memref<6x1x32xf32, #tpu.memory_space<vmem>>, vector<1x1x32xf32>
    %342 = vector.shape_cast %341 : vector<1x1x32xf32> to vector<1x32xf32>
    %c2_135 = arith.constant 2 : index
    %c0_136 = arith.constant 0 : index
    %c0_137 = arith.constant 0 : index
    %343 = vector.load %arg3[%c2_135, %c0_136, %c0_137] : memref<6x1x32xf32, #tpu.memory_space<vmem>>, vector<1x1x32xf32>
    %344 = vector.shape_cast %343 : vector<1x1x32xf32> to vector<1x32xf32>
    %cst_138 = arith.constant dense<0.000000e+00> : vector<16xf32>
    %345 = vector.multi_reduction <add>, %339, %cst_138 [1] : vector<16x32xf32> to vector<16xf32>
    %346 = vector.shape_cast %345 : vector<16xf32> to vector<16x1xf32>
    %cst_139 = arith.constant 3.200000e+01 : f32
    %347 = vector.broadcast %cst_139 : f32 to vector<16x1xf32>
    %348 = arith.divf %346, %347 : vector<16x1xf32>
    %349 = vector.broadcast %348 : vector<16x1xf32> to vector<16x32xf32>
    %350 = arith.subf %339, %349 : vector<16x32xf32>
    %351 = arith.mulf %350, %350 : vector<16x32xf32>
    %cst_140 = arith.constant dense<0.000000e+00> : vector<16xf32>
    %352 = vector.multi_reduction <add>, %351, %cst_140 [1] : vector<16x32xf32> to vector<16xf32>
    %353 = vector.shape_cast %352 : vector<16xf32> to vector<16x1xf32>
    %cst_141 = arith.constant 3.200000e+01 : f32
    %354 = vector.broadcast %cst_141 : f32 to vector<16x1xf32>
    %355 = arith.divf %353, %354 : vector<16x1xf32>
    %cst_142 = arith.constant 9.99999974E-6 : f32
    %356 = vector.broadcast %cst_142 : f32 to vector<16x1xf32>
    %357 = arith.addf %355, %356 : vector<16x1xf32>
    %358 = math.rsqrt %357 : vector<16x1xf32>
    %359 = vector.broadcast %358 : vector<16x1xf32> to vector<16x32xf32>
    %360 = arith.mulf %350, %359 : vector<16x32xf32>
    %361 = vector.broadcast %342 : vector<1x32xf32> to vector<16x32xf32>
    %362 = arith.mulf %360, %361 : vector<16x32xf32>
    %363 = vector.broadcast %344 : vector<1x32xf32> to vector<16x32xf32>
    %364 = arith.addf %362, %363 : vector<16x32xf32>
    %365 = arith.truncf %364 : vector<16x32xf32> to vector<16x32xbf16>
    %c2_143 = arith.constant 2 : index
    %c0_144 = arith.constant 0 : index
    %c0_145 = arith.constant 0 : index
    %366 = vector.load %arg4[%c2_143, %c0_144, %c0_145] : memref<6x32x96xbf16, #tpu.memory_space<vmem>>, vector<1x32x96xbf16>
    %367 = vector.shape_cast %366 : vector<1x32x96xbf16> to vector<32x96xbf16>
    %cst_146 = arith.constant dense<0.000000e+00> : vector<16x96xf32>
    %368 = tpu.matmul %365, %367, %cst_146 {dimension_numbers = #tpu.dot_dimension_numbers<[1], [0], [0], [1], [0, 0, 1, 1], [], []>} : vector<16x32xbf16>, vector<32x96xbf16>, vector<16x96xf32> -> vector<16x96xf32>
    %c2_147 = arith.constant 2 : index
    %c0_148 = arith.constant 0 : index
    %c0_149 = arith.constant 0 : index
    %369 = vector.load %arg5[%c2_147, %c0_148, %c0_149] : memref<6x1x96xf32, #tpu.memory_space<vmem>>, vector<1x1x96xf32>
    %370 = vector.shape_cast %369 : vector<1x1x96xf32> to vector<1x96xf32>
    %371 = vector.broadcast %370 : vector<1x96xf32> to vector<16x96xf32>
    %372 = arith.addf %368, %371 : vector<16x96xf32>
    %373 = vector.extract_strided_slice %372 {offsets = [0, 0], sizes = [16, 32], strides = [1, 1]} : vector<16x96xf32> to vector<16x32xf32>
    %cst_150 = arith.constant 0.353553385 : f32
    %374 = vector.broadcast %cst_150 : f32 to vector<16x32xf32>
    %375 = arith.mulf %373, %374 : vector<16x32xf32>
    %376 = arith.truncf %375 : vector<16x32xf32> to vector<16x32xbf16>
    %377 = vector.extract_strided_slice %372 {offsets = [0, 32], sizes = [16, 32], strides = [1, 1]} : vector<16x96xf32> to vector<16x32xf32>
    %378 = arith.truncf %377 : vector<16x32xf32> to vector<16x32xbf16>
    %379 = vector.extract_strided_slice %372 {offsets = [0, 64], sizes = [16, 32], strides = [1, 1]} : vector<16x96xf32> to vector<16x32xf32>
    %380 = arith.truncf %379 : vector<16x32xf32> to vector<16x32xbf16>
    %381 = vector.extract_strided_slice %376 {offsets = [0, 0], sizes = [16, 8], strides = [1, 1]} : vector<16x32xbf16> to vector<16x8xbf16>
    %382 = vector.extract_strided_slice %378 {offsets = [0, 0], sizes = [16, 8], strides = [1, 1]} : vector<16x32xbf16> to vector<16x8xbf16>
    %cst_151 = arith.constant dense<0.000000e+00> : vector<16x16xf32>
    %383 = tpu.matmul %381, %382, %cst_151 {dimension_numbers = #tpu.dot_dimension_numbers<[1], [1], [0], [0], [0, 0, 1, 0], [], []>} : vector<16x8xbf16>, vector<16x8xbf16>, vector<16x16xf32> -> vector<16x16xf32>
    %384 = arith.addf %383, %1 : vector<16x16xf32>
    %385 = vector.extract_strided_slice %376 {offsets = [0, 8], sizes = [16, 8], strides = [1, 1]} : vector<16x32xbf16> to vector<16x8xbf16>
    %386 = vector.extract_strided_slice %378 {offsets = [0, 8], sizes = [16, 8], strides = [1, 1]} : vector<16x32xbf16> to vector<16x8xbf16>
    %cst_152 = arith.constant dense<0.000000e+00> : vector<16x16xf32>
    %387 = tpu.matmul %385, %386, %cst_152 {dimension_numbers = #tpu.dot_dimension_numbers<[1], [1], [0], [0], [0, 0, 1, 0], [], []>} : vector<16x8xbf16>, vector<16x8xbf16>, vector<16x16xf32> -> vector<16x16xf32>
    %388 = arith.addf %387, %1 : vector<16x16xf32>
    %389 = vector.extract_strided_slice %376 {offsets = [0, 16], sizes = [16, 8], strides = [1, 1]} : vector<16x32xbf16> to vector<16x8xbf16>
    %390 = vector.extract_strided_slice %378 {offsets = [0, 16], sizes = [16, 8], strides = [1, 1]} : vector<16x32xbf16> to vector<16x8xbf16>
    %cst_153 = arith.constant dense<0.000000e+00> : vector<16x16xf32>
    %391 = tpu.matmul %389, %390, %cst_153 {dimension_numbers = #tpu.dot_dimension_numbers<[1], [1], [0], [0], [0, 0, 1, 0], [], []>} : vector<16x8xbf16>, vector<16x8xbf16>, vector<16x16xf32> -> vector<16x16xf32>
    %392 = arith.addf %391, %1 : vector<16x16xf32>
    %393 = vector.extract_strided_slice %376 {offsets = [0, 24], sizes = [16, 8], strides = [1, 1]} : vector<16x32xbf16> to vector<16x8xbf16>
    %394 = vector.extract_strided_slice %378 {offsets = [0, 24], sizes = [16, 8], strides = [1, 1]} : vector<16x32xbf16> to vector<16x8xbf16>
    %cst_154 = arith.constant dense<0.000000e+00> : vector<16x16xf32>
    %395 = tpu.matmul %393, %394, %cst_154 {dimension_numbers = #tpu.dot_dimension_numbers<[1], [1], [0], [0], [0, 0, 1, 0], [], []>} : vector<16x8xbf16>, vector<16x8xbf16>, vector<16x16xf32> -> vector<16x16xf32>
    %396 = arith.addf %395, %1 : vector<16x16xf32>
    %397 = vector.shape_cast %384 : vector<16x16xf32> to vector<1x16x16xf32>
    %398 = vector.shape_cast %388 : vector<16x16xf32> to vector<1x16x16xf32>
    %399 = vector.shape_cast %392 : vector<16x16xf32> to vector<1x16x16xf32>
    %400 = vector.shape_cast %396 : vector<16x16xf32> to vector<1x16x16xf32>
    %401 = tpu.concatenate %397, %398, %399, %400 in 0 : vector<1x16x16xf32>, vector<1x16x16xf32>, vector<1x16x16xf32>, vector<1x16x16xf32> -> vector<4x16x16xf32>
    %cst_155 = arith.constant dense<0xFF800000> : vector<4x16xf32>
    %402 = vector.multi_reduction <maximumf>, %401, %cst_155 [2] : vector<4x16x16xf32> to vector<4x16xf32>
    %403 = vector.shape_cast %402 : vector<4x16xf32> to vector<4x16x1xf32>
    %404 = vector.broadcast %403 : vector<4x16x1xf32> to vector<4x16x16xf32>
    %405 = arith.subf %401, %404 : vector<4x16x16xf32>
    %406 = math.exp %405 : vector<4x16x16xf32>
    %cst_156 = arith.constant dense<0.000000e+00> : vector<4x16xf32>
    %407 = vector.multi_reduction <add>, %406, %cst_156 [2] : vector<4x16x16xf32> to vector<4x16xf32>
    %408 = vector.shape_cast %407 : vector<4x16xf32> to vector<4x16x1xf32>
    %409 = tpu.reciprocal %408 {approx = true} : vector<4x16x1xf32> -> vector<4x16x1xf32>
    %410 = vector.extract_strided_slice %406 {offsets = [0, 0, 0], sizes = [1, 16, 16], strides = [1, 1, 1]} : vector<4x16x16xf32> to vector<1x16x16xf32>
    %411 = vector.shape_cast %410 : vector<1x16x16xf32> to vector<16x16xf32>
    %412 = arith.truncf %411 : vector<16x16xf32> to vector<16x16xbf16>
    %413 = vector.extract_strided_slice %380 {offsets = [0, 0], sizes = [16, 8], strides = [1, 1]} : vector<16x32xbf16> to vector<16x8xbf16>
    %cst_157 = arith.constant dense<0.000000e+00> : vector<16x8xf32>
    %414 = tpu.matmul %412, %413, %cst_157 {dimension_numbers = #tpu.dot_dimension_numbers<[1], [0], [0], [1], [0, 0, 1, 1], [], []>} : vector<16x16xbf16>, vector<16x8xbf16>, vector<16x8xf32> -> vector<16x8xf32>
    %415 = vector.extract_strided_slice %409 {offsets = [0, 0, 0], sizes = [1, 16, 1], strides = [1, 1, 1]} : vector<4x16x1xf32> to vector<1x16x1xf32>
    %416 = vector.shape_cast %415 : vector<1x16x1xf32> to vector<16x1xf32>
    %417 = vector.broadcast %416 : vector<16x1xf32> to vector<16x8xf32>
    %418 = arith.mulf %414, %417 : vector<16x8xf32>
    %419 = vector.extract_strided_slice %406 {offsets = [1, 0, 0], sizes = [1, 16, 16], strides = [1, 1, 1]} : vector<4x16x16xf32> to vector<1x16x16xf32>
    %420 = vector.shape_cast %419 : vector<1x16x16xf32> to vector<16x16xf32>
    %421 = arith.truncf %420 : vector<16x16xf32> to vector<16x16xbf16>
    %422 = vector.extract_strided_slice %380 {offsets = [0, 8], sizes = [16, 8], strides = [1, 1]} : vector<16x32xbf16> to vector<16x8xbf16>
    %cst_158 = arith.constant dense<0.000000e+00> : vector<16x8xf32>
    %423 = tpu.matmul %421, %422, %cst_158 {dimension_numbers = #tpu.dot_dimension_numbers<[1], [0], [0], [1], [0, 0, 1, 1], [], []>} : vector<16x16xbf16>, vector<16x8xbf16>, vector<16x8xf32> -> vector<16x8xf32>
    %424 = vector.extract_strided_slice %409 {offsets = [1, 0, 0], sizes = [1, 16, 1], strides = [1, 1, 1]} : vector<4x16x1xf32> to vector<1x16x1xf32>
    %425 = vector.shape_cast %424 : vector<1x16x1xf32> to vector<16x1xf32>
    %426 = vector.broadcast %425 : vector<16x1xf32> to vector<16x8xf32>
    %427 = arith.mulf %423, %426 : vector<16x8xf32>
    %428 = vector.extract_strided_slice %406 {offsets = [2, 0, 0], sizes = [1, 16, 16], strides = [1, 1, 1]} : vector<4x16x16xf32> to vector<1x16x16xf32>
    %429 = vector.shape_cast %428 : vector<1x16x16xf32> to vector<16x16xf32>
    %430 = arith.truncf %429 : vector<16x16xf32> to vector<16x16xbf16>
    %431 = vector.extract_strided_slice %380 {offsets = [0, 16], sizes = [16, 8], strides = [1, 1]} : vector<16x32xbf16> to vector<16x8xbf16>
    %cst_159 = arith.constant dense<0.000000e+00> : vector<16x8xf32>
    %432 = tpu.matmul %430, %431, %cst_159 {dimension_numbers = #tpu.dot_dimension_numbers<[1], [0], [0], [1], [0, 0, 1, 1], [], []>} : vector<16x16xbf16>, vector<16x8xbf16>, vector<16x8xf32> -> vector<16x8xf32>
    %433 = vector.extract_strided_slice %409 {offsets = [2, 0, 0], sizes = [1, 16, 1], strides = [1, 1, 1]} : vector<4x16x1xf32> to vector<1x16x1xf32>
    %434 = vector.shape_cast %433 : vector<1x16x1xf32> to vector<16x1xf32>
    %435 = vector.broadcast %434 : vector<16x1xf32> to vector<16x8xf32>
    %436 = arith.mulf %432, %435 : vector<16x8xf32>
    %437 = vector.extract_strided_slice %406 {offsets = [3, 0, 0], sizes = [1, 16, 16], strides = [1, 1, 1]} : vector<4x16x16xf32> to vector<1x16x16xf32>
    %438 = vector.shape_cast %437 : vector<1x16x16xf32> to vector<16x16xf32>
    %439 = arith.truncf %438 : vector<16x16xf32> to vector<16x16xbf16>
    %440 = vector.extract_strided_slice %380 {offsets = [0, 24], sizes = [16, 8], strides = [1, 1]} : vector<16x32xbf16> to vector<16x8xbf16>
    %cst_160 = arith.constant dense<0.000000e+00> : vector<16x8xf32>
    %441 = tpu.matmul %439, %440, %cst_160 {dimension_numbers = #tpu.dot_dimension_numbers<[1], [0], [0], [1], [0, 0, 1, 1], [], []>} : vector<16x16xbf16>, vector<16x8xbf16>, vector<16x8xf32> -> vector<16x8xf32>
    %442 = vector.extract_strided_slice %409 {offsets = [3, 0, 0], sizes = [1, 16, 1], strides = [1, 1, 1]} : vector<4x16x1xf32> to vector<1x16x1xf32>
    %443 = vector.shape_cast %442 : vector<1x16x1xf32> to vector<16x1xf32>
    %444 = vector.broadcast %443 : vector<16x1xf32> to vector<16x8xf32>
    %445 = arith.mulf %441, %444 : vector<16x8xf32>
    %446 = tpu.concatenate %418, %427, %436, %445 in 1 : vector<16x8xf32>, vector<16x8xf32>, vector<16x8xf32>, vector<16x8xf32> -> vector<16x32xf32>
    %447 = arith.truncf %446 : vector<16x32xf32> to vector<16x32xbf16>
    %c2_161 = arith.constant 2 : index
    %c0_162 = arith.constant 0 : index
    %c0_163 = arith.constant 0 : index
    %448 = vector.load %arg6[%c2_161, %c0_162, %c0_163] : memref<6x32x32xbf16, #tpu.memory_space<vmem>>, vector<1x32x32xbf16>
    %449 = vector.shape_cast %448 : vector<1x32x32xbf16> to vector<32x32xbf16>
    %cst_164 = arith.constant dense<0.000000e+00> : vector<16x32xf32>
    %450 = tpu.matmul %447, %449, %cst_164 {dimension_numbers = #tpu.dot_dimension_numbers<[1], [0], [0], [1], [0, 0, 1, 1], [], []>} : vector<16x32xbf16>, vector<32x32xbf16>, vector<16x32xf32> -> vector<16x32xf32>
    %c2_165 = arith.constant 2 : index
    %c0_166 = arith.constant 0 : index
    %c0_167 = arith.constant 0 : index
    %451 = vector.load %arg7[%c2_165, %c0_166, %c0_167] : memref<6x1x32xf32, #tpu.memory_space<vmem>>, vector<1x1x32xf32>
    %452 = vector.shape_cast %451 : vector<1x1x32xf32> to vector<1x32xf32>
    %453 = vector.broadcast %452 : vector<1x32xf32> to vector<16x32xf32>
    %454 = arith.addf %450, %453 : vector<16x32xf32>
    %455 = arith.addf %339, %454 : vector<16x32xf32>
    %c2_168 = arith.constant 2 : index
    %c0_169 = arith.constant 0 : index
    %c0_170 = arith.constant 0 : index
    %456 = vector.load %arg8[%c2_168, %c0_169, %c0_170] : memref<6x1x32xf32, #tpu.memory_space<vmem>>, vector<1x1x32xf32>
    %457 = vector.shape_cast %456 : vector<1x1x32xf32> to vector<1x32xf32>
    %c2_171 = arith.constant 2 : index
    %c0_172 = arith.constant 0 : index
    %c0_173 = arith.constant 0 : index
    %458 = vector.load %arg9[%c2_171, %c0_172, %c0_173] : memref<6x1x32xf32, #tpu.memory_space<vmem>>, vector<1x1x32xf32>
    %459 = vector.shape_cast %458 : vector<1x1x32xf32> to vector<1x32xf32>
    %cst_174 = arith.constant dense<0.000000e+00> : vector<16xf32>
    %460 = vector.multi_reduction <add>, %455, %cst_174 [1] : vector<16x32xf32> to vector<16xf32>
    %461 = vector.shape_cast %460 : vector<16xf32> to vector<16x1xf32>
    %cst_175 = arith.constant 3.200000e+01 : f32
    %462 = vector.broadcast %cst_175 : f32 to vector<16x1xf32>
    %463 = arith.divf %461, %462 : vector<16x1xf32>
    %464 = vector.broadcast %463 : vector<16x1xf32> to vector<16x32xf32>
    %465 = arith.subf %455, %464 : vector<16x32xf32>
    %466 = arith.mulf %465, %465 : vector<16x32xf32>
    %cst_176 = arith.constant dense<0.000000e+00> : vector<16xf32>
    %467 = vector.multi_reduction <add>, %466, %cst_176 [1] : vector<16x32xf32> to vector<16xf32>
    %468 = vector.shape_cast %467 : vector<16xf32> to vector<16x1xf32>
    %cst_177 = arith.constant 3.200000e+01 : f32
    %469 = vector.broadcast %cst_177 : f32 to vector<16x1xf32>
    %470 = arith.divf %468, %469 : vector<16x1xf32>
    %cst_178 = arith.constant 9.99999974E-6 : f32
    %471 = vector.broadcast %cst_178 : f32 to vector<16x1xf32>
    %472 = arith.addf %470, %471 : vector<16x1xf32>
    %473 = math.rsqrt %472 : vector<16x1xf32>
    %474 = vector.broadcast %473 : vector<16x1xf32> to vector<16x32xf32>
    %475 = arith.mulf %465, %474 : vector<16x32xf32>
    %476 = vector.broadcast %457 : vector<1x32xf32> to vector<16x32xf32>
    %477 = arith.mulf %475, %476 : vector<16x32xf32>
    %478 = vector.broadcast %459 : vector<1x32xf32> to vector<16x32xf32>
    %479 = arith.addf %477, %478 : vector<16x32xf32>
    %480 = arith.truncf %479 : vector<16x32xf32> to vector<16x32xbf16>
    %c2_179 = arith.constant 2 : index
    %c0_180 = arith.constant 0 : index
    %c0_181 = arith.constant 0 : index
    %481 = vector.load %arg10[%c2_179, %c0_180, %c0_181] : memref<6x32x128xbf16, #tpu.memory_space<vmem>>, vector<1x32x128xbf16>
    %482 = vector.shape_cast %481 : vector<1x32x128xbf16> to vector<32x128xbf16>
    %cst_182 = arith.constant dense<0.000000e+00> : vector<16x128xf32>
    %483 = tpu.matmul %480, %482, %cst_182 {dimension_numbers = #tpu.dot_dimension_numbers<[1], [0], [0], [1], [0, 0, 1, 1], [], []>} : vector<16x32xbf16>, vector<32x128xbf16>, vector<16x128xf32> -> vector<16x128xf32>
    %c2_183 = arith.constant 2 : index
    %c0_184 = arith.constant 0 : index
    %c0_185 = arith.constant 0 : index
    %484 = vector.load %arg11[%c2_183, %c0_184, %c0_185] : memref<6x1x128xf32, #tpu.memory_space<vmem>>, vector<1x1x128xf32>
    %485 = vector.shape_cast %484 : vector<1x1x128xf32> to vector<1x128xf32>
    %486 = vector.broadcast %485 : vector<1x128xf32> to vector<16x128xf32>
    %487 = arith.addf %483, %486 : vector<16x128xf32>
    %cst_186 = arith.constant 5.000000e-01 : f32
    %488 = vector.broadcast %cst_186 : f32 to vector<16x128xf32>
    %489 = arith.mulf %488, %487 : vector<16x128xf32>
    %cst_187 = arith.constant 4.471500e-02 : f32
    %490 = vector.broadcast %cst_187 : f32 to vector<16x128xf32>
    %491 = arith.mulf %490, %487 : vector<16x128xf32>
    %492 = arith.mulf %491, %487 : vector<16x128xf32>
    %493 = arith.mulf %492, %487 : vector<16x128xf32>
    %494 = arith.addf %487, %493 : vector<16x128xf32>
    %cst_188 = arith.constant 0.797884583 : f32
    %495 = vector.broadcast %cst_188 : f32 to vector<16x128xf32>
    %496 = arith.mulf %495, %494 : vector<16x128xf32>
    %497 = math.tanh %496 : vector<16x128xf32>
    %cst_189 = arith.constant 1.000000e+00 : f32
    %498 = vector.broadcast %cst_189 : f32 to vector<16x128xf32>
    %499 = arith.addf %498, %497 : vector<16x128xf32>
    %500 = arith.mulf %489, %499 : vector<16x128xf32>
    %501 = arith.truncf %500 : vector<16x128xf32> to vector<16x128xbf16>
    %c2_190 = arith.constant 2 : index
    %c0_191 = arith.constant 0 : index
    %c0_192 = arith.constant 0 : index
    %502 = vector.load %arg12[%c2_190, %c0_191, %c0_192] : memref<6x128x32xbf16, #tpu.memory_space<vmem>>, vector<1x128x32xbf16>
    %503 = vector.shape_cast %502 : vector<1x128x32xbf16> to vector<128x32xbf16>
    %cst_193 = arith.constant dense<0.000000e+00> : vector<16x32xf32>
    %504 = tpu.matmul %501, %503, %cst_193 {dimension_numbers = #tpu.dot_dimension_numbers<[1], [0], [0], [1], [0, 0, 1, 1], [], []>} : vector<16x128xbf16>, vector<128x32xbf16>, vector<16x32xf32> -> vector<16x32xf32>
    %c2_194 = arith.constant 2 : index
    %c0_195 = arith.constant 0 : index
    %c0_196 = arith.constant 0 : index
    %505 = vector.load %arg13[%c2_194, %c0_195, %c0_196] : memref<6x1x32xf32, #tpu.memory_space<vmem>>, vector<1x1x32xf32>
    %506 = vector.shape_cast %505 : vector<1x1x32xf32> to vector<1x32xf32>
    %507 = vector.broadcast %506 : vector<1x32xf32> to vector<16x32xf32>
    %508 = arith.addf %504, %507 : vector<16x32xf32>
    %509 = arith.addf %455, %508 : vector<16x32xf32>
    %c3 = arith.constant 3 : index
    %c0_197 = arith.constant 0 : index
    %c0_198 = arith.constant 0 : index
    %510 = vector.load %arg2[%c3, %c0_197, %c0_198] : memref<6x1x32xf32, #tpu.memory_space<vmem>>, vector<1x1x32xf32>
    %511 = vector.shape_cast %510 : vector<1x1x32xf32> to vector<1x32xf32>
    %c3_199 = arith.constant 3 : index
    %c0_200 = arith.constant 0 : index
    %c0_201 = arith.constant 0 : index
    %512 = vector.load %arg3[%c3_199, %c0_200, %c0_201] : memref<6x1x32xf32, #tpu.memory_space<vmem>>, vector<1x1x32xf32>
    %513 = vector.shape_cast %512 : vector<1x1x32xf32> to vector<1x32xf32>
    %cst_202 = arith.constant dense<0.000000e+00> : vector<16xf32>
    %514 = vector.multi_reduction <add>, %339, %cst_202 [1] : vector<16x32xf32> to vector<16xf32>
    %515 = vector.shape_cast %514 : vector<16xf32> to vector<16x1xf32>
    %cst_203 = arith.constant 3.200000e+01 : f32
    %516 = vector.broadcast %cst_203 : f32 to vector<16x1xf32>
    %517 = arith.divf %515, %516 : vector<16x1xf32>
    %518 = vector.broadcast %517 : vector<16x1xf32> to vector<16x32xf32>
    %519 = arith.subf %339, %518 : vector<16x32xf32>
    %520 = arith.mulf %519, %519 : vector<16x32xf32>
    %cst_204 = arith.constant dense<0.000000e+00> : vector<16xf32>
    %521 = vector.multi_reduction <add>, %520, %cst_204 [1] : vector<16x32xf32> to vector<16xf32>
    %522 = vector.shape_cast %521 : vector<16xf32> to vector<16x1xf32>
    %cst_205 = arith.constant 3.200000e+01 : f32
    %523 = vector.broadcast %cst_205 : f32 to vector<16x1xf32>
    %524 = arith.divf %522, %523 : vector<16x1xf32>
    %cst_206 = arith.constant 9.99999974E-6 : f32
    %525 = vector.broadcast %cst_206 : f32 to vector<16x1xf32>
    %526 = arith.addf %524, %525 : vector<16x1xf32>
    %527 = math.rsqrt %526 : vector<16x1xf32>
    %528 = vector.broadcast %527 : vector<16x1xf32> to vector<16x32xf32>
    %529 = arith.mulf %519, %528 : vector<16x32xf32>
    %530 = vector.broadcast %511 : vector<1x32xf32> to vector<16x32xf32>
    %531 = arith.mulf %529, %530 : vector<16x32xf32>
    %532 = vector.broadcast %513 : vector<1x32xf32> to vector<16x32xf32>
    %533 = arith.addf %531, %532 : vector<16x32xf32>
    %534 = arith.truncf %533 : vector<16x32xf32> to vector<16x32xbf16>
    %c3_207 = arith.constant 3 : index
    %c0_208 = arith.constant 0 : index
    %c0_209 = arith.constant 0 : index
    %535 = vector.load %arg4[%c3_207, %c0_208, %c0_209] : memref<6x32x96xbf16, #tpu.memory_space<vmem>>, vector<1x32x96xbf16>
    %536 = vector.shape_cast %535 : vector<1x32x96xbf16> to vector<32x96xbf16>
    %cst_210 = arith.constant dense<0.000000e+00> : vector<16x96xf32>
    %537 = tpu.matmul %534, %536, %cst_210 {dimension_numbers = #tpu.dot_dimension_numbers<[1], [0], [0], [1], [0, 0, 1, 1], [], []>} : vector<16x32xbf16>, vector<32x96xbf16>, vector<16x96xf32> -> vector<16x96xf32>
    %c3_211 = arith.constant 3 : index
    %c0_212 = arith.constant 0 : index
    %c0_213 = arith.constant 0 : index
    %538 = vector.load %arg5[%c3_211, %c0_212, %c0_213] : memref<6x1x96xf32, #tpu.memory_space<vmem>>, vector<1x1x96xf32>
    %539 = vector.shape_cast %538 : vector<1x1x96xf32> to vector<1x96xf32>
    %540 = vector.broadcast %539 : vector<1x96xf32> to vector<16x96xf32>
    %541 = arith.addf %537, %540 : vector<16x96xf32>
    %542 = vector.extract_strided_slice %541 {offsets = [0, 0], sizes = [16, 32], strides = [1, 1]} : vector<16x96xf32> to vector<16x32xf32>
    %cst_214 = arith.constant 0.353553385 : f32
    %543 = vector.broadcast %cst_214 : f32 to vector<16x32xf32>
    %544 = arith.mulf %542, %543 : vector<16x32xf32>
    %545 = arith.truncf %544 : vector<16x32xf32> to vector<16x32xbf16>
    %546 = vector.extract_strided_slice %541 {offsets = [0, 32], sizes = [16, 32], strides = [1, 1]} : vector<16x96xf32> to vector<16x32xf32>
    %547 = arith.truncf %546 : vector<16x32xf32> to vector<16x32xbf16>
    %548 = vector.extract_strided_slice %541 {offsets = [0, 64], sizes = [16, 32], strides = [1, 1]} : vector<16x96xf32> to vector<16x32xf32>
    %549 = arith.truncf %548 : vector<16x32xf32> to vector<16x32xbf16>
    %550 = vector.extract_strided_slice %545 {offsets = [0, 0], sizes = [16, 8], strides = [1, 1]} : vector<16x32xbf16> to vector<16x8xbf16>
    %551 = vector.extract_strided_slice %547 {offsets = [0, 0], sizes = [16, 8], strides = [1, 1]} : vector<16x32xbf16> to vector<16x8xbf16>
    %cst_215 = arith.constant dense<0.000000e+00> : vector<16x16xf32>
    %552 = tpu.matmul %550, %551, %cst_215 {dimension_numbers = #tpu.dot_dimension_numbers<[1], [1], [0], [0], [0, 0, 1, 0], [], []>} : vector<16x8xbf16>, vector<16x8xbf16>, vector<16x16xf32> -> vector<16x16xf32>
    %553 = arith.addf %552, %1 : vector<16x16xf32>
    %554 = vector.extract_strided_slice %545 {offsets = [0, 8], sizes = [16, 8], strides = [1, 1]} : vector<16x32xbf16> to vector<16x8xbf16>
    %555 = vector.extract_strided_slice %547 {offsets = [0, 8], sizes = [16, 8], strides = [1, 1]} : vector<16x32xbf16> to vector<16x8xbf16>
    %cst_216 = arith.constant dense<0.000000e+00> : vector<16x16xf32>
    %556 = tpu.matmul %554, %555, %cst_216 {dimension_numbers = #tpu.dot_dimension_numbers<[1], [1], [0], [0], [0, 0, 1, 0], [], []>} : vector<16x8xbf16>, vector<16x8xbf16>, vector<16x16xf32> -> vector<16x16xf32>
    %557 = arith.addf %556, %1 : vector<16x16xf32>
    %558 = vector.extract_strided_slice %545 {offsets = [0, 16], sizes = [16, 8], strides = [1, 1]} : vector<16x32xbf16> to vector<16x8xbf16>
    %559 = vector.extract_strided_slice %547 {offsets = [0, 16], sizes = [16, 8], strides = [1, 1]} : vector<16x32xbf16> to vector<16x8xbf16>
    %cst_217 = arith.constant dense<0.000000e+00> : vector<16x16xf32>
    %560 = tpu.matmul %558, %559, %cst_217 {dimension_numbers = #tpu.dot_dimension_numbers<[1], [1], [0], [0], [0, 0, 1, 0], [], []>} : vector<16x8xbf16>, vector<16x8xbf16>, vector<16x16xf32> -> vector<16x16xf32>
    %561 = arith.addf %560, %1 : vector<16x16xf32>
    %562 = vector.extract_strided_slice %545 {offsets = [0, 24], sizes = [16, 8], strides = [1, 1]} : vector<16x32xbf16> to vector<16x8xbf16>
    %563 = vector.extract_strided_slice %547 {offsets = [0, 24], sizes = [16, 8], strides = [1, 1]} : vector<16x32xbf16> to vector<16x8xbf16>
    %cst_218 = arith.constant dense<0.000000e+00> : vector<16x16xf32>
    %564 = tpu.matmul %562, %563, %cst_218 {dimension_numbers = #tpu.dot_dimension_numbers<[1], [1], [0], [0], [0, 0, 1, 0], [], []>} : vector<16x8xbf16>, vector<16x8xbf16>, vector<16x16xf32> -> vector<16x16xf32>
    %565 = arith.addf %564, %1 : vector<16x16xf32>
    %566 = vector.shape_cast %553 : vector<16x16xf32> to vector<1x16x16xf32>
    %567 = vector.shape_cast %557 : vector<16x16xf32> to vector<1x16x16xf32>
    %568 = vector.shape_cast %561 : vector<16x16xf32> to vector<1x16x16xf32>
    %569 = vector.shape_cast %565 : vector<16x16xf32> to vector<1x16x16xf32>
    %570 = tpu.concatenate %566, %567, %568, %569 in 0 : vector<1x16x16xf32>, vector<1x16x16xf32>, vector<1x16x16xf32>, vector<1x16x16xf32> -> vector<4x16x16xf32>
    %cst_219 = arith.constant dense<0xFF800000> : vector<4x16xf32>
    %571 = vector.multi_reduction <maximumf>, %570, %cst_219 [2] : vector<4x16x16xf32> to vector<4x16xf32>
    %572 = vector.shape_cast %571 : vector<4x16xf32> to vector<4x16x1xf32>
    %573 = vector.broadcast %572 : vector<4x16x1xf32> to vector<4x16x16xf32>
    %574 = arith.subf %570, %573 : vector<4x16x16xf32>
    %575 = math.exp %574 : vector<4x16x16xf32>
    %cst_220 = arith.constant dense<0.000000e+00> : vector<4x16xf32>
    %576 = vector.multi_reduction <add>, %575, %cst_220 [2] : vector<4x16x16xf32> to vector<4x16xf32>
    %577 = vector.shape_cast %576 : vector<4x16xf32> to vector<4x16x1xf32>
    %578 = tpu.reciprocal %577 {approx = true} : vector<4x16x1xf32> -> vector<4x16x1xf32>
    %579 = vector.extract_strided_slice %575 {offsets = [0, 0, 0], sizes = [1, 16, 16], strides = [1, 1, 1]} : vector<4x16x16xf32> to vector<1x16x16xf32>
    %580 = vector.shape_cast %579 : vector<1x16x16xf32> to vector<16x16xf32>
    %581 = arith.truncf %580 : vector<16x16xf32> to vector<16x16xbf16>
    %582 = vector.extract_strided_slice %549 {offsets = [0, 0], sizes = [16, 8], strides = [1, 1]} : vector<16x32xbf16> to vector<16x8xbf16>
    %cst_221 = arith.constant dense<0.000000e+00> : vector<16x8xf32>
    %583 = tpu.matmul %581, %582, %cst_221 {dimension_numbers = #tpu.dot_dimension_numbers<[1], [0], [0], [1], [0, 0, 1, 1], [], []>} : vector<16x16xbf16>, vector<16x8xbf16>, vector<16x8xf32> -> vector<16x8xf32>
    %584 = vector.extract_strided_slice %578 {offsets = [0, 0, 0], sizes = [1, 16, 1], strides = [1, 1, 1]} : vector<4x16x1xf32> to vector<1x16x1xf32>
    %585 = vector.shape_cast %584 : vector<1x16x1xf32> to vector<16x1xf32>
    %586 = vector.broadcast %585 : vector<16x1xf32> to vector<16x8xf32>
    %587 = arith.mulf %583, %586 : vector<16x8xf32>
    %588 = vector.extract_strided_slice %575 {offsets = [1, 0, 0], sizes = [1, 16, 16], strides = [1, 1, 1]} : vector<4x16x16xf32> to vector<1x16x16xf32>
    %589 = vector.shape_cast %588 : vector<1x16x16xf32> to vector<16x16xf32>
    %590 = arith.truncf %589 : vector<16x16xf32> to vector<16x16xbf16>
    %591 = vector.extract_strided_slice %549 {offsets = [0, 8], sizes = [16, 8], strides = [1, 1]} : vector<16x32xbf16> to vector<16x8xbf16>
    %cst_222 = arith.constant dense<0.000000e+00> : vector<16x8xf32>
    %592 = tpu.matmul %590, %591, %cst_222 {dimension_numbers = #tpu.dot_dimension_numbers<[1], [0], [0], [1], [0, 0, 1, 1], [], []>} : vector<16x16xbf16>, vector<16x8xbf16>, vector<16x8xf32> -> vector<16x8xf32>
    %593 = vector.extract_strided_slice %578 {offsets = [1, 0, 0], sizes = [1, 16, 1], strides = [1, 1, 1]} : vector<4x16x1xf32> to vector<1x16x1xf32>
    %594 = vector.shape_cast %593 : vector<1x16x1xf32> to vector<16x1xf32>
    %595 = vector.broadcast %594 : vector<16x1xf32> to vector<16x8xf32>
    %596 = arith.mulf %592, %595 : vector<16x8xf32>
    %597 = vector.extract_strided_slice %575 {offsets = [2, 0, 0], sizes = [1, 16, 16], strides = [1, 1, 1]} : vector<4x16x16xf32> to vector<1x16x16xf32>
    %598 = vector.shape_cast %597 : vector<1x16x16xf32> to vector<16x16xf32>
    %599 = arith.truncf %598 : vector<16x16xf32> to vector<16x16xbf16>
    %600 = vector.extract_strided_slice %549 {offsets = [0, 16], sizes = [16, 8], strides = [1, 1]} : vector<16x32xbf16> to vector<16x8xbf16>
    %cst_223 = arith.constant dense<0.000000e+00> : vector<16x8xf32>
    %601 = tpu.matmul %599, %600, %cst_223 {dimension_numbers = #tpu.dot_dimension_numbers<[1], [0], [0], [1], [0, 0, 1, 1], [], []>} : vector<16x16xbf16>, vector<16x8xbf16>, vector<16x8xf32> -> vector<16x8xf32>
    %602 = vector.extract_strided_slice %578 {offsets = [2, 0, 0], sizes = [1, 16, 1], strides = [1, 1, 1]} : vector<4x16x1xf32> to vector<1x16x1xf32>
    %603 = vector.shape_cast %602 : vector<1x16x1xf32> to vector<16x1xf32>
    %604 = vector.broadcast %603 : vector<16x1xf32> to vector<16x8xf32>
    %605 = arith.mulf %601, %604 : vector<16x8xf32>
    %606 = vector.extract_strided_slice %575 {offsets = [3, 0, 0], sizes = [1, 16, 16], strides = [1, 1, 1]} : vector<4x16x16xf32> to vector<1x16x16xf32>
    %607 = vector.shape_cast %606 : vector<1x16x16xf32> to vector<16x16xf32>
    %608 = arith.truncf %607 : vector<16x16xf32> to vector<16x16xbf16>
    %609 = vector.extract_strided_slice %549 {offsets = [0, 24], sizes = [16, 8], strides = [1, 1]} : vector<16x32xbf16> to vector<16x8xbf16>
    %cst_224 = arith.constant dense<0.000000e+00> : vector<16x8xf32>
    %610 = tpu.matmul %608, %609, %cst_224 {dimension_numbers = #tpu.dot_dimension_numbers<[1], [0], [0], [1], [0, 0, 1, 1], [], []>} : vector<16x16xbf16>, vector<16x8xbf16>, vector<16x8xf32> -> vector<16x8xf32>
    %611 = vector.extract_strided_slice %578 {offsets = [3, 0, 0], sizes = [1, 16, 1], strides = [1, 1, 1]} : vector<4x16x1xf32> to vector<1x16x1xf32>
    %612 = vector.shape_cast %611 : vector<1x16x1xf32> to vector<16x1xf32>
    %613 = vector.broadcast %612 : vector<16x1xf32> to vector<16x8xf32>
    %614 = arith.mulf %610, %613 : vector<16x8xf32>
    %615 = tpu.concatenate %587, %596, %605, %614 in 1 : vector<16x8xf32>, vector<16x8xf32>, vector<16x8xf32>, vector<16x8xf32> -> vector<16x32xf32>
    %616 = arith.truncf %615 : vector<16x32xf32> to vector<16x32xbf16>
    %c3_225 = arith.constant 3 : index
    %c0_226 = arith.constant 0 : index
    %c0_227 = arith.constant 0 : index
    %617 = vector.load %arg6[%c3_225, %c0_226, %c0_227] : memref<6x32x32xbf16, #tpu.memory_space<vmem>>, vector<1x32x32xbf16>
    %618 = vector.shape_cast %617 : vector<1x32x32xbf16> to vector<32x32xbf16>
    %cst_228 = arith.constant dense<0.000000e+00> : vector<16x32xf32>
    %619 = tpu.matmul %616, %618, %cst_228 {dimension_numbers = #tpu.dot_dimension_numbers<[1], [0], [0], [1], [0, 0, 1, 1], [], []>} : vector<16x32xbf16>, vector<32x32xbf16>, vector<16x32xf32> -> vector<16x32xf32>
    %c3_229 = arith.constant 3 : index
    %c0_230 = arith.constant 0 : index
    %c0_231 = arith.constant 0 : index
    %620 = vector.load %arg7[%c3_229, %c0_230, %c0_231] : memref<6x1x32xf32, #tpu.memory_space<vmem>>, vector<1x1x32xf32>
    %621 = vector.shape_cast %620 : vector<1x1x32xf32> to vector<1x32xf32>
    %622 = vector.broadcast %621 : vector<1x32xf32> to vector<16x32xf32>
    %623 = arith.addf %619, %622 : vector<16x32xf32>
    %624 = arith.addf %339, %623 : vector<16x32xf32>
    %c3_232 = arith.constant 3 : index
    %c0_233 = arith.constant 0 : index
    %c0_234 = arith.constant 0 : index
    %625 = vector.load %arg8[%c3_232, %c0_233, %c0_234] : memref<6x1x32xf32, #tpu.memory_space<vmem>>, vector<1x1x32xf32>
    %626 = vector.shape_cast %625 : vector<1x1x32xf32> to vector<1x32xf32>
    %c3_235 = arith.constant 3 : index
    %c0_236 = arith.constant 0 : index
    %c0_237 = arith.constant 0 : index
    %627 = vector.load %arg9[%c3_235, %c0_236, %c0_237] : memref<6x1x32xf32, #tpu.memory_space<vmem>>, vector<1x1x32xf32>
    %628 = vector.shape_cast %627 : vector<1x1x32xf32> to vector<1x32xf32>
    %cst_238 = arith.constant dense<0.000000e+00> : vector<16xf32>
    %629 = vector.multi_reduction <add>, %624, %cst_238 [1] : vector<16x32xf32> to vector<16xf32>
    %630 = vector.shape_cast %629 : vector<16xf32> to vector<16x1xf32>
    %cst_239 = arith.constant 3.200000e+01 : f32
    %631 = vector.broadcast %cst_239 : f32 to vector<16x1xf32>
    %632 = arith.divf %630, %631 : vector<16x1xf32>
    %633 = vector.broadcast %632 : vector<16x1xf32> to vector<16x32xf32>
    %634 = arith.subf %624, %633 : vector<16x32xf32>
    %635 = arith.mulf %634, %634 : vector<16x32xf32>
    %cst_240 = arith.constant dense<0.000000e+00> : vector<16xf32>
    %636 = vector.multi_reduction <add>, %635, %cst_240 [1] : vector<16x32xf32> to vector<16xf32>
    %637 = vector.shape_cast %636 : vector<16xf32> to vector<16x1xf32>
    %cst_241 = arith.constant 3.200000e+01 : f32
    %638 = vector.broadcast %cst_241 : f32 to vector<16x1xf32>
    %639 = arith.divf %637, %638 : vector<16x1xf32>
    %cst_242 = arith.constant 9.99999974E-6 : f32
    %640 = vector.broadcast %cst_242 : f32 to vector<16x1xf32>
    %641 = arith.addf %639, %640 : vector<16x1xf32>
    %642 = math.rsqrt %641 : vector<16x1xf32>
    %643 = vector.broadcast %642 : vector<16x1xf32> to vector<16x32xf32>
    %644 = arith.mulf %634, %643 : vector<16x32xf32>
    %645 = vector.broadcast %626 : vector<1x32xf32> to vector<16x32xf32>
    %646 = arith.mulf %644, %645 : vector<16x32xf32>
    %647 = vector.broadcast %628 : vector<1x32xf32> to vector<16x32xf32>
    %648 = arith.addf %646, %647 : vector<16x32xf32>
    %649 = arith.truncf %648 : vector<16x32xf32> to vector<16x32xbf16>
    %c3_243 = arith.constant 3 : index
    %c0_244 = arith.constant 0 : index
    %c0_245 = arith.constant 0 : index
    %650 = vector.load %arg10[%c3_243, %c0_244, %c0_245] : memref<6x32x128xbf16, #tpu.memory_space<vmem>>, vector<1x32x128xbf16>
    %651 = vector.shape_cast %650 : vector<1x32x128xbf16> to vector<32x128xbf16>
    %cst_246 = arith.constant dense<0.000000e+00> : vector<16x128xf32>
    %652 = tpu.matmul %649, %651, %cst_246 {dimension_numbers = #tpu.dot_dimension_numbers<[1], [0], [0], [1], [0, 0, 1, 1], [], []>} : vector<16x32xbf16>, vector<32x128xbf16>, vector<16x128xf32> -> vector<16x128xf32>
    %c3_247 = arith.constant 3 : index
    %c0_248 = arith.constant 0 : index
    %c0_249 = arith.constant 0 : index
    %653 = vector.load %arg11[%c3_247, %c0_248, %c0_249] : memref<6x1x128xf32, #tpu.memory_space<vmem>>, vector<1x1x128xf32>
    %654 = vector.shape_cast %653 : vector<1x1x128xf32> to vector<1x128xf32>
    %655 = vector.broadcast %654 : vector<1x128xf32> to vector<16x128xf32>
    %656 = arith.addf %652, %655 : vector<16x128xf32>
    %cst_250 = arith.constant 5.000000e-01 : f32
    %657 = vector.broadcast %cst_250 : f32 to vector<16x128xf32>
    %658 = arith.mulf %657, %656 : vector<16x128xf32>
    %cst_251 = arith.constant 4.471500e-02 : f32
    %659 = vector.broadcast %cst_251 : f32 to vector<16x128xf32>
    %660 = arith.mulf %659, %656 : vector<16x128xf32>
    %661 = arith.mulf %660, %656 : vector<16x128xf32>
    %662 = arith.mulf %661, %656 : vector<16x128xf32>
    %663 = arith.addf %656, %662 : vector<16x128xf32>
    %cst_252 = arith.constant 0.797884583 : f32
    %664 = vector.broadcast %cst_252 : f32 to vector<16x128xf32>
    %665 = arith.mulf %664, %663 : vector<16x128xf32>
    %666 = math.tanh %665 : vector<16x128xf32>
    %cst_253 = arith.constant 1.000000e+00 : f32
    %667 = vector.broadcast %cst_253 : f32 to vector<16x128xf32>
    %668 = arith.addf %667, %666 : vector<16x128xf32>
    %669 = arith.mulf %658, %668 : vector<16x128xf32>
    %670 = arith.truncf %669 : vector<16x128xf32> to vector<16x128xbf16>
    %c3_254 = arith.constant 3 : index
    %c0_255 = arith.constant 0 : index
    %c0_256 = arith.constant 0 : index
    %671 = vector.load %arg12[%c3_254, %c0_255, %c0_256] : memref<6x128x32xbf16, #tpu.memory_space<vmem>>, vector<1x128x32xbf16>
    %672 = vector.shape_cast %671 : vector<1x128x32xbf16> to vector<128x32xbf16>
    %cst_257 = arith.constant dense<0.000000e+00> : vector<16x32xf32>
    %673 = tpu.matmul %670, %672, %cst_257 {dimension_numbers = #tpu.dot_dimension_numbers<[1], [0], [0], [1], [0, 0, 1, 1], [], []>} : vector<16x128xbf16>, vector<128x32xbf16>, vector<16x32xf32> -> vector<16x32xf32>
    %c3_258 = arith.constant 3 : index
    %c0_259 = arith.constant 0 : index
    %c0_260 = arith.constant 0 : index
    %674 = vector.load %arg13[%c3_258, %c0_259, %c0_260] : memref<6x1x32xf32, #tpu.memory_space<vmem>>, vector<1x1x32xf32>
    %675 = vector.shape_cast %674 : vector<1x1x32xf32> to vector<1x32xf32>
    %676 = vector.broadcast %675 : vector<1x32xf32> to vector<16x32xf32>
    %677 = arith.addf %673, %676 : vector<16x32xf32>
    %678 = arith.addf %624, %677 : vector<16x32xf32>
    %c4 = arith.constant 4 : index
    %c0_261 = arith.constant 0 : index
    %c0_262 = arith.constant 0 : index
    %679 = vector.load %arg2[%c4, %c0_261, %c0_262] : memref<6x1x32xf32, #tpu.memory_space<vmem>>, vector<1x1x32xf32>
    %680 = vector.shape_cast %679 : vector<1x1x32xf32> to vector<1x32xf32>
    %c4_263 = arith.constant 4 : index
    %c0_264 = arith.constant 0 : index
    %c0_265 = arith.constant 0 : index
    %681 = vector.load %arg3[%c4_263, %c0_264, %c0_265] : memref<6x1x32xf32, #tpu.memory_space<vmem>>, vector<1x1x32xf32>
    %682 = vector.shape_cast %681 : vector<1x1x32xf32> to vector<1x32xf32>
    %cst_266 = arith.constant dense<0.000000e+00> : vector<16xf32>
    %683 = vector.multi_reduction <add>, %339, %cst_266 [1] : vector<16x32xf32> to vector<16xf32>
    %684 = vector.shape_cast %683 : vector<16xf32> to vector<16x1xf32>
    %cst_267 = arith.constant 3.200000e+01 : f32
    %685 = vector.broadcast %cst_267 : f32 to vector<16x1xf32>
    %686 = arith.divf %684, %685 : vector<16x1xf32>
    %687 = vector.broadcast %686 : vector<16x1xf32> to vector<16x32xf32>
    %688 = arith.subf %339, %687 : vector<16x32xf32>
    %689 = arith.mulf %688, %688 : vector<16x32xf32>
    %cst_268 = arith.constant dense<0.000000e+00> : vector<16xf32>
    %690 = vector.multi_reduction <add>, %689, %cst_268 [1] : vector<16x32xf32> to vector<16xf32>
    %691 = vector.shape_cast %690 : vector<16xf32> to vector<16x1xf32>
    %cst_269 = arith.constant 3.200000e+01 : f32
    %692 = vector.broadcast %cst_269 : f32 to vector<16x1xf32>
    %693 = arith.divf %691, %692 : vector<16x1xf32>
    %cst_270 = arith.constant 9.99999974E-6 : f32
    %694 = vector.broadcast %cst_270 : f32 to vector<16x1xf32>
    %695 = arith.addf %693, %694 : vector<16x1xf32>
    %696 = math.rsqrt %695 : vector<16x1xf32>
    %697 = vector.broadcast %696 : vector<16x1xf32> to vector<16x32xf32>
    %698 = arith.mulf %688, %697 : vector<16x32xf32>
    %699 = vector.broadcast %680 : vector<1x32xf32> to vector<16x32xf32>
    %700 = arith.mulf %698, %699 : vector<16x32xf32>
    %701 = vector.broadcast %682 : vector<1x32xf32> to vector<16x32xf32>
    %702 = arith.addf %700, %701 : vector<16x32xf32>
    %703 = arith.truncf %702 : vector<16x32xf32> to vector<16x32xbf16>
    %c4_271 = arith.constant 4 : index
    %c0_272 = arith.constant 0 : index
    %c0_273 = arith.constant 0 : index
    %704 = vector.load %arg4[%c4_271, %c0_272, %c0_273] : memref<6x32x96xbf16, #tpu.memory_space<vmem>>, vector<1x32x96xbf16>
    %705 = vector.shape_cast %704 : vector<1x32x96xbf16> to vector<32x96xbf16>
    %cst_274 = arith.constant dense<0.000000e+00> : vector<16x96xf32>
    %706 = tpu.matmul %703, %705, %cst_274 {dimension_numbers = #tpu.dot_dimension_numbers<[1], [0], [0], [1], [0, 0, 1, 1], [], []>} : vector<16x32xbf16>, vector<32x96xbf16>, vector<16x96xf32> -> vector<16x96xf32>
    %c4_275 = arith.constant 4 : index
    %c0_276 = arith.constant 0 : index
    %c0_277 = arith.constant 0 : index
    %707 = vector.load %arg5[%c4_275, %c0_276, %c0_277] : memref<6x1x96xf32, #tpu.memory_space<vmem>>, vector<1x1x96xf32>
    %708 = vector.shape_cast %707 : vector<1x1x96xf32> to vector<1x96xf32>
    %709 = vector.broadcast %708 : vector<1x96xf32> to vector<16x96xf32>
    %710 = arith.addf %706, %709 : vector<16x96xf32>
    %711 = vector.extract_strided_slice %710 {offsets = [0, 0], sizes = [16, 32], strides = [1, 1]} : vector<16x96xf32> to vector<16x32xf32>
    %cst_278 = arith.constant 0.353553385 : f32
    %712 = vector.broadcast %cst_278 : f32 to vector<16x32xf32>
    %713 = arith.mulf %711, %712 : vector<16x32xf32>
    %714 = arith.truncf %713 : vector<16x32xf32> to vector<16x32xbf16>
    %715 = vector.extract_strided_slice %710 {offsets = [0, 32], sizes = [16, 32], strides = [1, 1]} : vector<16x96xf32> to vector<16x32xf32>
    %716 = arith.truncf %715 : vector<16x32xf32> to vector<16x32xbf16>
    %717 = vector.extract_strided_slice %710 {offsets = [0, 64], sizes = [16, 32], strides = [1, 1]} : vector<16x96xf32> to vector<16x32xf32>
    %718 = arith.truncf %717 : vector<16x32xf32> to vector<16x32xbf16>
    %719 = vector.extract_strided_slice %714 {offsets = [0, 0], sizes = [16, 8], strides = [1, 1]} : vector<16x32xbf16> to vector<16x8xbf16>
    %720 = vector.extract_strided_slice %716 {offsets = [0, 0], sizes = [16, 8], strides = [1, 1]} : vector<16x32xbf16> to vector<16x8xbf16>
    %cst_279 = arith.constant dense<0.000000e+00> : vector<16x16xf32>
    %721 = tpu.matmul %719, %720, %cst_279 {dimension_numbers = #tpu.dot_dimension_numbers<[1], [1], [0], [0], [0, 0, 1, 0], [], []>} : vector<16x8xbf16>, vector<16x8xbf16>, vector<16x16xf32> -> vector<16x16xf32>
    %722 = arith.addf %721, %1 : vector<16x16xf32>
    %723 = vector.extract_strided_slice %714 {offsets = [0, 8], sizes = [16, 8], strides = [1, 1]} : vector<16x32xbf16> to vector<16x8xbf16>
    %724 = vector.extract_strided_slice %716 {offsets = [0, 8], sizes = [16, 8], strides = [1, 1]} : vector<16x32xbf16> to vector<16x8xbf16>
    %cst_280 = arith.constant dense<0.000000e+00> : vector<16x16xf32>
    %725 = tpu.matmul %723, %724, %cst_280 {dimension_numbers = #tpu.dot_dimension_numbers<[1], [1], [0], [0], [0, 0, 1, 0], [], []>} : vector<16x8xbf16>, vector<16x8xbf16>, vector<16x16xf32> -> vector<16x16xf32>
    %726 = arith.addf %725, %1 : vector<16x16xf32>
    %727 = vector.extract_strided_slice %714 {offsets = [0, 16], sizes = [16, 8], strides = [1, 1]} : vector<16x32xbf16> to vector<16x8xbf16>
    %728 = vector.extract_strided_slice %716 {offsets = [0, 16], sizes = [16, 8], strides = [1, 1]} : vector<16x32xbf16> to vector<16x8xbf16>
    %cst_281 = arith.constant dense<0.000000e+00> : vector<16x16xf32>
    %729 = tpu.matmul %727, %728, %cst_281 {dimension_numbers = #tpu.dot_dimension_numbers<[1], [1], [0], [0], [0, 0, 1, 0], [], []>} : vector<16x8xbf16>, vector<16x8xbf16>, vector<16x16xf32> -> vector<16x16xf32>
    %730 = arith.addf %729, %1 : vector<16x16xf32>
    %731 = vector.extract_strided_slice %714 {offsets = [0, 24], sizes = [16, 8], strides = [1, 1]} : vector<16x32xbf16> to vector<16x8xbf16>
    %732 = vector.extract_strided_slice %716 {offsets = [0, 24], sizes = [16, 8], strides = [1, 1]} : vector<16x32xbf16> to vector<16x8xbf16>
    %cst_282 = arith.constant dense<0.000000e+00> : vector<16x16xf32>
    %733 = tpu.matmul %731, %732, %cst_282 {dimension_numbers = #tpu.dot_dimension_numbers<[1], [1], [0], [0], [0, 0, 1, 0], [], []>} : vector<16x8xbf16>, vector<16x8xbf16>, vector<16x16xf32> -> vector<16x16xf32>
    %734 = arith.addf %733, %1 : vector<16x16xf32>
    %735 = vector.shape_cast %722 : vector<16x16xf32> to vector<1x16x16xf32>
    %736 = vector.shape_cast %726 : vector<16x16xf32> to vector<1x16x16xf32>
    %737 = vector.shape_cast %730 : vector<16x16xf32> to vector<1x16x16xf32>
    %738 = vector.shape_cast %734 : vector<16x16xf32> to vector<1x16x16xf32>
    %739 = tpu.concatenate %735, %736, %737, %738 in 0 : vector<1x16x16xf32>, vector<1x16x16xf32>, vector<1x16x16xf32>, vector<1x16x16xf32> -> vector<4x16x16xf32>
    %cst_283 = arith.constant dense<0xFF800000> : vector<4x16xf32>
    %740 = vector.multi_reduction <maximumf>, %739, %cst_283 [2] : vector<4x16x16xf32> to vector<4x16xf32>
    %741 = vector.shape_cast %740 : vector<4x16xf32> to vector<4x16x1xf32>
    %742 = vector.broadcast %741 : vector<4x16x1xf32> to vector<4x16x16xf32>
    %743 = arith.subf %739, %742 : vector<4x16x16xf32>
    %744 = math.exp %743 : vector<4x16x16xf32>
    %cst_284 = arith.constant dense<0.000000e+00> : vector<4x16xf32>
    %745 = vector.multi_reduction <add>, %744, %cst_284 [2] : vector<4x16x16xf32> to vector<4x16xf32>
    %746 = vector.shape_cast %745 : vector<4x16xf32> to vector<4x16x1xf32>
    %747 = tpu.reciprocal %746 {approx = true} : vector<4x16x1xf32> -> vector<4x16x1xf32>
    %748 = vector.extract_strided_slice %744 {offsets = [0, 0, 0], sizes = [1, 16, 16], strides = [1, 1, 1]} : vector<4x16x16xf32> to vector<1x16x16xf32>
    %749 = vector.shape_cast %748 : vector<1x16x16xf32> to vector<16x16xf32>
    %750 = arith.truncf %749 : vector<16x16xf32> to vector<16x16xbf16>
    %751 = vector.extract_strided_slice %718 {offsets = [0, 0], sizes = [16, 8], strides = [1, 1]} : vector<16x32xbf16> to vector<16x8xbf16>
    %cst_285 = arith.constant dense<0.000000e+00> : vector<16x8xf32>
    %752 = tpu.matmul %750, %751, %cst_285 {dimension_numbers = #tpu.dot_dimension_numbers<[1], [0], [0], [1], [0, 0, 1, 1], [], []>} : vector<16x16xbf16>, vector<16x8xbf16>, vector<16x8xf32> -> vector<16x8xf32>
    %753 = vector.extract_strided_slice %747 {offsets = [0, 0, 0], sizes = [1, 16, 1], strides = [1, 1, 1]} : vector<4x16x1xf32> to vector<1x16x1xf32>
    %754 = vector.shape_cast %753 : vector<1x16x1xf32> to vector<16x1xf32>
    %755 = vector.broadcast %754 : vector<16x1xf32> to vector<16x8xf32>
    %756 = arith.mulf %752, %755 : vector<16x8xf32>
    %757 = vector.extract_strided_slice %744 {offsets = [1, 0, 0], sizes = [1, 16, 16], strides = [1, 1, 1]} : vector<4x16x16xf32> to vector<1x16x16xf32>
    %758 = vector.shape_cast %757 : vector<1x16x16xf32> to vector<16x16xf32>
    %759 = arith.truncf %758 : vector<16x16xf32> to vector<16x16xbf16>
    %760 = vector.extract_strided_slice %718 {offsets = [0, 8], sizes = [16, 8], strides = [1, 1]} : vector<16x32xbf16> to vector<16x8xbf16>
    %cst_286 = arith.constant dense<0.000000e+00> : vector<16x8xf32>
    %761 = tpu.matmul %759, %760, %cst_286 {dimension_numbers = #tpu.dot_dimension_numbers<[1], [0], [0], [1], [0, 0, 1, 1], [], []>} : vector<16x16xbf16>, vector<16x8xbf16>, vector<16x8xf32> -> vector<16x8xf32>
    %762 = vector.extract_strided_slice %747 {offsets = [1, 0, 0], sizes = [1, 16, 1], strides = [1, 1, 1]} : vector<4x16x1xf32> to vector<1x16x1xf32>
    %763 = vector.shape_cast %762 : vector<1x16x1xf32> to vector<16x1xf32>
    %764 = vector.broadcast %763 : vector<16x1xf32> to vector<16x8xf32>
    %765 = arith.mulf %761, %764 : vector<16x8xf32>
    %766 = vector.extract_strided_slice %744 {offsets = [2, 0, 0], sizes = [1, 16, 16], strides = [1, 1, 1]} : vector<4x16x16xf32> to vector<1x16x16xf32>
    %767 = vector.shape_cast %766 : vector<1x16x16xf32> to vector<16x16xf32>
    %768 = arith.truncf %767 : vector<16x16xf32> to vector<16x16xbf16>
    %769 = vector.extract_strided_slice %718 {offsets = [0, 16], sizes = [16, 8], strides = [1, 1]} : vector<16x32xbf16> to vector<16x8xbf16>
    %cst_287 = arith.constant dense<0.000000e+00> : vector<16x8xf32>
    %770 = tpu.matmul %768, %769, %cst_287 {dimension_numbers = #tpu.dot_dimension_numbers<[1], [0], [0], [1], [0, 0, 1, 1], [], []>} : vector<16x16xbf16>, vector<16x8xbf16>, vector<16x8xf32> -> vector<16x8xf32>
    %771 = vector.extract_strided_slice %747 {offsets = [2, 0, 0], sizes = [1, 16, 1], strides = [1, 1, 1]} : vector<4x16x1xf32> to vector<1x16x1xf32>
    %772 = vector.shape_cast %771 : vector<1x16x1xf32> to vector<16x1xf32>
    %773 = vector.broadcast %772 : vector<16x1xf32> to vector<16x8xf32>
    %774 = arith.mulf %770, %773 : vector<16x8xf32>
    %775 = vector.extract_strided_slice %744 {offsets = [3, 0, 0], sizes = [1, 16, 16], strides = [1, 1, 1]} : vector<4x16x16xf32> to vector<1x16x16xf32>
    %776 = vector.shape_cast %775 : vector<1x16x16xf32> to vector<16x16xf32>
    %777 = arith.truncf %776 : vector<16x16xf32> to vector<16x16xbf16>
    %778 = vector.extract_strided_slice %718 {offsets = [0, 24], sizes = [16, 8], strides = [1, 1]} : vector<16x32xbf16> to vector<16x8xbf16>
    %cst_288 = arith.constant dense<0.000000e+00> : vector<16x8xf32>
    %779 = tpu.matmul %777, %778, %cst_288 {dimension_numbers = #tpu.dot_dimension_numbers<[1], [0], [0], [1], [0, 0, 1, 1], [], []>} : vector<16x16xbf16>, vector<16x8xbf16>, vector<16x8xf32> -> vector<16x8xf32>
    %780 = vector.extract_strided_slice %747 {offsets = [3, 0, 0], sizes = [1, 16, 1], strides = [1, 1, 1]} : vector<4x16x1xf32> to vector<1x16x1xf32>
    %781 = vector.shape_cast %780 : vector<1x16x1xf32> to vector<16x1xf32>
    %782 = vector.broadcast %781 : vector<16x1xf32> to vector<16x8xf32>
    %783 = arith.mulf %779, %782 : vector<16x8xf32>
    %784 = tpu.concatenate %756, %765, %774, %783 in 1 : vector<16x8xf32>, vector<16x8xf32>, vector<16x8xf32>, vector<16x8xf32> -> vector<16x32xf32>
    %785 = arith.truncf %784 : vector<16x32xf32> to vector<16x32xbf16>
    %c4_289 = arith.constant 4 : index
    %c0_290 = arith.constant 0 : index
    %c0_291 = arith.constant 0 : index
    %786 = vector.load %arg6[%c4_289, %c0_290, %c0_291] : memref<6x32x32xbf16, #tpu.memory_space<vmem>>, vector<1x32x32xbf16>
    %787 = vector.shape_cast %786 : vector<1x32x32xbf16> to vector<32x32xbf16>
    %cst_292 = arith.constant dense<0.000000e+00> : vector<16x32xf32>
    %788 = tpu.matmul %785, %787, %cst_292 {dimension_numbers = #tpu.dot_dimension_numbers<[1], [0], [0], [1], [0, 0, 1, 1], [], []>} : vector<16x32xbf16>, vector<32x32xbf16>, vector<16x32xf32> -> vector<16x32xf32>
    %c4_293 = arith.constant 4 : index
    %c0_294 = arith.constant 0 : index
    %c0_295 = arith.constant 0 : index
    %789 = vector.load %arg7[%c4_293, %c0_294, %c0_295] : memref<6x1x32xf32, #tpu.memory_space<vmem>>, vector<1x1x32xf32>
    %790 = vector.shape_cast %789 : vector<1x1x32xf32> to vector<1x32xf32>
    %791 = vector.broadcast %790 : vector<1x32xf32> to vector<16x32xf32>
    %792 = arith.addf %788, %791 : vector<16x32xf32>
    %793 = arith.addf %339, %792 : vector<16x32xf32>
    %c4_296 = arith.constant 4 : index
    %c0_297 = arith.constant 0 : index
    %c0_298 = arith.constant 0 : index
    %794 = vector.load %arg8[%c4_296, %c0_297, %c0_298] : memref<6x1x32xf32, #tpu.memory_space<vmem>>, vector<1x1x32xf32>
    %795 = vector.shape_cast %794 : vector<1x1x32xf32> to vector<1x32xf32>
    %c4_299 = arith.constant 4 : index
    %c0_300 = arith.constant 0 : index
    %c0_301 = arith.constant 0 : index
    %796 = vector.load %arg9[%c4_299, %c0_300, %c0_301] : memref<6x1x32xf32, #tpu.memory_space<vmem>>, vector<1x1x32xf32>
    %797 = vector.shape_cast %796 : vector<1x1x32xf32> to vector<1x32xf32>
    %cst_302 = arith.constant dense<0.000000e+00> : vector<16xf32>
    %798 = vector.multi_reduction <add>, %793, %cst_302 [1] : vector<16x32xf32> to vector<16xf32>
    %799 = vector.shape_cast %798 : vector<16xf32> to vector<16x1xf32>
    %cst_303 = arith.constant 3.200000e+01 : f32
    %800 = vector.broadcast %cst_303 : f32 to vector<16x1xf32>
    %801 = arith.divf %799, %800 : vector<16x1xf32>
    %802 = vector.broadcast %801 : vector<16x1xf32> to vector<16x32xf32>
    %803 = arith.subf %793, %802 : vector<16x32xf32>
    %804 = arith.mulf %803, %803 : vector<16x32xf32>
    %cst_304 = arith.constant dense<0.000000e+00> : vector<16xf32>
    %805 = vector.multi_reduction <add>, %804, %cst_304 [1] : vector<16x32xf32> to vector<16xf32>
    %806 = vector.shape_cast %805 : vector<16xf32> to vector<16x1xf32>
    %cst_305 = arith.constant 3.200000e+01 : f32
    %807 = vector.broadcast %cst_305 : f32 to vector<16x1xf32>
    %808 = arith.divf %806, %807 : vector<16x1xf32>
    %cst_306 = arith.constant 9.99999974E-6 : f32
    %809 = vector.broadcast %cst_306 : f32 to vector<16x1xf32>
    %810 = arith.addf %808, %809 : vector<16x1xf32>
    %811 = math.rsqrt %810 : vector<16x1xf32>
    %812 = vector.broadcast %811 : vector<16x1xf32> to vector<16x32xf32>
    %813 = arith.mulf %803, %812 : vector<16x32xf32>
    %814 = vector.broadcast %795 : vector<1x32xf32> to vector<16x32xf32>
    %815 = arith.mulf %813, %814 : vector<16x32xf32>
    %816 = vector.broadcast %797 : vector<1x32xf32> to vector<16x32xf32>
    %817 = arith.addf %815, %816 : vector<16x32xf32>
    %818 = arith.truncf %817 : vector<16x32xf32> to vector<16x32xbf16>
    %c4_307 = arith.constant 4 : index
    %c0_308 = arith.constant 0 : index
    %c0_309 = arith.constant 0 : index
    %819 = vector.load %arg10[%c4_307, %c0_308, %c0_309] : memref<6x32x128xbf16, #tpu.memory_space<vmem>>, vector<1x32x128xbf16>
    %820 = vector.shape_cast %819 : vector<1x32x128xbf16> to vector<32x128xbf16>
    %cst_310 = arith.constant dense<0.000000e+00> : vector<16x128xf32>
    %821 = tpu.matmul %818, %820, %cst_310 {dimension_numbers = #tpu.dot_dimension_numbers<[1], [0], [0], [1], [0, 0, 1, 1], [], []>} : vector<16x32xbf16>, vector<32x128xbf16>, vector<16x128xf32> -> vector<16x128xf32>
    %c4_311 = arith.constant 4 : index
    %c0_312 = arith.constant 0 : index
    %c0_313 = arith.constant 0 : index
    %822 = vector.load %arg11[%c4_311, %c0_312, %c0_313] : memref<6x1x128xf32, #tpu.memory_space<vmem>>, vector<1x1x128xf32>
    %823 = vector.shape_cast %822 : vector<1x1x128xf32> to vector<1x128xf32>
    %824 = vector.broadcast %823 : vector<1x128xf32> to vector<16x128xf32>
    %825 = arith.addf %821, %824 : vector<16x128xf32>
    %cst_314 = arith.constant 5.000000e-01 : f32
    %826 = vector.broadcast %cst_314 : f32 to vector<16x128xf32>
    %827 = arith.mulf %826, %825 : vector<16x128xf32>
    %cst_315 = arith.constant 4.471500e-02 : f32
    %828 = vector.broadcast %cst_315 : f32 to vector<16x128xf32>
    %829 = arith.mulf %828, %825 : vector<16x128xf32>
    %830 = arith.mulf %829, %825 : vector<16x128xf32>
    %831 = arith.mulf %830, %825 : vector<16x128xf32>
    %832 = arith.addf %825, %831 : vector<16x128xf32>
    %cst_316 = arith.constant 0.797884583 : f32
    %833 = vector.broadcast %cst_316 : f32 to vector<16x128xf32>
    %834 = arith.mulf %833, %832 : vector<16x128xf32>
    %835 = math.tanh %834 : vector<16x128xf32>
    %cst_317 = arith.constant 1.000000e+00 : f32
    %836 = vector.broadcast %cst_317 : f32 to vector<16x128xf32>
    %837 = arith.addf %836, %835 : vector<16x128xf32>
    %838 = arith.mulf %827, %837 : vector<16x128xf32>
    %839 = arith.truncf %838 : vector<16x128xf32> to vector<16x128xbf16>
    %c4_318 = arith.constant 4 : index
    %c0_319 = arith.constant 0 : index
    %c0_320 = arith.constant 0 : index
    %840 = vector.load %arg12[%c4_318, %c0_319, %c0_320] : memref<6x128x32xbf16, #tpu.memory_space<vmem>>, vector<1x128x32xbf16>
    %841 = vector.shape_cast %840 : vector<1x128x32xbf16> to vector<128x32xbf16>
    %cst_321 = arith.constant dense<0.000000e+00> : vector<16x32xf32>
    %842 = tpu.matmul %839, %841, %cst_321 {dimension_numbers = #tpu.dot_dimension_numbers<[1], [0], [0], [1], [0, 0, 1, 1], [], []>} : vector<16x128xbf16>, vector<128x32xbf16>, vector<16x32xf32> -> vector<16x32xf32>
    %c4_322 = arith.constant 4 : index
    %c0_323 = arith.constant 0 : index
    %c0_324 = arith.constant 0 : index
    %843 = vector.load %arg13[%c4_322, %c0_323, %c0_324] : memref<6x1x32xf32, #tpu.memory_space<vmem>>, vector<1x1x32xf32>
    %844 = vector.shape_cast %843 : vector<1x1x32xf32> to vector<1x32xf32>
    %845 = vector.broadcast %844 : vector<1x32xf32> to vector<16x32xf32>
    %846 = arith.addf %842, %845 : vector<16x32xf32>
    %847 = arith.addf %793, %846 : vector<16x32xf32>
    %c5 = arith.constant 5 : index
    %c0_325 = arith.constant 0 : index
    %c0_326 = arith.constant 0 : index
    %848 = vector.load %arg2[%c5, %c0_325, %c0_326] : memref<6x1x32xf32, #tpu.memory_space<vmem>>, vector<1x1x32xf32>
    %849 = vector.shape_cast %848 : vector<1x1x32xf32> to vector<1x32xf32>
    %c5_327 = arith.constant 5 : index
    %c0_328 = arith.constant 0 : index
    %c0_329 = arith.constant 0 : index
    %850 = vector.load %arg3[%c5_327, %c0_328, %c0_329] : memref<6x1x32xf32, #tpu.memory_space<vmem>>, vector<1x1x32xf32>
    %851 = vector.shape_cast %850 : vector<1x1x32xf32> to vector<1x32xf32>
    %cst_330 = arith.constant dense<0.000000e+00> : vector<16xf32>
    %852 = vector.multi_reduction <add>, %339, %cst_330 [1] : vector<16x32xf32> to vector<16xf32>
    %853 = vector.shape_cast %852 : vector<16xf32> to vector<16x1xf32>
    %cst_331 = arith.constant 3.200000e+01 : f32
    %854 = vector.broadcast %cst_331 : f32 to vector<16x1xf32>
    %855 = arith.divf %853, %854 : vector<16x1xf32>
    %856 = vector.broadcast %855 : vector<16x1xf32> to vector<16x32xf32>
    %857 = arith.subf %339, %856 : vector<16x32xf32>
    %858 = arith.mulf %857, %857 : vector<16x32xf32>
    %cst_332 = arith.constant dense<0.000000e+00> : vector<16xf32>
    %859 = vector.multi_reduction <add>, %858, %cst_332 [1] : vector<16x32xf32> to vector<16xf32>
    %860 = vector.shape_cast %859 : vector<16xf32> to vector<16x1xf32>
    %cst_333 = arith.constant 3.200000e+01 : f32
    %861 = vector.broadcast %cst_333 : f32 to vector<16x1xf32>
    %862 = arith.divf %860, %861 : vector<16x1xf32>
    %cst_334 = arith.constant 9.99999974E-6 : f32
    %863 = vector.broadcast %cst_334 : f32 to vector<16x1xf32>
    %864 = arith.addf %862, %863 : vector<16x1xf32>
    %865 = math.rsqrt %864 : vector<16x1xf32>
    %866 = vector.broadcast %865 : vector<16x1xf32> to vector<16x32xf32>
    %867 = arith.mulf %857, %866 : vector<16x32xf32>
    %868 = vector.broadcast %849 : vector<1x32xf32> to vector<16x32xf32>
    %869 = arith.mulf %867, %868 : vector<16x32xf32>
    %870 = vector.broadcast %851 : vector<1x32xf32> to vector<16x32xf32>
    %871 = arith.addf %869, %870 : vector<16x32xf32>
    %872 = arith.truncf %871 : vector<16x32xf32> to vector<16x32xbf16>
    %c5_335 = arith.constant 5 : index
    %c0_336 = arith.constant 0 : index
    %c0_337 = arith.constant 0 : index
    %873 = vector.load %arg4[%c5_335, %c0_336, %c0_337] : memref<6x32x96xbf16, #tpu.memory_space<vmem>>, vector<1x32x96xbf16>
    %874 = vector.shape_cast %873 : vector<1x32x96xbf16> to vector<32x96xbf16>
    %cst_338 = arith.constant dense<0.000000e+00> : vector<16x96xf32>
    %875 = tpu.matmul %872, %874, %cst_338 {dimension_numbers = #tpu.dot_dimension_numbers<[1], [0], [0], [1], [0, 0, 1, 1], [], []>} : vector<16x32xbf16>, vector<32x96xbf16>, vector<16x96xf32> -> vector<16x96xf32>
    %c5_339 = arith.constant 5 : index
    %c0_340 = arith.constant 0 : index
    %c0_341 = arith.constant 0 : index
    %876 = vector.load %arg5[%c5_339, %c0_340, %c0_341] : memref<6x1x96xf32, #tpu.memory_space<vmem>>, vector<1x1x96xf32>
    %877 = vector.shape_cast %876 : vector<1x1x96xf32> to vector<1x96xf32>
    %878 = vector.broadcast %877 : vector<1x96xf32> to vector<16x96xf32>
    %879 = arith.addf %875, %878 : vector<16x96xf32>
    %880 = vector.extract_strided_slice %879 {offsets = [0, 0], sizes = [16, 32], strides = [1, 1]} : vector<16x96xf32> to vector<16x32xf32>
    %cst_342 = arith.constant 0.353553385 : f32
    %881 = vector.broadcast %cst_342 : f32 to vector<16x32xf32>
    %882 = arith.mulf %880, %881 : vector<16x32xf32>
    %883 = arith.truncf %882 : vector<16x32xf32> to vector<16x32xbf16>
    %884 = vector.extract_strided_slice %879 {offsets = [0, 32], sizes = [16, 32], strides = [1, 1]} : vector<16x96xf32> to vector<16x32xf32>
    %885 = arith.truncf %884 : vector<16x32xf32> to vector<16x32xbf16>
    %886 = vector.extract_strided_slice %879 {offsets = [0, 64], sizes = [16, 32], strides = [1, 1]} : vector<16x96xf32> to vector<16x32xf32>
    %887 = arith.truncf %886 : vector<16x32xf32> to vector<16x32xbf16>
    %888 = vector.extract_strided_slice %883 {offsets = [0, 0], sizes = [16, 8], strides = [1, 1]} : vector<16x32xbf16> to vector<16x8xbf16>
    %889 = vector.extract_strided_slice %885 {offsets = [0, 0], sizes = [16, 8], strides = [1, 1]} : vector<16x32xbf16> to vector<16x8xbf16>
    %cst_343 = arith.constant dense<0.000000e+00> : vector<16x16xf32>
    %890 = tpu.matmul %888, %889, %cst_343 {dimension_numbers = #tpu.dot_dimension_numbers<[1], [1], [0], [0], [0, 0, 1, 0], [], []>} : vector<16x8xbf16>, vector<16x8xbf16>, vector<16x16xf32> -> vector<16x16xf32>
    %891 = arith.addf %890, %1 : vector<16x16xf32>
    %892 = vector.extract_strided_slice %883 {offsets = [0, 8], sizes = [16, 8], strides = [1, 1]} : vector<16x32xbf16> to vector<16x8xbf16>
    %893 = vector.extract_strided_slice %885 {offsets = [0, 8], sizes = [16, 8], strides = [1, 1]} : vector<16x32xbf16> to vector<16x8xbf16>
    %cst_344 = arith.constant dense<0.000000e+00> : vector<16x16xf32>
    %894 = tpu.matmul %892, %893, %cst_344 {dimension_numbers = #tpu.dot_dimension_numbers<[1], [1], [0], [0], [0, 0, 1, 0], [], []>} : vector<16x8xbf16>, vector<16x8xbf16>, vector<16x16xf32> -> vector<16x16xf32>
    %895 = arith.addf %894, %1 : vector<16x16xf32>
    %896 = vector.extract_strided_slice %883 {offsets = [0, 16], sizes = [16, 8], strides = [1, 1]} : vector<16x32xbf16> to vector<16x8xbf16>
    %897 = vector.extract_strided_slice %885 {offsets = [0, 16], sizes = [16, 8], strides = [1, 1]} : vector<16x32xbf16> to vector<16x8xbf16>
    %cst_345 = arith.constant dense<0.000000e+00> : vector<16x16xf32>
    %898 = tpu.matmul %896, %897, %cst_345 {dimension_numbers = #tpu.dot_dimension_numbers<[1], [1], [0], [0], [0, 0, 1, 0], [], []>} : vector<16x8xbf16>, vector<16x8xbf16>, vector<16x16xf32> -> vector<16x16xf32>
    %899 = arith.addf %898, %1 : vector<16x16xf32>
    %900 = vector.extract_strided_slice %883 {offsets = [0, 24], sizes = [16, 8], strides = [1, 1]} : vector<16x32xbf16> to vector<16x8xbf16>
    %901 = vector.extract_strided_slice %885 {offsets = [0, 24], sizes = [16, 8], strides = [1, 1]} : vector<16x32xbf16> to vector<16x8xbf16>
    %cst_346 = arith.constant dense<0.000000e+00> : vector<16x16xf32>
    %902 = tpu.matmul %900, %901, %cst_346 {dimension_numbers = #tpu.dot_dimension_numbers<[1], [1], [0], [0], [0, 0, 1, 0], [], []>} : vector<16x8xbf16>, vector<16x8xbf16>, vector<16x16xf32> -> vector<16x16xf32>
    %903 = arith.addf %902, %1 : vector<16x16xf32>
    %904 = vector.shape_cast %891 : vector<16x16xf32> to vector<1x16x16xf32>
    %905 = vector.shape_cast %895 : vector<16x16xf32> to vector<1x16x16xf32>
    %906 = vector.shape_cast %899 : vector<16x16xf32> to vector<1x16x16xf32>
    %907 = vector.shape_cast %903 : vector<16x16xf32> to vector<1x16x16xf32>
    %908 = tpu.concatenate %904, %905, %906, %907 in 0 : vector<1x16x16xf32>, vector<1x16x16xf32>, vector<1x16x16xf32>, vector<1x16x16xf32> -> vector<4x16x16xf32>
    %cst_347 = arith.constant dense<0xFF800000> : vector<4x16xf32>
    %909 = vector.multi_reduction <maximumf>, %908, %cst_347 [2] : vector<4x16x16xf32> to vector<4x16xf32>
    %910 = vector.shape_cast %909 : vector<4x16xf32> to vector<4x16x1xf32>
    %911 = vector.broadcast %910 : vector<4x16x1xf32> to vector<4x16x16xf32>
    %912 = arith.subf %908, %911 : vector<4x16x16xf32>
    %913 = math.exp %912 : vector<4x16x16xf32>
    %cst_348 = arith.constant dense<0.000000e+00> : vector<4x16xf32>
    %914 = vector.multi_reduction <add>, %913, %cst_348 [2] : vector<4x16x16xf32> to vector<4x16xf32>
    %915 = vector.shape_cast %914 : vector<4x16xf32> to vector<4x16x1xf32>
    %916 = tpu.reciprocal %915 {approx = true} : vector<4x16x1xf32> -> vector<4x16x1xf32>
    %917 = vector.extract_strided_slice %913 {offsets = [0, 0, 0], sizes = [1, 16, 16], strides = [1, 1, 1]} : vector<4x16x16xf32> to vector<1x16x16xf32>
    %918 = vector.shape_cast %917 : vector<1x16x16xf32> to vector<16x16xf32>
    %919 = arith.truncf %918 : vector<16x16xf32> to vector<16x16xbf16>
    %920 = vector.extract_strided_slice %887 {offsets = [0, 0], sizes = [16, 8], strides = [1, 1]} : vector<16x32xbf16> to vector<16x8xbf16>
    %cst_349 = arith.constant dense<0.000000e+00> : vector<16x8xf32>
    %921 = tpu.matmul %919, %920, %cst_349 {dimension_numbers = #tpu.dot_dimension_numbers<[1], [0], [0], [1], [0, 0, 1, 1], [], []>} : vector<16x16xbf16>, vector<16x8xbf16>, vector<16x8xf32> -> vector<16x8xf32>
    %922 = vector.extract_strided_slice %916 {offsets = [0, 0, 0], sizes = [1, 16, 1], strides = [1, 1, 1]} : vector<4x16x1xf32> to vector<1x16x1xf32>
    %923 = vector.shape_cast %922 : vector<1x16x1xf32> to vector<16x1xf32>
    %924 = vector.broadcast %923 : vector<16x1xf32> to vector<16x8xf32>
    %925 = arith.mulf %921, %924 : vector<16x8xf32>
    %926 = vector.extract_strided_slice %913 {offsets = [1, 0, 0], sizes = [1, 16, 16], strides = [1, 1, 1]} : vector<4x16x16xf32> to vector<1x16x16xf32>
    %927 = vector.shape_cast %926 : vector<1x16x16xf32> to vector<16x16xf32>
    %928 = arith.truncf %927 : vector<16x16xf32> to vector<16x16xbf16>
    %929 = vector.extract_strided_slice %887 {offsets = [0, 8], sizes = [16, 8], strides = [1, 1]} : vector<16x32xbf16> to vector<16x8xbf16>
    %cst_350 = arith.constant dense<0.000000e+00> : vector<16x8xf32>
    %930 = tpu.matmul %928, %929, %cst_350 {dimension_numbers = #tpu.dot_dimension_numbers<[1], [0], [0], [1], [0, 0, 1, 1], [], []>} : vector<16x16xbf16>, vector<16x8xbf16>, vector<16x8xf32> -> vector<16x8xf32>
    %931 = vector.extract_strided_slice %916 {offsets = [1, 0, 0], sizes = [1, 16, 1], strides = [1, 1, 1]} : vector<4x16x1xf32> to vector<1x16x1xf32>
    %932 = vector.shape_cast %931 : vector<1x16x1xf32> to vector<16x1xf32>
    %933 = vector.broadcast %932 : vector<16x1xf32> to vector<16x8xf32>
    %934 = arith.mulf %930, %933 : vector<16x8xf32>
    %935 = vector.extract_strided_slice %913 {offsets = [2, 0, 0], sizes = [1, 16, 16], strides = [1, 1, 1]} : vector<4x16x16xf32> to vector<1x16x16xf32>
    %936 = vector.shape_cast %935 : vector<1x16x16xf32> to vector<16x16xf32>
    %937 = arith.truncf %936 : vector<16x16xf32> to vector<16x16xbf16>
    %938 = vector.extract_strided_slice %887 {offsets = [0, 16], sizes = [16, 8], strides = [1, 1]} : vector<16x32xbf16> to vector<16x8xbf16>
    %cst_351 = arith.constant dense<0.000000e+00> : vector<16x8xf32>
    %939 = tpu.matmul %937, %938, %cst_351 {dimension_numbers = #tpu.dot_dimension_numbers<[1], [0], [0], [1], [0, 0, 1, 1], [], []>} : vector<16x16xbf16>, vector<16x8xbf16>, vector<16x8xf32> -> vector<16x8xf32>
    %940 = vector.extract_strided_slice %916 {offsets = [2, 0, 0], sizes = [1, 16, 1], strides = [1, 1, 1]} : vector<4x16x1xf32> to vector<1x16x1xf32>
    %941 = vector.shape_cast %940 : vector<1x16x1xf32> to vector<16x1xf32>
    %942 = vector.broadcast %941 : vector<16x1xf32> to vector<16x8xf32>
    %943 = arith.mulf %939, %942 : vector<16x8xf32>
    %944 = vector.extract_strided_slice %913 {offsets = [3, 0, 0], sizes = [1, 16, 16], strides = [1, 1, 1]} : vector<4x16x16xf32> to vector<1x16x16xf32>
    %945 = vector.shape_cast %944 : vector<1x16x16xf32> to vector<16x16xf32>
    %946 = arith.truncf %945 : vector<16x16xf32> to vector<16x16xbf16>
    %947 = vector.extract_strided_slice %887 {offsets = [0, 24], sizes = [16, 8], strides = [1, 1]} : vector<16x32xbf16> to vector<16x8xbf16>
    %cst_352 = arith.constant dense<0.000000e+00> : vector<16x8xf32>
    %948 = tpu.matmul %946, %947, %cst_352 {dimension_numbers = #tpu.dot_dimension_numbers<[1], [0], [0], [1], [0, 0, 1, 1], [], []>} : vector<16x16xbf16>, vector<16x8xbf16>, vector<16x8xf32> -> vector<16x8xf32>
    %949 = vector.extract_strided_slice %916 {offsets = [3, 0, 0], sizes = [1, 16, 1], strides = [1, 1, 1]} : vector<4x16x1xf32> to vector<1x16x1xf32>
    %950 = vector.shape_cast %949 : vector<1x16x1xf32> to vector<16x1xf32>
    %951 = vector.broadcast %950 : vector<16x1xf32> to vector<16x8xf32>
    %952 = arith.mulf %948, %951 : vector<16x8xf32>
    %953 = tpu.concatenate %925, %934, %943, %952 in 1 : vector<16x8xf32>, vector<16x8xf32>, vector<16x8xf32>, vector<16x8xf32> -> vector<16x32xf32>
    %954 = arith.truncf %953 : vector<16x32xf32> to vector<16x32xbf16>
    %c5_353 = arith.constant 5 : index
    %c0_354 = arith.constant 0 : index
    %c0_355 = arith.constant 0 : index
    %955 = vector.load %arg6[%c5_353, %c0_354, %c0_355] : memref<6x32x32xbf16, #tpu.memory_space<vmem>>, vector<1x32x32xbf16>
    %956 = vector.shape_cast %955 : vector<1x32x32xbf16> to vector<32x32xbf16>
    %cst_356 = arith.constant dense<0.000000e+00> : vector<16x32xf32>
    %957 = tpu.matmul %954, %956, %cst_356 {dimension_numbers = #tpu.dot_dimension_numbers<[1], [0], [0], [1], [0, 0, 1, 1], [], []>} : vector<16x32xbf16>, vector<32x32xbf16>, vector<16x32xf32> -> vector<16x32xf32>
    %c5_357 = arith.constant 5 : index
    %c0_358 = arith.constant 0 : index
    %c0_359 = arith.constant 0 : index
    %958 = vector.load %arg7[%c5_357, %c0_358, %c0_359] : memref<6x1x32xf32, #tpu.memory_space<vmem>>, vector<1x1x32xf32>
    %959 = vector.shape_cast %958 : vector<1x1x32xf32> to vector<1x32xf32>
    %960 = vector.broadcast %959 : vector<1x32xf32> to vector<16x32xf32>
    %961 = arith.addf %957, %960 : vector<16x32xf32>
    %962 = arith.addf %339, %961 : vector<16x32xf32>
    %c5_360 = arith.constant 5 : index
    %c0_361 = arith.constant 0 : index
    %c0_362 = arith.constant 0 : index
    %963 = vector.load %arg8[%c5_360, %c0_361, %c0_362] : memref<6x1x32xf32, #tpu.memory_space<vmem>>, vector<1x1x32xf32>
    %964 = vector.shape_cast %963 : vector<1x1x32xf32> to vector<1x32xf32>
    %c5_363 = arith.constant 5 : index
    %c0_364 = arith.constant 0 : index
    %c0_365 = arith.constant 0 : index
    %965 = vector.load %arg9[%c5_363, %c0_364, %c0_365] : memref<6x1x32xf32, #tpu.memory_space<vmem>>, vector<1x1x32xf32>
    %966 = vector.shape_cast %965 : vector<1x1x32xf32> to vector<1x32xf32>
    %cst_366 = arith.constant dense<0.000000e+00> : vector<16xf32>
    %967 = vector.multi_reduction <add>, %962, %cst_366 [1] : vector<16x32xf32> to vector<16xf32>
    %968 = vector.shape_cast %967 : vector<16xf32> to vector<16x1xf32>
    %cst_367 = arith.constant 3.200000e+01 : f32
    %969 = vector.broadcast %cst_367 : f32 to vector<16x1xf32>
    %970 = arith.divf %968, %969 : vector<16x1xf32>
    %971 = vector.broadcast %970 : vector<16x1xf32> to vector<16x32xf32>
    %972 = arith.subf %962, %971 : vector<16x32xf32>
    %973 = arith.mulf %972, %972 : vector<16x32xf32>
    %cst_368 = arith.constant dense<0.000000e+00> : vector<16xf32>
    %974 = vector.multi_reduction <add>, %973, %cst_368 [1] : vector<16x32xf32> to vector<16xf32>
    %975 = vector.shape_cast %974 : vector<16xf32> to vector<16x1xf32>
    %cst_369 = arith.constant 3.200000e+01 : f32
    %976 = vector.broadcast %cst_369 : f32 to vector<16x1xf32>
    %977 = arith.divf %975, %976 : vector<16x1xf32>
    %cst_370 = arith.constant 9.99999974E-6 : f32
    %978 = vector.broadcast %cst_370 : f32 to vector<16x1xf32>
    %979 = arith.addf %977, %978 : vector<16x1xf32>
    %980 = math.rsqrt %979 : vector<16x1xf32>
    %981 = vector.broadcast %980 : vector<16x1xf32> to vector<16x32xf32>
    %982 = arith.mulf %972, %981 : vector<16x32xf32>
    %983 = vector.broadcast %964 : vector<1x32xf32> to vector<16x32xf32>
    %984 = arith.mulf %982, %983 : vector<16x32xf32>
    %985 = vector.broadcast %966 : vector<1x32xf32> to vector<16x32xf32>
    %986 = arith.addf %984, %985 : vector<16x32xf32>
    %987 = arith.truncf %986 : vector<16x32xf32> to vector<16x32xbf16>
    %c5_371 = arith.constant 5 : index
    %c0_372 = arith.constant 0 : index
    %c0_373 = arith.constant 0 : index
    %988 = vector.load %arg10[%c5_371, %c0_372, %c0_373] : memref<6x32x128xbf16, #tpu.memory_space<vmem>>, vector<1x32x128xbf16>
    %989 = vector.shape_cast %988 : vector<1x32x128xbf16> to vector<32x128xbf16>
    %cst_374 = arith.constant dense<0.000000e+00> : vector<16x128xf32>
    %990 = tpu.matmul %987, %989, %cst_374 {dimension_numbers = #tpu.dot_dimension_numbers<[1], [0], [0], [1], [0, 0, 1, 1], [], []>} : vector<16x32xbf16>, vector<32x128xbf16>, vector<16x128xf32> -> vector<16x128xf32>
    %c5_375 = arith.constant 5 : index
    %c0_376 = arith.constant 0 : index
    %c0_377 = arith.constant 0 : index
    %991 = vector.load %arg11[%c5_375, %c0_376, %c0_377] : memref<6x1x128xf32, #tpu.memory_space<vmem>>, vector<1x1x128xf32>
    %992 = vector.shape_cast %991 : vector<1x1x128xf32> to vector<1x128xf32>
    %993 = vector.broadcast %992 : vector<1x128xf32> to vector<16x128xf32>
    %994 = arith.addf %990, %993 : vector<16x128xf32>
    %cst_378 = arith.constant 5.000000e-01 : f32
    %995 = vector.broadcast %cst_378 : f32 to vector<16x128xf32>
    %996 = arith.mulf %995, %994 : vector<16x128xf32>
    %cst_379 = arith.constant 4.471500e-02 : f32
    %997 = vector.broadcast %cst_379 : f32 to vector<16x128xf32>
    %998 = arith.mulf %997, %994 : vector<16x128xf32>
    %999 = arith.mulf %998, %994 : vector<16x128xf32>
    %1000 = arith.mulf %999, %994 : vector<16x128xf32>
    %1001 = arith.addf %994, %1000 : vector<16x128xf32>
    %cst_380 = arith.constant 0.797884583 : f32
    %1002 = vector.broadcast %cst_380 : f32 to vector<16x128xf32>
    %1003 = arith.mulf %1002, %1001 : vector<16x128xf32>
    %1004 = math.tanh %1003 : vector<16x128xf32>
    %cst_381 = arith.constant 1.000000e+00 : f32
    %1005 = vector.broadcast %cst_381 : f32 to vector<16x128xf32>
    %1006 = arith.addf %1005, %1004 : vector<16x128xf32>
    %1007 = arith.mulf %996, %1006 : vector<16x128xf32>
    %1008 = arith.truncf %1007 : vector<16x128xf32> to vector<16x128xbf16>
    %c5_382 = arith.constant 5 : index
    %c0_383 = arith.constant 0 : index
    %c0_384 = arith.constant 0 : index
    %1009 = vector.load %arg12[%c5_382, %c0_383, %c0_384] : memref<6x128x32xbf16, #tpu.memory_space<vmem>>, vector<1x128x32xbf16>
    %1010 = vector.shape_cast %1009 : vector<1x128x32xbf16> to vector<128x32xbf16>
    %cst_385 = arith.constant dense<0.000000e+00> : vector<16x32xf32>
    %1011 = tpu.matmul %1008, %1010, %cst_385 {dimension_numbers = #tpu.dot_dimension_numbers<[1], [0], [0], [1], [0, 0, 1, 1], [], []>} : vector<16x128xbf16>, vector<128x32xbf16>, vector<16x32xf32> -> vector<16x32xf32>
    %c5_386 = arith.constant 5 : index
    %c0_387 = arith.constant 0 : index
    %c0_388 = arith.constant 0 : index
    %1012 = vector.load %arg13[%c5_386, %c0_387, %c0_388] : memref<6x1x32xf32, #tpu.memory_space<vmem>>, vector<1x1x32xf32>
    %1013 = vector.shape_cast %1012 : vector<1x1x32xf32> to vector<1x32xf32>
    %1014 = vector.broadcast %1013 : vector<1x32xf32> to vector<16x32xf32>
    %1015 = arith.addf %1011, %1014 : vector<16x32xf32>
    %1016 = arith.addf %962, %1015 : vector<16x32xf32>
    %1017 = tpu.concatenate %509, %678, %847, %1016 in 0 : vector<16x32xf32>, vector<16x32xf32>, vector<16x32xf32>, vector<16x32xf32> -> vector<64x32xf32>
    %c0_389 = arith.constant 0 : index
    %c0_390 = arith.constant 0 : index
    %1018 = vector.load %arg14[%c0_389, %c0_390] : memref<1x32xf32, #tpu.memory_space<vmem>>, vector<1x32xf32>
    %c0_391 = arith.constant 0 : index
    %c0_392 = arith.constant 0 : index
    %1019 = vector.load %arg15[%c0_391, %c0_392] : memref<1x32xf32, #tpu.memory_space<vmem>>, vector<1x32xf32>
    %cst_393 = arith.constant dense<0.000000e+00> : vector<64xf32>
    %1020 = vector.multi_reduction <add>, %1017, %cst_393 [1] : vector<64x32xf32> to vector<64xf32>
    %1021 = vector.shape_cast %1020 : vector<64xf32> to vector<64x1xf32>
    %cst_394 = arith.constant 3.200000e+01 : f32
    %1022 = vector.broadcast %cst_394 : f32 to vector<64x1xf32>
    %1023 = arith.divf %1021, %1022 : vector<64x1xf32>
    %1024 = vector.broadcast %1023 : vector<64x1xf32> to vector<64x32xf32>
    %1025 = arith.subf %1017, %1024 : vector<64x32xf32>
    %1026 = arith.mulf %1025, %1025 : vector<64x32xf32>
    %cst_395 = arith.constant dense<0.000000e+00> : vector<64xf32>
    %1027 = vector.multi_reduction <add>, %1026, %cst_395 [1] : vector<64x32xf32> to vector<64xf32>
    %1028 = vector.shape_cast %1027 : vector<64xf32> to vector<64x1xf32>
    %cst_396 = arith.constant 3.200000e+01 : f32
    %1029 = vector.broadcast %cst_396 : f32 to vector<64x1xf32>
    %1030 = arith.divf %1028, %1029 : vector<64x1xf32>
    %cst_397 = arith.constant 9.99999974E-6 : f32
    %1031 = vector.broadcast %cst_397 : f32 to vector<64x1xf32>
    %1032 = arith.addf %1030, %1031 : vector<64x1xf32>
    %1033 = math.rsqrt %1032 : vector<64x1xf32>
    %1034 = vector.broadcast %1033 : vector<64x1xf32> to vector<64x32xf32>
    %1035 = arith.mulf %1025, %1034 : vector<64x32xf32>
    %1036 = vector.broadcast %1018 : vector<1x32xf32> to vector<64x32xf32>
    %1037 = arith.mulf %1035, %1036 : vector<64x32xf32>
    %1038 = vector.broadcast %1019 : vector<1x32xf32> to vector<64x32xf32>
    %1039 = arith.addf %1037, %1038 : vector<64x32xf32>
    %1040 = arith.truncf %1039 : vector<64x32xf32> to vector<64x32xbf16>
    %c0_398 = arith.constant 0 : index
    %c0_399 = arith.constant 0 : index
    %1041 = vector.load %arg16[%c0_398, %c0_399] : memref<32x128xbf16, #tpu.memory_space<vmem>>, vector<32x128xbf16>
    %cst_400 = arith.constant dense<0.000000e+00> : vector<64x128xf32>
    %1042 = tpu.matmul %1040, %1041, %cst_400 {dimension_numbers = #tpu.dot_dimension_numbers<[1], [0], [0], [1], [0, 0, 1, 1], [], []>} : vector<64x32xbf16>, vector<32x128xbf16>, vector<64x128xf32> -> vector<64x128xf32>
    %c0_401 = arith.constant 0 : index
    %c0_402 = arith.constant 0 : index
    %1043 = vector.load %arg17[%c0_401, %c0_402] : memref<64x128xf32, #tpu.memory_space<vmem>>, vector<64x128xf32>
    tpu.vector_store %arg17[%c0_401, %c0_402], %1042 {strides = array<i32>} : memref<64x128xf32, #tpu.memory_space<vmem>>, vector<64x128xf32>,
    return
  }
}

</mosaic_0001>

<llo_original>
// kernel: multi_token_gpt2_forward.1
$region0: #{multi_token_gpt2_forward.1}
  #allocation0 [shape = 'u32[]', space=smem, size = 0x4, offset = 0x4, fixed_abs, tag = 'smem constant byte address 0x4 - core index']
  #allocation1 [shape = 'u32[144,128]{1,0:T(1,128)}', space=vmem, size = 0x12000, scoped, tag = 'internal scratch']
  %s0 = inlined_call_operand.vmem [shape: f32[16,32], index: 0, kind: input, shape index: {}]
  %s1 = inlined_call_operand.vmem [shape: f32[16,16], index: 1, kind: input, shape index: {}]
  %s2 = inlined_call_operand.vmem [shape: f32[6,1,32], index: 2, kind: input, shape index: {}]
  %s3 = inlined_call_operand.vmem [shape: f32[6,1,32], index: 3, kind: input, shape index: {}]
  %s4 = inlined_call_operand.vmem [shape: bf16[6,32,96], index: 4, kind: input, shape index: {}]
  %s5 = inlined_call_operand.vmem [shape: f32[6,1,96], index: 5, kind: input, shape index: {}]
  %s6 = inlined_call_operand.vmem [shape: bf16[6,32,32], index: 6, kind: input, shape index: {}]
  %s7 = inlined_call_operand.vmem [shape: f32[6,1,32], index: 7, kind: input, shape index: {}]
  %s8 = inlined_call_operand.vmem [shape: f32[6,1,32], index: 8, kind: input, shape index: {}]
  %s9 = inlined_call_operand.vmem [shape: f32[6,1,32], index: 9, kind: input, shape index: {}]
  %s10 = inlined_call_operand.vmem [shape: bf16[6,32,128], index: 10, kind: input, shape index: {}]
  %s11 = inlined_call_operand.vmem [shape: f32[6,1,128], index: 11, kind: input, shape index: {}]
  %s12 = inlined_call_operand.vmem [shape: bf16[6,128,32], index: 12, kind: input, shape index: {}]
  %s13 = inlined_call_operand.vmem [shape: f32[6,1,32], index: 13, kind: input, shape index: {}]
  %s14 = inlined_call_operand.vmem [shape: f32[1,32], index: 14, kind: input, shape index: {}]
  %s15 = inlined_call_operand.vmem [shape: f32[1,32], index: 15, kind: input, shape index: {}]
  %s16 = inlined_call_operand.vmem [shape: bf16[32,128], index: 16, kind: input, shape index: {}]
  %s17 = inlined_call_operand.vmem [shape: f32[64,128], index: 17, kind: output, shape index: {0}]
  %s18 = inlined_call_operand.hbm [shape: f32[16,32], index: 18, kind: output, shape index: {1}]
  %19 = xla_tuple %s17, %s18
  %s20 = sld [smem:[#allocation0]]
  $region86: #{multi_token_gpt2_forward.1} parent=0
    _
  %s22 = ssub.s32 1, %s20
  %s23 = scalar_select 0, %s22, %s20
  $region1: #{multi_token_gpt2_forward.1} parent=0
    #allocation2 [shape = 'u8[8192]{0}', space=vmem, size = 0x2000, scoped, tag = 'output window, operand 1, single buffered']
    #allocation3 [shape = 's32[1]{0}', space=sflag, size = 0x4, scoped, tag = 'scoped memory for multi_token_gpt2_forward.1']
    %24 = vsyncpa [#allocation3], 0
    // Predicated region
    $region2: #{multi_token_gpt2_forward.1} parent=1 // pred_check
      _
    $region3: #{multi_token_gpt2_forward.1} parent=1 // pred_check_branch
      %26 = sbr.rel (0) target = $region5
    $region4: #{multi_token_gpt2_forward.1} parent=1 // pred_region
      _
    $region5: #{multi_token_gpt2_forward.1} parent=1 // pred_fallthru
      _
    // Predicated region
    $region6: #{multi_token_gpt2_forward.1} parent=1 // pred_check
      _
    $region7: #{multi_token_gpt2_forward.1} parent=1 // pred_check_branch
      %28 = sbr.rel (0) target = $region9
    $region8: #{multi_token_gpt2_forward.1} parent=1 // pred_region
      _
    $region9: #{multi_token_gpt2_forward.1} parent=1 // pred_fallthru
      _
    // Predicated region
    $region10: #{multi_token_gpt2_forward.1} parent=1 // pred_check
      _
    $region11: #{multi_token_gpt2_forward.1} parent=1 // pred_check_branch
      %30 = sbr.rel (0) target = $region13
    $region12: #{multi_token_gpt2_forward.1} parent=1 // pred_region
      _
    $region13: #{multi_token_gpt2_forward.1} parent=1 // pred_fallthru
      _
    // Predicated region
    $region14: #{multi_token_gpt2_forward.1} parent=1 // pred_check
      _
    $region15: #{multi_token_gpt2_forward.1} parent=1 // pred_check_branch
      %32 = sbr.rel (0) target = $region17
    $region16: #{multi_token_gpt2_forward.1} parent=1 // pred_region
      _
    $region17: #{multi_token_gpt2_forward.1} parent=1 // pred_fallthru
      _
    // Predicated region
    $region18: #{multi_token_gpt2_forward.1} parent=1 // pred_check
      _
    $region19: #{multi_token_gpt2_forward.1} parent=1 // pred_check_branch
      %34 = sbr.rel (0) target = $region21
    $region20: #{multi_token_gpt2_forward.1} parent=1 // pred_region
      _
    $region21: #{multi_token_gpt2_forward.1} parent=1 // pred_fallthru
      _
    // Predicated region
    $region22: #{multi_token_gpt2_forward.1} parent=1 // pred_check
      _
    $region23: #{multi_token_gpt2_forward.1} parent=1 // pred_check_branch
      %36 = sbr.rel (0) target = $region25
    $region24: #{multi_token_gpt2_forward.1} parent=1 // pred_region
      _
    $region25: #{multi_token_gpt2_forward.1} parent=1 // pred_fallthru
      _
    // Predicated region
    $region26: #{multi_token_gpt2_forward.1} parent=1 // pred_check
      _
    $region27: #{multi_token_gpt2_forward.1} parent=1 // pred_check_branch
      %38 = sbr.rel (0) target = $region29
    $region28: #{multi_token_gpt2_forward.1} parent=1 // pred_region
      _
    $region29: #{multi_token_gpt2_forward.1} parent=1 // pred_fallthru
      _
    // Predicated region
    $region30: #{multi_token_gpt2_forward.1} parent=1 // pred_check
      _
    $region31: #{multi_token_gpt2_forward.1} parent=1 // pred_check_branch
      %40 = sbr.rel (0) target = $region33
    $region32: #{multi_token_gpt2_forward.1} parent=1 // pred_region
      _
    $region33: #{multi_token_gpt2_forward.1} parent=1 // pred_fallthru
      _
    // Predicated region
    $region34: #{multi_token_gpt2_forward.1} parent=1 // pred_check
      _
    $region35: #{multi_token_gpt2_forward.1} parent=1 // pred_check_branch
      %42 = sbr.rel (0) target = $region37
    $region36: #{multi_token_gpt2_forward.1} parent=1 // pred_region
      _
    $region37: #{multi_token_gpt2_forward.1} parent=1 // pred_fallthru
      _
    // Predicated region
    $region38: #{multi_token_gpt2_forward.1} parent=1 // pred_check
      _
    $region39: #{multi_token_gpt2_forward.1} parent=1 // pred_check_branch
      %44 = sbr.rel (0) target = $region41
    $region40: #{multi_token_gpt2_forward.1} parent=1 // pred_region
      _
    $region41: #{multi_token_gpt2_forward.1} parent=1 // pred_fallthru
      _
    // Predicated region
    $region42: #{multi_token_gpt2_forward.1} parent=1 // pred_check
      _
    $region43: #{multi_token_gpt2_forward.1} parent=1 // pred_check_branch
      %46 = sbr.rel (0) target = $region45
    $region44: #{multi_token_gpt2_forward.1} parent=1 // pred_region
      _
    $region45: #{multi_token_gpt2_forward.1} parent=1 // pred_fallthru
      _
    // Predicated region
    $region46: #{multi_token_gpt2_forward.1} parent=1 // pred_check
      _
    $region47: #{multi_token_gpt2_forward.1} parent=1 // pred_check_branch
      %48 = sbr.rel (0) target = $region49
    $region48: #{multi_token_gpt2_forward.1} parent=1 // pred_region
      _
    $region49: #{multi_token_gpt2_forward.1} parent=1 // pred_fallthru
      _
    // Predicated region
    $region50: #{multi_token_gpt2_forward.1} parent=1 // pred_check
      _
    $region51: #{multi_token_gpt2_forward.1} parent=1 // pred_check_branch
      %50 = sbr.rel (0) target = $region53
    $region52: #{multi_token_gpt2_forward.1} parent=1 // pred_region
      _
    $region53: #{multi_token_gpt2_forward.1} parent=1 // pred_fallthru
      _
    // Predicated region
    $region54: #{multi_token_gpt2_forward.1} parent=1 // pred_check
      _
    $region55: #{multi_token_gpt2_forward.1} parent=1 // pred_check_branch
      %52 = sbr.rel (0) target = $region57
    $region56: #{multi_token_gpt2_forward.1} parent=1 // pred_region
      _
    $region57: #{multi_token_gpt2_forward.1} parent=1 // pred_fallthru
      _
    // Predicated region
    $region58: #{multi_token_gpt2_forward.1} parent=1 // pred_check
      _
    $region59: #{multi_token_gpt2_forward.1} parent=1 // pred_check_branch
      %54 = sbr.rel (0) target = $region61
    $region60: #{multi_token_gpt2_forward.1} parent=1 // pred_region
      _
    $region61: #{multi_token_gpt2_forward.1} parent=1 // pred_fallthru
      _
    // Predicated region
    $region62: #{multi_token_gpt2_forward.1} parent=1 // pred_check
      _
    $region63: #{multi_token_gpt2_forward.1} parent=1 // pred_check_branch
      %56 = sbr.rel (0) target = $region65
    $region64: #{multi_token_gpt2_forward.1} parent=1 // pred_region
      _
    $region65: #{multi_token_gpt2_forward.1} parent=1 // pred_fallthru
      _
    // Predicated region
    $region66: #{multi_token_gpt2_forward.1} parent=1 // pred_check
      _
    $region67: #{multi_token_gpt2_forward.1} parent=1 // pred_check_branch
      %58 = sbr.rel (0) target = $region69
    $region68: #{multi_token_gpt2_forward.1} parent=1 // pred_region
      _
    $region69: #{multi_token_gpt2_forward.1} parent=1 // pred_fallthru
      _
    %v60 = vld [vmem:[%s0] sm:$0xff]
    %v61 = vld [vmem:[%s0 + $0x8] sm:$0xff]
    %v62 = vld [vmem:[%s1] sm:$0xff]
    %v63 = vld [vmem:[%s1 + $0x8] sm:$0xff]
    %v64 = vld [vmem:[%s2] sm:$0x1]
    %v65 = vld [vmem:[%s3] sm:$0x1]
    %vm66 = vcmask 261120
    %v67 = vsel %vm66, %v60, 0.0
    %68 = vadd.xlane.f32.xlu0 %v67
    %v69 = vpop.xlane.xlu0 %68
    %v70 = vsel %vm66, %v61, 0.0
    %71 = vadd.xlane.f32.xlu0 %v70
    %v72 = vpop.xlane.xlu0 %71
    %v73 = vrcp.pop 32.0
    %v74 = vmul.f32 %v69, %v73
    %v75 = vmul.f32 %v72, %v73
    %v76 = vsub.f32 %v60, %v74
    %v77 = vsub.f32 %v61, %v75
    %v78 = vmul.f32 %v76, %v76
    %v79 = vmul.f32 %v77, %v77
    %v80 = vsel %vm66, %v78, 0.0
    %81 = vadd.xlane.f32.xlu0 %v80
    %v82 = vpop.xlane.xlu0 %81
    %v83 = vsel %vm66, %v79, 0.0
    %84 = vadd.xlane.f32.xlu0 %v83
    %v85 = vpop.xlane.xlu0 %84
    %v86 = vmul.f32 %v82, %v73
    %v87 = vmul.f32 %v85, %v73
    %v88 = vadd.f32 %v86, 1e-05
    %v89 = vadd.f32 %v87, 1e-05
    %v90 = vrsqrt.pop %v88
    %v91 = vrsqrt.pop %v89
    %v92 = vmul.f32 %v76, %v90
    %v93 = vmul.f32 %v77, %v91
    %v95 = vlaneseq
    %v96 = vshrl.u32 %v95, 7
    %v97 = vsub.s32 0, %v96
    %v98 = vrot.slane %v64, %v97
    %v100 = vmul.f32 %v92, %v98
    %v101 = vmul.f32 %v93, %v98
    %v103 = vlaneseq
    %v104 = vshrl.u32 %v103, 7
    %v105 = vsub.s32 0, %v104
    %v106 = vrot.slane %v65, %v105
    %v108 = vadd.f32 %v100, %v106
    %v109 = vadd.f32 %v101, %v106
    %v110 = vpack.c.bf16 %v109, %v108
    %v111 = vld [vmem:[%s4] sm:$0xf]
    %v112 = vld [vmem:[%s4 + $0x4] sm:$0xf]
    %v113 = vld [vmem:[%s4 + $0x8] sm:$0xf]
    %v114 = vld [vmem:[%s4 + $0xc] sm:$0xf]
    %v115 = vld [vmem:[%s5] sm:$0x1]
    %v117 = vlaneseq
    %v118 = vshrl.u32 %v117, 7
    %v119 = vsub.s32 0, %v118
    %v120 = vrot.slane %v115, %v119
    %v126 = vunpack.c.l.b16 %v111
    %v127 = vunpack.c.l.b16 %v112
    %v128 = vunpack.c.l.b16 %v113
    %v129 = vunpack.c.l.b16 %v114
    %v130 = vpack.c.b16 %v127, %v126
    %v131 = vpack.c.b16 %v129, %v128
    %v135 = vsel %vm66, %v110, 0
    %137 = vmatprep.subr.bf16.mxu0 0
    %138 = vmatpush1.bf16.msra.mxu0 0
    %139 = vmatprep.subr.bf16.mxu0 0
    %140 = vmatpush1.bf16.msra.mxu0 0
    %141 = vmatprep.subr.bf16.mxu0 0
    %142 = vmatpush1.bf16.msra.mxu0 0
    %143 = vmatprep.subr.bf16.mxu0 0
    %144 = vmatpush1.bf16.msra.mxu0 0
    %145 = vmatprep.subr.bf16.mxu0 0
    %146 = vmatpush1.bf16.msra.mxu0 0
    %147 = vmatprep.subr.bf16.mxu0 0
    %148 = vmatpush1.bf16.msra.mxu0 0
    %149 = vmatprep.subr.bf16.mxu0 0
    %150 = vmatpush1.bf16.msra.mxu0 %v131
    %151 = vmatprep.subr.bf16.mxu0 0
    %152 = vmatpush1.bf16.msra.mxu0 %v130
    %153 = vmatprep.subr.bf16.mxu0 0
    %154 = vmatpush2.bf16.msra.mxu0 0
    %155 = vmatprep.subr.bf16.mxu0 0
    %156 = vmatpush2.bf16.msra.mxu0 0
    %157 = vmatprep.subr.bf16.mxu0 0
    %158 = vmatpush2.bf16.msra.mxu0 0
    %159 = vmatprep.subr.bf16.mxu0 0
    %160 = vmatpush2.bf16.msra.mxu0 0
    %161 = vmatprep.subr.bf16.mxu0 0
    %162 = vmatpush2.bf16.msra.mxu0 0
    %163 = vmatprep.subr.bf16.mxu0 0
    %164 = vmatpush2.bf16.msra.mxu0 0
    %165 = vmatprep.subr.bf16.mxu0 0
    %166 = vmatpush2.bf16.msra.mxu0 0
    %167 = vmatprep.subr.bf16.mxu0 0
    %168 = vmatpush2.bf16.msra.mxu0 0
    %169 = vmatprep.mubr.bf16.mxu0 0
    %170 = vmatmul.mubr.bf16.gmra.mxu0 %v135
    %v171 = vpop.f32.mrf.mxu0
    %v172 = vadd.f32 %v120, %v171
    %v173 = vpop.f32.mrf.mxu0
    %v174 = vpop.f32.mrf.mxu0
    %v175 = vadd.f32 %v120, %v174
    %v176 = vpop.f32.mrf.mxu0
    %177 = vdwg.mxu0
    %v178 = vmul.f32 %v172, 0.35355338
    %v179 = vmul.f32 %v175, 0.35355338
    %v180 = vpack.c.bf16 %v179, %v178
    %v181 = vpack.c.bf16 %v175, %v172
    %183 = vrot.lane.b32.xlu0 %v181, 96
    %v184 = vpop.permute.xlu0 %183
    %vm185 = vcmask 64512
    %v187 = vsel %vm185, %v180, 0
    %v190 = vsel %vm185, %v184, 0
    %192 = vmatprep.subr.bf16.mxu0 0
    %193 = vmatpush1.bf16.xpose.msra.mxu0 0
    %194 = vmatprep.subr.bf16.mxu0 0
    %195 = vmatpush1.bf16.xpose.msra.mxu0 0
    %196 = vmatprep.subr.bf16.mxu0 0
    %197 = vmatpush1.bf16.xpose.msra.mxu0 0
    %198 = vmatprep.subr.bf16.mxu0 0
    %199 = vmatpush1.bf16.xpose.msra.mxu0 0
    %200 = vmatprep.subr.bf16.mxu0 0
    %201 = vmatpush1.bf16.xpose.msra.mxu0 0
    %202 = vmatprep.subr.bf16.mxu0 0
    %203 = vmatpush1.bf16.xpose.msra.mxu0 0
    %204 = vmatprep.subr.bf16.mxu0 0
    %205 = vmatpush1.bf16.xpose.msra.mxu0 0
    %206 = vmatprep.subr.bf16.mxu0 0
    %207 = vmatpush1.bf16.xpose.msra.mxu0 %v190
    %208 = vmatprep.subr.bf16.mxu0 0
    %209 = vmatpush2.bf16.xpose.msra.mxu0 0
    %210 = vmatprep.subr.bf16.mxu0 0
    %211 = vmatpush2.bf16.xpose.msra.mxu0 0
    %212 = vmatprep.subr.bf16.mxu0 0
    %213 = vmatpush2.bf16.xpose.msra.mxu0 0
    %214 = vmatprep.subr.bf16.mxu0 0
    %215 = vmatpush2.bf16.xpose.msra.mxu0 0
    %216 = vmatprep.subr.bf16.mxu0 0
    %217 = vmatpush2.bf16.xpose.msra.mxu0 0
    %218 = vmatprep.subr.bf16.mxu0 0
    %219 = vmatpush2.bf16.xpose.msra.mxu0 0
    %220 = vmatprep.subr.bf16.mxu0 0
    %221 = vmatpush2.bf16.xpose.msra.mxu0 0
    %222 = vmatprep.subr.bf16.mxu0 0
    %223 = vmatpush2.bf16.xpose.msra.mxu0 0
    %224 = vmatprep.mubr.bf16.mxu0 0
    %225 = vmatmul.mubr.bf16.gmra.mxu0 %v187
    %v226 = vpop.f32.mrf.mxu0
    %v227 = vadd.f32 %v62, %v226
    %v228 = vpop.f32.mrf.mxu0
    %v229 = vpop.f32.mrf.mxu0
    %v230 = vadd.f32 %v63, %v229
    %v231 = vpop.f32.mrf.mxu0
    %232 = vdwg.mxu0
    %234 = vrot.lane.b32.xlu0 %v180, 120
    %v235 = vpop.permute.xlu0 %234
    %236 = vrot.lane.b32.xlu0 %v181, 88
    %v237 = vpop.permute.xlu0 %236
    %v239 = vsel %vm185, %v235, 0
    %v242 = vsel %vm185, %v237, 0
    %244 = vmatprep.subr.bf16.mxu0 0
    %245 = vmatpush1.bf16.xpose.msra.mxu0 0
    %246 = vmatprep.subr.bf16.mxu0 0
    %247 = vmatpush1.bf16.xpose.msra.mxu0 0
    %248 = vmatprep.subr.bf16.mxu0 0
    %249 = vmatpush1.bf16.xpose.msra.mxu0 0
    %250 = vmatprep.subr.bf16.mxu0 0
    %251 = vmatpush1.bf16.xpose.msra.mxu0 0
    %252 = vmatprep.subr.bf16.mxu0 0
    %253 = vmatpush1.bf16.xpose.msra.mxu0 0
    %254 = vmatprep.subr.bf16.mxu0 0
    %255 = vmatpush1.bf16.xpose.msra.mxu0 0
    %256 = vmatprep.subr.bf16.mxu0 0
    %257 = vmatpush1.bf16.xpose.msra.mxu0 0
    %258 = vmatprep.subr.bf16.mxu0 0
    %259 = vmatpush1.bf16.xpose.msra.mxu0 %v242
    %260 = vmatprep.subr.bf16.mxu0 0
    %261 = vmatpush2.bf16.xpose.msra.mxu0 0
    %262 = vmatprep.subr.bf16.mxu0 0
    %263 = vmatpush2.bf16.xpose.msra.mxu0 0
    %264 = vmatprep.subr.bf16.mxu0 0
    %265 = vmatpush2.bf16.xpose.msra.mxu0 0
    %266 = vmatprep.subr.bf16.mxu0 0
    %267 = vmatpush2.bf16.xpose.msra.mxu0 0
    %268 = vmatprep.subr.bf16.mxu0 0
    %269 = vmatpush2.bf16.xpose.msra.mxu0 0
    %270 = vmatprep.subr.bf16.mxu0 0
    %271 = vmatpush2.bf16.xpose.msra.mxu0 0
    %272 = vmatprep.subr.bf16.mxu0 0
    %273 = vmatpush2.bf16.xpose.msra.mxu0 0
    %274 = vmatprep.subr.bf16.mxu0 0
    %275 = vmatpush2.bf16.xpose.msra.mxu0 0
    %276 = vmatprep.mubr.bf16.mxu0 0
    %277 = vmatmul.mubr.bf16.gmra.mxu0 %v239
    %v278 = vpop.f32.mrf.mxu0
    %v279 = vadd.f32 %v62, %v278
    %v280 = vpop.f32.mrf.mxu0
    %v281 = vpop.f32.mrf.mxu0
    %v282 = vadd.f32 %v63, %v281
    %v283 = vpop.f32.mrf.mxu0
    %284 = vdwg.mxu0
    %285 = vrot.lane.b32.xlu0 %v180, 112
    %v286 = vpop.permute.xlu0 %285
    %287 = vrot.lane.b32.xlu0 %v181, 80
    %v288 = vpop.permute.xlu0 %287
    %v290 = vsel %vm185, %v286, 0
    %v293 = vsel %vm185, %v288, 0
    %295 = vmatprep.subr.bf16.mxu0 0
    %296 = vmatpush1.bf16.xpose.msra.mxu0 0
    %297 = vmatprep.subr.bf16.mxu0 0
    %298 = vmatpush1.bf16.xpose.msra.mxu0 0
    %299 = vmatprep.subr.bf16.mxu0 0
    %300 = vmatpush1.bf16.xpose.msra.mxu0 0
    %301 = vmatprep.subr.bf16.mxu0 0
    %302 = vmatpush1.bf16.xpose.msra.mxu0 0
    %303 = vmatprep.subr.bf16.mxu0 0
    %304 = vmatpush1.bf16.xpose.msra.mxu0 0
    %305 = vmatprep.subr.bf16.mxu0 0
    %306 = vmatpush1.bf16.xpose.msra.mxu0 0
    %307 = vmatprep.subr.bf16.mxu0 0
    %308 = vmatpush1.bf16.xpose.msra.mxu0 0
    %309 = vmatprep.subr.bf16.mxu0 0
    %310 = vmatpush1.bf16.xpose.msra.mxu0 %v293
    %311 = vmatprep.subr.bf16.mxu0 0
    %312 = vmatpush2.bf16.xpose.msra.mxu0 0
    %313 = vmatprep.subr.bf16.mxu0 0
    %314 = vmatpush2.bf16.xpose.msra.mxu0 0
    %315 = vmatprep.subr.bf16.mxu0 0
    %316 = vmatpush2.bf16.xpose.msra.mxu0 0
    %317 = vmatprep.subr.bf16.mxu0 0
    %318 = vmatpush2.bf16.xpose.msra.mxu0 0
    %319 = vmatprep.subr.bf16.mxu0 0
    %320 = vmatpush2.bf16.xpose.msra.mxu0 0
    %321 = vmatprep.subr.bf16.mxu0 0
    %322 = vmatpush2.bf16.xpose.msra.mxu0 0
    %323 = vmatprep.subr.bf16.mxu0 0
    %324 = vmatpush2.bf16.xpose.msra.mxu0 0
    %325 = vmatprep.subr.bf16.mxu0 0
    %326 = vmatpush2.bf16.xpose.msra.mxu0 0
    %327 = vmatprep.mubr.bf16.mxu0 0
    %328 = vmatmul.mubr.bf16.gmra.mxu0 %v290
    %v329 = vpop.f32.mrf.mxu0
    %v330 = vadd.f32 %v62, %v329
    %v331 = vpop.f32.mrf.mxu0
    %v332 = vpop.f32.mrf.mxu0
    %v333 = vadd.f32 %v63, %v332
    %v334 = vpop.f32.mrf.mxu0
    %335 = vdwg.mxu0
    %336 = vrot.lane.b32.xlu0 %v180, 104
    %v337 = vpop.permute.xlu0 %336
    %338 = vrot.lane.b32.xlu0 %v181, 72
    %v339 = vpop.permute.xlu0 %338
    %v341 = vsel %vm185, %v337, 0
    %v344 = vsel %vm185, %v339, 0
    %346 = vmatprep.subr.bf16.mxu0 0
    %347 = vmatpush1.bf16.xpose.msra.mxu0 0
    %348 = vmatprep.subr.bf16.mxu0 0
    %349 = vmatpush1.bf16.xpose.msra.mxu0 0
    %350 = vmatprep.subr.bf16.mxu0 0
    %351 = vmatpush1.bf16.xpose.msra.mxu0 0
    %352 = vmatprep.subr.bf16.mxu0 0
    %353 = vmatpush1.bf16.xpose.msra.mxu0 0
    %354 = vmatprep.subr.bf16.mxu0 0
    %355 = vmatpush1.bf16.xpose.msra.mxu0 0
    %356 = vmatprep.subr.bf16.mxu0 0
    %357 = vmatpush1.bf16.xpose.msra.mxu0 0
    %358 = vmatprep.subr.bf16.mxu0 0
    %359 = vmatpush1.bf16.xpose.msra.mxu0 0
    %360 = vmatprep.subr.bf16.mxu0 0
    %361 = vmatpush1.bf16.xpose.msra.mxu0 %v344
    %362 = vmatprep.subr.bf16.mxu0 0
    %363 = vmatpush2.bf16.xpose.msra.mxu0 0
    %364 = vmatprep.subr.bf16.mxu0 0
    %365 = vmatpush2.bf16.xpose.msra.mxu0 0
    %366 = vmatprep.subr.bf16.mxu0 0
    %367 = vmatpush2.bf16.xpose.msra.mxu0 0
    %368 = vmatprep.subr.bf16.mxu0 0
    %369 = vmatpush2.bf16.xpose.msra.mxu0 0
    %370 = vmatprep.subr.bf16.mxu0 0
    %371 = vmatpush2.bf16.xpose.msra.mxu0 0
    %372 = vmatprep.subr.bf16.mxu0 0
    %373 = vmatpush2.bf16.xpose.msra.mxu0 0
    %374 = vmatprep.subr.bf16.mxu0 0
    %375 = vmatpush2.bf16.xpose.msra.mxu0 0
    %376 = vmatprep.subr.bf16.mxu0 0
    %377 = vmatpush2.bf16.xpose.msra.mxu0 0
    %378 = vmatprep.mubr.bf16.mxu0 0
    %379 = vmatmul.mubr.bf16.gmra.mxu0 %v341
    %v380 = vpop.f32.mrf.mxu0
    %v381 = vadd.f32 %v62, %v380
    %v382 = vpop.f32.mrf.mxu0
    %v383 = vpop.f32.mrf.mxu0
    %v384 = vadd.f32 %v63, %v383
    %v385 = vpop.f32.mrf.mxu0
    %386 = vdwg.mxu0
    %vm387 = vcmask 130048
    %v388 = vsel %vm387, %v227, -inf
    %389 = vmax.xlane.f32.xlu0 %v388
    %v390 = vpop.xlane.xlu0 %389
    %v391 = vsel %vm387, %v230, -inf
    %392 = vmax.xlane.f32.xlu0 %v391
    %v393 = vpop.xlane.xlu0 %392
    %v394 = vsel %vm387, %v279, -inf
    %395 = vmax.xlane.f32.xlu0 %v394
    %v396 = vpop.xlane.xlu0 %395
    %v397 = vsel %vm387, %v282, -inf
    %398 = vmax.xlane.f32.xlu0 %v397
    %v399 = vpop.xlane.xlu0 %398
    %v400 = vsel %vm387, %v330, -inf
    %401 = vmax.xlane.f32.xlu0 %v400
    %v402 = vpop.xlane.xlu0 %401
    %v403 = vsel %vm387, %v333, -inf
    %404 = vmax.xlane.f32.xlu0 %v403
    %v405 = vpop.xlane.xlu0 %404
    %v406 = vsel %vm387, %v381, -inf
    %407 = vmax.xlane.f32.xlu0 %v406
    %v408 = vpop.xlane.xlu0 %407
    %v409 = vsel %vm387, %v384, -inf
    %410 = vmax.xlane.f32.xlu0 %v409
    %v411 = vpop.xlane.xlu0 %410
    %v412 = vsub.f32 %v227, %v390
    %v413 = vsub.f32 %v230, %v393
    %v414 = vsub.f32 %v279, %v396
    %v415 = vsub.f32 %v282, %v399
    %v416 = vsub.f32 %v330, %v402
    %v417 = vsub.f32 %v333, %v405
    %v418 = vsub.f32 %v381, %v408
    %v419 = vsub.f32 %v384, %v411
    %v420 = vmul.f32 %v412, 1.442695
    %v421 = vpow.pop %v420
    %v422 = vmul.f32 %v413, 1.442695
    %v423 = vpow.pop %v422
    %v424 = vmul.f32 %v414, 1.442695
    %v425 = vpow.pop %v424
    %v426 = vmul.f32 %v415, 1.442695
    %v427 = vpow.pop %v426
    %v428 = vmul.f32 %v416, 1.442695
    %v429 = vpow.pop %v428
    %v430 = vmul.f32 %v417, 1.442695
    %v431 = vpow.pop %v430
    %v432 = vmul.f32 %v418, 1.442695
    %v433 = vpow.pop %v432
    %v434 = vmul.f32 %v419, 1.442695
    %v435 = vpow.pop %v434
    %v436 = vsel %vm387, %v421, 0.0
    %437 = vadd.xlane.f32.xlu0 %v436
    %v438 = vpop.xlane.xlu0 %437
    %v439 = vsel %vm387, %v423, 0.0
    %440 = vadd.xlane.f32.xlu0 %v439
    %v441 = vpop.xlane.xlu0 %440
    %v442 = vsel %vm387, %v425, 0.0
    %443 = vadd.xlane.f32.xlu0 %v442
    %v444 = vpop.xlane.xlu0 %443
    %v445 = vsel %vm387, %v427, 0.0
    %446 = vadd.xlane.f32.xlu0 %v445
    %v447 = vpop.xlane.xlu0 %446
    %v448 = vsel %vm387, %v429, 0.0
    %449 = vadd.xlane.f32.xlu0 %v448
    %v450 = vpop.xlane.xlu0 %449
    %v451 = vsel %vm387, %v431, 0.0
    %452 = vadd.xlane.f32.xlu0 %v451
    %v453 = vpop.xlane.xlu0 %452
    %v454 = vsel %vm387, %v433, 0.0
    %455 = vadd.xlane.f32.xlu0 %v454
    %v456 = vpop.xlane.xlu0 %455
    %v457 = vsel %vm387, %v435, 0.0
    %458 = vadd.xlane.f32.xlu0 %v457
    %v459 = vpop.xlane.xlu0 %458
    %v460 = vrcp.pop %v438
    %v461 = vrcp.pop %v441
    %v462 = vrcp.pop %v444
    %v463 = vrcp.pop %v447
    %v464 = vrcp.pop %v450
    %v465 = vrcp.pop %v453
    %v466 = vrcp.pop %v456
    %v467 = vrcp.pop %v459
    %v468 = vpack.c.bf16 %v423, %v421
    %469 = vrot.lane.b32.xlu0 %v181, 64
    %v470 = vpop.permute.xlu0 %469
    %v473 = vsel %vm387, %v468, 0
    %475 = vmatprep.subr.bf16.mxu0 0
    %476 = vmatpush1.bf16.msra.mxu0 0
    %477 = vmatprep.subr.bf16.mxu0 0
    %478 = vmatpush1.bf16.msra.mxu0 0
    %479 = vmatprep.subr.bf16.mxu0 0
    %480 = vmatpush1.bf16.msra.mxu0 0
    %481 = vmatprep.subr.bf16.mxu0 0
    %482 = vmatpush1.bf16.msra.mxu0 0
    %483 = vmatprep.subr.bf16.mxu0 0
    %484 = vmatpush1.bf16.msra.mxu0 0
    %485 = vmatprep.subr.bf16.mxu0 0
    %486 = vmatpush1.bf16.msra.mxu0 0
    %487 = vmatprep.subr.bf16.mxu0 0
    %488 = vmatpush1.bf16.msra.mxu0 0
    %489 = vmatprep.subr.bf16.mxu0 0
    %490 = vmatpush1.bf16.msra.mxu0 %v470
    %491 = vmatprep.subr.bf16.mxu0 0
    %492 = vmatpush2.bf16.msra.mxu0 0
    %493 = vmatprep.subr.bf16.mxu0 0
    %494 = vmatpush2.bf16.msra.mxu0 0
    %495 = vmatprep.subr.bf16.mxu0 0
    %496 = vmatpush2.bf16.msra.mxu0 0
    %497 = vmatprep.subr.bf16.mxu0 0
    %498 = vmatpush2.bf16.msra.mxu0 0
    %499 = vmatprep.subr.bf16.mxu0 0
    %500 = vmatpush2.bf16.msra.mxu0 0
    %501 = vmatprep.subr.bf16.mxu0 0
    %502 = vmatpush2.bf16.msra.mxu0 0
    %503 = vmatprep.subr.bf16.mxu0 0
    %504 = vmatpush2.bf16.msra.mxu0 0
    %505 = vmatprep.subr.bf16.mxu0 0
    %506 = vmatpush2.bf16.msra.mxu0 0
    %507 = vmatprep.mubr.bf16.mxu0 0
    %508 = vmatmul.mubr.bf16.gmra.mxu0 %v473
    %v509 = vpop.f32.mrf.mxu0
    %v510 = vadd.f32 0.0, %v509
    %v511 = vpop.f32.mrf.mxu0
    %v512 = vpop.f32.mrf.mxu0
    %v513 = vadd.f32 0.0, %v512
    %v514 = vpop.f32.mrf.mxu0
    %515 = vdwg.mxu0
    %v516 = vmul.f32 %v510, %v460
    %v517 = vmul.f32 %v513, %v461
    %v518 = vpack.c.bf16 %v427, %v425
    %519 = vrot.lane.b32.xlu0 %v181, 56
    %v520 = vpop.permute.xlu0 %519
    %v523 = vsel %vm387, %v518, 0
    %525 = vmatprep.subr.bf16.mxu0 0
    %526 = vmatpush1.bf16.msra.mxu0 0
    %527 = vmatprep.subr.bf16.mxu0 0
    %528 = vmatpush1.bf16.msra.mxu0 0
    %529 = vmatprep.subr.bf16.mxu0 0
    %530 = vmatpush1.bf16.msra.mxu0 0
    %531 = vmatprep.subr.bf16.mxu0 0
    %532 = vmatpush1.bf16.msra.mxu0 0
    %533 = vmatprep.subr.bf16.mxu0 0
    %534 = vmatpush1.bf16.msra.mxu0 0
    %535 = vmatprep.subr.bf16.mxu0 0
    %536 = vmatpush1.bf16.msra.mxu0 0
    %537 = vmatprep.subr.bf16.mxu0 0
    %538 = vmatpush1.bf16.msra.mxu0 0
    %539 = vmatprep.subr.bf16.mxu0 0
    %540 = vmatpush1.bf16.msra.mxu0 %v520
    %541 = vmatprep.subr.bf16.mxu0 0
    %542 = vmatpush2.bf16.msra.mxu0 0
    %543 = vmatprep.subr.bf16.mxu0 0
    %544 = vmatpush2.bf16.msra.mxu0 0
    %545 = vmatprep.subr.bf16.mxu0 0
    %546 = vmatpush2.bf16.msra.mxu0 0
    %547 = vmatprep.subr.bf16.mxu0 0
    %548 = vmatpush2.bf16.msra.mxu0 0
    %549 = vmatprep.subr.bf16.mxu0 0
    %550 = vmatpush2.bf16.msra.mxu0 0
    %551 = vmatprep.subr.bf16.mxu0 0
    %552 = vmatpush2.bf16.msra.mxu0 0
    %553 = vmatprep.subr.bf16.mxu0 0
    %554 = vmatpush2.bf16.msra.mxu0 0
    %555 = vmatprep.subr.bf16.mxu0 0
    %556 = vmatpush2.bf16.msra.mxu0 0
    %557 = vmatprep.mubr.bf16.mxu0 0
    %558 = vmatmul.mubr.bf16.gmra.mxu0 %v523
    %v559 = vpop.f32.mrf.mxu0
    %v560 = vadd.f32 0.0, %v559
    %v561 = vpop.f32.mrf.mxu0
    %v562 = vpop.f32.mrf.mxu0
    %v563 = vadd.f32 0.0, %v562
    %v564 = vpop.f32.mrf.mxu0
    %565 = vdwg.mxu0
    %v566 = vmul.f32 %v560, %v462
    %v567 = vmul.f32 %v563, %v463
    %v568 = vpack.c.bf16 %v431, %v429
    %569 = vrot.lane.b32.xlu0 %v181, 48
    %v570 = vpop.permute.xlu0 %569
    %v573 = vsel %vm387, %v568, 0
    %575 = vmatprep.subr.bf16.mxu0 0
    %576 = vmatpush1.bf16.msra.mxu0 0
    %577 = vmatprep.subr.bf16.mxu0 0
    %578 = vmatpush1.bf16.msra.mxu0 0
    %579 = vmatprep.subr.bf16.mxu0 0
    %580 = vmatpush1.bf16.msra.mxu0 0
    %581 = vmatprep.subr.bf16.mxu0 0
    %582 = vmatpush1.bf16.msra.mxu0 0
    %583 = vmatprep.subr.bf16.mxu0 0
    %584 = vmatpush1.bf16.msra.mxu0 0
    %585 = vmatprep.subr.bf16.mxu0 0
    %586 = vmatpush1.bf16.msra.mxu0 0
    %587 = vmatprep.subr.bf16.mxu0 0
    %588 = vmatpush1.bf16.msra.mxu0 0
    %589 = vmatprep.subr.bf16.mxu0 0
    %590 = vmatpush1.bf16.msra.mxu0 %v570
    %591 = vmatprep.subr.bf16.mxu0 0
    %592 = vmatpush2.bf16.msra.mxu0 0
    %593 = vmatprep.subr.bf16.mxu0 0
    %594 = vmatpush2.bf16.msra.mxu0 0
    %595 = vmatprep.subr.bf16.mxu0 0
    %596 = vmatpush2.bf16.msra.mxu0 0
    %597 = vmatprep.subr.bf16.mxu0 0
    %598 = vmatpush2.bf16.msra.mxu0 0
    %599 = vmatprep.subr.bf16.mxu0 0
    %600 = vmatpush2.bf16.msra.mxu0 0
    %601 = vmatprep.subr.bf16.mxu0 0
    %602 = vmatpush2.bf16.msra.mxu0 0
    %603 = vmatprep.subr.bf16.mxu0 0
    %604 = vmatpush2.bf16.msra.mxu0 0
    %605 = vmatprep.subr.bf16.mxu0 0
    %606 = vmatpush2.bf16.msra.mxu0 0
    %607 = vmatprep.mubr.bf16.mxu0 0
    %608 = vmatmul.mubr.bf16.gmra.mxu0 %v573
    %v609 = vpop.f32.mrf.mxu0
    %v610 = vadd.f32 0.0, %v609
    %v611 = vpop.f32.mrf.mxu0
    %v612 = vpop.f32.mrf.mxu0
    %v613 = vadd.f32 0.0, %v612
    %v614 = vpop.f32.mrf.mxu0
    %615 = vdwg.mxu0
    %v616 = vmul.f32 %v610, %v464
    %v617 = vmul.f32 %v613, %v465
    %v618 = vpack.c.bf16 %v435, %v433
    %619 = vrot.lane.b32.xlu0 %v181, 40
    %v620 = vpop.permute.xlu0 %619
    %v623 = vsel %vm387, %v618, 0
    %625 = vmatprep.subr.bf16.mxu0 0
    %626 = vmatpush1.bf16.msra.mxu0 0
    %627 = vmatprep.subr.bf16.mxu0 0
    %628 = vmatpush1.bf16.msra.mxu0 0
    %629 = vmatprep.subr.bf16.mxu0 0
    %630 = vmatpush1.bf16.msra.mxu0 0
    %631 = vmatprep.subr.bf16.mxu0 0
    %632 = vmatpush1.bf16.msra.mxu0 0
    %633 = vmatprep.subr.bf16.mxu0 0
    %634 = vmatpush1.bf16.msra.mxu0 0
    %635 = vmatprep.subr.bf16.mxu0 0
    %636 = vmatpush1.bf16.msra.mxu0 0
    %637 = vmatprep.subr.bf16.mxu0 0
    %638 = vmatpush1.bf16.msra.mxu0 0
    %639 = vmatprep.subr.bf16.mxu0 0
    %640 = vmatpush1.bf16.msra.mxu0 %v620
    %641 = vmatprep.subr.bf16.mxu0 0
    %642 = vmatpush2.bf16.msra.mxu0 0
    %643 = vmatprep.subr.bf16.mxu0 0
    %644 = vmatpush2.bf16.msra.mxu0 0
    %645 = vmatprep.subr.bf16.mxu0 0
    %646 = vmatpush2.bf16.msra.mxu0 0
    %647 = vmatprep.subr.bf16.mxu0 0
    %648 = vmatpush2.bf16.msra.mxu0 0
    %649 = vmatprep.subr.bf16.mxu0 0
    %650 = vmatpush2.bf16.msra.mxu0 0
    %651 = vmatprep.subr.bf16.mxu0 0
    %652 = vmatpush2.bf16.msra.mxu0 0
    %653 = vmatprep.subr.bf16.mxu0 0
    %654 = vmatpush2.bf16.msra.mxu0 0
    %655 = vmatprep.subr.bf16.mxu0 0
    %656 = vmatpush2.bf16.msra.mxu0 0
    %657 = vmatprep.mubr.bf16.mxu0 0
    %658 = vmatmul.mubr.bf16.gmra.mxu0 %v623
    %v659 = vpop.f32.mrf.mxu0
    %v660 = vadd.f32 0.0, %v659
    %v661 = vpop.f32.mrf.mxu0
    %v662 = vpop.f32.mrf.mxu0
    %v663 = vadd.f32 0.0, %v662
    %v664 = vpop.f32.mrf.mxu0
    %665 = vdwg.mxu0
    %v666 = vmul.f32 %v660, %v466
    %v667 = vmul.f32 %v663, %v467
    %670 = vrot.lane.b32.xlu0 %v566, 8
    %v671 = vpop.permute.xlu0 %670
    %672 = vrot.lane.b32.xlu0 %v567, 8
    %v673 = vpop.permute.xlu0 %672
    %678 = vrot.lane.b32.xlu0 %v616, 16
    %v679 = vpop.permute.xlu0 %678
    %680 = vrot.lane.b32.xlu0 %v617, 16
    %v681 = vpop.permute.xlu0 %680
    %686 = vrot.lane.b32.xlu0 %v666, 24
    %v687 = vpop.permute.xlu0 %686
    %688 = vrot.lane.b32.xlu0 %v667, 24
    %v689 = vpop.permute.xlu0 %688
    %v692 = vsel %vm185, %v516, %v671
    %v693 = vsel %vm185, %v517, %v673
    %v694 = vsel %vm387, %v692, %v679
    %v695 = vsel %vm387, %v693, %v681
    %vm696 = vcmask 195584
    %v697 = vsel %vm696, %v694, %v687
    %v698 = vsel %vm696, %v695, %v689
    %v699 = vpack.c.bf16 %v698, %v697
    %v700 = vld [vmem:[%s6] sm:$0xf]
    %v701 = vld [vmem:[%s6 + $0x4] sm:$0xf]
    %v702 = vld [vmem:[%s6 + $0x8] sm:$0xf]
    %v703 = vld [vmem:[%s6 + $0xc] sm:$0xf]
    %v704 = vld [vmem:[%s7] sm:$0x1]
    %v706 = vlaneseq
    %v707 = vshrl.u32 %v706, 7
    %v708 = vsub.s32 0, %v707
    %v709 = vrot.slane %v704, %v708
    %v715 = vunpack.c.l.b16 %v700
    %v716 = vunpack.c.l.b16 %v701
    %v717 = vunpack.c.l.b16 %v702
    %v718 = vunpack.c.l.b16 %v703
    %v719 = vpack.c.b16 %v716, %v715
    %v720 = vpack.c.b16 %v718, %v717
    %v724 = vsel %vm66, %v699, 0
    %726 = vmatprep.subr.bf16.mxu0 0
    %727 = vmatpush1.bf16.msra.mxu0 0
    %728 = vmatprep.subr.bf16.mxu0 0
    %729 = vmatpush1.bf16.msra.mxu0 0
    %730 = vmatprep.subr.bf16.mxu0 0
    %731 = vmatpush1.bf16.msra.mxu0 0
    %732 = vmatprep.subr.bf16.mxu0 0
    %733 = vmatpush1.bf16.msra.mxu0 0
    %734 = vmatprep.subr.bf16.mxu0 0
    %735 = vmatpush1.bf16.msra.mxu0 0
    %736 = vmatprep.subr.bf16.mxu0 0
    %737 = vmatpush1.bf16.msra.mxu0 0
    %738 = vmatprep.subr.bf16.mxu0 0
    %739 = vmatpush1.bf16.msra.mxu0 %v720
    %740 = vmatprep.subr.bf16.mxu0 0
    %741 = vmatpush1.bf16.msra.mxu0 %v719
    %742 = vmatprep.subr.bf16.mxu0 0
    %743 = vmatpush2.bf16.msra.mxu0 0
    %744 = vmatprep.subr.bf16.mxu0 0
    %745 = vmatpush2.bf16.msra.mxu0 0
    %746 = vmatprep.subr.bf16.mxu0 0
    %747 = vmatpush2.bf16.msra.mxu0 0
    %748 = vmatprep.subr.bf16.mxu0 0
    %749 = vmatpush2.bf16.msra.mxu0 0
    %750 = vmatprep.subr.bf16.mxu0 0
    %751 = vmatpush2.bf16.msra.mxu0 0
    %752 = vmatprep.subr.bf16.mxu0 0
    %753 = vmatpush2.bf16.msra.mxu0 0
    %754 = vmatprep.subr.bf16.mxu0 0
    %755 = vmatpush2.bf16.msra.mxu0 0
    %756 = vmatprep.subr.bf16.mxu0 0
    %757 = vmatpush2.bf16.msra.mxu0 0
    %758 = vmatprep.mubr.bf16.mxu0 0
    %759 = vmatmul.mubr.bf16.gmra.mxu0 %v724
    %v760 = vpop.f32.mrf.mxu0
    %v761 = vadd.f32 %v709, %v760
    %v762 = vpop.f32.mrf.mxu0
    %v763 = vpop.f32.mrf.mxu0
    %v764 = vadd.f32 %v709, %v763
    %v765 = vpop.f32.mrf.mxu0
    %766 = vdwg.mxu0
    %v767 = vadd.f32 %v60, %v761
    %v768 = vadd.f32 %v61, %v764
    %v769 = vld [vmem:[%s8] sm:$0x1]
    %v770 = vld [vmem:[%s9] sm:$0x1]
    %v771 = vsel %vm66, %v767, 0.0
    %772 = vadd.xlane.f32.xlu0 %v771
    %v773 = vpop.xlane.xlu0 %772
    %v774 = vsel %vm66, %v768, 0.0
    %775 = vadd.xlane.f32.xlu0 %v774
    %v776 = vpop.xlane.xlu0 %775
    %v777 = vmul.f32 %v773, %v73
    %v778 = vmul.f32 %v776, %v73
    %v779 = vsub.f32 %v767, %v777
    %v780 = vsub.f32 %v768, %v778
    %v781 = vmul.f32 %v779, %v779
    %v782 = vmul.f32 %v780, %v780
    %v783 = vsel %vm66, %v781, 0.0
    %784 = vadd.xlane.f32.xlu0 %v783
    %v785 = vpop.xlane.xlu0 %784
    %v786 = vsel %vm66, %v782, 0.0
    %787 = vadd.xlane.f32.xlu0 %v786
    %v788 = vpop.xlane.xlu0 %787
    %v789 = vmul.f32 %v785, %v73
    %v790 = vmul.f32 %v788, %v73
    %v791 = vadd.f32 %v789, 1e-05
    %v792 = vadd.f32 %v790, 1e-05
    %v793 = vrsqrt.pop %v791
    %v794 = vrsqrt.pop %v792
    %v795 = vmul.f32 %v779, %v793
    %v796 = vmul.f32 %v780, %v794
    %v798 = vlaneseq
    %v799 = vshrl.u32 %v798, 7
    %v800 = vsub.s32 0, %v799
    %v801 = vrot.slane %v769, %v800
    %v803 = vmul.f32 %v795, %v801
    %v804 = vmul.f32 %v796, %v801
    %v806 = vlaneseq
    %v807 = vshrl.u32 %v806, 7
    %v808 = vsub.s32 0, %v807
    %v809 = vrot.slane %v770, %v808
    %v811 = vadd.f32 %v803, %v809
    %v812 = vadd.f32 %v804, %v809
    %v813 = vpack.c.bf16 %v812, %v811
    %v814 = vld [vmem:[%s10] sm:$0xf]
    %v815 = vld [vmem:[%s10 + $0x4] sm:$0xf]
    %v816 = vld [vmem:[%s10 + $0x8] sm:$0xf]
    %v817 = vld [vmem:[%s10 + $0xc] sm:$0xf]
    %v818 = vld [vmem:[%s11] sm:$0x1]
    %v820 = vlaneseq
    %v821 = vshrl.u32 %v820, 7
    %v822 = vsub.s32 0, %v821
    %v823 = vrot.slane %v818, %v822
    %v829 = vunpack.c.l.b16 %v814
    %v830 = vunpack.c.l.b16 %v815
    %v831 = vunpack.c.l.b16 %v816
    %v832 = vunpack.c.l.b16 %v817
    %v833 = vpack.c.b16 %v830, %v829
    %v834 = vpack.c.b16 %v832, %v831
    %v838 = vsel %vm66, %v813, 0
    %840 = vmatprep.subr.bf16.mxu0 0
    %841 = vmatpush1.bf16.msra.mxu0 0
    %842 = vmatprep.subr.bf16.mxu0 0
    %843 = vmatpush1.bf16.msra.mxu0 0
    %844 = vmatprep.subr.bf16.mxu0 0
    %845 = vmatpush1.bf16.msra.mxu0 0
    %846 = vmatprep.subr.bf16.mxu0 0
    %847 = vmatpush1.bf16.msra.mxu0 0
    %848 = vmatprep.subr.bf16.mxu0 0
    %849 = vmatpush1.bf16.msra.mxu0 0
    %850 = vmatprep.subr.bf16.mxu0 0
    %851 = vmatpush1.bf16.msra.mxu0 0
    %852 = vmatprep.subr.bf16.mxu0 0
    %853 = vmatpush1.bf16.msra.mxu0 %v834
    %854 = vmatprep.subr.bf16.mxu0 0
    %855 = vmatpush1.bf16.msra.mxu0 %v833
    %856 = vmatprep.subr.bf16.mxu0 0
    %857 = vmatpush2.bf16.msra.mxu0 0
    %858 = vmatprep.subr.bf16.mxu0 0
    %859 = vmatpush2.bf16.msra.mxu0 0
    %860 = vmatprep.subr.bf16.mxu0 0
    %861 = vmatpush2.bf16.msra.mxu0 0
    %862 = vmatprep.subr.bf16.mxu0 0
    %863 = vmatpush2.bf16.msra.mxu0 0
    %864 = vmatprep.subr.bf16.mxu0 0
    %865 = vmatpush2.bf16.msra.mxu0 0
    %866 = vmatprep.subr.bf16.mxu0 0
    %867 = vmatpush2.bf16.msra.mxu0 0
    %868 = vmatprep.subr.bf16.mxu0 0
    %869 = vmatpush2.bf16.msra.mxu0 0
    %870 = vmatprep.subr.bf16.mxu0 0
    %871 = vmatpush2.bf16.msra.mxu0 0
    %872 = vmatprep.mubr.bf16.mxu0 0
    %873 = vmatmul.mubr.bf16.gmra.mxu0 %v838
    %v874 = vpop.f32.mrf.mxu0
    %v875 = vadd.f32 %v823, %v874
    %v876 = vpop.f32.mrf.mxu0
    %v877 = vpop.f32.mrf.mxu0
    %v878 = vadd.f32 %v823, %v877
    %v879 = vpop.f32.mrf.mxu0
    %880 = vdwg.mxu0
    %v881 = vmul.f32 %v875, 0.5
    %v882 = vmul.f32 %v878, 0.5
    %v883 = vmul.f32 %v875, 0.044715
    %v884 = vmul.f32 %v878, 0.044715
    %v885 = vmul.f32 %v883, %v875
    %v886 = vmul.f32 %v884, %v878
    %v887 = vmul.f32 %v885, %v875
    %v888 = vmul.f32 %v886, %v878
    %v889 = vadd.f32 %v875, %v887
    %v890 = vadd.f32 %v878, %v888
    %v891 = vmul.f32 %v889, 0.7978846
    %v892 = vmul.f32 %v890, 0.7978846
    %v893 = vtanh.pop %v891
    %v894 = vtanh.pop %v892
    %v895 = vadd.f32 %v893, 1.0
    %v896 = vadd.f32 %v894, 1.0
    %v897 = vmul.f32 %v881, %v895
    %v898 = vmul.f32 %v882, %v896
    %v899 = vpack.c.bf16 %v898, %v897
    %v900 = vld [vmem:[%s12] sm:$0xf]
    %v901 = vld [vmem:[%s12 + $0x4] sm:$0xf]
    %v902 = vld [vmem:[%s12 + $0x8] sm:$0xf]
    %v903 = vld [vmem:[%s12 + $0xc] sm:$0xf]
    %v904 = vld [vmem:[%s12 + $0x10] sm:$0xf]
    %v905 = vld [vmem:[%s12 + $0x14] sm:$0xf]
    %v906 = vld [vmem:[%s12 + $0x18] sm:$0xf]
    %v907 = vld [vmem:[%s12 + $0x1c] sm:$0xf]
    %v908 = vld [vmem:[%s12 + $0x20] sm:$0xf]
    %v909 = vld [vmem:[%s12 + $0x24] sm:$0xf]
    %v910 = vld [vmem:[%s12 + $0x28] sm:$0xf]
    %v911 = vld [vmem:[%s12 + $0x2c] sm:$0xf]
    %v912 = vld [vmem:[%s12 + $0x30] sm:$0xf]
    %v913 = vld [vmem:[%s12 + $0x34] sm:$0xf]
    %v914 = vld [vmem:[%s12 + $0x38] sm:$0xf]
    %v915 = vld [vmem:[%s12 + $0x3c] sm:$0xf]
    %v916 = vld [vmem:[%s13] sm:$0x1]
    %v918 = vlaneseq
    %v919 = vshrl.u32 %v918, 7
    %v920 = vsub.s32 0, %v919
    %v921 = vrot.slane %v916, %v920
    %v939 = vunpack.c.l.b16 %v900
    %v940 = vunpack.c.l.b16 %v901
    %v941 = vunpack.c.l.b16 %v902
    %v942 = vunpack.c.l.b16 %v903
    %v943 = vunpack.c.l.b16 %v904
    %v944 = vunpack.c.l.b16 %v905
    %v945 = vunpack.c.l.b16 %v906
    %v946 = vunpack.c.l.b16 %v907
    %v947 = vunpack.c.l.b16 %v908
    %v948 = vunpack.c.l.b16 %v909
    %v949 = vunpack.c.l.b16 %v910
    %v950 = vunpack.c.l.b16 %v911
    %v951 = vunpack.c.l.b16 %v912
    %v952 = vunpack.c.l.b16 %v913
    %v953 = vunpack.c.l.b16 %v914
    %v954 = vunpack.c.l.b16 %v915
    %v955 = vpack.c.b16 %v940, %v939
    %v956 = vpack.c.b16 %v942, %v941
    %v957 = vpack.c.b16 %v944, %v943
    %v958 = vpack.c.b16 %v946, %v945
    %v959 = vpack.c.b16 %v948, %v947
    %v960 = vpack.c.b16 %v950, %v949
    %v961 = vpack.c.b16 %v952, %v951
    %v962 = vpack.c.b16 %v954, %v953
    %971 = vmatprep.subr.bf16.mxu0 0
    %972 = vmatpush1.bf16.msra.mxu0 %v962
    %973 = vmatprep.subr.bf16.mxu0 0
    %974 = vmatpush1.bf16.msra.mxu0 %v961
    %975 = vmatprep.subr.bf16.mxu0 0
    %976 = vmatpush1.bf16.msra.mxu0 %v960
    %977 = vmatprep.subr.bf16.mxu0 0
    %978 = vmatpush1.bf16.msra.mxu0 %v959
    %979 = vmatprep.subr.bf16.mxu0 0
    %980 = vmatpush1.bf16.msra.mxu0 %v958
    %981 = vmatprep.subr.bf16.mxu0 0
    %982 = vmatpush1.bf16.msra.mxu0 %v957
    %983 = vmatprep.subr.bf16.mxu0 0
    %984 = vmatpush1.bf16.msra.mxu0 %v956
    %985 = vmatprep.subr.bf16.mxu0 0
    %986 = vmatpush1.bf16.msra.mxu0 %v955
    %987 = vmatprep.subr.bf16.mxu0 0
    %988 = vmatpush2.bf16.msra.mxu0 0
    %989 = vmatprep.subr.bf16.mxu0 0
    %990 = vmatpush2.bf16.msra.mxu0 0
    %991 = vmatprep.subr.bf16.mxu0 0
    %992 = vmatpush2.bf16.msra.mxu0 0
    %993 = vmatprep.subr.bf16.mxu0 0
    %994 = vmatpush2.bf16.msra.mxu0 0
    %995 = vmatprep.subr.bf16.mxu0 0
    %996 = vmatpush2.bf16.msra.mxu0 0
    %997 = vmatprep.subr.bf16.mxu0 0
    %998 = vmatpush2.bf16.msra.mxu0 0
    %999 = vmatprep.subr.bf16.mxu0 0
    %1000 = vmatpush2.bf16.msra.mxu0 0
    %1001 = vmatprep.subr.bf16.mxu0 0
    %1002 = vmatpush2.bf16.msra.mxu0 0
    %1003 = vmatprep.mubr.bf16.mxu0 0
    %1004 = vmatmul.mubr.bf16.gmra.mxu0 %v899
    %v1005 = vpop.f32.mrf.mxu0
    %v1006 = vadd.f32 %v921, %v1005
    %v1007 = vpop.f32.mrf.mxu0
    %v1008 = vpop.f32.mrf.mxu0
    %v1009 = vadd.f32 %v921, %v1008
    %v1010 = vpop.f32.mrf.mxu0
    %1011 = vdwg.mxu0
    %v1012 = vadd.f32 %v767, %v1006
    %v1013 = vadd.f32 %v768, %v1009
    %s1014 = scalar_lea.vmem %s2, 1
    %v1015 = vld [vmem:[%s1014] sm:$0x1]
    %s1016 = scalar_lea.vmem %s3, 1
    %v1017 = vld [vmem:[%s1016] sm:$0x1]
    %v1018 = vsel %vm66, %v1012, 0.0
    %1019 = vadd.xlane.f32.xlu0 %v1018
    %v1020 = vpop.xlane.xlu0 %1019
    %v1021 = vsel %vm66, %v1013, 0.0
    %1022 = vadd.xlane.f32.xlu0 %v1021
    %v1023 = vpop.xlane.xlu0 %1022
    %v1024 = vmul.f32 %v1020, %v73
    %v1025 = vmul.f32 %v1023, %v73
    %v1026 = vsub.f32 %v1012, %v1024
    %v1027 = vsub.f32 %v1013, %v1025
    %v1028 = vmul.f32 %v1026, %v1026
    %v1029 = vmul.f32 %v1027, %v1027
    %v1030 = vsel %vm66, %v1028, 0.0
    %1031 = vadd.xlane.f32.xlu0 %v1030
    %v1032 = vpop.xlane.xlu0 %1031
    %v1033 = vsel %vm66, %v1029, 0.0
    %1034 = vadd.xlane.f32.xlu0 %v1033
    %v1035 = vpop.xlane.xlu0 %1034
    %v1036 = vmul.f32 %v1032, %v73
    %v1037 = vmul.f32 %v1035, %v73
    %v1038 = vadd.f32 %v1036, 1e-05
    %v1039 = vadd.f32 %v1037, 1e-05
    %v1040 = vrsqrt.pop %v1038
    %v1041 = vrsqrt.pop %v1039
    %v1042 = vmul.f32 %v1026, %v1040
    %v1043 = vmul.f32 %v1027, %v1041
    %v1045 = vlaneseq
    %v1046 = vshrl.u32 %v1045, 7
    %v1047 = vsub.s32 0, %v1046
    %v1048 = vrot.slane %v1015, %v1047
    %v1050 = vmul.f32 %v1042, %v1048
    %v1051 = vmul.f32 %v1043, %v1048
    %v1053 = vlaneseq
    %v1054 = vshrl.u32 %v1053, 7
    %v1055 = vsub.s32 0, %v1054
    %v1056 = vrot.slane %v1017, %v1055
    %v1058 = vadd.f32 %v1050, %v1056
    %v1059 = vadd.f32 %v1051, %v1056
    %v1060 = vpack.c.bf16 %v1059, %v1058
    %s1061 = scalar_lea.vmem %s4, 16
    %v1062 = vld [vmem:[%s1061] sm:$0xf]
    %v1063 = vld [vmem:[%s1061 + $0x4] sm:$0xf]
    %v1064 = vld [vmem:[%s1061 + $0x8] sm:$0xf]
    %v1065 = vld [vmem:[%s1061 + $0xc] sm:$0xf]
    %s1066 = scalar_lea.vmem %s5, 1
    %v1067 = vld [vmem:[%s1066] sm:$0x1]
    %v1069 = vlaneseq
    %v1070 = vshrl.u32 %v1069, 7
    %v1071 = vsub.s32 0, %v1070
    %v1072 = vrot.slane %v1067, %v1071
    %v1078 = vunpack.c.l.b16 %v1062
    %v1079 = vunpack.c.l.b16 %v1063
    %v1080 = vunpack.c.l.b16 %v1064
    %v1081 = vunpack.c.l.b16 %v1065
    %v1082 = vpack.c.b16 %v1079, %v1078
    %v1083 = vpack.c.b16 %v1081, %v1080
    %v1087 = vsel %vm66, %v1060, 0
    %1089 = vmatprep.subr.bf16.mxu0 0
    %1090 = vmatpush1.bf16.msra.mxu0 0
    %1091 = vmatprep.subr.bf16.mxu0 0
    %1092 = vmatpush1.bf16.msra.mxu0 0
    %1093 = vmatprep.subr.bf16.mxu0 0
    %1094 = vmatpush1.bf16.msra.mxu0 0
    %1095 = vmatprep.subr.bf16.mxu0 0
    %1096 = vmatpush1.bf16.msra.mxu0 0
    %1097 = vmatprep.subr.bf16.mxu0 0
    %1098 = vmatpush1.bf16.msra.mxu0 0
    %1099 = vmatprep.subr.bf16.mxu0 0
    %1100 = vmatpush1.bf16.msra.mxu0 0
    %1101 = vmatprep.subr.bf16.mxu0 0
    %1102 = vmatpush1.bf16.msra.mxu0 %v1083
    %1103 = vmatprep.subr.bf16.mxu0 0
    %1104 = vmatpush1.bf16.msra.mxu0 %v1082
    %1105 = vmatprep.subr.bf16.mxu0 0
    %1106 = vmatpush2.bf16.msra.mxu0 0
    %1107 = vmatprep.subr.bf16.mxu0 0
    %1108 = vmatpush2.bf16.msra.mxu0 0
    %1109 = vmatprep.subr.bf16.mxu0 0
    %1110 = vmatpush2.bf16.msra.mxu0 0
    %1111 = vmatprep.subr.bf16.mxu0 0
    %1112 = vmatpush2.bf16.msra.mxu0 0
    %1113 = vmatprep.subr.bf16.mxu0 0
    %1114 = vmatpush2.bf16.msra.mxu0 0
    %1115 = vmatprep.subr.bf16.mxu0 0
    %1116 = vmatpush2.bf16.msra.mxu0 0
    %1117 = vmatprep.subr.bf16.mxu0 0
    %1118 = vmatpush2.bf16.msra.mxu0 0
    %1119 = vmatprep.subr.bf16.mxu0 0
    %1120 = vmatpush2.bf16.msra.mxu0 0
    %1121 = vmatprep.mubr.bf16.mxu0 0
    %1122 = vmatmul.mubr.bf16.gmra.mxu0 %v1087
    %v1123 = vpop.f32.mrf.mxu0
    %v1124 = vadd.f32 %v1072, %v1123
    %v1125 = vpop.f32.mrf.mxu0
    %v1126 = vpop.f32.mrf.mxu0
    %v1127 = vadd.f32 %v1072, %v1126
    %v1128 = vpop.f32.mrf.mxu0
    %1129 = vdwg.mxu0
    %v1130 = vmul.f32 %v1124, 0.35355338
    %v1131 = vmul.f32 %v1127, 0.35355338
    %v1132 = vpack.c.bf16 %v1131, %v1130
    %v1133 = vpack.c.bf16 %v1127, %v1124
    %1135 = vrot.lane.b32.xlu0 %v1133, 96
    %v1136 = vpop.permute.xlu0 %1135
    %v1138 = vsel %vm185, %v1132, 0
    %v1141 = vsel %vm185, %v1136, 0
    %1143 = vmatprep.subr.bf16.mxu0 0
    %1144 = vmatpush1.bf16.xpose.msra.mxu0 0
    %1145 = vmatprep.subr.bf16.mxu0 0
    %1146 = vmatpush1.bf16.xpose.msra.mxu0 0
    %1147 = vmatprep.subr.bf16.mxu0 0
    %1148 = vmatpush1.bf16.xpose.msra.mxu0 0
    %1149 = vmatprep.subr.bf16.mxu0 0
    %1150 = vmatpush1.bf16.xpose.msra.mxu0 0
    %1151 = vmatprep.subr.bf16.mxu0 0
    %1152 = vmatpush1.bf16.xpose.msra.mxu0 0
    %1153 = vmatprep.subr.bf16.mxu0 0
    %1154 = vmatpush1.bf16.xpose.msra.mxu0 0
    %1155 = vmatprep.subr.bf16.mxu0 0
    %1156 = vmatpush1.bf16.xpose.msra.mxu0 0
    %1157 = vmatprep.subr.bf16.mxu0 0
    %1158 = vmatpush1.bf16.xpose.msra.mxu0 %v1141
    %1159 = vmatprep.subr.bf16.mxu0 0
    %1160 = vmatpush2.bf16.xpose.msra.mxu0 0
    %1161 = vmatprep.subr.bf16.mxu0 0
    %1162 = vmatpush2.bf16.xpose.msra.mxu0 0
    %1163 = vmatprep.subr.bf16.mxu0 0
    %1164 = vmatpush2.bf16.xpose.msra.mxu0 0
    %1165 = vmatprep.subr.bf16.mxu0 0
    %1166 = vmatpush2.bf16.xpose.msra.mxu0 0
    %1167 = vmatprep.subr.bf16.mxu0 0
    %1168 = vmatpush2.bf16.xpose.msra.mxu0 0
    %1169 = vmatprep.subr.bf16.mxu0 0
    %1170 = vmatpush2.bf16.xpose.msra.mxu0 0
    %1171 = vmatprep.subr.bf16.mxu0 0
    %1172 = vmatpush2.bf16.xpose.msra.mxu0 0
    %1173 = vmatprep.subr.bf16.mxu0 0
    %1174 = vmatpush2.bf16.xpose.msra.mxu0 0
    %1175 = vmatprep.mubr.bf16.mxu0 0
    %1176 = vmatmul.mubr.bf16.gmra.mxu0 %v1138
    %v1177 = vpop.f32.mrf.mxu0
    %v1178 = vadd.f32 %v62, %v1177
    %v1179 = vpop.f32.mrf.mxu0
    %v1180 = vpop.f32.mrf.mxu0
    %v1181 = vadd.f32 %v63, %v1180
    %v1182 = vpop.f32.mrf.mxu0
    %1183 = vdwg.mxu0
    %1185 = vrot.lane.b32.xlu0 %v1132, 120
    %v1186 = vpop.permute.xlu0 %1185
    %1187 = vrot.lane.b32.xlu0 %v1133, 88
    %v1188 = vpop.permute.xlu0 %1187
    %v1190 = vsel %vm185, %v1186, 0
    %v1193 = vsel %vm185, %v1188, 0
    %1195 = vmatprep.subr.bf16.mxu0 0
    %1196 = vmatpush1.bf16.xpose.msra.mxu0 0
    %1197 = vmatprep.subr.bf16.mxu0 0
    %1198 = vmatpush1.bf16.xpose.msra.mxu0 0
    %1199 = vmatprep.subr.bf16.mxu0 0
    %1200 = vmatpush1.bf16.xpose.msra.mxu0 0
    %1201 = vmatprep.subr.bf16.mxu0 0
    %1202 = vmatpush1.bf16.xpose.msra.mxu0 0
    %1203 = vmatprep.subr.bf16.mxu0 0
    %1204 = vmatpush1.bf16.xpose.msra.mxu0 0
    %1205 = vmatprep.subr.bf16.mxu0 0
    %1206 = vmatpush1.bf16.xpose.msra.mxu0 0
    %1207 = vmatprep.subr.bf16.mxu0 0
    %1208 = vmatpush1.bf16.xpose.msra.mxu0 0
    %1209 = vmatprep.subr.bf16.mxu0 0
    %1210 = vmatpush1.bf16.xpose.msra.mxu0 %v1193
    %1211 = vmatprep.subr.bf16.mxu0 0
    %1212 = vmatpush2.bf16.xpose.msra.mxu0 0
    %1213 = vmatprep.subr.bf16.mxu0 0
    %1214 = vmatpush2.bf16.xpose.msra.mxu0 0
    %1215 = vmatprep.subr.bf16.mxu0 0
    %1216 = vmatpush2.bf16.xpose.msra.mxu0 0
    %1217 = vmatprep.subr.bf16.mxu0 0
    %1218 = vmatpush2.bf16.xpose.msra.mxu0 0
    %1219 = vmatprep.subr.bf16.mxu0 0
    %1220 = vmatpush2.bf16.xpose.msra.mxu0 0
    %1221 = vmatprep.subr.bf16.mxu0 0
    %1222 = vmatpush2.bf16.xpose.msra.mxu0 0
    %1223 = vmatprep.subr.bf16.mxu0 0
    %1224 = vmatpush2.bf16.xpose.msra.mxu0 0
    %1225 = vmatprep.subr.bf16.mxu0 0
    %1226 = vmatpush2.bf16.xpose.msra.mxu0 0
    %1227 = vmatprep.mubr.bf16.mxu0 0
    %1228 = vmatmul.mubr.bf16.gmra.mxu0 %v1190
    %v1229 = vpop.f32.mrf.mxu0
    %v1230 = vadd.f32 %v62, %v1229
    %v1231 = vpop.f32.mrf.mxu0
    %v1232 = vpop.f32.mrf.mxu0
    %v1233 = vadd.f32 %v63, %v1232
    %v1234 = vpop.f32.mrf.mxu0
    %1235 = vdwg.mxu0
    %1236 = vrot.lane.b32.xlu0 %v1132, 112
    %v1237 = vpop.permute.xlu0 %1236
    %1238 = vrot.lane.b32.xlu0 %v1133, 80
    %v1239 = vpop.permute.xlu0 %1238
    %v1241 = vsel %vm185, %v1237, 0
    %v1244 = vsel %vm185, %v1239, 0
    %1246 = vmatprep.subr.bf16.mxu0 0
    %1247 = vmatpush1.bf16.xpose.msra.mxu0 0
    %1248 = vmatprep.subr.bf16.mxu0 0
    %1249 = vmatpush1.bf16.xpose.msra.mxu0 0
    %1250 = vmatprep.subr.bf16.mxu0 0
    %1251 = vmatpush1.bf16.xpose.msra.mxu0 0
    %1252 = vmatprep.subr.bf16.mxu0 0
    %1253 = vmatpush1.bf16.xpose.msra.mxu0 0
    %1254 = vmatprep.subr.bf16.mxu0 0
    %1255 = vmatpush1.bf16.xpose.msra.mxu0 0
    %1256 = vmatprep.subr.bf16.mxu0 0
    %1257 = vmatpush1.bf16.xpose.msra.mxu0 0
    %1258 = vmatprep.subr.bf16.mxu0 0
    %1259 = vmatpush1.bf16.xpose.msra.mxu0 0
    %1260 = vmatprep.subr.bf16.mxu0 0
    %1261 = vmatpush1.bf16.xpose.msra.mxu0 %v1244
    %1262 = vmatprep.subr.bf16.mxu0 0
    %1263 = vmatpush2.bf16.xpose.msra.mxu0 0
    %1264 = vmatprep.subr.bf16.mxu0 0
    %1265 = vmatpush2.bf16.xpose.msra.mxu0 0
    %1266 = vmatprep.subr.bf16.mxu0 0
    %1267 = vmatpush2.bf16.xpose.msra.mxu0 0
    %1268 = vmatprep.subr.bf16.mxu0 0
    %1269 = vmatpush2.bf16.xpose.msra.mxu0 0
    %1270 = vmatprep.subr.bf16.mxu0 0
    %1271 = vmatpush2.bf16.xpose.msra.mxu0 0
    %1272 = vmatprep.subr.bf16.mxu0 0
    %1273 = vmatpush2.bf16.xpose.msra.mxu0 0
    %1274 = vmatprep.subr.bf16.mxu0 0
    %1275 = vmatpush2.bf16.xpose.msra.mxu0 0
    %1276 = vmatprep.subr.bf16.mxu0 0
    %1277 = vmatpush2.bf16.xpose.msra.mxu0 0
    %1278 = vmatprep.mubr.bf16.mxu0 0
    %1279 = vmatmul.mubr.bf16.gmra.mxu0 %v1241
    %v1280 = vpop.f32.mrf.mxu0
    %v1281 = vadd.f32 %v62, %v1280
    %v1282 = vpop.f32.mrf.mxu0
    %v1283 = vpop.f32.mrf.mxu0
    %v1284 = vadd.f32 %v63, %v1283
    %v1285 = vpop.f32.mrf.mxu0
    %1286 = vdwg.mxu0
    %1287 = vrot.lane.b32.xlu0 %v1132, 104
    %v1288 = vpop.permute.xlu0 %1287
    %1289 = vrot.lane.b32.xlu0 %v1133, 72
    %v1290 = vpop.permute.xlu0 %1289
    %v1292 = vsel %vm185, %v1288, 0
    %v1295 = vsel %vm185, %v1290, 0
    %1297 = vmatprep.subr.bf16.mxu0 0
    %1298 = vmatpush1.bf16.xpose.msra.mxu0 0
    %1299 = vmatprep.subr.bf16.mxu0 0
    %1300 = vmatpush1.bf16.xpose.msra.mxu0 0
    %1301 = vmatprep.subr.bf16.mxu0 0
    %1302 = vmatpush1.bf16.xpose.msra.mxu0 0
    %1303 = vmatprep.subr.bf16.mxu0 0
    %1304 = vmatpush1.bf16.xpose.msra.mxu0 0
    %1305 = vmatprep.subr.bf16.mxu0 0
    %1306 = vmatpush1.bf16.xpose.msra.mxu0 0
    %1307 = vmatprep.subr.bf16.mxu0 0
    %1308 = vmatpush1.bf16.xpose.msra.mxu0 0
    %1309 = vmatprep.subr.bf16.mxu0 0
    %1310 = vmatpush1.bf16.xpose.msra.mxu0 0
    %1311 = vmatprep.subr.bf16.mxu0 0
    %1312 = vmatpush1.bf16.xpose.msra.mxu0 %v1295
    %1313 = vmatprep.subr.bf16.mxu0 0
    %1314 = vmatpush2.bf16.xpose.msra.mxu0 0
    %1315 = vmatprep.subr.bf16.mxu0 0
    %1316 = vmatpush2.bf16.xpose.msra.mxu0 0
    %1317 = vmatprep.subr.bf16.mxu0 0
    %1318 = vmatpush2.bf16.xpose.msra.mxu0 0
    %1319 = vmatprep.subr.bf16.mxu0 0
    %1320 = vmatpush2.bf16.xpose.msra.mxu0 0
    %1321 = vmatprep.subr.bf16.mxu0 0
    %1322 = vmatpush2.bf16.xpose.msra.mxu0 0
    %1323 = vmatprep.subr.bf16.mxu0 0
    %1324 = vmatpush2.bf16.xpose.msra.mxu0 0
    %1325 = vmatprep.subr.bf16.mxu0 0
    %1326 = vmatpush2.bf16.xpose.msra.mxu0 0
    %1327 = vmatprep.subr.bf16.mxu0 0
    %1328 = vmatpush2.bf16.xpose.msra.mxu0 0
    %1329 = vmatprep.mubr.bf16.mxu0 0
    %1330 = vmatmul.mubr.bf16.gmra.mxu0 %v1292
    %v1331 = vpop.f32.mrf.mxu0
    %v1332 = vadd.f32 %v62, %v1331
    %v1333 = vpop.f32.mrf.mxu0
    %v1334 = vpop.f32.mrf.mxu0
    %v1335 = vadd.f32 %v63, %v1334
    %v1336 = vpop.f32.mrf.mxu0
    %1337 = vdwg.mxu0
    %v1338 = vsel %vm387, %v1178, -inf
    %1339 = vmax.xlane.f32.xlu0 %v1338
    %v1340 = vpop.xlane.xlu0 %1339
    %v1341 = vsel %vm387, %v1181, -inf
    %1342 = vmax.xlane.f32.xlu0 %v1341
    %v1343 = vpop.xlane.xlu0 %1342
    %v1344 = vsel %vm387, %v1230, -inf
    %1345 = vmax.xlane.f32.xlu0 %v1344
    %v1346 = vpop.xlane.xlu0 %1345
    %v1347 = vsel %vm387, %v1233, -inf
    %1348 = vmax.xlane.f32.xlu0 %v1347
    %v1349 = vpop.xlane.xlu0 %1348
    %v1350 = vsel %vm387, %v1281, -inf
    %1351 = vmax.xlane.f32.xlu0 %v1350
    %v1352 = vpop.xlane.xlu0 %1351
    %v1353 = vsel %vm387, %v1284, -inf
    %1354 = vmax.xlane.f32.xlu0 %v1353
    %v1355 = vpop.xlane.xlu0 %1354
    %v1356 = vsel %vm387, %v1332, -inf
    %1357 = vmax.xlane.f32.xlu0 %v1356
    %v1358 = vpop.xlane.xlu0 %1357
    %v1359 = vsel %vm387, %v1335, -inf
    %1360 = vmax.xlane.f32.xlu0 %v1359
    %v1361 = vpop.xlane.xlu0 %1360
    %v1362 = vsub.f32 %v1178, %v1340
    %v1363 = vsub.f32 %v1181, %v1343
    %v1364 = vsub.f32 %v1230, %v1346
    %v1365 = vsub.f32 %v1233, %v1349
    %v1366 = vsub.f32 %v1281, %v1352
    %v1367 = vsub.f32 %v1284, %v1355
    %v1368 = vsub.f32 %v1332, %v1358
    %v1369 = vsub.f32 %v1335, %v1361
    %v1370 = vmul.f32 %v1362, 1.442695
    %v1371 = vpow.pop %v1370
    %v1372 = vmul.f32 %v1363, 1.442695
    %v1373 = vpow.pop %v1372
    %v1374 = vmul.f32 %v1364, 1.442695
    %v1375 = vpow.pop %v1374
    %v1376 = vmul.f32 %v1365, 1.442695
    %v1377 = vpow.pop %v1376
    %v1378 = vmul.f32 %v1366, 1.442695
    %v1379 = vpow.pop %v1378
    %v1380 = vmul.f32 %v1367, 1.442695
    %v1381 = vpow.pop %v1380
    %v1382 = vmul.f32 %v1368, 1.442695
    %v1383 = vpow.pop %v1382
    %v1384 = vmul.f32 %v1369, 1.442695
    %v1385 = vpow.pop %v1384
    %v1386 = vsel %vm387, %v1371, 0.0
    %1387 = vadd.xlane.f32.xlu0 %v1386
    %v1388 = vpop.xlane.xlu0 %1387
    %v1389 = vsel %vm387, %v1373, 0.0
    %1390 = vadd.xlane.f32.xlu0 %v1389
    %v1391 = vpop.xlane.xlu0 %1390
    %v1392 = vsel %vm387, %v1375, 0.0
    %1393 = vadd.xlane.f32.xlu0 %v1392
    %v1394 = vpop.xlane.xlu0 %1393
    %v1395 = vsel %vm387, %v1377, 0.0
    %1396 = vadd.xlane.f32.xlu0 %v1395
    %v1397 = vpop.xlane.xlu0 %1396
    %v1398 = vsel %vm387, %v1379, 0.0
    %1399 = vadd.xlane.f32.xlu0 %v1398
    %v1400 = vpop.xlane.xlu0 %1399
    %v1401 = vsel %vm387, %v1381, 0.0
    %1402 = vadd.xlane.f32.xlu0 %v1401
    %v1403 = vpop.xlane.xlu0 %1402
    %v1404 = vsel %vm387, %v1383, 0.0
    %1405 = vadd.xlane.f32.xlu0 %v1404
    %v1406 = vpop.xlane.xlu0 %1405
    %v1407 = vsel %vm387, %v1385, 0.0
    %1408 = vadd.xlane.f32.xlu0 %v1407
    %v1409 = vpop.xlane.xlu0 %1408
    %v1410 = vrcp.pop %v1388
    %v1411 = vrcp.pop %v1391
    %v1412 = vrcp.pop %v1394
    %v1413 = vrcp.pop %v1397
    %v1414 = vrcp.pop %v1400
    %v1415 = vrcp.pop %v1403
    %v1416 = vrcp.pop %v1406
    %v1417 = vrcp.pop %v1409
    %v1418 = vpack.c.bf16 %v1373, %v1371
    %1419 = vrot.lane.b32.xlu0 %v1133, 64
    %v1420 = vpop.permute.xlu0 %1419
    %v1423 = vsel %vm387, %v1418, 0
    %1425 = vmatprep.subr.bf16.mxu0 0
    %1426 = vmatpush1.bf16.msra.mxu0 0
    %1427 = vmatprep.subr.bf16.mxu0 0
    %1428 = vmatpush1.bf16.msra.mxu0 0
    %1429 = vmatprep.subr.bf16.mxu0 0
    %1430 = vmatpush1.bf16.msra.mxu0 0
    %1431 = vmatprep.subr.bf16.mxu0 0
    %1432 = vmatpush1.bf16.msra.mxu0 0
    %1433 = vmatprep.subr.bf16.mxu0 0
    %1434 = vmatpush1.bf16.msra.mxu0 0
    %1435 = vmatprep.subr.bf16.mxu0 0
    %1436 = vmatpush1.bf16.msra.mxu0 0
    %1437 = vmatprep.subr.bf16.mxu0 0
    %1438 = vmatpush1.bf16.msra.mxu0 0
    %1439 = vmatprep.subr.bf16.mxu0 0
    %1440 = vmatpush1.bf16.msra.mxu0 %v1420
    %1441 = vmatprep.subr.bf16.mxu0 0
    %1442 = vmatpush2.bf16.msra.mxu0 0
    %1443 = vmatprep.subr.bf16.mxu0 0
    %1444 = vmatpush2.bf16.msra.mxu0 0
    %1445 = vmatprep.subr.bf16.mxu0 0
    %1446 = vmatpush2.bf16.msra.mxu0 0
    %1447 = vmatprep.subr.bf16.mxu0 0
    %1448 = vmatpush2.bf16.msra.mxu0 0
    %1449 = vmatprep.subr.bf16.mxu0 0
    %1450 = vmatpush2.bf16.msra.mxu0 0
    %1451 = vmatprep.subr.bf16.mxu0 0
    %1452 = vmatpush2.bf16.msra.mxu0 0
    %1453 = vmatprep.subr.bf16.mxu0 0
    %1454 = vmatpush2.bf16.msra.mxu0 0
    %1455 = vmatprep.subr.bf16.mxu0 0
    %1456 = vmatpush2.bf16.msra.mxu0 0
    %1457 = vmatprep.mubr.bf16.mxu0 0
    %1458 = vmatmul.mubr.bf16.gmra.mxu0 %v1423
    %v1459 = vpop.f32.mrf.mxu0
    %v1460 = vadd.f32 0.0, %v1459
    %v1461 = vpop.f32.mrf.mxu0
    %v1462 = vpop.f32.mrf.mxu0
    %v1463 = vadd.f32 0.0, %v1462
    %v1464 = vpop.f32.mrf.mxu0
    %1465 = vdwg.mxu0
    %v1466 = vmul.f32 %v1460, %v1410
    %v1467 = vmul.f32 %v1463, %v1411
    %v1468 = vpack.c.bf16 %v1377, %v1375
    %1469 = vrot.lane.b32.xlu0 %v1133, 56
    %v1470 = vpop.permute.xlu0 %1469
    %v1473 = vsel %vm387, %v1468, 0
    %1475 = vmatprep.subr.bf16.mxu0 0
    %1476 = vmatpush1.bf16.msra.mxu0 0
    %1477 = vmatprep.subr.bf16.mxu0 0
    %1478 = vmatpush1.bf16.msra.mxu0 0
    %1479 = vmatprep.subr.bf16.mxu0 0
    %1480 = vmatpush1.bf16.msra.mxu0 0
    %1481 = vmatprep.subr.bf16.mxu0 0
    %1482 = vmatpush1.bf16.msra.mxu0 0
    %1483 = vmatprep.subr.bf16.mxu0 0
    %1484 = vmatpush1.bf16.msra.mxu0 0
    %1485 = vmatprep.subr.bf16.mxu0 0
    %1486 = vmatpush1.bf16.msra.mxu0 0
    %1487 = vmatprep.subr.bf16.mxu0 0
    %1488 = vmatpush1.bf16.msra.mxu0 0
    %1489 = vmatprep.subr.bf16.mxu0 0
    %1490 = vmatpush1.bf16.msra.mxu0 %v1470
    %1491 = vmatprep.subr.bf16.mxu0 0
    %1492 = vmatpush2.bf16.msra.mxu0 0
    %1493 = vmatprep.subr.bf16.mxu0 0
    %1494 = vmatpush2.bf16.msra.mxu0 0
    %1495 = vmatprep.subr.bf16.mxu0 0
    %1496 = vmatpush2.bf16.msra.mxu0 0
    %1497 = vmatprep.subr.bf16.mxu0 0
    %1498 = vmatpush2.bf16.msra.mxu0 0
    %1499 = vmatprep.subr.bf16.mxu0 0
    %1500 = vmatpush2.bf16.msra.mxu0 0
    %1501 = vmatprep.subr.bf16.mxu0 0
    %1502 = vmatpush2.bf16.msra.mxu0 0
    %1503 = vmatprep.subr.bf16.mxu0 0
    %1504 = vmatpush2.bf16.msra.mxu0 0
    %1505 = vmatprep.subr.bf16.mxu0 0
    %1506 = vmatpush2.bf16.msra.mxu0 0
    %1507 = vmatprep.mubr.bf16.mxu0 0
    %1508 = vmatmul.mubr.bf16.gmra.mxu0 %v1473
    %v1509 = vpop.f32.mrf.mxu0
    %v1510 = vadd.f32 0.0, %v1509
    %v1511 = vpop.f32.mrf.mxu0
    %v1512 = vpop.f32.mrf.mxu0
    %v1513 = vadd.f32 0.0, %v1512
    %v1514 = vpop.f32.mrf.mxu0
    %1515 = vdwg.mxu0
    %v1516 = vmul.f32 %v1510, %v1412
    %v1517 = vmul.f32 %v1513, %v1413
    %v1518 = vpack.c.bf16 %v1381, %v1379
    %1519 = vrot.lane.b32.xlu0 %v1133, 48
    %v1520 = vpop.permute.xlu0 %1519
    %v1523 = vsel %vm387, %v1518, 0
    %1525 = vmatprep.subr.bf16.mxu0 0
    %1526 = vmatpush1.bf16.msra.mxu0 0
    %1527 = vmatprep.subr.bf16.mxu0 0
    %1528 = vmatpush1.bf16.msra.mxu0 0
    %1529 = vmatprep.subr.bf16.mxu0 0
    %1530 = vmatpush1.bf16.msra.mxu0 0
    %1531 = vmatprep.subr.bf16.mxu0 0
    %1532 = vmatpush1.bf16.msra.mxu0 0
    %1533 = vmatprep.subr.bf16.mxu0 0
    %1534 = vmatpush1.bf16.msra.mxu0 0
    %1535 = vmatprep.subr.bf16.mxu0 0
    %1536 = vmatpush1.bf16.msra.mxu0 0
    %1537 = vmatprep.subr.bf16.mxu0 0
    %1538 = vmatpush1.bf16.msra.mxu0 0
    %1539 = vmatprep.subr.bf16.mxu0 0
    %1540 = vmatpush1.bf16.msra.mxu0 %v1520
    %1541 = vmatprep.subr.bf16.mxu0 0
    %1542 = vmatpush2.bf16.msra.mxu0 0
    %1543 = vmatprep.subr.bf16.mxu0 0
    %1544 = vmatpush2.bf16.msra.mxu0 0
    %1545 = vmatprep.subr.bf16.mxu0 0
    %1546 = vmatpush2.bf16.msra.mxu0 0
    %1547 = vmatprep.subr.bf16.mxu0 0
    %1548 = vmatpush2.bf16.msra.mxu0 0
    %1549 = vmatprep.subr.bf16.mxu0 0
    %1550 = vmatpush2.bf16.msra.mxu0 0
    %1551 = vmatprep.subr.bf16.mxu0 0
    %1552 = vmatpush2.bf16.msra.mxu0 0
    %1553 = vmatprep.subr.bf16.mxu0 0
    %1554 = vmatpush2.bf16.msra.mxu0 0
    %1555 = vmatprep.subr.bf16.mxu0 0
    %1556 = vmatpush2.bf16.msra.mxu0 0
    %1557 = vmatprep.mubr.bf16.mxu0 0
    %1558 = vmatmul.mubr.bf16.gmra.mxu0 %v1523
    %v1559 = vpop.f32.mrf.mxu0
    %v1560 = vadd.f32 0.0, %v1559
    %v1561 = vpop.f32.mrf.mxu0
    %v1562 = vpop.f32.mrf.mxu0
    %v1563 = vadd.f32 0.0, %v1562
    %v1564 = vpop.f32.mrf.mxu0
    %1565 = vdwg.mxu0
    %v1566 = vmul.f32 %v1560, %v1414
    %v1567 = vmul.f32 %v1563, %v1415
    %v1568 = vpack.c.bf16 %v1385, %v1383
    %1569 = vrot.lane.b32.xlu0 %v1133, 40
    %v1570 = vpop.permute.xlu0 %1569
    %v1573 = vsel %vm387, %v1568, 0
    %1575 = vmatprep.subr.bf16.mxu0 0
    %1576 = vmatpush1.bf16.msra.mxu0 0
    %1577 = vmatprep.subr.bf16.mxu0 0
    %1578 = vmatpush1.bf16.msra.mxu0 0
    %1579 = vmatprep.subr.bf16.mxu0 0
    %1580 = vmatpush1.bf16.msra.mxu0 0
    %1581 = vmatprep.subr.bf16.mxu0 0
    %1582 = vmatpush1.bf16.msra.mxu0 0
    %1583 = vmatprep.subr.bf16.mxu0 0
    %1584 = vmatpush1.bf16.msra.mxu0 0
    %1585 = vmatprep.subr.bf16.mxu0 0
    %1586 = vmatpush1.bf16.msra.mxu0 0
    %1587 = vmatprep.subr.bf16.mxu0 0
    %1588 = vmatpush1.bf16.msra.mxu0 0
    %1589 = vmatprep.subr.bf16.mxu0 0
    %1590 = vmatpush1.bf16.msra.mxu0 %v1570
    %1591 = vmatprep.subr.bf16.mxu0 0
    %1592 = vmatpush2.bf16.msra.mxu0 0
    %1593 = vmatprep.subr.bf16.mxu0 0
    %1594 = vmatpush2.bf16.msra.mxu0 0
    %1595 = vmatprep.subr.bf16.mxu0 0
    %1596 = vmatpush2.bf16.msra.mxu0 0
    %1597 = vmatprep.subr.bf16.mxu0 0
    %1598 = vmatpush2.bf16.msra.mxu0 0
    %1599 = vmatprep.subr.bf16.mxu0 0
    %1600 = vmatpush2.bf16.msra.mxu0 0
    %1601 = vmatprep.subr.bf16.mxu0 0
    %1602 = vmatpush2.bf16.msra.mxu0 0
    %1603 = vmatprep.subr.bf16.mxu0 0
    %1604 = vmatpush2.bf16.msra.mxu0 0
    %1605 = vmatprep.subr.bf16.mxu0 0
    %1606 = vmatpush2.bf16.msra.mxu0 0
    %1607 = vmatprep.mubr.bf16.mxu0 0
    %1608 = vmatmul.mubr.bf16.gmra.mxu0 %v1573
    %v1609 = vpop.f32.mrf.mxu0
    %v1610 = vadd.f32 0.0, %v1609
    %v1611 = vpop.f32.mrf.mxu0
    %v1612 = vpop.f32.mrf.mxu0
    %v1613 = vadd.f32 0.0, %v1612
    %v1614 = vpop.f32.mrf.mxu0
    %1615 = vdwg.mxu0
    %v1616 = vmul.f32 %v1610, %v1416
    %v1617 = vmul.f32 %v1613, %v1417
    %1620 = vrot.lane.b32.xlu0 %v1516, 8
    %v1621 = vpop.permute.xlu0 %1620
    %1622 = vrot.lane.b32.xlu0 %v1517, 8
    %v1623 = vpop.permute.xlu0 %1622
    %1628 = vrot.lane.b32.xlu0 %v1566, 16
    %v1629 = vpop.permute.xlu0 %1628
    %1630 = vrot.lane.b32.xlu0 %v1567, 16
    %v1631 = vpop.permute.xlu0 %1630
    %1636 = vrot.lane.b32.xlu0 %v1616, 24
    %v1637 = vpop.permute.xlu0 %1636
    %1638 = vrot.lane.b32.xlu0 %v1617, 24
    %v1639 = vpop.permute.xlu0 %1638
    %v1642 = vsel %vm185, %v1466, %v1621
    %v1643 = vsel %vm185, %v1467, %v1623
    %v1644 = vsel %vm387, %v1642, %v1629
    %v1645 = vsel %vm387, %v1643, %v1631
    %v1646 = vsel %vm696, %v1644, %v1637
    %v1647 = vsel %vm696, %v1645, %v1639
    %v1648 = vpack.c.bf16 %v1647, %v1646
    %s1649 = scalar_lea.vmem %s6, 16
    %v1650 = vld [vmem:[%s1649] sm:$0xf]
    %v1651 = vld [vmem:[%s1649 + $0x4] sm:$0xf]
    %v1652 = vld [vmem:[%s1649 + $0x8] sm:$0xf]
    %v1653 = vld [vmem:[%s1649 + $0xc] sm:$0xf]
    %s1654 = scalar_lea.vmem %s7, 1
    %v1655 = vld [vmem:[%s1654] sm:$0x1]
    %v1657 = vlaneseq
    %v1658 = vshrl.u32 %v1657, 7
    %v1659 = vsub.s32 0, %v1658
    %v1660 = vrot.slane %v1655, %v1659
    %v1666 = vunpack.c.l.b16 %v1650
    %v1667 = vunpack.c.l.b16 %v1651
    %v1668 = vunpack.c.l.b16 %v1652
    %v1669 = vunpack.c.l.b16 %v1653
    %v1670 = vpack.c.b16 %v1667, %v1666
    %v1671 = vpack.c.b16 %v1669, %v1668
    %v1675 = vsel %vm66, %v1648, 0
    %1677 = vmatprep.subr.bf16.mxu0 0
    %1678 = vmatpush1.bf16.msra.mxu0 0
    %1679 = vmatprep.subr.bf16.mxu0 0
    %1680 = vmatpush1.bf16.msra.mxu0 0
    %1681 = vmatprep.subr.bf16.mxu0 0
    %1682 = vmatpush1.bf16.msra.mxu0 0
    %1683 = vmatprep.subr.bf16.mxu0 0
    %1684 = vmatpush1.bf16.msra.mxu0 0
    %1685 = vmatprep.subr.bf16.mxu0 0
    %1686 = vmatpush1.bf16.msra.mxu0 0
    %1687 = vmatprep.subr.bf16.mxu0 0
    %1688 = vmatpush1.bf16.msra.mxu0 0
    %1689 = vmatprep.subr.bf16.mxu0 0
    %1690 = vmatpush1.bf16.msra.mxu0 %v1671
    %1691 = vmatprep.subr.bf16.mxu0 0
    %1692 = vmatpush1.bf16.msra.mxu0 %v1670
    %1693 = vmatprep.subr.bf16.mxu0 0
    %1694 = vmatpush2.bf16.msra.mxu0 0
    %1695 = vmatprep.subr.bf16.mxu0 0
    %1696 = vmatpush2.bf16.msra.mxu0 0
    %1697 = vmatprep.subr.bf16.mxu0 0
    %1698 = vmatpush2.bf16.msra.mxu0 0
    %1699 = vmatprep.subr.bf16.mxu0 0
    %1700 = vmatpush2.bf16.msra.mxu0 0
    %1701 = vmatprep.subr.bf16.mxu0 0
    %1702 = vmatpush2.bf16.msra.mxu0 0
    %1703 = vmatprep.subr.bf16.mxu0 0
    %1704 = vmatpush2.bf16.msra.mxu0 0
    %1705 = vmatprep.subr.bf16.mxu0 0
    %1706 = vmatpush2.bf16.msra.mxu0 0
    %1707 = vmatprep.subr.bf16.mxu0 0
    %1708 = vmatpush2.bf16.msra.mxu0 0
    %1709 = vmatprep.mubr.bf16.mxu0 0
    %1710 = vmatmul.mubr.bf16.gmra.mxu0 %v1675
    %v1711 = vpop.f32.mrf.mxu0
    %v1712 = vadd.f32 %v1660, %v1711
    %v1713 = vpop.f32.mrf.mxu0
    %v1714 = vpop.f32.mrf.mxu0
    %v1715 = vadd.f32 %v1660, %v1714
    %v1716 = vpop.f32.mrf.mxu0
    %1717 = vdwg.mxu0
    %v1718 = vadd.f32 %v1012, %v1712
    %v1719 = vadd.f32 %v1013, %v1715
    %s1720 = scalar_lea.vmem %s8, 1
    %v1721 = vld [vmem:[%s1720] sm:$0x1]
    %s1722 = scalar_lea.vmem %s9, 1
    %v1723 = vld [vmem:[%s1722] sm:$0x1]
    %v1724 = vsel %vm66, %v1718, 0.0
    %1725 = vadd.xlane.f32.xlu0 %v1724
    %v1726 = vpop.xlane.xlu0 %1725
    %v1727 = vsel %vm66, %v1719, 0.0
    %1728 = vadd.xlane.f32.xlu0 %v1727
    %v1729 = vpop.xlane.xlu0 %1728
    %v1730 = vmul.f32 %v1726, %v73
    %v1731 = vmul.f32 %v1729, %v73
    %v1732 = vsub.f32 %v1718, %v1730
    %v1733 = vsub.f32 %v1719, %v1731
    %v1734 = vmul.f32 %v1732, %v1732
    %v1735 = vmul.f32 %v1733, %v1733
    %v1736 = vsel %vm66, %v1734, 0.0
    %1737 = vadd.xlane.f32.xlu0 %v1736
    %v1738 = vpop.xlane.xlu0 %1737
    %v1739 = vsel %vm66, %v1735, 0.0
    %1740 = vadd.xlane.f32.xlu0 %v1739
    %v1741 = vpop.xlane.xlu0 %1740
    %v1742 = vmul.f32 %v1738, %v73
    %v1743 = vmul.f32 %v1741, %v73
    %v1744 = vadd.f32 %v1742, 1e-05
    %v1745 = vadd.f32 %v1743, 1e-05
    %v1746 = vrsqrt.pop %v1744
    %v1747 = vrsqrt.pop %v1745
    %v1748 = vmul.f32 %v1732, %v1746
    %v1749 = vmul.f32 %v1733, %v1747
    %v1751 = vlaneseq
    %v1752 = vshrl.u32 %v1751, 7
    %v1753 = vsub.s32 0, %v1752
    %v1754 = vrot.slane %v1721, %v1753
    %v1756 = vmul.f32 %v1748, %v1754
    %v1757 = vmul.f32 %v1749, %v1754
    %v1759 = vlaneseq
    %v1760 = vshrl.u32 %v1759, 7
    %v1761 = vsub.s32 0, %v1760
    %v1762 = vrot.slane %v1723, %v1761
    %v1764 = vadd.f32 %v1756, %v1762
    %v1765 = vadd.f32 %v1757, %v1762
    %v1766 = vpack.c.bf16 %v1765, %v1764
    %s1767 = scalar_lea.vmem %s10, 16
    %v1768 = vld [vmem:[%s1767] sm:$0xf]
    %v1769 = vld [vmem:[%s1767 + $0x4] sm:$0xf]
    %v1770 = vld [vmem:[%s1767 + $0x8] sm:$0xf]
    %v1771 = vld [vmem:[%s1767 + $0xc] sm:$0xf]
    %s1772 = scalar_lea.vmem %s11, 1
    %v1773 = vld [vmem:[%s1772] sm:$0x1]
    %v1775 = vlaneseq
    %v1776 = vshrl.u32 %v1775, 7
    %v1777 = vsub.s32 0, %v1776
    %v1778 = vrot.slane %v1773, %v1777
    %v1784 = vunpack.c.l.b16 %v1768
    %v1785 = vunpack.c.l.b16 %v1769
    %v1786 = vunpack.c.l.b16 %v1770
    %v1787 = vunpack.c.l.b16 %v1771
    %v1788 = vpack.c.b16 %v1785, %v1784
    %v1789 = vpack.c.b16 %v1787, %v1786
    %v1793 = vsel %vm66, %v1766, 0
    %1795 = vmatprep.subr.bf16.mxu0 0
    %1796 = vmatpush1.bf16.msra.mxu0 0
    %1797 = vmatprep.subr.bf16.mxu0 0
    %1798 = vmatpush1.bf16.msra.mxu0 0
    %1799 = vmatprep.subr.bf16.mxu0 0
    %1800 = vmatpush1.bf16.msra.mxu0 0
    %1801 = vmatprep.subr.bf16.mxu0 0
    %1802 = vmatpush1.bf16.msra.mxu0 0
    %1803 = vmatprep.subr.bf16.mxu0 0
    %1804 = vmatpush1.bf16.msra.mxu0 0
    %1805 = vmatprep.subr.bf16.mxu0 0
    %1806 = vmatpush1.bf16.msra.mxu0 0
    %1807 = vmatprep.subr.bf16.mxu0 0
    %1808 = vmatpush1.bf16.msra.mxu0 %v1789
    %1809 = vmatprep.subr.bf16.mxu0 0
    %1810 = vmatpush1.bf16.msra.mxu0 %v1788
    %1811 = vmatprep.subr.bf16.mxu0 0
    %1812 = vmatpush2.bf16.msra.mxu0 0
    %1813 = vmatprep.subr.bf16.mxu0 0
    %1814 = vmatpush2.bf16.msra.mxu0 0
    %1815 = vmatprep.subr.bf16.mxu0 0
    %1816 = vmatpush2.bf16.msra.mxu0 0
    %1817 = vmatprep.subr.bf16.mxu0 0
    %1818 = vmatpush2.bf16.msra.mxu0 0
    %1819 = vmatprep.subr.bf16.mxu0 0
    %1820 = vmatpush2.bf16.msra.mxu0 0
    %1821 = vmatprep.subr.bf16.mxu0 0
    %1822 = vmatpush2.bf16.msra.mxu0 0
    %1823 = vmatprep.subr.bf16.mxu0 0
    %1824 = vmatpush2.bf16.msra.mxu0 0
    %1825 = vmatprep.subr.bf16.mxu0 0
    %1826 = vmatpush2.bf16.msra.mxu0 0
    %1827 = vmatprep.mubr.bf16.mxu0 0
    %1828 = vmatmul.mubr.bf16.gmra.mxu0 %v1793
    %v1829 = vpop.f32.mrf.mxu0
    %v1830 = vadd.f32 %v1778, %v1829
    %v1831 = vpop.f32.mrf.mxu0
    %v1832 = vpop.f32.mrf.mxu0
    %v1833 = vadd.f32 %v1778, %v1832
    %v1834 = vpop.f32.mrf.mxu0
    %1835 = vdwg.mxu0
    %v1836 = vmul.f32 %v1830, 0.5
    %v1837 = vmul.f32 %v1833, 0.5
    %v1838 = vmul.f32 %v1830, 0.044715
    %v1839 = vmul.f32 %v1833, 0.044715
    %v1840 = vmul.f32 %v1838, %v1830
    %v1841 = vmul.f32 %v1839, %v1833
    %v1842 = vmul.f32 %v1840, %v1830
    %v1843 = vmul.f32 %v1841, %v1833
    %v1844 = vadd.f32 %v1830, %v1842
    %v1845 = vadd.f32 %v1833, %v1843
    %v1846 = vmul.f32 %v1844, 0.7978846
    %v1847 = vmul.f32 %v1845, 0.7978846
    %v1848 = vtanh.pop %v1846
    %v1849 = vtanh.pop %v1847
    %v1850 = vadd.f32 %v1848, 1.0
    %v1851 = vadd.f32 %v1849, 1.0
    %v1852 = vmul.f32 %v1836, %v1850
    %v1853 = vmul.f32 %v1837, %v1851
    %v1854 = vpack.c.bf16 %v1853, %v1852
    %s1855 = scalar_lea.vmem %s12, 64
    %v1856 = vld [vmem:[%s1855] sm:$0xf]
    %v1857 = vld [vmem:[%s1855 + $0x4] sm:$0xf]
    %v1858 = vld [vmem:[%s1855 + $0x8] sm:$0xf]
    %v1859 = vld [vmem:[%s1855 + $0xc] sm:$0xf]
    %v1860 = vld [vmem:[%s1855 + $0x10] sm:$0xf]
    %v1861 = vld [vmem:[%s1855 + $0x14] sm:$0xf]
    %v1862 = vld [vmem:[%s1855 + $0x18] sm:$0xf]
    %v1863 = vld [vmem:[%s1855 + $0x1c] sm:$0xf]
    %v1864 = vld [vmem:[%s1855 + $0x20] sm:$0xf]
    %v1865 = vld [vmem:[%s1855 + $0x24] sm:$0xf]
    %v1866 = vld [vmem:[%s1855 + $0x28] sm:$0xf]
    %v1867 = vld [vmem:[%s1855 + $0x2c] sm:$0xf]
    %v1868 = vld [vmem:[%s1855 + $0x30] sm:$0xf]
    %v1869 = vld [vmem:[%s1855 + $0x34] sm:$0xf]
    %v1870 = vld [vmem:[%s1855 + $0x38] sm:$0xf]
    %v1871 = vld [vmem:[%s1855 + $0x3c] sm:$0xf]
    %s1872 = scalar_lea.vmem %s13, 1
    %v1873 = vld [vmem:[%s1872] sm:$0x1]
    %v1875 = vlaneseq
    %v1876 = vshrl.u32 %v1875, 7
    %v1877 = vsub.s32 0, %v1876
    %v1878 = vrot.slane %v1873, %v1877
    %v1896 = vunpack.c.l.b16 %v1856
    %v1897 = vunpack.c.l.b16 %v1857
    %v1898 = vunpack.c.l.b16 %v1858
    %v1899 = vunpack.c.l.b16 %v1859
    %v1900 = vunpack.c.l.b16 %v1860
    %v1901 = vunpack.c.l.b16 %v1861
    %v1902 = vunpack.c.l.b16 %v1862
    %v1903 = vunpack.c.l.b16 %v1863
    %v1904 = vunpack.c.l.b16 %v1864
    %v1905 = vunpack.c.l.b16 %v1865
    %v1906 = vunpack.c.l.b16 %v1866
    %v1907 = vunpack.c.l.b16 %v1867
    %v1908 = vunpack.c.l.b16 %v1868
    %v1909 = vunpack.c.l.b16 %v1869
    %v1910 = vunpack.c.l.b16 %v1870
    %v1911 = vunpack.c.l.b16 %v1871
    %v1912 = vpack.c.b16 %v1897, %v1896
    %v1913 = vpack.c.b16 %v1899, %v1898
    %v1914 = vpack.c.b16 %v1901, %v1900
    %v1915 = vpack.c.b16 %v1903, %v1902
    %v1916 = vpack.c.b16 %v1905, %v1904
    %v1917 = vpack.c.b16 %v1907, %v1906
    %v1918 = vpack.c.b16 %v1909, %v1908
    %v1919 = vpack.c.b16 %v1911, %v1910
    %1928 = vmatprep.subr.bf16.mxu0 0
    %1929 = vmatpush1.bf16.msra.mxu0 %v1919
    %1930 = vmatprep.subr.bf16.mxu0 0
    %1931 = vmatpush1.bf16.msra.mxu0 %v1918
    %1932 = vmatprep.subr.bf16.mxu0 0
    %1933 = vmatpush1.bf16.msra.mxu0 %v1917
    %1934 = vmatprep.subr.bf16.mxu0 0
    %1935 = vmatpush1.bf16.msra.mxu0 %v1916
    %1936 = vmatprep.subr.bf16.mxu0 0
    %1937 = vmatpush1.bf16.msra.mxu0 %v1915
    %1938 = vmatprep.subr.bf16.mxu0 0
    %1939 = vmatpush1.bf16.msra.mxu0 %v1914
    %1940 = vmatprep.subr.bf16.mxu0 0
    %1941 = vmatpush1.bf16.msra.mxu0 %v1913
    %1942 = vmatprep.subr.bf16.mxu0 0
    %1943 = vmatpush1.bf16.msra.mxu0 %v1912
    %1944 = vmatprep.subr.bf16.mxu0 0
    %1945 = vmatpush2.bf16.msra.mxu0 0
    %1946 = vmatprep.subr.bf16.mxu0 0
    %1947 = vmatpush2.bf16.msra.mxu0 0
    %1948 = vmatprep.subr.bf16.mxu0 0
    %1949 = vmatpush2.bf16.msra.mxu0 0
    %1950 = vmatprep.subr.bf16.mxu0 0
    %1951 = vmatpush2.bf16.msra.mxu0 0
    %1952 = vmatprep.subr.bf16.mxu0 0
    %1953 = vmatpush2.bf16.msra.mxu0 0
    %1954 = vmatprep.subr.bf16.mxu0 0
    %1955 = vmatpush2.bf16.msra.mxu0 0
    %1956 = vmatprep.subr.bf16.mxu0 0
    %1957 = vmatpush2.bf16.msra.mxu0 0
    %1958 = vmatprep.subr.bf16.mxu0 0
    %1959 = vmatpush2.bf16.msra.mxu0 0
    %1960 = vmatprep.mubr.bf16.mxu0 0
    %1961 = vmatmul.mubr.bf16.gmra.mxu0 %v1854
    %v1962 = vpop.f32.mrf.mxu0
    %v1963 = vadd.f32 %v1878, %v1962
    %v1964 = vpop.f32.mrf.mxu0
    %v1965 = vpop.f32.mrf.mxu0
    %v1966 = vadd.f32 %v1878, %v1965
    %v1967 = vpop.f32.mrf.mxu0
    %1968 = vdwg.mxu0
    %v1969 = vadd.f32 %v1718, %v1963
    %v1970 = vadd.f32 %v1719, %v1966
    %1971 = vst.msk [vmem:[#allocation2] sm:$0xff] %vm66, %v1969
    %1972 = vst.msk [vmem:[#allocation2 + $0x8] sm:$0xff] %vm66, %v1970
    %s1973 = scalar_lea.vmem %s2, 2
    %v1974 = vld [vmem:[%s1973] sm:$0x1]
    %s1975 = scalar_lea.vmem %s3, 2
    %v1976 = vld [vmem:[%s1975] sm:$0x1]
    %v1977 = vsel %vm66, %v1969, 0.0
    %1978 = vadd.xlane.f32.xlu0 %v1977
    %v1979 = vpop.xlane.xlu0 %1978
    %v1980 = vsel %vm66, %v1970, 0.0
    %1981 = vadd.xlane.f32.xlu0 %v1980
    %v1982 = vpop.xlane.xlu0 %1981
    %v1983 = vmul.f32 %v1979, %v73
    %v1984 = vmul.f32 %v1982, %v73
    %v1985 = vsub.f32 %v1969, %v1983
    %v1986 = vsub.f32 %v1970, %v1984
    %v1987 = vmul.f32 %v1985, %v1985
    %v1988 = vmul.f32 %v1986, %v1986
    %v1989 = vsel %vm66, %v1987, 0.0
    %1990 = vadd.xlane.f32.xlu0 %v1989
    %v1991 = vpop.xlane.xlu0 %1990
    %v1992 = vsel %vm66, %v1988, 0.0
    %1993 = vadd.xlane.f32.xlu0 %v1992
    %v1994 = vpop.xlane.xlu0 %1993
    %v1995 = vmul.f32 %v1991, %v73
    %v1996 = vmul.f32 %v1994, %v73
    %v1997 = vadd.f32 %v1995, 1e-05
    %v1998 = vadd.f32 %v1996, 1e-05
    %v1999 = vrsqrt.pop %v1997
    %v2000 = vrsqrt.pop %v1998
    %v2001 = vmul.f32 %v1985, %v1999
    %v2002 = vmul.f32 %v1986, %v2000
    %v2004 = vlaneseq
    %v2005 = vshrl.u32 %v2004, 7
    %v2006 = vsub.s32 0, %v2005
    %v2007 = vrot.slane %v1974, %v2006
    %v2009 = vmul.f32 %v2001, %v2007
    %v2010 = vmul.f32 %v2002, %v2007
    %v2012 = vlaneseq
    %v2013 = vshrl.u32 %v2012, 7
    %v2014 = vsub.s32 0, %v2013
    %v2015 = vrot.slane %v1976, %v2014
    %v2017 = vadd.f32 %v2009, %v2015
    %v2018 = vadd.f32 %v2010, %v2015
    %v2019 = vpack.c.bf16 %v2018, %v2017
    %s2020 = scalar_lea.vmem %s4, 32
    %v2021 = vld [vmem:[%s2020] sm:$0xf]
    %v2022 = vld [vmem:[%s2020 + $0x4] sm:$0xf]
    %v2023 = vld [vmem:[%s2020 + $0x8] sm:$0xf]
    %v2024 = vld [vmem:[%s2020 + $0xc] sm:$0xf]
    %s2025 = scalar_lea.vmem %s5, 2
    %v2026 = vld [vmem:[%s2025] sm:$0x1]
    %v2028 = vlaneseq
    %v2029 = vshrl.u32 %v2028, 7
    %v2030 = vsub.s32 0, %v2029
    %v2031 = vrot.slane %v2026, %v2030
    %v2037 = vunpack.c.l.b16 %v2021
    %v2038 = vunpack.c.l.b16 %v2022
    %v2039 = vunpack.c.l.b16 %v2023
    %v2040 = vunpack.c.l.b16 %v2024
    %v2041 = vpack.c.b16 %v2038, %v2037
    %v2042 = vpack.c.b16 %v2040, %v2039
    %v2046 = vsel %vm66, %v2019, 0
    %2048 = vmatprep.subr.bf16.mxu0 0
    %2049 = vmatpush1.bf16.msra.mxu0 0
    %2050 = vmatprep.subr.bf16.mxu0 0
    %2051 = vmatpush1.bf16.msra.mxu0 0
    %2052 = vmatprep.subr.bf16.mxu0 0
    %2053 = vmatpush1.bf16.msra.mxu0 0
    %2054 = vmatprep.subr.bf16.mxu0 0
    %2055 = vmatpush1.bf16.msra.mxu0 0
    %2056 = vmatprep.subr.bf16.mxu0 0
    %2057 = vmatpush1.bf16.msra.mxu0 0
    %2058 = vmatprep.subr.bf16.mxu0 0
    %2059 = vmatpush1.bf16.msra.mxu0 0
    %2060 = vmatprep.subr.bf16.mxu0 0
    %2061 = vmatpush1.bf16.msra.mxu0 %v2042
    %2062 = vmatprep.subr.bf16.mxu0 0
    %2063 = vmatpush1.bf16.msra.mxu0 %v2041
    %2064 = vmatprep.subr.bf16.mxu0 0
    %2065 = vmatpush2.bf16.msra.mxu0 0
    %2066 = vmatprep.subr.bf16.mxu0 0
    %2067 = vmatpush2.bf16.msra.mxu0 0
    %2068 = vmatprep.subr.bf16.mxu0 0
    %2069 = vmatpush2.bf16.msra.mxu0 0
    %2070 = vmatprep.subr.bf16.mxu0 0
    %2071 = vmatpush2.bf16.msra.mxu0 0
    %2072 = vmatprep.subr.bf16.mxu0 0
    %2073 = vmatpush2.bf16.msra.mxu0 0
    %2074 = vmatprep.subr.bf16.mxu0 0
    %2075 = vmatpush2.bf16.msra.mxu0 0
    %2076 = vmatprep.subr.bf16.mxu0 0
    %2077 = vmatpush2.bf16.msra.mxu0 0
    %2078 = vmatprep.subr.bf16.mxu0 0
    %2079 = vmatpush2.bf16.msra.mxu0 0
    %2080 = vmatprep.mubr.bf16.mxu0 0
    %2081 = vmatmul.mubr.bf16.gmra.mxu0 %v2046
    %v2082 = vpop.f32.mrf.mxu0
    %v2083 = vadd.f32 %v2031, %v2082
    %v2084 = vpop.f32.mrf.mxu0
    %v2085 = vpop.f32.mrf.mxu0
    %v2086 = vadd.f32 %v2031, %v2085
    %v2087 = vpop.f32.mrf.mxu0
    %2088 = vdwg.mxu0
    %v2089 = vmul.f32 %v2083, 0.35355338
    %v2090 = vmul.f32 %v2086, 0.35355338
    %v2091 = vpack.c.bf16 %v2090, %v2089
    %v2092 = vpack.c.bf16 %v2086, %v2083
    %2094 = vrot.lane.b32.xlu0 %v2092, 96
    %v2095 = vpop.permute.xlu0 %2094
    %v2097 = vsel %vm185, %v2091, 0
    %v2100 = vsel %vm185, %v2095, 0
    %2102 = vmatprep.subr.bf16.mxu0 0
    %2103 = vmatpush1.bf16.xpose.msra.mxu0 0
    %2104 = vmatprep.subr.bf16.mxu0 0
    %2105 = vmatpush1.bf16.xpose.msra.mxu0 0
    %2106 = vmatprep.subr.bf16.mxu0 0
    %2107 = vmatpush1.bf16.xpose.msra.mxu0 0
    %2108 = vmatprep.subr.bf16.mxu0 0
    %2109 = vmatpush1.bf16.xpose.msra.mxu0 0
    %2110 = vmatprep.subr.bf16.mxu0 0
    %2111 = vmatpush1.bf16.xpose.msra.mxu0 0
    %2112 = vmatprep.subr.bf16.mxu0 0
    %2113 = vmatpush1.bf16.xpose.msra.mxu0 0
    %2114 = vmatprep.subr.bf16.mxu0 0
    %2115 = vmatpush1.bf16.xpose.msra.mxu0 0
    %2116 = vmatprep.subr.bf16.mxu0 0
    %2117 = vmatpush1.bf16.xpose.msra.mxu0 %v2100
    %2118 = vmatprep.subr.bf16.mxu0 0
    %2119 = vmatpush2.bf16.xpose.msra.mxu0 0
    %2120 = vmatprep.subr.bf16.mxu0 0
    %2121 = vmatpush2.bf16.xpose.msra.mxu0 0
    %2122 = vmatprep.subr.bf16.mxu0 0
    %2123 = vmatpush2.bf16.xpose.msra.mxu0 0
    %2124 = vmatprep.subr.bf16.mxu0 0
    %2125 = vmatpush2.bf16.xpose.msra.mxu0 0
    %2126 = vmatprep.subr.bf16.mxu0 0
    %2127 = vmatpush2.bf16.xpose.msra.mxu0 0
    %2128 = vmatprep.subr.bf16.mxu0 0
    %2129 = vmatpush2.bf16.xpose.msra.mxu0 0
    %2130 = vmatprep.subr.bf16.mxu0 0
    %2131 = vmatpush2.bf16.xpose.msra.mxu0 0
    %2132 = vmatprep.subr.bf16.mxu0 0
    %2133 = vmatpush2.bf16.xpose.msra.mxu0 0
    %2134 = vmatprep.mubr.bf16.mxu0 0
    %2135 = vmatmul.mubr.bf16.gmra.mxu0 %v2097
    %v2136 = vpop.f32.mrf.mxu0
    %v2137 = vadd.f32 %v62, %v2136
    %v2138 = vpop.f32.mrf.mxu0
    %v2139 = vpop.f32.mrf.mxu0
    %v2140 = vadd.f32 %v63, %v2139
    %v2141 = vpop.f32.mrf.mxu0
    %2142 = vdwg.mxu0
    %2144 = vrot.lane.b32.xlu0 %v2091, 120
    %v2145 = vpop.permute.xlu0 %2144
    %2146 = vrot.lane.b32.xlu0 %v2092, 88
    %v2147 = vpop.permute.xlu0 %2146
    %v2149 = vsel %vm185, %v2145, 0
    %v2152 = vsel %vm185, %v2147, 0
    %2154 = vmatprep.subr.bf16.mxu0 0
    %2155 = vmatpush1.bf16.xpose.msra.mxu0 0
    %2156 = vmatprep.subr.bf16.mxu0 0
    %2157 = vmatpush1.bf16.xpose.msra.mxu0 0
    %2158 = vmatprep.subr.bf16.mxu0 0
    %2159 = vmatpush1.bf16.xpose.msra.mxu0 0
    %2160 = vmatprep.subr.bf16.mxu0 0
    %2161 = vmatpush1.bf16.xpose.msra.mxu0 0
    %2162 = vmatprep.subr.bf16.mxu0 0
    %2163 = vmatpush1.bf16.xpose.msra.mxu0 0
    %2164 = vmatprep.subr.bf16.mxu0 0
    %2165 = vmatpush1.bf16.xpose.msra.mxu0 0
    %2166 = vmatprep.subr.bf16.mxu0 0
    %2167 = vmatpush1.bf16.xpose.msra.mxu0 0
    %2168 = vmatprep.subr.bf16.mxu0 0
    %2169 = vmatpush1.bf16.xpose.msra.mxu0 %v2152
    %2170 = vmatprep.subr.bf16.mxu0 0
    %2171 = vmatpush2.bf16.xpose.msra.mxu0 0
    %2172 = vmatprep.subr.bf16.mxu0 0
    %2173 = vmatpush2.bf16.xpose.msra.mxu0 0
    %2174 = vmatprep.subr.bf16.mxu0 0
    %2175 = vmatpush2.bf16.xpose.msra.mxu0 0
    %2176 = vmatprep.subr.bf16.mxu0 0
    %2177 = vmatpush2.bf16.xpose.msra.mxu0 0
    %2178 = vmatprep.subr.bf16.mxu0 0
    %2179 = vmatpush2.bf16.xpose.msra.mxu0 0
    %2180 = vmatprep.subr.bf16.mxu0 0
    %2181 = vmatpush2.bf16.xpose.msra.mxu0 0
    %2182 = vmatprep.subr.bf16.mxu0 0
    %2183 = vmatpush2.bf16.xpose.msra.mxu0 0
    %2184 = vmatprep.subr.bf16.mxu0 0
    %2185 = vmatpush2.bf16.xpose.msra.mxu0 0
    %2186 = vmatprep.mubr.bf16.mxu0 0
    %2187 = vmatmul.mubr.bf16.gmra.mxu0 %v2149
    %v2188 = vpop.f32.mrf.mxu0
    %v2189 = vadd.f32 %v62, %v2188
    %v2190 = vpop.f32.mrf.mxu0
    %v2191 = vpop.f32.mrf.mxu0
    %v2192 = vadd.f32 %v63, %v2191
    %v2193 = vpop.f32.mrf.mxu0
    %2194 = vdwg.mxu0
    %2195 = vrot.lane.b32.xlu0 %v2091, 112
    %v2196 = vpop.permute.xlu0 %2195
    %2197 = vrot.lane.b32.xlu0 %v2092, 80
    %v2198 = vpop.permute.xlu0 %2197
    %v2200 = vsel %vm185, %v2196, 0
    %v2203 = vsel %vm185, %v2198, 0
    %2205 = vmatprep.subr.bf16.mxu0 0
    %2206 = vmatpush1.bf16.xpose.msra.mxu0 0
    %2207 = vmatprep.subr.bf16.mxu0 0
    %2208 = vmatpush1.bf16.xpose.msra.mxu0 0
    %2209 = vmatprep.subr.bf16.mxu0 0
    %2210 = vmatpush1.bf16.xpose.msra.mxu0 0
    %2211 = vmatprep.subr.bf16.mxu0 0
    %2212 = vmatpush1.bf16.xpose.msra.mxu0 0
    %2213 = vmatprep.subr.bf16.mxu0 0
    %2214 = vmatpush1.bf16.xpose.msra.mxu0 0
    %2215 = vmatprep.subr.bf16.mxu0 0
    %2216 = vmatpush1.bf16.xpose.msra.mxu0 0
    %2217 = vmatprep.subr.bf16.mxu0 0
    %2218 = vmatpush1.bf16.xpose.msra.mxu0 0
    %2219 = vmatprep.subr.bf16.mxu0 0
    %2220 = vmatpush1.bf16.xpose.msra.mxu0 %v2203
    %2221 = vmatprep.subr.bf16.mxu0 0
    %2222 = vmatpush2.bf16.xpose.msra.mxu0 0
    %2223 = vmatprep.subr.bf16.mxu0 0
    %2224 = vmatpush2.bf16.xpose.msra.mxu0 0
    %2225 = vmatprep.subr.bf16.mxu0 0
    %2226 = vmatpush2.bf16.xpose.msra.mxu0 0
    %2227 = vmatprep.subr.bf16.mxu0 0
    %2228 = vmatpush2.bf16.xpose.msra.mxu0 0
    %2229 = vmatprep.subr.bf16.mxu0 0
    %2230 = vmatpush2.bf16.xpose.msra.mxu0 0
    %2231 = vmatprep.subr.bf16.mxu0 0
    %2232 = vmatpush2.bf16.xpose.msra.mxu0 0
    %2233 = vmatprep.subr.bf16.mxu0 0
    %2234 = vmatpush2.bf16.xpose.msra.mxu0 0
    %2235 = vmatprep.subr.bf16.mxu0 0
    %2236 = vmatpush2.bf16.xpose.msra.mxu0 0
    %2237 = vmatprep.mubr.bf16.mxu0 0
    %2238 = vmatmul.mubr.bf16.gmra.mxu0 %v2200
    %v2239 = vpop.f32.mrf.mxu0
    %v2240 = vadd.f32 %v62, %v2239
    %v2241 = vpop.f32.mrf.mxu0
    %v2242 = vpop.f32.mrf.mxu0
    %v2243 = vadd.f32 %v63, %v2242
    %v2244 = vpop.f32.mrf.mxu0
    %2245 = vdwg.mxu0
    %2246 = vrot.lane.b32.xlu0 %v2091, 104
    %v2247 = vpop.permute.xlu0 %2246
    %2248 = vrot.lane.b32.xlu0 %v2092, 72
    %v2249 = vpop.permute.xlu0 %2248
    %v2251 = vsel %vm185, %v2247, 0
    %v2254 = vsel %vm185, %v2249, 0
    %2256 = vmatprep.subr.bf16.mxu0 0
    %2257 = vmatpush1.bf16.xpose.msra.mxu0 0
    %2258 = vmatprep.subr.bf16.mxu0 0
    %2259 = vmatpush1.bf16.xpose.msra.mxu0 0
    %2260 = vmatprep.subr.bf16.mxu0 0
    %2261 = vmatpush1.bf16.xpose.msra.mxu0 0
    %2262 = vmatprep.subr.bf16.mxu0 0
    %2263 = vmatpush1.bf16.xpose.msra.mxu0 0
    %2264 = vmatprep.subr.bf16.mxu0 0
    %2265 = vmatpush1.bf16.xpose.msra.mxu0 0
    %2266 = vmatprep.subr.bf16.mxu0 0
    %2267 = vmatpush1.bf16.xpose.msra.mxu0 0
    %2268 = vmatprep.subr.bf16.mxu0 0
    %2269 = vmatpush1.bf16.xpose.msra.mxu0 0
    %2270 = vmatprep.subr.bf16.mxu0 0
    %2271 = vmatpush1.bf16.xpose.msra.mxu0 %v2254
    %2272 = vmatprep.subr.bf16.mxu0 0
    %2273 = vmatpush2.bf16.xpose.msra.mxu0 0
    %2274 = vmatprep.subr.bf16.mxu0 0
    %2275 = vmatpush2.bf16.xpose.msra.mxu0 0
    %2276 = vmatprep.subr.bf16.mxu0 0
    %2277 = vmatpush2.bf16.xpose.msra.mxu0 0
    %2278 = vmatprep.subr.bf16.mxu0 0
    %2279 = vmatpush2.bf16.xpose.msra.mxu0 0
    %2280 = vmatprep.subr.bf16.mxu0 0
    %2281 = vmatpush2.bf16.xpose.msra.mxu0 0
    %2282 = vmatprep.subr.bf16.mxu0 0
    %2283 = vmatpush2.bf16.xpose.msra.mxu0 0
    %2284 = vmatprep.subr.bf16.mxu0 0
    %2285 = vmatpush2.bf16.xpose.msra.mxu0 0
    %2286 = vmatprep.subr.bf16.mxu0 0
    %2287 = vmatpush2.bf16.xpose.msra.mxu0 0
    %2288 = vmatprep.mubr.bf16.mxu0 0
    %2289 = vmatmul.mubr.bf16.gmra.mxu0 %v2251
    %v2290 = vpop.f32.mrf.mxu0
    %v2291 = vadd.f32 %v62, %v2290
    %v2292 = vpop.f32.mrf.mxu0
    %v2293 = vpop.f32.mrf.mxu0
    %v2294 = vadd.f32 %v63, %v2293
    %v2295 = vpop.f32.mrf.mxu0
    %2296 = vdwg.mxu0
    %v2297 = vsel %vm387, %v2137, -inf
    %2298 = vmax.xlane.f32.xlu0 %v2297
    %v2299 = vpop.xlane.xlu0 %2298
    %v2300 = vsel %vm387, %v2140, -inf
    %2301 = vmax.xlane.f32.xlu0 %v2300
    %v2302 = vpop.xlane.xlu0 %2301
    %v2303 = vsel %vm387, %v2189, -inf
    %2304 = vmax.xlane.f32.xlu0 %v2303
    %v2305 = vpop.xlane.xlu0 %2304
    %v2306 = vsel %vm387, %v2192, -inf
    %2307 = vmax.xlane.f32.xlu0 %v2306
    %v2308 = vpop.xlane.xlu0 %2307
    %v2309 = vsel %vm387, %v2240, -inf
    %2310 = vmax.xlane.f32.xlu0 %v2309
    %v2311 = vpop.xlane.xlu0 %2310
    %v2312 = vsel %vm387, %v2243, -inf
    %2313 = vmax.xlane.f32.xlu0 %v2312
    %v2314 = vpop.xlane.xlu0 %2313
    %v2315 = vsel %vm387, %v2291, -inf
    %2316 = vmax.xlane.f32.xlu0 %v2315
    %v2317 = vpop.xlane.xlu0 %2316
    %v2318 = vsel %vm387, %v2294, -inf
    %2319 = vmax.xlane.f32.xlu0 %v2318
    %v2320 = vpop.xlane.xlu0 %2319
    %v2321 = vsub.f32 %v2137, %v2299
    %v2322 = vsub.f32 %v2140, %v2302
    %v2323 = vsub.f32 %v2189, %v2305
    %v2324 = vsub.f32 %v2192, %v2308
    %v2325 = vsub.f32 %v2240, %v2311
    %v2326 = vsub.f32 %v2243, %v2314
    %v2327 = vsub.f32 %v2291, %v2317
    %v2328 = vsub.f32 %v2294, %v2320
    %v2329 = vmul.f32 %v2321, 1.442695
    %v2330 = vpow.pop %v2329
    %v2331 = vmul.f32 %v2322, 1.442695
    %v2332 = vpow.pop %v2331
    %v2333 = vmul.f32 %v2323, 1.442695
    %v2334 = vpow.pop %v2333
    %v2335 = vmul.f32 %v2324, 1.442695
    %v2336 = vpow.pop %v2335
    %v2337 = vmul.f32 %v2325, 1.442695
    %v2338 = vpow.pop %v2337
    %v2339 = vmul.f32 %v2326, 1.442695
    %v2340 = vpow.pop %v2339
    %v2341 = vmul.f32 %v2327, 1.442695
    %v2342 = vpow.pop %v2341
    %v2343 = vmul.f32 %v2328, 1.442695
    %v2344 = vpow.pop %v2343
    %v2345 = vsel %vm387, %v2330, 0.0
    %2346 = vadd.xlane.f32.xlu0 %v2345
    %v2347 = vpop.xlane.xlu0 %2346
    %v2348 = vsel %vm387, %v2332, 0.0
    %2349 = vadd.xlane.f32.xlu0 %v2348
    %v2350 = vpop.xlane.xlu0 %2349
    %v2351 = vsel %vm387, %v2334, 0.0
    %2352 = vadd.xlane.f32.xlu0 %v2351
    %v2353 = vpop.xlane.xlu0 %2352
    %v2354 = vsel %vm387, %v2336, 0.0
    %2355 = vadd.xlane.f32.xlu0 %v2354
    %v2356 = vpop.xlane.xlu0 %2355
    %v2357 = vsel %vm387, %v2338, 0.0
    %2358 = vadd.xlane.f32.xlu0 %v2357
    %v2359 = vpop.xlane.xlu0 %2358
    %v2360 = vsel %vm387, %v2340, 0.0
    %2361 = vadd.xlane.f32.xlu0 %v2360
    %v2362 = vpop.xlane.xlu0 %2361
    %v2363 = vsel %vm387, %v2342, 0.0
    %2364 = vadd.xlane.f32.xlu0 %v2363
    %v2365 = vpop.xlane.xlu0 %2364
    %v2366 = vsel %vm387, %v2344, 0.0
    %2367 = vadd.xlane.f32.xlu0 %v2366
    %v2368 = vpop.xlane.xlu0 %2367
    %v2369 = vrcp.pop %v2347
    %v2370 = vrcp.pop %v2350
    %v2371 = vrcp.pop %v2353
    %v2372 = vrcp.pop %v2356
    %v2373 = vrcp.pop %v2359
    %v2374 = vrcp.pop %v2362
    %v2375 = vrcp.pop %v2365
    %v2376 = vrcp.pop %v2368
    %v2377 = vpack.c.bf16 %v2332, %v2330
    %2378 = vrot.lane.b32.xlu0 %v2092, 64
    %v2379 = vpop.permute.xlu0 %2378
    %v2382 = vsel %vm387, %v2377, 0
    %2384 = vmatprep.subr.bf16.mxu0 0
    %2385 = vmatpush1.bf16.msra.mxu0 0
    %2386 = vmatprep.subr.bf16.mxu0 0
    %2387 = vmatpush1.bf16.msra.mxu0 0
    %2388 = vmatprep.subr.bf16.mxu0 0
    %2389 = vmatpush1.bf16.msra.mxu0 0
    %2390 = vmatprep.subr.bf16.mxu0 0
    %2391 = vmatpush1.bf16.msra.mxu0 0
    %2392 = vmatprep.subr.bf16.mxu0 0
    %2393 = vmatpush1.bf16.msra.mxu0 0
    %2394 = vmatprep.subr.bf16.mxu0 0
    %2395 = vmatpush1.bf16.msra.mxu0 0
    %2396 = vmatprep.subr.bf16.mxu0 0
    %2397 = vmatpush1.bf16.msra.mxu0 0
    %2398 = vmatprep.subr.bf16.mxu0 0
    %2399 = vmatpush1.bf16.msra.mxu0 %v2379
    %2400 = vmatprep.subr.bf16.mxu0 0
    %2401 = vmatpush2.bf16.msra.mxu0 0
    %2402 = vmatprep.subr.bf16.mxu0 0
    %2403 = vmatpush2.bf16.msra.mxu0 0
    %2404 = vmatprep.subr.bf16.mxu0 0
    %2405 = vmatpush2.bf16.msra.mxu0 0
    %2406 = vmatprep.subr.bf16.mxu0 0
    %2407 = vmatpush2.bf16.msra.mxu0 0
    %2408 = vmatprep.subr.bf16.mxu0 0
    %2409 = vmatpush2.bf16.msra.mxu0 0
    %2410 = vmatprep.subr.bf16.mxu0 0
    %2411 = vmatpush2.bf16.msra.mxu0 0
    %2412 = vmatprep.subr.bf16.mxu0 0
    %2413 = vmatpush2.bf16.msra.mxu0 0
    %2414 = vmatprep.subr.bf16.mxu0 0
    %2415 = vmatpush2.bf16.msra.mxu0 0
    %2416 = vmatprep.mubr.bf16.mxu0 0
    %2417 = vmatmul.mubr.bf16.gmra.mxu0 %v2382
    %v2418 = vpop.f32.mrf.mxu0
    %v2419 = vadd.f32 0.0, %v2418
    %v2420 = vpop.f32.mrf.mxu0
    %v2421 = vpop.f32.mrf.mxu0
    %v2422 = vadd.f32 0.0, %v2421
    %v2423 = vpop.f32.mrf.mxu0
    %2424 = vdwg.mxu0
    %v2425 = vmul.f32 %v2419, %v2369
    %v2426 = vmul.f32 %v2422, %v2370
    %v2427 = vpack.c.bf16 %v2336, %v2334
    %2428 = vrot.lane.b32.xlu0 %v2092, 56
    %v2429 = vpop.permute.xlu0 %2428
    %v2432 = vsel %vm387, %v2427, 0
    %2434 = vmatprep.subr.bf16.mxu0 0
    %2435 = vmatpush1.bf16.msra.mxu0 0
    %2436 = vmatprep.subr.bf16.mxu0 0
    %2437 = vmatpush1.bf16.msra.mxu0 0
    %2438 = vmatprep.subr.bf16.mxu0 0
    %2439 = vmatpush1.bf16.msra.mxu0 0
    %2440 = vmatprep.subr.bf16.mxu0 0
    %2441 = vmatpush1.bf16.msra.mxu0 0
    %2442 = vmatprep.subr.bf16.mxu0 0
    %2443 = vmatpush1.bf16.msra.mxu0 0
    %2444 = vmatprep.subr.bf16.mxu0 0
    %2445 = vmatpush1.bf16.msra.mxu0 0
    %2446 = vmatprep.subr.bf16.mxu0 0
    %2447 = vmatpush1.bf16.msra.mxu0 0
    %2448 = vmatprep.subr.bf16.mxu0 0
    %2449 = vmatpush1.bf16.msra.mxu0 %v2429
    %2450 = vmatprep.subr.bf16.mxu0 0
    %2451 = vmatpush2.bf16.msra.mxu0 0
    %2452 = vmatprep.subr.bf16.mxu0 0
    %2453 = vmatpush2.bf16.msra.mxu0 0
    %2454 = vmatprep.subr.bf16.mxu0 0
    %2455 = vmatpush2.bf16.msra.mxu0 0
    %2456 = vmatprep.subr.bf16.mxu0 0
    %2457 = vmatpush2.bf16.msra.mxu0 0
    %2458 = vmatprep.subr.bf16.mxu0 0
    %2459 = vmatpush2.bf16.msra.mxu0 0
    %2460 = vmatprep.subr.bf16.mxu0 0
    %2461 = vmatpush2.bf16.msra.mxu0 0
    %2462 = vmatprep.subr.bf16.mxu0 0
    %2463 = vmatpush2.bf16.msra.mxu0 0
    %2464 = vmatprep.subr.bf16.mxu0 0
    %2465 = vmatpush2.bf16.msra.mxu0 0
    %2466 = vmatprep.mubr.bf16.mxu0 0
    %2467 = vmatmul.mubr.bf16.gmra.mxu0 %v2432
    %v2468 = vpop.f32.mrf.mxu0
    %v2469 = vadd.f32 0.0, %v2468
    %v2470 = vpop.f32.mrf.mxu0
    %v2471 = vpop.f32.mrf.mxu0
    %v2472 = vadd.f32 0.0, %v2471
    %v2473 = vpop.f32.mrf.mxu0
    %2474 = vdwg.mxu0
    %v2475 = vmul.f32 %v2469, %v2371
    %v2476 = vmul.f32 %v2472, %v2372
    %v2477 = vpack.c.bf16 %v2340, %v2338
    %2478 = vrot.lane.b32.xlu0 %v2092, 48
    %v2479 = vpop.permute.xlu0 %2478
    %v2482 = vsel %vm387, %v2477, 0
    %2484 = vmatprep.subr.bf16.mxu0 0
    %2485 = vmatpush1.bf16.msra.mxu0 0
    %2486 = vmatprep.subr.bf16.mxu0 0
    %2487 = vmatpush1.bf16.msra.mxu0 0
    %2488 = vmatprep.subr.bf16.mxu0 0
    %2489 = vmatpush1.bf16.msra.mxu0 0
    %2490 = vmatprep.subr.bf16.mxu0 0
    %2491 = vmatpush1.bf16.msra.mxu0 0
    %2492 = vmatprep.subr.bf16.mxu0 0
    %2493 = vmatpush1.bf16.msra.mxu0 0
    %2494 = vmatprep.subr.bf16.mxu0 0
    %2495 = vmatpush1.bf16.msra.mxu0 0
    %2496 = vmatprep.subr.bf16.mxu0 0
    %2497 = vmatpush1.bf16.msra.mxu0 0
    %2498 = vmatprep.subr.bf16.mxu0 0
    %2499 = vmatpush1.bf16.msra.mxu0 %v2479
    %2500 = vmatprep.subr.bf16.mxu0 0
    %2501 = vmatpush2.bf16.msra.mxu0 0
    %2502 = vmatprep.subr.bf16.mxu0 0
    %2503 = vmatpush2.bf16.msra.mxu0 0
    %2504 = vmatprep.subr.bf16.mxu0 0
    %2505 = vmatpush2.bf16.msra.mxu0 0
    %2506 = vmatprep.subr.bf16.mxu0 0
    %2507 = vmatpush2.bf16.msra.mxu0 0
    %2508 = vmatprep.subr.bf16.mxu0 0
    %2509 = vmatpush2.bf16.msra.mxu0 0
    %2510 = vmatprep.subr.bf16.mxu0 0
    %2511 = vmatpush2.bf16.msra.mxu0 0
    %2512 = vmatprep.subr.bf16.mxu0 0
    %2513 = vmatpush2.bf16.msra.mxu0 0
    %2514 = vmatprep.subr.bf16.mxu0 0
    %2515 = vmatpush2.bf16.msra.mxu0 0
    %2516 = vmatprep.mubr.bf16.mxu0 0
    %2517 = vmatmul.mubr.bf16.gmra.mxu0 %v2482
    %v2518 = vpop.f32.mrf.mxu0
    %v2519 = vadd.f32 0.0, %v2518
    %v2520 = vpop.f32.mrf.mxu0
    %v2521 = vpop.f32.mrf.mxu0
    %v2522 = vadd.f32 0.0, %v2521
    %v2523 = vpop.f32.mrf.mxu0
    %2524 = vdwg.mxu0
    %v2525 = vmul.f32 %v2519, %v2373
    %v2526 = vmul.f32 %v2522, %v2374
    %v2527 = vpack.c.bf16 %v2344, %v2342
    %2528 = vrot.lane.b32.xlu0 %v2092, 40
    %v2529 = vpop.permute.xlu0 %2528
    %v2532 = vsel %vm387, %v2527, 0
    %2534 = vmatprep.subr.bf16.mxu0 0
    %2535 = vmatpush1.bf16.msra.mxu0 0
    %2536 = vmatprep.subr.bf16.mxu0 0
    %2537 = vmatpush1.bf16.msra.mxu0 0
    %2538 = vmatprep.subr.bf16.mxu0 0
    %2539 = vmatpush1.bf16.msra.mxu0 0
    %2540 = vmatprep.subr.bf16.mxu0 0
    %2541 = vmatpush1.bf16.msra.mxu0 0
    %2542 = vmatprep.subr.bf16.mxu0 0
    %2543 = vmatpush1.bf16.msra.mxu0 0
    %2544 = vmatprep.subr.bf16.mxu0 0
    %2545 = vmatpush1.bf16.msra.mxu0 0
    %2546 = vmatprep.subr.bf16.mxu0 0
    %2547 = vmatpush1.bf16.msra.mxu0 0
    %2548 = vmatprep.subr.bf16.mxu0 0
    %2549 = vmatpush1.bf16.msra.mxu0 %v2529
    %2550 = vmatprep.subr.bf16.mxu0 0
    %2551 = vmatpush2.bf16.msra.mxu0 0
    %2552 = vmatprep.subr.bf16.mxu0 0
    %2553 = vmatpush2.bf16.msra.mxu0 0
    %2554 = vmatprep.subr.bf16.mxu0 0
    %2555 = vmatpush2.bf16.msra.mxu0 0
    %2556 = vmatprep.subr.bf16.mxu0 0
    %2557 = vmatpush2.bf16.msra.mxu0 0
    %2558 = vmatprep.subr.bf16.mxu0 0
    %2559 = vmatpush2.bf16.msra.mxu0 0
    %2560 = vmatprep.subr.bf16.mxu0 0
    %2561 = vmatpush2.bf16.msra.mxu0 0
    %2562 = vmatprep.subr.bf16.mxu0 0
    %2563 = vmatpush2.bf16.msra.mxu0 0
    %2564 = vmatprep.subr.bf16.mxu0 0
    %2565 = vmatpush2.bf16.msra.mxu0 0
    %2566 = vmatprep.mubr.bf16.mxu0 0
    %2567 = vmatmul.mubr.bf16.gmra.mxu0 %v2532
    %v2568 = vpop.f32.mrf.mxu0
    %v2569 = vadd.f32 0.0, %v2568
    %v2570 = vpop.f32.mrf.mxu0
    %v2571 = vpop.f32.mrf.mxu0
    %v2572 = vadd.f32 0.0, %v2571
    %v2573 = vpop.f32.mrf.mxu0
    %2574 = vdwg.mxu0
    %v2575 = vmul.f32 %v2569, %v2375
    %v2576 = vmul.f32 %v2572, %v2376
    %2579 = vrot.lane.b32.xlu0 %v2475, 8
    %v2580 = vpop.permute.xlu0 %2579
    %2581 = vrot.lane.b32.xlu0 %v2476, 8
    %v2582 = vpop.permute.xlu0 %2581
    %2587 = vrot.lane.b32.xlu0 %v2525, 16
    %v2588 = vpop.permute.xlu0 %2587
    %2589 = vrot.lane.b32.xlu0 %v2526, 16
    %v2590 = vpop.permute.xlu0 %2589
    %2595 = vrot.lane.b32.xlu0 %v2575, 24
    %v2596 = vpop.permute.xlu0 %2595
    %2597 = vrot.lane.b32.xlu0 %v2576, 24
    %v2598 = vpop.permute.xlu0 %2597
    %v2601 = vsel %vm185, %v2425, %v2580
    %v2602 = vsel %vm185, %v2426, %v2582
    %v2603 = vsel %vm387, %v2601, %v2588
    %v2604 = vsel %vm387, %v2602, %v2590
    %v2605 = vsel %vm696, %v2603, %v2596
    %v2606 = vsel %vm696, %v2604, %v2598
    %v2607 = vpack.c.bf16 %v2606, %v2605
    %s2608 = scalar_lea.vmem %s6, 32
    %v2609 = vld [vmem:[%s2608] sm:$0xf]
    %v2610 = vld [vmem:[%s2608 + $0x4] sm:$0xf]
    %v2611 = vld [vmem:[%s2608 + $0x8] sm:$0xf]
    %v2612 = vld [vmem:[%s2608 + $0xc] sm:$0xf]
    %s2613 = scalar_lea.vmem %s7, 2
    %v2614 = vld [vmem:[%s2613] sm:$0x1]
    %v2616 = vlaneseq
    %v2617 = vshrl.u32 %v2616, 7
    %v2618 = vsub.s32 0, %v2617
    %v2619 = vrot.slane %v2614, %v2618
    %v2625 = vunpack.c.l.b16 %v2609
    %v2626 = vunpack.c.l.b16 %v2610
    %v2627 = vunpack.c.l.b16 %v2611
    %v2628 = vunpack.c.l.b16 %v2612
    %v2629 = vpack.c.b16 %v2626, %v2625
    %v2630 = vpack.c.b16 %v2628, %v2627
    %v2634 = vsel %vm66, %v2607, 0
    %2636 = vmatprep.subr.bf16.mxu0 0
    %2637 = vmatpush1.bf16.msra.mxu0 0
    %2638 = vmatprep.subr.bf16.mxu0 0
    %2639 = vmatpush1.bf16.msra.mxu0 0
    %2640 = vmatprep.subr.bf16.mxu0 0
    %2641 = vmatpush1.bf16.msra.mxu0 0
    %2642 = vmatprep.subr.bf16.mxu0 0
    %2643 = vmatpush1.bf16.msra.mxu0 0
    %2644 = vmatprep.subr.bf16.mxu0 0
    %2645 = vmatpush1.bf16.msra.mxu0 0
    %2646 = vmatprep.subr.bf16.mxu0 0
    %2647 = vmatpush1.bf16.msra.mxu0 0
    %2648 = vmatprep.subr.bf16.mxu0 0
    %2649 = vmatpush1.bf16.msra.mxu0 %v2630
    %2650 = vmatprep.subr.bf16.mxu0 0
    %2651 = vmatpush1.bf16.msra.mxu0 %v2629
    %2652 = vmatprep.subr.bf16.mxu0 0
    %2653 = vmatpush2.bf16.msra.mxu0 0
    %2654 = vmatprep.subr.bf16.mxu0 0
    %2655 = vmatpush2.bf16.msra.mxu0 0
    %2656 = vmatprep.subr.bf16.mxu0 0
    %2657 = vmatpush2.bf16.msra.mxu0 0
    %2658 = vmatprep.subr.bf16.mxu0 0
    %2659 = vmatpush2.bf16.msra.mxu0 0
    %2660 = vmatprep.subr.bf16.mxu0 0
    %2661 = vmatpush2.bf16.msra.mxu0 0
    %2662 = vmatprep.subr.bf16.mxu0 0
    %2663 = vmatpush2.bf16.msra.mxu0 0
    %2664 = vmatprep.subr.bf16.mxu0 0
    %2665 = vmatpush2.bf16.msra.mxu0 0
    %2666 = vmatprep.subr.bf16.mxu0 0
    %2667 = vmatpush2.bf16.msra.mxu0 0
    %2668 = vmatprep.mubr.bf16.mxu0 0
    %2669 = vmatmul.mubr.bf16.gmra.mxu0 %v2634
    %v2670 = vpop.f32.mrf.mxu0
    %v2671 = vadd.f32 %v2619, %v2670
    %v2672 = vpop.f32.mrf.mxu0
    %v2673 = vpop.f32.mrf.mxu0
    %v2674 = vadd.f32 %v2619, %v2673
    %v2675 = vpop.f32.mrf.mxu0
    %2676 = vdwg.mxu0
    %v2677 = vadd.f32 %v1969, %v2671
    %v2678 = vadd.f32 %v1970, %v2674
    %s2679 = scalar_lea.vmem %s8, 2
    %v2680 = vld [vmem:[%s2679] sm:$0x1]
    %s2681 = scalar_lea.vmem %s9, 2
    %v2682 = vld [vmem:[%s2681] sm:$0x1]
    %v2683 = vsel %vm66, %v2677, 0.0
    %2684 = vadd.xlane.f32.xlu0 %v2683
    %v2685 = vpop.xlane.xlu0 %2684
    %v2686 = vsel %vm66, %v2678, 0.0
    %2687 = vadd.xlane.f32.xlu0 %v2686
    %v2688 = vpop.xlane.xlu0 %2687
    %v2689 = vmul.f32 %v2685, %v73
    %v2690 = vmul.f32 %v2688, %v73
    %v2691 = vsub.f32 %v2677, %v2689
    %v2692 = vsub.f32 %v2678, %v2690
    %v2693 = vmul.f32 %v2691, %v2691
    %v2694 = vmul.f32 %v2692, %v2692
    %v2695 = vsel %vm66, %v2693, 0.0
    %2696 = vadd.xlane.f32.xlu0 %v2695
    %v2697 = vpop.xlane.xlu0 %2696
    %v2698 = vsel %vm66, %v2694, 0.0
    %2699 = vadd.xlane.f32.xlu0 %v2698
    %v2700 = vpop.xlane.xlu0 %2699
    %v2701 = vmul.f32 %v2697, %v73
    %v2702 = vmul.f32 %v2700, %v73
    %v2703 = vadd.f32 %v2701, 1e-05
    %v2704 = vadd.f32 %v2702, 1e-05
    %v2705 = vrsqrt.pop %v2703
    %v2706 = vrsqrt.pop %v2704
    %v2707 = vmul.f32 %v2691, %v2705
    %v2708 = vmul.f32 %v2692, %v2706
    %v2710 = vlaneseq
    %v2711 = vshrl.u32 %v2710, 7
    %v2712 = vsub.s32 0, %v2711
    %v2713 = vrot.slane %v2680, %v2712
    %v2715 = vmul.f32 %v2707, %v2713
    %v2716 = vmul.f32 %v2708, %v2713
    %v2718 = vlaneseq
    %v2719 = vshrl.u32 %v2718, 7
    %v2720 = vsub.s32 0, %v2719
    %v2721 = vrot.slane %v2682, %v2720
    %v2723 = vadd.f32 %v2715, %v2721
    %v2724 = vadd.f32 %v2716, %v2721
    %v2725 = vpack.c.bf16 %v2724, %v2723
    %s2726 = scalar_lea.vmem %s10, 32
    %v2727 = vld [vmem:[%s2726] sm:$0xf]
    %v2728 = vld [vmem:[%s2726 + $0x4] sm:$0xf]
    %v2729 = vld [vmem:[%s2726 + $0x8] sm:$0xf]
    %v2730 = vld [vmem:[%s2726 + $0xc] sm:$0xf]
    %s2731 = scalar_lea.vmem %s11, 2
    %v2732 = vld [vmem:[%s2731] sm:$0x1]
    %v2734 = vlaneseq
    %v2735 = vshrl.u32 %v2734, 7
    %v2736 = vsub.s32 0, %v2735
    %v2737 = vrot.slane %v2732, %v2736
    %v2743 = vunpack.c.l.b16 %v2727
    %v2744 = vunpack.c.l.b16 %v2728
    %v2745 = vunpack.c.l.b16 %v2729
    %v2746 = vunpack.c.l.b16 %v2730
    %v2747 = vpack.c.b16 %v2744, %v2743
    %v2748 = vpack.c.b16 %v2746, %v2745
    %v2752 = vsel %vm66, %v2725, 0
    %2754 = vmatprep.subr.bf16.mxu0 0
    %2755 = vmatpush1.bf16.msra.mxu0 0
    %2756 = vmatprep.subr.bf16.mxu0 0
    %2757 = vmatpush1.bf16.msra.mxu0 0
    %2758 = vmatprep.subr.bf16.mxu0 0
    %2759 = vmatpush1.bf16.msra.mxu0 0
    %2760 = vmatprep.subr.bf16.mxu0 0
    %2761 = vmatpush1.bf16.msra.mxu0 0
    %2762 = vmatprep.subr.bf16.mxu0 0
    %2763 = vmatpush1.bf16.msra.mxu0 0
    %2764 = vmatprep.subr.bf16.mxu0 0
    %2765 = vmatpush1.bf16.msra.mxu0 0
    %2766 = vmatprep.subr.bf16.mxu0 0
    %2767 = vmatpush1.bf16.msra.mxu0 %v2748
    %2768 = vmatprep.subr.bf16.mxu0 0
    %2769 = vmatpush1.bf16.msra.mxu0 %v2747
    %2770 = vmatprep.subr.bf16.mxu0 0
    %2771 = vmatpush2.bf16.msra.mxu0 0
    %2772 = vmatprep.subr.bf16.mxu0 0
    %2773 = vmatpush2.bf16.msra.mxu0 0
    %2774 = vmatprep.subr.bf16.mxu0 0
    %2775 = vmatpush2.bf16.msra.mxu0 0
    %2776 = vmatprep.subr.bf16.mxu0 0
    %2777 = vmatpush2.bf16.msra.mxu0 0
    %2778 = vmatprep.subr.bf16.mxu0 0
    %2779 = vmatpush2.bf16.msra.mxu0 0
    %2780 = vmatprep.subr.bf16.mxu0 0
    %2781 = vmatpush2.bf16.msra.mxu0 0
    %2782 = vmatprep.subr.bf16.mxu0 0
    %2783 = vmatpush2.bf16.msra.mxu0 0
    %2784 = vmatprep.subr.bf16.mxu0 0
    %2785 = vmatpush2.bf16.msra.mxu0 0
    %2786 = vmatprep.mubr.bf16.mxu0 0
    %2787 = vmatmul.mubr.bf16.gmra.mxu0 %v2752
    %v2788 = vpop.f32.mrf.mxu0
    %v2789 = vadd.f32 %v2737, %v2788
    %v2790 = vpop.f32.mrf.mxu0
    %v2791 = vpop.f32.mrf.mxu0
    %v2792 = vadd.f32 %v2737, %v2791
    %v2793 = vpop.f32.mrf.mxu0
    %2794 = vdwg.mxu0
    %v2795 = vmul.f32 %v2789, 0.5
    %v2796 = vmul.f32 %v2792, 0.5
    %v2797 = vmul.f32 %v2789, 0.044715
    %v2798 = vmul.f32 %v2792, 0.044715
    %v2799 = vmul.f32 %v2797, %v2789
    %v2800 = vmul.f32 %v2798, %v2792
    %v2801 = vmul.f32 %v2799, %v2789
    %v2802 = vmul.f32 %v2800, %v2792
    %v2803 = vadd.f32 %v2789, %v2801
    %v2804 = vadd.f32 %v2792, %v2802
    %v2805 = vmul.f32 %v2803, 0.7978846
    %v2806 = vmul.f32 %v2804, 0.7978846
    %v2807 = vtanh.pop %v2805
    %v2808 = vtanh.pop %v2806
    %v2809 = vadd.f32 %v2807, 1.0
    %v2810 = vadd.f32 %v2808, 1.0
    %v2811 = vmul.f32 %v2795, %v2809
    %v2812 = vmul.f32 %v2796, %v2810
    %v2813 = vpack.c.bf16 %v2812, %v2811
    %s2814 = scalar_lea.vmem %s12, 128
    %v2815 = vld [vmem:[%s2814] sm:$0xf]
    %v2816 = vld [vmem:[%s2814 + $0x4] sm:$0xf]
    %v2817 = vld [vmem:[%s2814 + $0x8] sm:$0xf]
    %v2818 = vld [vmem:[%s2814 + $0xc] sm:$0xf]
    %v2819 = vld [vmem:[%s2814 + $0x10] sm:$0xf]
    %v2820 = vld [vmem:[%s2814 + $0x14] sm:$0xf]
    %v2821 = vld [vmem:[%s2814 + $0x18] sm:$0xf]
    %v2822 = vld [vmem:[%s2814 + $0x1c] sm:$0xf]
    %v2823 = vld [vmem:[%s2814 + $0x20] sm:$0xf]
    %v2824 = vld [vmem:[%s2814 + $0x24] sm:$0xf]
    %v2825 = vld [vmem:[%s2814 + $0x28] sm:$0xf]
    %v2826 = vld [vmem:[%s2814 + $0x2c] sm:$0xf]
    %v2827 = vld [vmem:[%s2814 + $0x30] sm:$0xf]
    %v2828 = vld [vmem:[%s2814 + $0x34] sm:$0xf]
    %v2829 = vld [vmem:[%s2814 + $0x38] sm:$0xf]
    %v2830 = vld [vmem:[%s2814 + $0x3c] sm:$0xf]
    %s2831 = scalar_lea.vmem %s13, 2
    %v2832 = vld [vmem:[%s2831] sm:$0x1]
    %v2834 = vlaneseq
    %v2835 = vshrl.u32 %v2834, 7
    %v2836 = vsub.s32 0, %v2835
    %v2837 = vrot.slane %v2832, %v2836
    %v2855 = vunpack.c.l.b16 %v2815
    %v2856 = vunpack.c.l.b16 %v2816
    %v2857 = vunpack.c.l.b16 %v2817
    %v2858 = vunpack.c.l.b16 %v2818
    %v2859 = vunpack.c.l.b16 %v2819
    %v2860 = vunpack.c.l.b16 %v2820
    %v2861 = vunpack.c.l.b16 %v2821
    %v2862 = vunpack.c.l.b16 %v2822
    %v2863 = vunpack.c.l.b16 %v2823
    %v2864 = vunpack.c.l.b16 %v2824
    %v2865 = vunpack.c.l.b16 %v2825
    %v2866 = vunpack.c.l.b16 %v2826
    %v2867 = vunpack.c.l.b16 %v2827
    %v2868 = vunpack.c.l.b16 %v2828
    %v2869 = vunpack.c.l.b16 %v2829
    %v2870 = vunpack.c.l.b16 %v2830
    %v2871 = vpack.c.b16 %v2856, %v2855
    %v2872 = vpack.c.b16 %v2858, %v2857
    %v2873 = vpack.c.b16 %v2860, %v2859
    %v2874 = vpack.c.b16 %v2862, %v2861
    %v2875 = vpack.c.b16 %v2864, %v2863
    %v2876 = vpack.c.b16 %v2866, %v2865
    %v2877 = vpack.c.b16 %v2868, %v2867
    %v2878 = vpack.c.b16 %v2870, %v2869
    %2887 = vmatprep.subr.bf16.mxu0 0
    %2888 = vmatpush1.bf16.msra.mxu0 %v2878
    %2889 = vmatprep.subr.bf16.mxu0 0
    %2890 = vmatpush1.bf16.msra.mxu0 %v2877
    %2891 = vmatprep.subr.bf16.mxu0 0
    %2892 = vmatpush1.bf16.msra.mxu0 %v2876
    %2893 = vmatprep.subr.bf16.mxu0 0
    %2894 = vmatpush1.bf16.msra.mxu0 %v2875
    %2895 = vmatprep.subr.bf16.mxu0 0
    %2896 = vmatpush1.bf16.msra.mxu0 %v2874
    %2897 = vmatprep.subr.bf16.mxu0 0
    %2898 = vmatpush1.bf16.msra.mxu0 %v2873
    %2899 = vmatprep.subr.bf16.mxu0 0
    %2900 = vmatpush1.bf16.msra.mxu0 %v2872
    %2901 = vmatprep.subr.bf16.mxu0 0
    %2902 = vmatpush1.bf16.msra.mxu0 %v2871
    %2903 = vmatprep.subr.bf16.mxu0 0
    %2904 = vmatpush2.bf16.msra.mxu0 0
    %2905 = vmatprep.subr.bf16.mxu0 0
    %2906 = vmatpush2.bf16.msra.mxu0 0
    %2907 = vmatprep.subr.bf16.mxu0 0
    %2908 = vmatpush2.bf16.msra.mxu0 0
    %2909 = vmatprep.subr.bf16.mxu0 0
    %2910 = vmatpush2.bf16.msra.mxu0 0
    %2911 = vmatprep.subr.bf16.mxu0 0
    %2912 = vmatpush2.bf16.msra.mxu0 0
    %2913 = vmatprep.subr.bf16.mxu0 0
    %2914 = vmatpush2.bf16.msra.mxu0 0
    %2915 = vmatprep.subr.bf16.mxu0 0
    %2916 = vmatpush2.bf16.msra.mxu0 0
    %2917 = vmatprep.subr.bf16.mxu0 0
    %2918 = vmatpush2.bf16.msra.mxu0 0
    %2919 = vmatprep.mubr.bf16.mxu0 0
    %2920 = vmatmul.mubr.bf16.gmra.mxu0 %v2813
    %v2921 = vpop.f32.mrf.mxu0
    %v2922 = vadd.f32 %v2837, %v2921
    %v2923 = vpop.f32.mrf.mxu0
    %v2924 = vpop.f32.mrf.mxu0
    %v2925 = vadd.f32 %v2837, %v2924
    %v2926 = vpop.f32.mrf.mxu0
    %2927 = vdwg.mxu0
    %v2928 = vadd.f32 %v2677, %v2922
    %v2929 = vadd.f32 %v2678, %v2925
    %s2930 = scalar_lea.vmem %s2, 3
    %v2931 = vld [vmem:[%s2930] sm:$0x1]
    %s2932 = scalar_lea.vmem %s3, 3
    %v2933 = vld [vmem:[%s2932] sm:$0x1]
    %v2935 = vlaneseq
    %v2936 = vshrl.u32 %v2935, 7
    %v2937 = vsub.s32 0, %v2936
    %v2938 = vrot.slane %v2931, %v2937
    %v2940 = vmul.f32 %v2001, %v2938
    %v2941 = vmul.f32 %v2002, %v2938
    %v2943 = vlaneseq
    %v2944 = vshrl.u32 %v2943, 7
    %v2945 = vsub.s32 0, %v2944
    %v2946 = vrot.slane %v2933, %v2945
    %v2948 = vadd.f32 %v2940, %v2946
    %v2949 = vadd.f32 %v2941, %v2946
    %v2950 = vpack.c.bf16 %v2949, %v2948
    %s2951 = scalar_lea.vmem %s4, 48
    %v2952 = vld [vmem:[%s2951] sm:$0xf]
    %v2953 = vld [vmem:[%s2951 + $0x4] sm:$0xf]
    %v2954 = vld [vmem:[%s2951 + $0x8] sm:$0xf]
    %v2955 = vld [vmem:[%s2951 + $0xc] sm:$0xf]
    %s2956 = scalar_lea.vmem %s5, 3
    %v2957 = vld [vmem:[%s2956] sm:$0x1]
    %v2959 = vlaneseq
    %v2960 = vshrl.u32 %v2959, 7
    %v2961 = vsub.s32 0, %v2960
    %v2962 = vrot.slane %v2957, %v2961
    %v2968 = vunpack.c.l.b16 %v2952
    %v2969 = vunpack.c.l.b16 %v2953
    %v2970 = vunpack.c.l.b16 %v2954
    %v2971 = vunpack.c.l.b16 %v2955
    %v2972 = vpack.c.b16 %v2969, %v2968
    %v2973 = vpack.c.b16 %v2971, %v2970
    %v2977 = vsel %vm66, %v2950, 0
    %2979 = vmatprep.subr.bf16.mxu0 0
    %2980 = vmatpush1.bf16.msra.mxu0 0
    %2981 = vmatprep.subr.bf16.mxu0 0
    %2982 = vmatpush1.bf16.msra.mxu0 0
    %2983 = vmatprep.subr.bf16.mxu0 0
    %2984 = vmatpush1.bf16.msra.mxu0 0
    %2985 = vmatprep.subr.bf16.mxu0 0
    %2986 = vmatpush1.bf16.msra.mxu0 0
    %2987 = vmatprep.subr.bf16.mxu0 0
    %2988 = vmatpush1.bf16.msra.mxu0 0
    %2989 = vmatprep.subr.bf16.mxu0 0
    %2990 = vmatpush1.bf16.msra.mxu0 0
    %2991 = vmatprep.subr.bf16.mxu0 0
    %2992 = vmatpush1.bf16.msra.mxu0 %v2973
    %2993 = vmatprep.subr.bf16.mxu0 0
    %2994 = vmatpush1.bf16.msra.mxu0 %v2972
    %2995 = vmatprep.subr.bf16.mxu0 0
    %2996 = vmatpush2.bf16.msra.mxu0 0
    %2997 = vmatprep.subr.bf16.mxu0 0
    %2998 = vmatpush2.bf16.msra.mxu0 0
    %2999 = vmatprep.subr.bf16.mxu0 0
    %3000 = vmatpush2.bf16.msra.mxu0 0
    %3001 = vmatprep.subr.bf16.mxu0 0
    %3002 = vmatpush2.bf16.msra.mxu0 0
    %3003 = vmatprep.subr.bf16.mxu0 0
    %3004 = vmatpush2.bf16.msra.mxu0 0
    %3005 = vmatprep.subr.bf16.mxu0 0
    %3006 = vmatpush2.bf16.msra.mxu0 0
    %3007 = vmatprep.subr.bf16.mxu0 0
    %3008 = vmatpush2.bf16.msra.mxu0 0
    %3009 = vmatprep.subr.bf16.mxu0 0
    %3010 = vmatpush2.bf16.msra.mxu0 0
    %3011 = vmatprep.mubr.bf16.mxu0 0
    %3012 = vmatmul.mubr.bf16.gmra.mxu0 %v2977
    %v3013 = vpop.f32.mrf.mxu0
    %v3014 = vadd.f32 %v2962, %v3013
    %v3015 = vpop.f32.mrf.mxu0
    %v3016 = vpop.f32.mrf.mxu0
    %v3017 = vadd.f32 %v2962, %v3016
    %v3018 = vpop.f32.mrf.mxu0
    %3019 = vdwg.mxu0
    %v3020 = vmul.f32 %v3014, 0.35355338
    %v3021 = vmul.f32 %v3017, 0.35355338
    %v3022 = vpack.c.bf16 %v3021, %v3020
    %v3023 = vpack.c.bf16 %v3017, %v3014
    %3025 = vrot.lane.b32.xlu0 %v3023, 96
    %v3026 = vpop.permute.xlu0 %3025
    %v3028 = vsel %vm185, %v3022, 0
    %v3031 = vsel %vm185, %v3026, 0
    %3033 = vmatprep.subr.bf16.mxu0 0
    %3034 = vmatpush1.bf16.xpose.msra.mxu0 0
    %3035 = vmatprep.subr.bf16.mxu0 0
    %3036 = vmatpush1.bf16.xpose.msra.mxu0 0
    %3037 = vmatprep.subr.bf16.mxu0 0
    %3038 = vmatpush1.bf16.xpose.msra.mxu0 0
    %3039 = vmatprep.subr.bf16.mxu0 0
    %3040 = vmatpush1.bf16.xpose.msra.mxu0 0
    %3041 = vmatprep.subr.bf16.mxu0 0
    %3042 = vmatpush1.bf16.xpose.msra.mxu0 0
    %3043 = vmatprep.subr.bf16.mxu0 0
    %3044 = vmatpush1.bf16.xpose.msra.mxu0 0
    %3045 = vmatprep.subr.bf16.mxu0 0
    %3046 = vmatpush1.bf16.xpose.msra.mxu0 0
    %3047 = vmatprep.subr.bf16.mxu0 0
    %3048 = vmatpush1.bf16.xpose.msra.mxu0 %v3031
    %3049 = vmatprep.subr.bf16.mxu0 0
    %3050 = vmatpush2.bf16.xpose.msra.mxu0 0
    %3051 = vmatprep.subr.bf16.mxu0 0
    %3052 = vmatpush2.bf16.xpose.msra.mxu0 0
    %3053 = vmatprep.subr.bf16.mxu0 0
    %3054 = vmatpush2.bf16.xpose.msra.mxu0 0
    %3055 = vmatprep.subr.bf16.mxu0 0
    %3056 = vmatpush2.bf16.xpose.msra.mxu0 0
    %3057 = vmatprep.subr.bf16.mxu0 0
    %3058 = vmatpush2.bf16.xpose.msra.mxu0 0
    %3059 = vmatprep.subr.bf16.mxu0 0
    %3060 = vmatpush2.bf16.xpose.msra.mxu0 0
    %3061 = vmatprep.subr.bf16.mxu0 0
    %3062 = vmatpush2.bf16.xpose.msra.mxu0 0
    %3063 = vmatprep.subr.bf16.mxu0 0
    %3064 = vmatpush2.bf16.xpose.msra.mxu0 0
    %3065 = vmatprep.mubr.bf16.mxu0 0
    %3066 = vmatmul.mubr.bf16.gmra.mxu0 %v3028
    %v3067 = vpop.f32.mrf.mxu0
    %v3068 = vadd.f32 %v62, %v3067
    %v3069 = vpop.f32.mrf.mxu0
    %v3070 = vpop.f32.mrf.mxu0
    %v3071 = vadd.f32 %v63, %v3070
    %v3072 = vpop.f32.mrf.mxu0
    %3073 = vdwg.mxu0
    %3075 = vrot.lane.b32.xlu0 %v3022, 120
    %v3076 = vpop.permute.xlu0 %3075
    %3077 = vrot.lane.b32.xlu0 %v3023, 88
    %v3078 = vpop.permute.xlu0 %3077
    %v3080 = vsel %vm185, %v3076, 0
    %v3083 = vsel %vm185, %v3078, 0
    %3085 = vmatprep.subr.bf16.mxu0 0
    %3086 = vmatpush1.bf16.xpose.msra.mxu0 0
    %3087 = vmatprep.subr.bf16.mxu0 0
    %3088 = vmatpush1.bf16.xpose.msra.mxu0 0
    %3089 = vmatprep.subr.bf16.mxu0 0
    %3090 = vmatpush1.bf16.xpose.msra.mxu0 0
    %3091 = vmatprep.subr.bf16.mxu0 0
    %3092 = vmatpush1.bf16.xpose.msra.mxu0 0
    %3093 = vmatprep.subr.bf16.mxu0 0
    %3094 = vmatpush1.bf16.xpose.msra.mxu0 0
    %3095 = vmatprep.subr.bf16.mxu0 0
    %3096 = vmatpush1.bf16.xpose.msra.mxu0 0
    %3097 = vmatprep.subr.bf16.mxu0 0
    %3098 = vmatpush1.bf16.xpose.msra.mxu0 0
    %3099 = vmatprep.subr.bf16.mxu0 0
    %3100 = vmatpush1.bf16.xpose.msra.mxu0 %v3083
    %3101 = vmatprep.subr.bf16.mxu0 0
    %3102 = vmatpush2.bf16.xpose.msra.mxu0 0
    %3103 = vmatprep.subr.bf16.mxu0 0
    %3104 = vmatpush2.bf16.xpose.msra.mxu0 0
    %3105 = vmatprep.subr.bf16.mxu0 0
    %3106 = vmatpush2.bf16.xpose.msra.mxu0 0
    %3107 = vmatprep.subr.bf16.mxu0 0
    %3108 = vmatpush2.bf16.xpose.msra.mxu0 0
    %3109 = vmatprep.subr.bf16.mxu0 0
    %3110 = vmatpush2.bf16.xpose.msra.mxu0 0
    %3111 = vmatprep.subr.bf16.mxu0 0
    %3112 = vmatpush2.bf16.xpose.msra.mxu0 0
    %3113 = vmatprep.subr.bf16.mxu0 0
    %3114 = vmatpush2.bf16.xpose.msra.mxu0 0
    %3115 = vmatprep.subr.bf16.mxu0 0
    %3116 = vmatpush2.bf16.xpose.msra.mxu0 0
    %3117 = vmatprep.mubr.bf16.mxu0 0
    %3118 = vmatmul.mubr.bf16.gmra.mxu0 %v3080
    %v3119 = vpop.f32.mrf.mxu0
    %v3120 = vadd.f32 %v62, %v3119
    %v3121 = vpop.f32.mrf.mxu0
    %v3122 = vpop.f32.mrf.mxu0
    %v3123 = vadd.f32 %v63, %v3122
    %v3124 = vpop.f32.mrf.mxu0
    %3125 = vdwg.mxu0
    %3126 = vrot.lane.b32.xlu0 %v3022, 112
    %v3127 = vpop.permute.xlu0 %3126
    %3128 = vrot.lane.b32.xlu0 %v3023, 80
    %v3129 = vpop.permute.xlu0 %3128
    %v3131 = vsel %vm185, %v3127, 0
    %v3134 = vsel %vm185, %v3129, 0
    %3136 = vmatprep.subr.bf16.mxu0 0
    %3137 = vmatpush1.bf16.xpose.msra.mxu0 0
    %3138 = vmatprep.subr.bf16.mxu0 0
    %3139 = vmatpush1.bf16.xpose.msra.mxu0 0
    %3140 = vmatprep.subr.bf16.mxu0 0
    %3141 = vmatpush1.bf16.xpose.msra.mxu0 0
    %3142 = vmatprep.subr.bf16.mxu0 0
    %3143 = vmatpush1.bf16.xpose.msra.mxu0 0
    %3144 = vmatprep.subr.bf16.mxu0 0
    %3145 = vmatpush1.bf16.xpose.msra.mxu0 0
    %3146 = vmatprep.subr.bf16.mxu0 0
    %3147 = vmatpush1.bf16.xpose.msra.mxu0 0
    %3148 = vmatprep.subr.bf16.mxu0 0
    %3149 = vmatpush1.bf16.xpose.msra.mxu0 0
    %3150 = vmatprep.subr.bf16.mxu0 0
    %3151 = vmatpush1.bf16.xpose.msra.mxu0 %v3134
    %3152 = vmatprep.subr.bf16.mxu0 0
    %3153 = vmatpush2.bf16.xpose.msra.mxu0 0
    %3154 = vmatprep.subr.bf16.mxu0 0
    %3155 = vmatpush2.bf16.xpose.msra.mxu0 0
    %3156 = vmatprep.subr.bf16.mxu0 0
    %3157 = vmatpush2.bf16.xpose.msra.mxu0 0
    %3158 = vmatprep.subr.bf16.mxu0 0
    %3159 = vmatpush2.bf16.xpose.msra.mxu0 0
    %3160 = vmatprep.subr.bf16.mxu0 0
    %3161 = vmatpush2.bf16.xpose.msra.mxu0 0
    %3162 = vmatprep.subr.bf16.mxu0 0
    %3163 = vmatpush2.bf16.xpose.msra.mxu0 0
    %3164 = vmatprep.subr.bf16.mxu0 0
    %3165 = vmatpush2.bf16.xpose.msra.mxu0 0
    %3166 = vmatprep.subr.bf16.mxu0 0
    %3167 = vmatpush2.bf16.xpose.msra.mxu0 0
    %3168 = vmatprep.mubr.bf16.mxu0 0
    %3169 = vmatmul.mubr.bf16.gmra.mxu0 %v3131
    %v3170 = vpop.f32.mrf.mxu0
    %v3171 = vadd.f32 %v62, %v3170
    %v3172 = vpop.f32.mrf.mxu0
    %v3173 = vpop.f32.mrf.mxu0
    %v3174 = vadd.f32 %v63, %v3173
    %v3175 = vpop.f32.mrf.mxu0
    %3176 = vdwg.mxu0
    %3177 = vrot.lane.b32.xlu0 %v3022, 104
    %v3178 = vpop.permute.xlu0 %3177
    %3179 = vrot.lane.b32.xlu0 %v3023, 72
    %v3180 = vpop.permute.xlu0 %3179
    %v3182 = vsel %vm185, %v3178, 0
    %v3185 = vsel %vm185, %v3180, 0
    %3187 = vmatprep.subr.bf16.mxu0 0
    %3188 = vmatpush1.bf16.xpose.msra.mxu0 0
    %3189 = vmatprep.subr.bf16.mxu0 0
    %3190 = vmatpush1.bf16.xpose.msra.mxu0 0
    %3191 = vmatprep.subr.bf16.mxu0 0
    %3192 = vmatpush1.bf16.xpose.msra.mxu0 0
    %3193 = vmatprep.subr.bf16.mxu0 0
    %3194 = vmatpush1.bf16.xpose.msra.mxu0 0
    %3195 = vmatprep.subr.bf16.mxu0 0
    %3196 = vmatpush1.bf16.xpose.msra.mxu0 0
    %3197 = vmatprep.subr.bf16.mxu0 0
    %3198 = vmatpush1.bf16.xpose.msra.mxu0 0
    %3199 = vmatprep.subr.bf16.mxu0 0
    %3200 = vmatpush1.bf16.xpose.msra.mxu0 0
    %3201 = vmatprep.subr.bf16.mxu0 0
    %3202 = vmatpush1.bf16.xpose.msra.mxu0 %v3185
    %3203 = vmatprep.subr.bf16.mxu0 0
    %3204 = vmatpush2.bf16.xpose.msra.mxu0 0
    %3205 = vmatprep.subr.bf16.mxu0 0
    %3206 = vmatpush2.bf16.xpose.msra.mxu0 0
    %3207 = vmatprep.subr.bf16.mxu0 0
    %3208 = vmatpush2.bf16.xpose.msra.mxu0 0
    %3209 = vmatprep.subr.bf16.mxu0 0
    %3210 = vmatpush2.bf16.xpose.msra.mxu0 0
    %3211 = vmatprep.subr.bf16.mxu0 0
    %3212 = vmatpush2.bf16.xpose.msra.mxu0 0
    %3213 = vmatprep.subr.bf16.mxu0 0
    %3214 = vmatpush2.bf16.xpose.msra.mxu0 0
    %3215 = vmatprep.subr.bf16.mxu0 0
    %3216 = vmatpush2.bf16.xpose.msra.mxu0 0
    %3217 = vmatprep.subr.bf16.mxu0 0
    %3218 = vmatpush2.bf16.xpose.msra.mxu0 0
    %3219 = vmatprep.mubr.bf16.mxu0 0
    %3220 = vmatmul.mubr.bf16.gmra.mxu0 %v3182
    %v3221 = vpop.f32.mrf.mxu0
    %v3222 = vadd.f32 %v62, %v3221
    %v3223 = vpop.f32.mrf.mxu0
    %v3224 = vpop.f32.mrf.mxu0
    %v3225 = vadd.f32 %v63, %v3224
    %v3226 = vpop.f32.mrf.mxu0
    %3227 = vdwg.mxu0
    %v3228 = vsel %vm387, %v3068, -inf
    %3229 = vmax.xlane.f32.xlu0 %v3228
    %v3230 = vpop.xlane.xlu0 %3229
    %v3231 = vsel %vm387, %v3071, -inf
    %3232 = vmax.xlane.f32.xlu0 %v3231
    %v3233 = vpop.xlane.xlu0 %3232
    %v3234 = vsel %vm387, %v3120, -inf
    %3235 = vmax.xlane.f32.xlu0 %v3234
    %v3236 = vpop.xlane.xlu0 %3235
    %v3237 = vsel %vm387, %v3123, -inf
    %3238 = vmax.xlane.f32.xlu0 %v3237
    %v3239 = vpop.xlane.xlu0 %3238
    %v3240 = vsel %vm387, %v3171, -inf
    %3241 = vmax.xlane.f32.xlu0 %v3240
    %v3242 = vpop.xlane.xlu0 %3241
    %v3243 = vsel %vm387, %v3174, -inf
    %3244 = vmax.xlane.f32.xlu0 %v3243
    %v3245 = vpop.xlane.xlu0 %3244
    %v3246 = vsel %vm387, %v3222, -inf
    %3247 = vmax.xlane.f32.xlu0 %v3246
    %v3248 = vpop.xlane.xlu0 %3247
    %v3249 = vsel %vm387, %v3225, -inf
    %3250 = vmax.xlane.f32.xlu0 %v3249
    %v3251 = vpop.xlane.xlu0 %3250
    %v3252 = vsub.f32 %v3068, %v3230
    %v3253 = vsub.f32 %v3071, %v3233
    %v3254 = vsub.f32 %v3120, %v3236
    %v3255 = vsub.f32 %v3123, %v3239
    %v3256 = vsub.f32 %v3171, %v3242
    %v3257 = vsub.f32 %v3174, %v3245
    %v3258 = vsub.f32 %v3222, %v3248
    %v3259 = vsub.f32 %v3225, %v3251
    %v3260 = vmul.f32 %v3252, 1.442695
    %v3261 = vpow.pop %v3260
    %v3262 = vmul.f32 %v3253, 1.442695
    %v3263 = vpow.pop %v3262
    %v3264 = vmul.f32 %v3254, 1.442695
    %v3265 = vpow.pop %v3264
    %v3266 = vmul.f32 %v3255, 1.442695
    %v3267 = vpow.pop %v3266
    %v3268 = vmul.f32 %v3256, 1.442695
    %v3269 = vpow.pop %v3268
    %v3270 = vmul.f32 %v3257, 1.442695
    %v3271 = vpow.pop %v3270
    %v3272 = vmul.f32 %v3258, 1.442695
    %v3273 = vpow.pop %v3272
    %v3274 = vmul.f32 %v3259, 1.442695
    %v3275 = vpow.pop %v3274
    %v3276 = vsel %vm387, %v3261, 0.0
    %3277 = vadd.xlane.f32.xlu0 %v3276
    %v3278 = vpop.xlane.xlu0 %3277
    %v3279 = vsel %vm387, %v3263, 0.0
    %3280 = vadd.xlane.f32.xlu0 %v3279
    %v3281 = vpop.xlane.xlu0 %3280
    %v3282 = vsel %vm387, %v3265, 0.0
    %3283 = vadd.xlane.f32.xlu0 %v3282
    %v3284 = vpop.xlane.xlu0 %3283
    %v3285 = vsel %vm387, %v3267, 0.0
    %3286 = vadd.xlane.f32.xlu0 %v3285
    %v3287 = vpop.xlane.xlu0 %3286
    %v3288 = vsel %vm387, %v3269, 0.0
    %3289 = vadd.xlane.f32.xlu0 %v3288
    %v3290 = vpop.xlane.xlu0 %3289
    %v3291 = vsel %vm387, %v3271, 0.0
    %3292 = vadd.xlane.f32.xlu0 %v3291
    %v3293 = vpop.xlane.xlu0 %3292
    %v3294 = vsel %vm387, %v3273, 0.0
    %3295 = vadd.xlane.f32.xlu0 %v3294
    %v3296 = vpop.xlane.xlu0 %3295
    %v3297 = vsel %vm387, %v3275, 0.0
    %3298 = vadd.xlane.f32.xlu0 %v3297
    %v3299 = vpop.xlane.xlu0 %3298
    %v3300 = vrcp.pop %v3278
    %v3301 = vrcp.pop %v3281
    %v3302 = vrcp.pop %v3284
    %v3303 = vrcp.pop %v3287
    %v3304 = vrcp.pop %v3290
    %v3305 = vrcp.pop %v3293
    %v3306 = vrcp.pop %v3296
    %v3307 = vrcp.pop %v3299
    %v3308 = vpack.c.bf16 %v3263, %v3261
    %3309 = vrot.lane.b32.xlu0 %v3023, 64
    %v3310 = vpop.permute.xlu0 %3309
    %v3313 = vsel %vm387, %v3308, 0
    %3315 = vmatprep.subr.bf16.mxu0 0
    %3316 = vmatpush1.bf16.msra.mxu0 0
    %3317 = vmatprep.subr.bf16.mxu0 0
    %3318 = vmatpush1.bf16.msra.mxu0 0
    %3319 = vmatprep.subr.bf16.mxu0 0
    %3320 = vmatpush1.bf16.msra.mxu0 0
    %3321 = vmatprep.subr.bf16.mxu0 0
    %3322 = vmatpush1.bf16.msra.mxu0 0
    %3323 = vmatprep.subr.bf16.mxu0 0
    %3324 = vmatpush1.bf16.msra.mxu0 0
    %3325 = vmatprep.subr.bf16.mxu0 0
    %3326 = vmatpush1.bf16.msra.mxu0 0
    %3327 = vmatprep.subr.bf16.mxu0 0
    %3328 = vmatpush1.bf16.msra.mxu0 0
    %3329 = vmatprep.subr.bf16.mxu0 0
    %3330 = vmatpush1.bf16.msra.mxu0 %v3310
    %3331 = vmatprep.subr.bf16.mxu0 0
    %3332 = vmatpush2.bf16.msra.mxu0 0
    %3333 = vmatprep.subr.bf16.mxu0 0
    %3334 = vmatpush2.bf16.msra.mxu0 0
    %3335 = vmatprep.subr.bf16.mxu0 0
    %3336 = vmatpush2.bf16.msra.mxu0 0
    %3337 = vmatprep.subr.bf16.mxu0 0
    %3338 = vmatpush2.bf16.msra.mxu0 0
    %3339 = vmatprep.subr.bf16.mxu0 0
    %3340 = vmatpush2.bf16.msra.mxu0 0
    %3341 = vmatprep.subr.bf16.mxu0 0
    %3342 = vmatpush2.bf16.msra.mxu0 0
    %3343 = vmatprep.subr.bf16.mxu0 0
    %3344 = vmatpush2.bf16.msra.mxu0 0
    %3345 = vmatprep.subr.bf16.mxu0 0
    %3346 = vmatpush2.bf16.msra.mxu0 0
    %3347 = vmatprep.mubr.bf16.mxu0 0
    %3348 = vmatmul.mubr.bf16.gmra.mxu0 %v3313
    %v3349 = vpop.f32.mrf.mxu0
    %v3350 = vadd.f32 0.0, %v3349
    %v3351 = vpop.f32.mrf.mxu0
    %v3352 = vpop.f32.mrf.mxu0
    %v3353 = vadd.f32 0.0, %v3352
    %v3354 = vpop.f32.mrf.mxu0
    %3355 = vdwg.mxu0
    %v3356 = vmul.f32 %v3350, %v3300
    %v3357 = vmul.f32 %v3353, %v3301
    %v3358 = vpack.c.bf16 %v3267, %v3265
    %3359 = vrot.lane.b32.xlu0 %v3023, 56
    %v3360 = vpop.permute.xlu0 %3359
    %v3363 = vsel %vm387, %v3358, 0
    %3365 = vmatprep.subr.bf16.mxu0 0
    %3366 = vmatpush1.bf16.msra.mxu0 0
    %3367 = vmatprep.subr.bf16.mxu0 0
    %3368 = vmatpush1.bf16.msra.mxu0 0
    %3369 = vmatprep.subr.bf16.mxu0 0
    %3370 = vmatpush1.bf16.msra.mxu0 0
    %3371 = vmatprep.subr.bf16.mxu0 0
    %3372 = vmatpush1.bf16.msra.mxu0 0
    %3373 = vmatprep.subr.bf16.mxu0 0
    %3374 = vmatpush1.bf16.msra.mxu0 0
    %3375 = vmatprep.subr.bf16.mxu0 0
    %3376 = vmatpush1.bf16.msra.mxu0 0
    %3377 = vmatprep.subr.bf16.mxu0 0
    %3378 = vmatpush1.bf16.msra.mxu0 0
    %3379 = vmatprep.subr.bf16.mxu0 0
    %3380 = vmatpush1.bf16.msra.mxu0 %v3360
    %3381 = vmatprep.subr.bf16.mxu0 0
    %3382 = vmatpush2.bf16.msra.mxu0 0
    %3383 = vmatprep.subr.bf16.mxu0 0
    %3384 = vmatpush2.bf16.msra.mxu0 0
    %3385 = vmatprep.subr.bf16.mxu0 0
    %3386 = vmatpush2.bf16.msra.mxu0 0
    %3387 = vmatprep.subr.bf16.mxu0 0
    %3388 = vmatpush2.bf16.msra.mxu0 0
    %3389 = vmatprep.subr.bf16.mxu0 0
    %3390 = vmatpush2.bf16.msra.mxu0 0
    %3391 = vmatprep.subr.bf16.mxu0 0
    %3392 = vmatpush2.bf16.msra.mxu0 0
    %3393 = vmatprep.subr.bf16.mxu0 0
    %3394 = vmatpush2.bf16.msra.mxu0 0
    %3395 = vmatprep.subr.bf16.mxu0 0
    %3396 = vmatpush2.bf16.msra.mxu0 0
    %3397 = vmatprep.mubr.bf16.mxu0 0
    %3398 = vmatmul.mubr.bf16.gmra.mxu0 %v3363
    %v3399 = vpop.f32.mrf.mxu0
    %v3400 = vadd.f32 0.0, %v3399
    %v3401 = vpop.f32.mrf.mxu0
    %v3402 = vpop.f32.mrf.mxu0
    %v3403 = vadd.f32 0.0, %v3402
    %v3404 = vpop.f32.mrf.mxu0
    %3405 = vdwg.mxu0
    %v3406 = vmul.f32 %v3400, %v3302
    %v3407 = vmul.f32 %v3403, %v3303
    %v3408 = vpack.c.bf16 %v3271, %v3269
    %3409 = vrot.lane.b32.xlu0 %v3023, 48
    %v3410 = vpop.permute.xlu0 %3409
    %v3413 = vsel %vm387, %v3408, 0
    %3415 = vmatprep.subr.bf16.mxu0 0
    %3416 = vmatpush1.bf16.msra.mxu0 0
    %3417 = vmatprep.subr.bf16.mxu0 0
    %3418 = vmatpush1.bf16.msra.mxu0 0
    %3419 = vmatprep.subr.bf16.mxu0 0
    %3420 = vmatpush1.bf16.msra.mxu0 0
    %3421 = vmatprep.subr.bf16.mxu0 0
    %3422 = vmatpush1.bf16.msra.mxu0 0
    %3423 = vmatprep.subr.bf16.mxu0 0
    %3424 = vmatpush1.bf16.msra.mxu0 0
    %3425 = vmatprep.subr.bf16.mxu0 0
    %3426 = vmatpush1.bf16.msra.mxu0 0
    %3427 = vmatprep.subr.bf16.mxu0 0
    %3428 = vmatpush1.bf16.msra.mxu0 0
    %3429 = vmatprep.subr.bf16.mxu0 0
    %3430 = vmatpush1.bf16.msra.mxu0 %v3410
    %3431 = vmatprep.subr.bf16.mxu0 0
    %3432 = vmatpush2.bf16.msra.mxu0 0
    %3433 = vmatprep.subr.bf16.mxu0 0
    %3434 = vmatpush2.bf16.msra.mxu0 0
    %3435 = vmatprep.subr.bf16.mxu0 0
    %3436 = vmatpush2.bf16.msra.mxu0 0
    %3437 = vmatprep.subr.bf16.mxu0 0
    %3438 = vmatpush2.bf16.msra.mxu0 0
    %3439 = vmatprep.subr.bf16.mxu0 0
    %3440 = vmatpush2.bf16.msra.mxu0 0
    %3441 = vmatprep.subr.bf16.mxu0 0
    %3442 = vmatpush2.bf16.msra.mxu0 0
    %3443 = vmatprep.subr.bf16.mxu0 0
    %3444 = vmatpush2.bf16.msra.mxu0 0
    %3445 = vmatprep.subr.bf16.mxu0 0
    %3446 = vmatpush2.bf16.msra.mxu0 0
    %3447 = vmatprep.mubr.bf16.mxu0 0
    %3448 = vmatmul.mubr.bf16.gmra.mxu0 %v3413
    %v3449 = vpop.f32.mrf.mxu0
    %v3450 = vadd.f32 0.0, %v3449
    %v3451 = vpop.f32.mrf.mxu0
    %v3452 = vpop.f32.mrf.mxu0
    %v3453 = vadd.f32 0.0, %v3452
    %v3454 = vpop.f32.mrf.mxu0
    %3455 = vdwg.mxu0
    %v3456 = vmul.f32 %v3450, %v3304
    %v3457 = vmul.f32 %v3453, %v3305
    %v3458 = vpack.c.bf16 %v3275, %v3273
    %3459 = vrot.lane.b32.xlu0 %v3023, 40
    %v3460 = vpop.permute.xlu0 %3459
    %v3463 = vsel %vm387, %v3458, 0
    %3465 = vmatprep.subr.bf16.mxu0 0
    %3466 = vmatpush1.bf16.msra.mxu0 0
    %3467 = vmatprep.subr.bf16.mxu0 0
    %3468 = vmatpush1.bf16.msra.mxu0 0
    %3469 = vmatprep.subr.bf16.mxu0 0
    %3470 = vmatpush1.bf16.msra.mxu0 0
    %3471 = vmatprep.subr.bf16.mxu0 0
    %3472 = vmatpush1.bf16.msra.mxu0 0
    %3473 = vmatprep.subr.bf16.mxu0 0
    %3474 = vmatpush1.bf16.msra.mxu0 0
    %3475 = vmatprep.subr.bf16.mxu0 0
    %3476 = vmatpush1.bf16.msra.mxu0 0
    %3477 = vmatprep.subr.bf16.mxu0 0
    %3478 = vmatpush1.bf16.msra.mxu0 0
    %3479 = vmatprep.subr.bf16.mxu0 0
    %3480 = vmatpush1.bf16.msra.mxu0 %v3460
    %3481 = vmatprep.subr.bf16.mxu0 0
    %3482 = vmatpush2.bf16.msra.mxu0 0
    %3483 = vmatprep.subr.bf16.mxu0 0
    %3484 = vmatpush2.bf16.msra.mxu0 0
    %3485 = vmatprep.subr.bf16.mxu0 0
    %3486 = vmatpush2.bf16.msra.mxu0 0
    %3487 = vmatprep.subr.bf16.mxu0 0
    %3488 = vmatpush2.bf16.msra.mxu0 0
    %3489 = vmatprep.subr.bf16.mxu0 0
    %3490 = vmatpush2.bf16.msra.mxu0 0
    %3491 = vmatprep.subr.bf16.mxu0 0
    %3492 = vmatpush2.bf16.msra.mxu0 0
    %3493 = vmatprep.subr.bf16.mxu0 0
    %3494 = vmatpush2.bf16.msra.mxu0 0
    %3495 = vmatprep.subr.bf16.mxu0 0
    %3496 = vmatpush2.bf16.msra.mxu0 0
    %3497 = vmatprep.mubr.bf16.mxu0 0
    %3498 = vmatmul.mubr.bf16.gmra.mxu0 %v3463
    %v3499 = vpop.f32.mrf.mxu0
    %v3500 = vadd.f32 0.0, %v3499
    %v3501 = vpop.f32.mrf.mxu0
    %v3502 = vpop.f32.mrf.mxu0
    %v3503 = vadd.f32 0.0, %v3502
    %v3504 = vpop.f32.mrf.mxu0
    %3505 = vdwg.mxu0
    %v3506 = vmul.f32 %v3500, %v3306
    %v3507 = vmul.f32 %v3503, %v3307
    %3510 = vrot.lane.b32.xlu0 %v3406, 8
    %v3511 = vpop.permute.xlu0 %3510
    %3512 = vrot.lane.b32.xlu0 %v3407, 8
    %v3513 = vpop.permute.xlu0 %3512
    %3518 = vrot.lane.b32.xlu0 %v3456, 16
    %v3519 = vpop.permute.xlu0 %3518
    %3520 = vrot.lane.b32.xlu0 %v3457, 16
    %v3521 = vpop.permute.xlu0 %3520
    %3526 = vrot.lane.b32.xlu0 %v3506, 24
    %v3527 = vpop.permute.xlu0 %3526
    %3528 = vrot.lane.b32.xlu0 %v3507, 24
    %v3529 = vpop.permute.xlu0 %3528
    %v3532 = vsel %vm185, %v3356, %v3511
    %v3533 = vsel %vm185, %v3357, %v3513
    %v3534 = vsel %vm387, %v3532, %v3519
    %v3535 = vsel %vm387, %v3533, %v3521
    %v3536 = vsel %vm696, %v3534, %v3527
    %v3537 = vsel %vm696, %v3535, %v3529
    %v3538 = vpack.c.bf16 %v3537, %v3536
    %s3539 = scalar_lea.vmem %s6, 48
    %v3540 = vld [vmem:[%s3539] sm:$0xf]
    %v3541 = vld [vmem:[%s3539 + $0x4] sm:$0xf]
    %v3542 = vld [vmem:[%s3539 + $0x8] sm:$0xf]
    %v3543 = vld [vmem:[%s3539 + $0xc] sm:$0xf]
    %s3544 = scalar_lea.vmem %s7, 3
    %v3545 = vld [vmem:[%s3544] sm:$0x1]
    %v3547 = vlaneseq
    %v3548 = vshrl.u32 %v3547, 7
    %v3549 = vsub.s32 0, %v3548
    %v3550 = vrot.slane %v3545, %v3549
    %v3556 = vunpack.c.l.b16 %v3540
    %v3557 = vunpack.c.l.b16 %v3541
    %v3558 = vunpack.c.l.b16 %v3542
    %v3559 = vunpack.c.l.b16 %v3543
    %v3560 = vpack.c.b16 %v3557, %v3556
    %v3561 = vpack.c.b16 %v3559, %v3558
    %v3565 = vsel %vm66, %v3538, 0
    %3567 = vmatprep.subr.bf16.mxu0 0
    %3568 = vmatpush1.bf16.msra.mxu0 0
    %3569 = vmatprep.subr.bf16.mxu0 0
    %3570 = vmatpush1.bf16.msra.mxu0 0
    %3571 = vmatprep.subr.bf16.mxu0 0
    %3572 = vmatpush1.bf16.msra.mxu0 0
    %3573 = vmatprep.subr.bf16.mxu0 0
    %3574 = vmatpush1.bf16.msra.mxu0 0
    %3575 = vmatprep.subr.bf16.mxu0 0
    %3576 = vmatpush1.bf16.msra.mxu0 0
    %3577 = vmatprep.subr.bf16.mxu0 0
    %3578 = vmatpush1.bf16.msra.mxu0 0
    %3579 = vmatprep.subr.bf16.mxu0 0
    %3580 = vmatpush1.bf16.msra.mxu0 %v3561
    %3581 = vmatprep.subr.bf16.mxu0 0
    %3582 = vmatpush1.bf16.msra.mxu0 %v3560
    %3583 = vmatprep.subr.bf16.mxu0 0
    %3584 = vmatpush2.bf16.msra.mxu0 0
    %3585 = vmatprep.subr.bf16.mxu0 0
    %3586 = vmatpush2.bf16.msra.mxu0 0
    %3587 = vmatprep.subr.bf16.mxu0 0
    %3588 = vmatpush2.bf16.msra.mxu0 0
    %3589 = vmatprep.subr.bf16.mxu0 0
    %3590 = vmatpush2.bf16.msra.mxu0 0
    %3591 = vmatprep.subr.bf16.mxu0 0
    %3592 = vmatpush2.bf16.msra.mxu0 0
    %3593 = vmatprep.subr.bf16.mxu0 0
    %3594 = vmatpush2.bf16.msra.mxu0 0
    %3595 = vmatprep.subr.bf16.mxu0 0
    %3596 = vmatpush2.bf16.msra.mxu0 0
    %3597 = vmatprep.subr.bf16.mxu0 0
    %3598 = vmatpush2.bf16.msra.mxu0 0
    %3599 = vmatprep.mubr.bf16.mxu0 0
    %3600 = vmatmul.mubr.bf16.gmra.mxu0 %v3565
    %v3601 = vpop.f32.mrf.mxu0
    %v3602 = vadd.f32 %v3550, %v3601
    %v3603 = vpop.f32.mrf.mxu0
    %v3604 = vpop.f32.mrf.mxu0
    %v3605 = vadd.f32 %v3550, %v3604
    %v3606 = vpop.f32.mrf.mxu0
    %3607 = vdwg.mxu0
    %v3608 = vadd.f32 %v1969, %v3602
    %v3609 = vadd.f32 %v1970, %v3605
    %s3610 = scalar_lea.vmem %s8, 3
    %v3611 = vld [vmem:[%s3610] sm:$0x1]
    %s3612 = scalar_lea.vmem %s9, 3
    %v3613 = vld [vmem:[%s3612] sm:$0x1]
    %v3614 = vsel %vm66, %v3608, 0.0
    %3615 = vadd.xlane.f32.xlu0 %v3614
    %v3616 = vpop.xlane.xlu0 %3615
    %v3617 = vsel %vm66, %v3609, 0.0
    %3618 = vadd.xlane.f32.xlu0 %v3617
    %v3619 = vpop.xlane.xlu0 %3618
    %v3620 = vmul.f32 %v3616, %v73
    %v3621 = vmul.f32 %v3619, %v73
    %v3622 = vsub.f32 %v3608, %v3620
    %v3623 = vsub.f32 %v3609, %v3621
    %v3624 = vmul.f32 %v3622, %v3622
    %v3625 = vmul.f32 %v3623, %v3623
    %v3626 = vsel %vm66, %v3624, 0.0
    %3627 = vadd.xlane.f32.xlu0 %v3626
    %v3628 = vpop.xlane.xlu0 %3627
    %v3629 = vsel %vm66, %v3625, 0.0
    %3630 = vadd.xlane.f32.xlu0 %v3629
    %v3631 = vpop.xlane.xlu0 %3630
    %v3632 = vmul.f32 %v3628, %v73
    %v3633 = vmul.f32 %v3631, %v73
    %v3634 = vadd.f32 %v3632, 1e-05
    %v3635 = vadd.f32 %v3633, 1e-05
    %v3636 = vrsqrt.pop %v3634
    %v3637 = vrsqrt.pop %v3635
    %v3638 = vmul.f32 %v3622, %v3636
    %v3639 = vmul.f32 %v3623, %v3637
    %v3641 = vlaneseq
    %v3642 = vshrl.u32 %v3641, 7
    %v3643 = vsub.s32 0, %v3642
    %v3644 = vrot.slane %v3611, %v3643
    %v3646 = vmul.f32 %v3638, %v3644
    %v3647 = vmul.f32 %v3639, %v3644
    %v3649 = vlaneseq
    %v3650 = vshrl.u32 %v3649, 7
    %v3651 = vsub.s32 0, %v3650
    %v3652 = vrot.slane %v3613, %v3651
    %v3654 = vadd.f32 %v3646, %v3652
    %v3655 = vadd.f32 %v3647, %v3652
    %v3656 = vpack.c.bf16 %v3655, %v3654
    %s3657 = scalar_lea.vmem %s10, 48
    %v3658 = vld [vmem:[%s3657] sm:$0xf]
    %v3659 = vld [vmem:[%s3657 + $0x4] sm:$0xf]
    %v3660 = vld [vmem:[%s3657 + $0x8] sm:$0xf]
    %v3661 = vld [vmem:[%s3657 + $0xc] sm:$0xf]
    %s3662 = scalar_lea.vmem %s11, 3
    %v3663 = vld [vmem:[%s3662] sm:$0x1]
    %v3665 = vlaneseq
    %v3666 = vshrl.u32 %v3665, 7
    %v3667 = vsub.s32 0, %v3666
    %v3668 = vrot.slane %v3663, %v3667
    %v3674 = vunpack.c.l.b16 %v3658
    %v3675 = vunpack.c.l.b16 %v3659
    %v3676 = vunpack.c.l.b16 %v3660
    %v3677 = vunpack.c.l.b16 %v3661
    %v3678 = vpack.c.b16 %v3675, %v3674
    %v3679 = vpack.c.b16 %v3677, %v3676
    %v3683 = vsel %vm66, %v3656, 0
    %3685 = vmatprep.subr.bf16.mxu0 0
    %3686 = vmatpush1.bf16.msra.mxu0 0
    %3687 = vmatprep.subr.bf16.mxu0 0
    %3688 = vmatpush1.bf16.msra.mxu0 0
    %3689 = vmatprep.subr.bf16.mxu0 0
    %3690 = vmatpush1.bf16.msra.mxu0 0
    %3691 = vmatprep.subr.bf16.mxu0 0
    %3692 = vmatpush1.bf16.msra.mxu0 0
    %3693 = vmatprep.subr.bf16.mxu0 0
    %3694 = vmatpush1.bf16.msra.mxu0 0
    %3695 = vmatprep.subr.bf16.mxu0 0
    %3696 = vmatpush1.bf16.msra.mxu0 0
    %3697 = vmatprep.subr.bf16.mxu0 0
    %3698 = vmatpush1.bf16.msra.mxu0 %v3679
    %3699 = vmatprep.subr.bf16.mxu0 0
    %3700 = vmatpush1.bf16.msra.mxu0 %v3678
    %3701 = vmatprep.subr.bf16.mxu0 0
    %3702 = vmatpush2.bf16.msra.mxu0 0
    %3703 = vmatprep.subr.bf16.mxu0 0
    %3704 = vmatpush2.bf16.msra.mxu0 0
    %3705 = vmatprep.subr.bf16.mxu0 0
    %3706 = vmatpush2.bf16.msra.mxu0 0
    %3707 = vmatprep.subr.bf16.mxu0 0
    %3708 = vmatpush2.bf16.msra.mxu0 0
    %3709 = vmatprep.subr.bf16.mxu0 0
    %3710 = vmatpush2.bf16.msra.mxu0 0
    %3711 = vmatprep.subr.bf16.mxu0 0
    %3712 = vmatpush2.bf16.msra.mxu0 0
    %3713 = vmatprep.subr.bf16.mxu0 0
    %3714 = vmatpush2.bf16.msra.mxu0 0
    %3715 = vmatprep.subr.bf16.mxu0 0
    %3716 = vmatpush2.bf16.msra.mxu0 0
    %3717 = vmatprep.mubr.bf16.mxu0 0
    %3718 = vmatmul.mubr.bf16.gmra.mxu0 %v3683
    %v3719 = vpop.f32.mrf.mxu0
    %v3720 = vadd.f32 %v3668, %v3719
    %v3721 = vpop.f32.mrf.mxu0
    %v3722 = vpop.f32.mrf.mxu0
    %v3723 = vadd.f32 %v3668, %v3722
    %v3724 = vpop.f32.mrf.mxu0
    %3725 = vdwg.mxu0
    %v3726 = vmul.f32 %v3720, 0.5
    %v3727 = vmul.f32 %v3723, 0.5
    %v3728 = vmul.f32 %v3720, 0.044715
    %v3729 = vmul.f32 %v3723, 0.044715
    %v3730 = vmul.f32 %v3728, %v3720
    %v3731 = vmul.f32 %v3729, %v3723
    %v3732 = vmul.f32 %v3730, %v3720
    %v3733 = vmul.f32 %v3731, %v3723
    %v3734 = vadd.f32 %v3720, %v3732
    %v3735 = vadd.f32 %v3723, %v3733
    %v3736 = vmul.f32 %v3734, 0.7978846
    %v3737 = vmul.f32 %v3735, 0.7978846
    %v3738 = vtanh.pop %v3736
    %v3739 = vtanh.pop %v3737
    %v3740 = vadd.f32 %v3738, 1.0
    %v3741 = vadd.f32 %v3739, 1.0
    %v3742 = vmul.f32 %v3726, %v3740
    %v3743 = vmul.f32 %v3727, %v3741
    %v3744 = vpack.c.bf16 %v3743, %v3742
    %s3745 = scalar_lea.vmem %s12, 192
    %v3746 = vld [vmem:[%s3745] sm:$0xf]
    %v3747 = vld [vmem:[%s3745 + $0x4] sm:$0xf]
    %v3748 = vld [vmem:[%s3745 + $0x8] sm:$0xf]
    %v3749 = vld [vmem:[%s3745 + $0xc] sm:$0xf]
    %v3750 = vld [vmem:[%s3745 + $0x10] sm:$0xf]
    %v3751 = vld [vmem:[%s3745 + $0x14] sm:$0xf]
    %v3752 = vld [vmem:[%s3745 + $0x18] sm:$0xf]
    %v3753 = vld [vmem:[%s3745 + $0x1c] sm:$0xf]
    %v3754 = vld [vmem:[%s3745 + $0x20] sm:$0xf]
    %v3755 = vld [vmem:[%s3745 + $0x24] sm:$0xf]
    %v3756 = vld [vmem:[%s3745 + $0x28] sm:$0xf]
    %v3757 = vld [vmem:[%s3745 + $0x2c] sm:$0xf]
    %v3758 = vld [vmem:[%s3745 + $0x30] sm:$0xf]
    %v3759 = vld [vmem:[%s3745 + $0x34] sm:$0xf]
    %v3760 = vld [vmem:[%s3745 + $0x38] sm:$0xf]
    %v3761 = vld [vmem:[%s3745 + $0x3c] sm:$0xf]
    %s3762 = scalar_lea.vmem %s13, 3
    %v3763 = vld [vmem:[%s3762] sm:$0x1]
    %v3765 = vlaneseq
    %v3766 = vshrl.u32 %v3765, 7
    %v3767 = vsub.s32 0, %v3766
    %v3768 = vrot.slane %v3763, %v3767
    %v3786 = vunpack.c.l.b16 %v3746
    %v3787 = vunpack.c.l.b16 %v3747
    %v3788 = vunpack.c.l.b16 %v3748
    %v3789 = vunpack.c.l.b16 %v3749
    %v3790 = vunpack.c.l.b16 %v3750
    %v3791 = vunpack.c.l.b16 %v3751
    %v3792 = vunpack.c.l.b16 %v3752
    %v3793 = vunpack.c.l.b16 %v3753
    %v3794 = vunpack.c.l.b16 %v3754
    %v3795 = vunpack.c.l.b16 %v3755
    %v3796 = vunpack.c.l.b16 %v3756
    %v3797 = vunpack.c.l.b16 %v3757
    %v3798 = vunpack.c.l.b16 %v3758
    %v3799 = vunpack.c.l.b16 %v3759
    %v3800 = vunpack.c.l.b16 %v3760
    %v3801 = vunpack.c.l.b16 %v3761
    %v3802 = vpack.c.b16 %v3787, %v3786
    %v3803 = vpack.c.b16 %v3789, %v3788
    %v3804 = vpack.c.b16 %v3791, %v3790
    %v3805 = vpack.c.b16 %v3793, %v3792
    %v3806 = vpack.c.b16 %v3795, %v3794
    %v3807 = vpack.c.b16 %v3797, %v3796
    %v3808 = vpack.c.b16 %v3799, %v3798
    %v3809 = vpack.c.b16 %v3801, %v3800
    %3818 = vmatprep.subr.bf16.mxu0 0
    %3819 = vmatpush1.bf16.msra.mxu0 %v3809
    %3820 = vmatprep.subr.bf16.mxu0 0
    %3821 = vmatpush1.bf16.msra.mxu0 %v3808
    %3822 = vmatprep.subr.bf16.mxu0 0
    %3823 = vmatpush1.bf16.msra.mxu0 %v3807
    %3824 = vmatprep.subr.bf16.mxu0 0
    %3825 = vmatpush1.bf16.msra.mxu0 %v3806
    %3826 = vmatprep.subr.bf16.mxu0 0
    %3827 = vmatpush1.bf16.msra.mxu0 %v3805
    %3828 = vmatprep.subr.bf16.mxu0 0
    %3829 = vmatpush1.bf16.msra.mxu0 %v3804
    %3830 = vmatprep.subr.bf16.mxu0 0
    %3831 = vmatpush1.bf16.msra.mxu0 %v3803
    %3832 = vmatprep.subr.bf16.mxu0 0
    %3833 = vmatpush1.bf16.msra.mxu0 %v3802
    %3834 = vmatprep.subr.bf16.mxu0 0
    %3835 = vmatpush2.bf16.msra.mxu0 0
    %3836 = vmatprep.subr.bf16.mxu0 0
    %3837 = vmatpush2.bf16.msra.mxu0 0
    %3838 = vmatprep.subr.bf16.mxu0 0
    %3839 = vmatpush2.bf16.msra.mxu0 0
    %3840 = vmatprep.subr.bf16.mxu0 0
    %3841 = vmatpush2.bf16.msra.mxu0 0
    %3842 = vmatprep.subr.bf16.mxu0 0
    %3843 = vmatpush2.bf16.msra.mxu0 0
    %3844 = vmatprep.subr.bf16.mxu0 0
    %3845 = vmatpush2.bf16.msra.mxu0 0
    %3846 = vmatprep.subr.bf16.mxu0 0
    %3847 = vmatpush2.bf16.msra.mxu0 0
    %3848 = vmatprep.subr.bf16.mxu0 0
    %3849 = vmatpush2.bf16.msra.mxu0 0
    %3850 = vmatprep.mubr.bf16.mxu0 0
    %3851 = vmatmul.mubr.bf16.gmra.mxu0 %v3744
    %v3852 = vpop.f32.mrf.mxu0
    %v3853 = vadd.f32 %v3768, %v3852
    %v3854 = vpop.f32.mrf.mxu0
    %v3855 = vpop.f32.mrf.mxu0
    %v3856 = vadd.f32 %v3768, %v3855
    %v3857 = vpop.f32.mrf.mxu0
    %3858 = vdwg.mxu0
    %v3859 = vadd.f32 %v3608, %v3853
    %v3860 = vadd.f32 %v3609, %v3856
    %s3861 = scalar_lea.vmem %s2, 4
    %v3862 = vld [vmem:[%s3861] sm:$0x1]
    %s3863 = scalar_lea.vmem %s3, 4
    %v3864 = vld [vmem:[%s3863] sm:$0x1]
    %v3866 = vlaneseq
    %v3867 = vshrl.u32 %v3866, 7
    %v3868 = vsub.s32 0, %v3867
    %v3869 = vrot.slane %v3862, %v3868
    %v3871 = vmul.f32 %v2001, %v3869
    %v3872 = vmul.f32 %v2002, %v3869
    %v3874 = vlaneseq
    %v3875 = vshrl.u32 %v3874, 7
    %v3876 = vsub.s32 0, %v3875
    %v3877 = vrot.slane %v3864, %v3876
    %v3879 = vadd.f32 %v3871, %v3877
    %v3880 = vadd.f32 %v3872, %v3877
    %v3881 = vpack.c.bf16 %v3880, %v3879
    %s3882 = scalar_lea.vmem %s4, 64
    %v3883 = vld [vmem:[%s3882] sm:$0xf]
    %v3884 = vld [vmem:[%s3882 + $0x4] sm:$0xf]
    %v3885 = vld [vmem:[%s3882 + $0x8] sm:$0xf]
    %v3886 = vld [vmem:[%s3882 + $0xc] sm:$0xf]
    %s3887 = scalar_lea.vmem %s5, 4
    %v3888 = vld [vmem:[%s3887] sm:$0x1]
    %v3890 = vlaneseq
    %v3891 = vshrl.u32 %v3890, 7
    %v3892 = vsub.s32 0, %v3891
    %v3893 = vrot.slane %v3888, %v3892
    %v3899 = vunpack.c.l.b16 %v3883
    %v3900 = vunpack.c.l.b16 %v3884
    %v3901 = vunpack.c.l.b16 %v3885
    %v3902 = vunpack.c.l.b16 %v3886
    %v3903 = vpack.c.b16 %v3900, %v3899
    %v3904 = vpack.c.b16 %v3902, %v3901
    %v3908 = vsel %vm66, %v3881, 0
    %3910 = vmatprep.subr.bf16.mxu0 0
    %3911 = vmatpush1.bf16.msra.mxu0 0
    %3912 = vmatprep.subr.bf16.mxu0 0
    %3913 = vmatpush1.bf16.msra.mxu0 0
    %3914 = vmatprep.subr.bf16.mxu0 0
    %3915 = vmatpush1.bf16.msra.mxu0 0
    %3916 = vmatprep.subr.bf16.mxu0 0
    %3917 = vmatpush1.bf16.msra.mxu0 0
    %3918 = vmatprep.subr.bf16.mxu0 0
    %3919 = vmatpush1.bf16.msra.mxu0 0
    %3920 = vmatprep.subr.bf16.mxu0 0
    %3921 = vmatpush1.bf16.msra.mxu0 0
    %3922 = vmatprep.subr.bf16.mxu0 0
    %3923 = vmatpush1.bf16.msra.mxu0 %v3904
    %3924 = vmatprep.subr.bf16.mxu0 0
    %3925 = vmatpush1.bf16.msra.mxu0 %v3903
    %3926 = vmatprep.subr.bf16.mxu0 0
    %3927 = vmatpush2.bf16.msra.mxu0 0
    %3928 = vmatprep.subr.bf16.mxu0 0
    %3929 = vmatpush2.bf16.msra.mxu0 0
    %3930 = vmatprep.subr.bf16.mxu0 0
    %3931 = vmatpush2.bf16.msra.mxu0 0
    %3932 = vmatprep.subr.bf16.mxu0 0
    %3933 = vmatpush2.bf16.msra.mxu0 0
    %3934 = vmatprep.subr.bf16.mxu0 0
    %3935 = vmatpush2.bf16.msra.mxu0 0
    %3936 = vmatprep.subr.bf16.mxu0 0
    %3937 = vmatpush2.bf16.msra.mxu0 0
    %3938 = vmatprep.subr.bf16.mxu0 0
    %3939 = vmatpush2.bf16.msra.mxu0 0
    %3940 = vmatprep.subr.bf16.mxu0 0
    %3941 = vmatpush2.bf16.msra.mxu0 0
    %3942 = vmatprep.mubr.bf16.mxu0 0
    %3943 = vmatmul.mubr.bf16.gmra.mxu0 %v3908
    %v3944 = vpop.f32.mrf.mxu0
    %v3945 = vadd.f32 %v3893, %v3944
    %v3946 = vpop.f32.mrf.mxu0
    %v3947 = vpop.f32.mrf.mxu0
    %v3948 = vadd.f32 %v3893, %v3947
    %v3949 = vpop.f32.mrf.mxu0
    %3950 = vdwg.mxu0
    %v3951 = vmul.f32 %v3945, 0.35355338
    %v3952 = vmul.f32 %v3948, 0.35355338
    %v3953 = vpack.c.bf16 %v3952, %v3951
    %v3954 = vpack.c.bf16 %v3948, %v3945
    %3956 = vrot.lane.b32.xlu0 %v3954, 96
    %v3957 = vpop.permute.xlu0 %3956
    %v3959 = vsel %vm185, %v3953, 0
    %v3962 = vsel %vm185, %v3957, 0
    %3964 = vmatprep.subr.bf16.mxu0 0
    %3965 = vmatpush1.bf16.xpose.msra.mxu0 0
    %3966 = vmatprep.subr.bf16.mxu0 0
    %3967 = vmatpush1.bf16.xpose.msra.mxu0 0
    %3968 = vmatprep.subr.bf16.mxu0 0
    %3969 = vmatpush1.bf16.xpose.msra.mxu0 0
    %3970 = vmatprep.subr.bf16.mxu0 0
    %3971 = vmatpush1.bf16.xpose.msra.mxu0 0
    %3972 = vmatprep.subr.bf16.mxu0 0
    %3973 = vmatpush1.bf16.xpose.msra.mxu0 0
    %3974 = vmatprep.subr.bf16.mxu0 0
    %3975 = vmatpush1.bf16.xpose.msra.mxu0 0
    %3976 = vmatprep.subr.bf16.mxu0 0
    %3977 = vmatpush1.bf16.xpose.msra.mxu0 0
    %3978 = vmatprep.subr.bf16.mxu0 0
    %3979 = vmatpush1.bf16.xpose.msra.mxu0 %v3962
    %3980 = vmatprep.subr.bf16.mxu0 0
    %3981 = vmatpush2.bf16.xpose.msra.mxu0 0
    %3982 = vmatprep.subr.bf16.mxu0 0
    %3983 = vmatpush2.bf16.xpose.msra.mxu0 0
    %3984 = vmatprep.subr.bf16.mxu0 0
    %3985 = vmatpush2.bf16.xpose.msra.mxu0 0
    %3986 = vmatprep.subr.bf16.mxu0 0
    %3987 = vmatpush2.bf16.xpose.msra.mxu0 0
    %3988 = vmatprep.subr.bf16.mxu0 0
    %3989 = vmatpush2.bf16.xpose.msra.mxu0 0
    %3990 = vmatprep.subr.bf16.mxu0 0
    %3991 = vmatpush2.bf16.xpose.msra.mxu0 0
    %3992 = vmatprep.subr.bf16.mxu0 0
    %3993 = vmatpush2.bf16.xpose.msra.mxu0 0
    %3994 = vmatprep.subr.bf16.mxu0 0
    %3995 = vmatpush2.bf16.xpose.msra.mxu0 0
    %3996 = vmatprep.mubr.bf16.mxu0 0
    %3997 = vmatmul.mubr.bf16.gmra.mxu0 %v3959
    %v3998 = vpop.f32.mrf.mxu0
    %v3999 = vadd.f32 %v62, %v3998
    %v4000 = vpop.f32.mrf.mxu0
    %v4001 = vpop.f32.mrf.mxu0
    %v4002 = vadd.f32 %v63, %v4001
    %v4003 = vpop.f32.mrf.mxu0
    %4004 = vdwg.mxu0
    %4006 = vrot.lane.b32.xlu0 %v3953, 120
    %v4007 = vpop.permute.xlu0 %4006
    %4008 = vrot.lane.b32.xlu0 %v3954, 88
    %v4009 = vpop.permute.xlu0 %4008
    %v4011 = vsel %vm185, %v4007, 0
    %v4014 = vsel %vm185, %v4009, 0
    %4016 = vmatprep.subr.bf16.mxu0 0
    %4017 = vmatpush1.bf16.xpose.msra.mxu0 0
    %4018 = vmatprep.subr.bf16.mxu0 0
    %4019 = vmatpush1.bf16.xpose.msra.mxu0 0
    %4020 = vmatprep.subr.bf16.mxu0 0
    %4021 = vmatpush1.bf16.xpose.msra.mxu0 0
    %4022 = vmatprep.subr.bf16.mxu0 0
    %4023 = vmatpush1.bf16.xpose.msra.mxu0 0
    %4024 = vmatprep.subr.bf16.mxu0 0
    %4025 = vmatpush1.bf16.xpose.msra.mxu0 0
    %4026 = vmatprep.subr.bf16.mxu0 0
    %4027 = vmatpush1.bf16.xpose.msra.mxu0 0
    %4028 = vmatprep.subr.bf16.mxu0 0
    %4029 = vmatpush1.bf16.xpose.msra.mxu0 0
    %4030 = vmatprep.subr.bf16.mxu0 0
    %4031 = vmatpush1.bf16.xpose.msra.mxu0 %v4014
    %4032 = vmatprep.subr.bf16.mxu0 0
    %4033 = vmatpush2.bf16.xpose.msra.mxu0 0
    %4034 = vmatprep.subr.bf16.mxu0 0
    %4035 = vmatpush2.bf16.xpose.msra.mxu0 0
    %4036 = vmatprep.subr.bf16.mxu0 0
    %4037 = vmatpush2.bf16.xpose.msra.mxu0 0
    %4038 = vmatprep.subr.bf16.mxu0 0
    %4039 = vmatpush2.bf16.xpose.msra.mxu0 0
    %4040 = vmatprep.subr.bf16.mxu0 0
    %4041 = vmatpush2.bf16.xpose.msra.mxu0 0
    %4042 = vmatprep.subr.bf16.mxu0 0
    %4043 = vmatpush2.bf16.xpose.msra.mxu0 0
    %4044 = vmatprep.subr.bf16.mxu0 0
    %4045 = vmatpush2.bf16.xpose.msra.mxu0 0
    %4046 = vmatprep.subr.bf16.mxu0 0
    %4047 = vmatpush2.bf16.xpose.msra.mxu0 0
    %4048 = vmatprep.mubr.bf16.mxu0 0
    %4049 = vmatmul.mubr.bf16.gmra.mxu0 %v4011
    %v4050 = vpop.f32.mrf.mxu0
    %v4051 = vadd.f32 %v62, %v4050
    %v4052 = vpop.f32.mrf.mxu0
    %v4053 = vpop.f32.mrf.mxu0
    %v4054 = vadd.f32 %v63, %v4053
    %v4055 = vpop.f32.mrf.mxu0
    %4056 = vdwg.mxu0
    %4057 = vrot.lane.b32.xlu0 %v3953, 112
    %v4058 = vpop.permute.xlu0 %4057
    %4059 = vrot.lane.b32.xlu0 %v3954, 80
    %v4060 = vpop.permute.xlu0 %4059
    %v4062 = vsel %vm185, %v4058, 0
    %v4065 = vsel %vm185, %v4060, 0
    %4067 = vmatprep.subr.bf16.mxu0 0
    %4068 = vmatpush1.bf16.xpose.msra.mxu0 0
    %4069 = vmatprep.subr.bf16.mxu0 0
    %4070 = vmatpush1.bf16.xpose.msra.mxu0 0
    %4071 = vmatprep.subr.bf16.mxu0 0
    %4072 = vmatpush1.bf16.xpose.msra.mxu0 0
    %4073 = vmatprep.subr.bf16.mxu0 0
    %4074 = vmatpush1.bf16.xpose.msra.mxu0 0
    %4075 = vmatprep.subr.bf16.mxu0 0
    %4076 = vmatpush1.bf16.xpose.msra.mxu0 0
    %4077 = vmatprep.subr.bf16.mxu0 0
    %4078 = vmatpush1.bf16.xpose.msra.mxu0 0
    %4079 = vmatprep.subr.bf16.mxu0 0
    %4080 = vmatpush1.bf16.xpose.msra.mxu0 0
    %4081 = vmatprep.subr.bf16.mxu0 0
    %4082 = vmatpush1.bf16.xpose.msra.mxu0 %v4065
    %4083 = vmatprep.subr.bf16.mxu0 0
    %4084 = vmatpush2.bf16.xpose.msra.mxu0 0
    %4085 = vmatprep.subr.bf16.mxu0 0
    %4086 = vmatpush2.bf16.xpose.msra.mxu0 0
    %4087 = vmatprep.subr.bf16.mxu0 0
    %4088 = vmatpush2.bf16.xpose.msra.mxu0 0
    %4089 = vmatprep.subr.bf16.mxu0 0
    %4090 = vmatpush2.bf16.xpose.msra.mxu0 0
    %4091 = vmatprep.subr.bf16.mxu0 0
    %4092 = vmatpush2.bf16.xpose.msra.mxu0 0
    %4093 = vmatprep.subr.bf16.mxu0 0
    %4094 = vmatpush2.bf16.xpose.msra.mxu0 0
    %4095 = vmatprep.subr.bf16.mxu0 0
    %4096 = vmatpush2.bf16.xpose.msra.mxu0 0
    %4097 = vmatprep.subr.bf16.mxu0 0
    %4098 = vmatpush2.bf16.xpose.msra.mxu0 0
    %4099 = vmatprep.mubr.bf16.mxu0 0
    %4100 = vmatmul.mubr.bf16.gmra.mxu0 %v4062
    %v4101 = vpop.f32.mrf.mxu0
    %v4102 = vadd.f32 %v62, %v4101
    %v4103 = vpop.f32.mrf.mxu0
    %v4104 = vpop.f32.mrf.mxu0
    %v4105 = vadd.f32 %v63, %v4104
    %v4106 = vpop.f32.mrf.mxu0
    %4107 = vdwg.mxu0
    %4108 = vrot.lane.b32.xlu0 %v3953, 104
    %v4109 = vpop.permute.xlu0 %4108
    %4110 = vrot.lane.b32.xlu0 %v3954, 72
    %v4111 = vpop.permute.xlu0 %4110
    %v4113 = vsel %vm185, %v4109, 0
    %v4116 = vsel %vm185, %v4111, 0
    %4118 = vmatprep.subr.bf16.mxu0 0
    %4119 = vmatpush1.bf16.xpose.msra.mxu0 0
    %4120 = vmatprep.subr.bf16.mxu0 0
    %4121 = vmatpush1.bf16.xpose.msra.mxu0 0
    %4122 = vmatprep.subr.bf16.mxu0 0
    %4123 = vmatpush1.bf16.xpose.msra.mxu0 0
    %4124 = vmatprep.subr.bf16.mxu0 0
    %4125 = vmatpush1.bf16.xpose.msra.mxu0 0
    %4126 = vmatprep.subr.bf16.mxu0 0
    %4127 = vmatpush1.bf16.xpose.msra.mxu0 0
    %4128 = vmatprep.subr.bf16.mxu0 0
    %4129 = vmatpush1.bf16.xpose.msra.mxu0 0
    %4130 = vmatprep.subr.bf16.mxu0 0
    %4131 = vmatpush1.bf16.xpose.msra.mxu0 0
    %4132 = vmatprep.subr.bf16.mxu0 0
    %4133 = vmatpush1.bf16.xpose.msra.mxu0 %v4116
    %4134 = vmatprep.subr.bf16.mxu0 0
    %4135 = vmatpush2.bf16.xpose.msra.mxu0 0
    %4136 = vmatprep.subr.bf16.mxu0 0
    %4137 = vmatpush2.bf16.xpose.msra.mxu0 0
    %4138 = vmatprep.subr.bf16.mxu0 0
    %4139 = vmatpush2.bf16.xpose.msra.mxu0 0
    %4140 = vmatprep.subr.bf16.mxu0 0
    %4141 = vmatpush2.bf16.xpose.msra.mxu0 0
    %4142 = vmatprep.subr.bf16.mxu0 0
    %4143 = vmatpush2.bf16.xpose.msra.mxu0 0
    %4144 = vmatprep.subr.bf16.mxu0 0
    %4145 = vmatpush2.bf16.xpose.msra.mxu0 0
    %4146 = vmatprep.subr.bf16.mxu0 0
    %4147 = vmatpush2.bf16.xpose.msra.mxu0 0
    %4148 = vmatprep.subr.bf16.mxu0 0
    %4149 = vmatpush2.bf16.xpose.msra.mxu0 0
    %4150 = vmatprep.mubr.bf16.mxu0 0
    %4151 = vmatmul.mubr.bf16.gmra.mxu0 %v4113
    %v4152 = vpop.f32.mrf.mxu0
    %v4153 = vadd.f32 %v62, %v4152
    %v4154 = vpop.f32.mrf.mxu0
    %v4155 = vpop.f32.mrf.mxu0
    %v4156 = vadd.f32 %v63, %v4155
    %v4157 = vpop.f32.mrf.mxu0
    %4158 = vdwg.mxu0
    %v4159 = vsel %vm387, %v3999, -inf
    %4160 = vmax.xlane.f32.xlu0 %v4159
    %v4161 = vpop.xlane.xlu0 %4160
    %v4162 = vsel %vm387, %v4002, -inf
    %4163 = vmax.xlane.f32.xlu0 %v4162
    %v4164 = vpop.xlane.xlu0 %4163
    %v4165 = vsel %vm387, %v4051, -inf
    %4166 = vmax.xlane.f32.xlu0 %v4165
    %v4167 = vpop.xlane.xlu0 %4166
    %v4168 = vsel %vm387, %v4054, -inf
    %4169 = vmax.xlane.f32.xlu0 %v4168
    %v4170 = vpop.xlane.xlu0 %4169
    %v4171 = vsel %vm387, %v4102, -inf
    %4172 = vmax.xlane.f32.xlu0 %v4171
    %v4173 = vpop.xlane.xlu0 %4172
    %v4174 = vsel %vm387, %v4105, -inf
    %4175 = vmax.xlane.f32.xlu0 %v4174
    %v4176 = vpop.xlane.xlu0 %4175
    %v4177 = vsel %vm387, %v4153, -inf
    %4178 = vmax.xlane.f32.xlu0 %v4177
    %v4179 = vpop.xlane.xlu0 %4178
    %v4180 = vsel %vm387, %v4156, -inf
    %4181 = vmax.xlane.f32.xlu0 %v4180
    %v4182 = vpop.xlane.xlu0 %4181
    %v4183 = vsub.f32 %v3999, %v4161
    %v4184 = vsub.f32 %v4002, %v4164
    %v4185 = vsub.f32 %v4051, %v4167
    %v4186 = vsub.f32 %v4054, %v4170
    %v4187 = vsub.f32 %v4102, %v4173
    %v4188 = vsub.f32 %v4105, %v4176
    %v4189 = vsub.f32 %v4153, %v4179
    %v4190 = vsub.f32 %v4156, %v4182
    %v4191 = vmul.f32 %v4183, 1.442695
    %v4192 = vpow.pop %v4191
    %v4193 = vmul.f32 %v4184, 1.442695
    %v4194 = vpow.pop %v4193
    %v4195 = vmul.f32 %v4185, 1.442695
    %v4196 = vpow.pop %v4195
    %v4197 = vmul.f32 %v4186, 1.442695
    %v4198 = vpow.pop %v4197
    %v4199 = vmul.f32 %v4187, 1.442695
    %v4200 = vpow.pop %v4199
    %v4201 = vmul.f32 %v4188, 1.442695
    %v4202 = vpow.pop %v4201
    %v4203 = vmul.f32 %v4189, 1.442695
    %v4204 = vpow.pop %v4203
    %v4205 = vmul.f32 %v4190, 1.442695
    %v4206 = vpow.pop %v4205
    %v4207 = vsel %vm387, %v4192, 0.0
    %4208 = vadd.xlane.f32.xlu0 %v4207
    %v4209 = vpop.xlane.xlu0 %4208
    %v4210 = vsel %vm387, %v4194, 0.0
    %4211 = vadd.xlane.f32.xlu0 %v4210
    %v4212 = vpop.xlane.xlu0 %4211
    %v4213 = vsel %vm387, %v4196, 0.0
    %4214 = vadd.xlane.f32.xlu0 %v4213
    %v4215 = vpop.xlane.xlu0 %4214
    %v4216 = vsel %vm387, %v4198, 0.0
    %4217 = vadd.xlane.f32.xlu0 %v4216
    %v4218 = vpop.xlane.xlu0 %4217
    %v4219 = vsel %vm387, %v4200, 0.0
    %4220 = vadd.xlane.f32.xlu0 %v4219
    %v4221 = vpop.xlane.xlu0 %4220
    %v4222 = vsel %vm387, %v4202, 0.0
    %4223 = vadd.xlane.f32.xlu0 %v4222
    %v4224 = vpop.xlane.xlu0 %4223
    %v4225 = vsel %vm387, %v4204, 0.0
    %4226 = vadd.xlane.f32.xlu0 %v4225
    %v4227 = vpop.xlane.xlu0 %4226
    %v4228 = vsel %vm387, %v4206, 0.0
    %4229 = vadd.xlane.f32.xlu0 %v4228
    %v4230 = vpop.xlane.xlu0 %4229
    %v4231 = vrcp.pop %v4209
    %v4232 = vrcp.pop %v4212
    %v4233 = vrcp.pop %v4215
    %v4234 = vrcp.pop %v4218
    %v4235 = vrcp.pop %v4221
    %v4236 = vrcp.pop %v4224
    %v4237 = vrcp.pop %v4227
    %v4238 = vrcp.pop %v4230
    %v4239 = vpack.c.bf16 %v4194, %v4192
    %4240 = vrot.lane.b32.xlu0 %v3954, 64
    %v4241 = vpop.permute.xlu0 %4240
    %v4244 = vsel %vm387, %v4239, 0
    %4246 = vmatprep.subr.bf16.mxu0 0
    %4247 = vmatpush1.bf16.msra.mxu0 0
    %4248 = vmatprep.subr.bf16.mxu0 0
    %4249 = vmatpush1.bf16.msra.mxu0 0
    %4250 = vmatprep.subr.bf16.mxu0 0
    %4251 = vmatpush1.bf16.msra.mxu0 0
    %4252 = vmatprep.subr.bf16.mxu0 0
    %4253 = vmatpush1.bf16.msra.mxu0 0
    %4254 = vmatprep.subr.bf16.mxu0 0
    %4255 = vmatpush1.bf16.msra.mxu0 0
    %4256 = vmatprep.subr.bf16.mxu0 0
    %4257 = vmatpush1.bf16.msra.mxu0 0
    %4258 = vmatprep.subr.bf16.mxu0 0
    %4259 = vmatpush1.bf16.msra.mxu0 0
    %4260 = vmatprep.subr.bf16.mxu0 0
    %4261 = vmatpush1.bf16.msra.mxu0 %v4241
    %4262 = vmatprep.subr.bf16.mxu0 0
    %4263 = vmatpush2.bf16.msra.mxu0 0
    %4264 = vmatprep.subr.bf16.mxu0 0
    %4265 = vmatpush2.bf16.msra.mxu0 0
    %4266 = vmatprep.subr.bf16.mxu0 0
    %4267 = vmatpush2.bf16.msra.mxu0 0
    %4268 = vmatprep.subr.bf16.mxu0 0
    %4269 = vmatpush2.bf16.msra.mxu0 0
    %4270 = vmatprep.subr.bf16.mxu0 0
    %4271 = vmatpush2.bf16.msra.mxu0 0
    %4272 = vmatprep.subr.bf16.mxu0 0
    %4273 = vmatpush2.bf16.msra.mxu0 0
    %4274 = vmatprep.subr.bf16.mxu0 0
    %4275 = vmatpush2.bf16.msra.mxu0 0
    %4276 = vmatprep.subr.bf16.mxu0 0
    %4277 = vmatpush2.bf16.msra.mxu0 0
    %4278 = vmatprep.mubr.bf16.mxu0 0
    %4279 = vmatmul.mubr.bf16.gmra.mxu0 %v4244
    %v4280 = vpop.f32.mrf.mxu0
    %v4281 = vadd.f32 0.0, %v4280
    %v4282 = vpop.f32.mrf.mxu0
    %v4283 = vpop.f32.mrf.mxu0
    %v4284 = vadd.f32 0.0, %v4283
    %v4285 = vpop.f32.mrf.mxu0
    %4286 = vdwg.mxu0
    %v4287 = vmul.f32 %v4281, %v4231
    %v4288 = vmul.f32 %v4284, %v4232
    %v4289 = vpack.c.bf16 %v4198, %v4196
    %4290 = vrot.lane.b32.xlu0 %v3954, 56
    %v4291 = vpop.permute.xlu0 %4290
    %v4294 = vsel %vm387, %v4289, 0
    %4296 = vmatprep.subr.bf16.mxu0 0
    %4297 = vmatpush1.bf16.msra.mxu0 0
    %4298 = vmatprep.subr.bf16.mxu0 0
    %4299 = vmatpush1.bf16.msra.mxu0 0
    %4300 = vmatprep.subr.bf16.mxu0 0
    %4301 = vmatpush1.bf16.msra.mxu0 0
    %4302 = vmatprep.subr.bf16.mxu0 0
    %4303 = vmatpush1.bf16.msra.mxu0 0
    %4304 = vmatprep.subr.bf16.mxu0 0
    %4305 = vmatpush1.bf16.msra.mxu0 0
    %4306 = vmatprep.subr.bf16.mxu0 0
    %4307 = vmatpush1.bf16.msra.mxu0 0
    %4308 = vmatprep.subr.bf16.mxu0 0
    %4309 = vmatpush1.bf16.msra.mxu0 0
    %4310 = vmatprep.subr.bf16.mxu0 0
    %4311 = vmatpush1.bf16.msra.mxu0 %v4291
    %4312 = vmatprep.subr.bf16.mxu0 0
    %4313 = vmatpush2.bf16.msra.mxu0 0
    %4314 = vmatprep.subr.bf16.mxu0 0
    %4315 = vmatpush2.bf16.msra.mxu0 0
    %4316 = vmatprep.subr.bf16.mxu0 0
    %4317 = vmatpush2.bf16.msra.mxu0 0
    %4318 = vmatprep.subr.bf16.mxu0 0
    %4319 = vmatpush2.bf16.msra.mxu0 0
    %4320 = vmatprep.subr.bf16.mxu0 0
    %4321 = vmatpush2.bf16.msra.mxu0 0
    %4322 = vmatprep.subr.bf16.mxu0 0
    %4323 = vmatpush2.bf16.msra.mxu0 0
    %4324 = vmatprep.subr.bf16.mxu0 0
    %4325 = vmatpush2.bf16.msra.mxu0 0
    %4326 = vmatprep.subr.bf16.mxu0 0
    %4327 = vmatpush2.bf16.msra.mxu0 0
    %4328 = vmatprep.mubr.bf16.mxu0 0
    %4329 = vmatmul.mubr.bf16.gmra.mxu0 %v4294
    %v4330 = vpop.f32.mrf.mxu0
    %v4331 = vadd.f32 0.0, %v4330
    %v4332 = vpop.f32.mrf.mxu0
    %v4333 = vpop.f32.mrf.mxu0
    %v4334 = vadd.f32 0.0, %v4333
    %v4335 = vpop.f32.mrf.mxu0
    %4336 = vdwg.mxu0
    %v4337 = vmul.f32 %v4331, %v4233
    %v4338 = vmul.f32 %v4334, %v4234
    %v4339 = vpack.c.bf16 %v4202, %v4200
    %4340 = vrot.lane.b32.xlu0 %v3954, 48
    %v4341 = vpop.permute.xlu0 %4340
    %v4344 = vsel %vm387, %v4339, 0
    %4346 = vmatprep.subr.bf16.mxu0 0
    %4347 = vmatpush1.bf16.msra.mxu0 0
    %4348 = vmatprep.subr.bf16.mxu0 0
    %4349 = vmatpush1.bf16.msra.mxu0 0
    %4350 = vmatprep.subr.bf16.mxu0 0
    %4351 = vmatpush1.bf16.msra.mxu0 0
    %4352 = vmatprep.subr.bf16.mxu0 0
    %4353 = vmatpush1.bf16.msra.mxu0 0
    %4354 = vmatprep.subr.bf16.mxu0 0
    %4355 = vmatpush1.bf16.msra.mxu0 0
    %4356 = vmatprep.subr.bf16.mxu0 0
    %4357 = vmatpush1.bf16.msra.mxu0 0
    %4358 = vmatprep.subr.bf16.mxu0 0
    %4359 = vmatpush1.bf16.msra.mxu0 0
    %4360 = vmatprep.subr.bf16.mxu0 0
    %4361 = vmatpush1.bf16.msra.mxu0 %v4341
    %4362 = vmatprep.subr.bf16.mxu0 0
    %4363 = vmatpush2.bf16.msra.mxu0 0
    %4364 = vmatprep.subr.bf16.mxu0 0
    %4365 = vmatpush2.bf16.msra.mxu0 0
    %4366 = vmatprep.subr.bf16.mxu0 0
    %4367 = vmatpush2.bf16.msra.mxu0 0
    %4368 = vmatprep.subr.bf16.mxu0 0
    %4369 = vmatpush2.bf16.msra.mxu0 0
    %4370 = vmatprep.subr.bf16.mxu0 0
    %4371 = vmatpush2.bf16.msra.mxu0 0
    %4372 = vmatprep.subr.bf16.mxu0 0
    %4373 = vmatpush2.bf16.msra.mxu0 0
    %4374 = vmatprep.subr.bf16.mxu0 0
    %4375 = vmatpush2.bf16.msra.mxu0 0
    %4376 = vmatprep.subr.bf16.mxu0 0
    %4377 = vmatpush2.bf16.msra.mxu0 0
    %4378 = vmatprep.mubr.bf16.mxu0 0
    %4379 = vmatmul.mubr.bf16.gmra.mxu0 %v4344
    %v4380 = vpop.f32.mrf.mxu0
    %v4381 = vadd.f32 0.0, %v4380
    %v4382 = vpop.f32.mrf.mxu0
    %v4383 = vpop.f32.mrf.mxu0
    %v4384 = vadd.f32 0.0, %v4383
    %v4385 = vpop.f32.mrf.mxu0
    %4386 = vdwg.mxu0
    %v4387 = vmul.f32 %v4381, %v4235
    %v4388 = vmul.f32 %v4384, %v4236
    %v4389 = vpack.c.bf16 %v4206, %v4204
    %4390 = vrot.lane.b32.xlu0 %v3954, 40
    %v4391 = vpop.permute.xlu0 %4390
    %v4394 = vsel %vm387, %v4389, 0
    %4396 = vmatprep.subr.bf16.mxu0 0
    %4397 = vmatpush1.bf16.msra.mxu0 0
    %4398 = vmatprep.subr.bf16.mxu0 0
    %4399 = vmatpush1.bf16.msra.mxu0 0
    %4400 = vmatprep.subr.bf16.mxu0 0
    %4401 = vmatpush1.bf16.msra.mxu0 0
    %4402 = vmatprep.subr.bf16.mxu0 0
    %4403 = vmatpush1.bf16.msra.mxu0 0
    %4404 = vmatprep.subr.bf16.mxu0 0
    %4405 = vmatpush1.bf16.msra.mxu0 0
    %4406 = vmatprep.subr.bf16.mxu0 0
    %4407 = vmatpush1.bf16.msra.mxu0 0
    %4408 = vmatprep.subr.bf16.mxu0 0
    %4409 = vmatpush1.bf16.msra.mxu0 0
    %4410 = vmatprep.subr.bf16.mxu0 0
    %4411 = vmatpush1.bf16.msra.mxu0 %v4391
    %4412 = vmatprep.subr.bf16.mxu0 0
    %4413 = vmatpush2.bf16.msra.mxu0 0
    %4414 = vmatprep.subr.bf16.mxu0 0
    %4415 = vmatpush2.bf16.msra.mxu0 0
    %4416 = vmatprep.subr.bf16.mxu0 0
    %4417 = vmatpush2.bf16.msra.mxu0 0
    %4418 = vmatprep.subr.bf16.mxu0 0
    %4419 = vmatpush2.bf16.msra.mxu0 0
    %4420 = vmatprep.subr.bf16.mxu0 0
    %4421 = vmatpush2.bf16.msra.mxu0 0
    %4422 = vmatprep.subr.bf16.mxu0 0
    %4423 = vmatpush2.bf16.msra.mxu0 0
    %4424 = vmatprep.subr.bf16.mxu0 0
    %4425 = vmatpush2.bf16.msra.mxu0 0
    %4426 = vmatprep.subr.bf16.mxu0 0
    %4427 = vmatpush2.bf16.msra.mxu0 0
    %4428 = vmatprep.mubr.bf16.mxu0 0
    %4429 = vmatmul.mubr.bf16.gmra.mxu0 %v4394
    %v4430 = vpop.f32.mrf.mxu0
    %v4431 = vadd.f32 0.0, %v4430
    %v4432 = vpop.f32.mrf.mxu0
    %v4433 = vpop.f32.mrf.mxu0
    %v4434 = vadd.f32 0.0, %v4433
    %v4435 = vpop.f32.mrf.mxu0
    %4436 = vdwg.mxu0
    %v4437 = vmul.f32 %v4431, %v4237
    %v4438 = vmul.f32 %v4434, %v4238
    %4441 = vrot.lane.b32.xlu0 %v4337, 8
    %v4442 = vpop.permute.xlu0 %4441
    %4443 = vrot.lane.b32.xlu0 %v4338, 8
    %v4444 = vpop.permute.xlu0 %4443
    %4449 = vrot.lane.b32.xlu0 %v4387, 16
    %v4450 = vpop.permute.xlu0 %4449
    %4451 = vrot.lane.b32.xlu0 %v4388, 16
    %v4452 = vpop.permute.xlu0 %4451
    %4457 = vrot.lane.b32.xlu0 %v4437, 24
    %v4458 = vpop.permute.xlu0 %4457
    %4459 = vrot.lane.b32.xlu0 %v4438, 24
    %v4460 = vpop.permute.xlu0 %4459
    %v4463 = vsel %vm185, %v4287, %v4442
    %v4464 = vsel %vm185, %v4288, %v4444
    %v4465 = vsel %vm387, %v4463, %v4450
    %v4466 = vsel %vm387, %v4464, %v4452
    %v4467 = vsel %vm696, %v4465, %v4458
    %v4468 = vsel %vm696, %v4466, %v4460
    %v4469 = vpack.c.bf16 %v4468, %v4467
    %s4470 = scalar_lea.vmem %s6, 64
    %v4471 = vld [vmem:[%s4470] sm:$0xf]
    %v4472 = vld [vmem:[%s4470 + $0x4] sm:$0xf]
    %v4473 = vld [vmem:[%s4470 + $0x8] sm:$0xf]
    %v4474 = vld [vmem:[%s4470 + $0xc] sm:$0xf]
    %s4475 = scalar_lea.vmem %s7, 4
    %v4476 = vld [vmem:[%s4475] sm:$0x1]
    %v4478 = vlaneseq
    %v4479 = vshrl.u32 %v4478, 7
    %v4480 = vsub.s32 0, %v4479
    %v4481 = vrot.slane %v4476, %v4480
    %v4487 = vunpack.c.l.b16 %v4471
    %v4488 = vunpack.c.l.b16 %v4472
    %v4489 = vunpack.c.l.b16 %v4473
    %v4490 = vunpack.c.l.b16 %v4474
    %v4491 = vpack.c.b16 %v4488, %v4487
    %v4492 = vpack.c.b16 %v4490, %v4489
    %v4496 = vsel %vm66, %v4469, 0
    %4498 = vmatprep.subr.bf16.mxu0 0
    %4499 = vmatpush1.bf16.msra.mxu0 0
    %4500 = vmatprep.subr.bf16.mxu0 0
    %4501 = vmatpush1.bf16.msra.mxu0 0
    %4502 = vmatprep.subr.bf16.mxu0 0
    %4503 = vmatpush1.bf16.msra.mxu0 0
    %4504 = vmatprep.subr.bf16.mxu0 0
    %4505 = vmatpush1.bf16.msra.mxu0 0
    %4506 = vmatprep.subr.bf16.mxu0 0
    %4507 = vmatpush1.bf16.msra.mxu0 0
    %4508 = vmatprep.subr.bf16.mxu0 0
    %4509 = vmatpush1.bf16.msra.mxu0 0
    %4510 = vmatprep.subr.bf16.mxu0 0
    %4511 = vmatpush1.bf16.msra.mxu0 %v4492
    %4512 = vmatprep.subr.bf16.mxu0 0
    %4513 = vmatpush1.bf16.msra.mxu0 %v4491
    %4514 = vmatprep.subr.bf16.mxu0 0
    %4515 = vmatpush2.bf16.msra.mxu0 0
    %4516 = vmatprep.subr.bf16.mxu0 0
    %4517 = vmatpush2.bf16.msra.mxu0 0
    %4518 = vmatprep.subr.bf16.mxu0 0
    %4519 = vmatpush2.bf16.msra.mxu0 0
    %4520 = vmatprep.subr.bf16.mxu0 0
    %4521 = vmatpush2.bf16.msra.mxu0 0
    %4522 = vmatprep.subr.bf16.mxu0 0
    %4523 = vmatpush2.bf16.msra.mxu0 0
    %4524 = vmatprep.subr.bf16.mxu0 0
    %4525 = vmatpush2.bf16.msra.mxu0 0
    %4526 = vmatprep.subr.bf16.mxu0 0
    %4527 = vmatpush2.bf16.msra.mxu0 0
    %4528 = vmatprep.subr.bf16.mxu0 0
    %4529 = vmatpush2.bf16.msra.mxu0 0
    %4530 = vmatprep.mubr.bf16.mxu0 0
    %4531 = vmatmul.mubr.bf16.gmra.mxu0 %v4496
    %v4532 = vpop.f32.mrf.mxu0
    %v4533 = vadd.f32 %v4481, %v4532
    %v4534 = vpop.f32.mrf.mxu0
    %v4535 = vpop.f32.mrf.mxu0
    %v4536 = vadd.f32 %v4481, %v4535
    %v4537 = vpop.f32.mrf.mxu0
    %4538 = vdwg.mxu0
    %v4539 = vadd.f32 %v1969, %v4533
    %v4540 = vadd.f32 %v1970, %v4536
    %s4541 = scalar_lea.vmem %s8, 4
    %v4542 = vld [vmem:[%s4541] sm:$0x1]
    %s4543 = scalar_lea.vmem %s9, 4
    %v4544 = vld [vmem:[%s4543] sm:$0x1]
    %v4545 = vsel %vm66, %v4539, 0.0
    %4546 = vadd.xlane.f32.xlu0 %v4545
    %v4547 = vpop.xlane.xlu0 %4546
    %v4548 = vsel %vm66, %v4540, 0.0
    %4549 = vadd.xlane.f32.xlu0 %v4548
    %v4550 = vpop.xlane.xlu0 %4549
    %v4551 = vmul.f32 %v4547, %v73
    %v4552 = vmul.f32 %v4550, %v73
    %v4553 = vsub.f32 %v4539, %v4551
    %v4554 = vsub.f32 %v4540, %v4552
    %v4555 = vmul.f32 %v4553, %v4553
    %v4556 = vmul.f32 %v4554, %v4554
    %v4557 = vsel %vm66, %v4555, 0.0
    %4558 = vadd.xlane.f32.xlu0 %v4557
    %v4559 = vpop.xlane.xlu0 %4558
    %v4560 = vsel %vm66, %v4556, 0.0
    %4561 = vadd.xlane.f32.xlu0 %v4560
    %v4562 = vpop.xlane.xlu0 %4561
    %v4563 = vmul.f32 %v4559, %v73
    %v4564 = vmul.f32 %v4562, %v73
    %v4565 = vadd.f32 %v4563, 1e-05
    %v4566 = vadd.f32 %v4564, 1e-05
    %v4567 = vrsqrt.pop %v4565
    %v4568 = vrsqrt.pop %v4566
    %v4569 = vmul.f32 %v4553, %v4567
    %v4570 = vmul.f32 %v4554, %v4568
    %v4572 = vlaneseq
    %v4573 = vshrl.u32 %v4572, 7
    %v4574 = vsub.s32 0, %v4573
    %v4575 = vrot.slane %v4542, %v4574
    %v4577 = vmul.f32 %v4569, %v4575
    %v4578 = vmul.f32 %v4570, %v4575
    %v4580 = vlaneseq
    %v4581 = vshrl.u32 %v4580, 7
    %v4582 = vsub.s32 0, %v4581
    %v4583 = vrot.slane %v4544, %v4582
    %v4585 = vadd.f32 %v4577, %v4583
    %v4586 = vadd.f32 %v4578, %v4583
    %v4587 = vpack.c.bf16 %v4586, %v4585
    %s4588 = scalar_lea.vmem %s10, 64
    %v4589 = vld [vmem:[%s4588] sm:$0xf]
    %v4590 = vld [vmem:[%s4588 + $0x4] sm:$0xf]
    %v4591 = vld [vmem:[%s4588 + $0x8] sm:$0xf]
    %v4592 = vld [vmem:[%s4588 + $0xc] sm:$0xf]
    %s4593 = scalar_lea.vmem %s11, 4
    %v4594 = vld [vmem:[%s4593] sm:$0x1]
    %v4596 = vlaneseq
    %v4597 = vshrl.u32 %v4596, 7
    %v4598 = vsub.s32 0, %v4597
    %v4599 = vrot.slane %v4594, %v4598
    %v4605 = vunpack.c.l.b16 %v4589
    %v4606 = vunpack.c.l.b16 %v4590
    %v4607 = vunpack.c.l.b16 %v4591
    %v4608 = vunpack.c.l.b16 %v4592
    %v4609 = vpack.c.b16 %v4606, %v4605
    %v4610 = vpack.c.b16 %v4608, %v4607
    %v4614 = vsel %vm66, %v4587, 0
    %4616 = vmatprep.subr.bf16.mxu0 0
    %4617 = vmatpush1.bf16.msra.mxu0 0
    %4618 = vmatprep.subr.bf16.mxu0 0
    %4619 = vmatpush1.bf16.msra.mxu0 0
    %4620 = vmatprep.subr.bf16.mxu0 0
    %4621 = vmatpush1.bf16.msra.mxu0 0
    %4622 = vmatprep.subr.bf16.mxu0 0
    %4623 = vmatpush1.bf16.msra.mxu0 0
    %4624 = vmatprep.subr.bf16.mxu0 0
    %4625 = vmatpush1.bf16.msra.mxu0 0
    %4626 = vmatprep.subr.bf16.mxu0 0
    %4627 = vmatpush1.bf16.msra.mxu0 0
    %4628 = vmatprep.subr.bf16.mxu0 0
    %4629 = vmatpush1.bf16.msra.mxu0 %v4610
    %4630 = vmatprep.subr.bf16.mxu0 0
    %4631 = vmatpush1.bf16.msra.mxu0 %v4609
    %4632 = vmatprep.subr.bf16.mxu0 0
    %4633 = vmatpush2.bf16.msra.mxu0 0
    %4634 = vmatprep.subr.bf16.mxu0 0
    %4635 = vmatpush2.bf16.msra.mxu0 0
    %4636 = vmatprep.subr.bf16.mxu0 0
    %4637 = vmatpush2.bf16.msra.mxu0 0
    %4638 = vmatprep.subr.bf16.mxu0 0
    %4639 = vmatpush2.bf16.msra.mxu0 0
    %4640 = vmatprep.subr.bf16.mxu0 0
    %4641 = vmatpush2.bf16.msra.mxu0 0
    %4642 = vmatprep.subr.bf16.mxu0 0
    %4643 = vmatpush2.bf16.msra.mxu0 0
    %4644 = vmatprep.subr.bf16.mxu0 0
    %4645 = vmatpush2.bf16.msra.mxu0 0
    %4646 = vmatprep.subr.bf16.mxu0 0
    %4647 = vmatpush2.bf16.msra.mxu0 0
    %4648 = vmatprep.mubr.bf16.mxu0 0
    %4649 = vmatmul.mubr.bf16.gmra.mxu0 %v4614
    %v4650 = vpop.f32.mrf.mxu0
    %v4651 = vadd.f32 %v4599, %v4650
    %v4652 = vpop.f32.mrf.mxu0
    %v4653 = vpop.f32.mrf.mxu0
    %v4654 = vadd.f32 %v4599, %v4653
    %v4655 = vpop.f32.mrf.mxu0
    %4656 = vdwg.mxu0
    %v4657 = vmul.f32 %v4651, 0.5
    %v4658 = vmul.f32 %v4654, 0.5
    %v4659 = vmul.f32 %v4651, 0.044715
    %v4660 = vmul.f32 %v4654, 0.044715
    %v4661 = vmul.f32 %v4659, %v4651
    %v4662 = vmul.f32 %v4660, %v4654
    %v4663 = vmul.f32 %v4661, %v4651
    %v4664 = vmul.f32 %v4662, %v4654
    %v4665 = vadd.f32 %v4651, %v4663
    %v4666 = vadd.f32 %v4654, %v4664
    %v4667 = vmul.f32 %v4665, 0.7978846
    %v4668 = vmul.f32 %v4666, 0.7978846
    %v4669 = vtanh.pop %v4667
    %v4670 = vtanh.pop %v4668
    %v4671 = vadd.f32 %v4669, 1.0
    %v4672 = vadd.f32 %v4670, 1.0
    %v4673 = vmul.f32 %v4657, %v4671
    %v4674 = vmul.f32 %v4658, %v4672
    %v4675 = vpack.c.bf16 %v4674, %v4673
    %s4676 = scalar_lea.vmem %s12, 256
    %v4677 = vld [vmem:[%s4676] sm:$0xf]
    %v4678 = vld [vmem:[%s4676 + $0x4] sm:$0xf]
    %v4679 = vld [vmem:[%s4676 + $0x8] sm:$0xf]
    %v4680 = vld [vmem:[%s4676 + $0xc] sm:$0xf]
    %v4681 = vld [vmem:[%s4676 + $0x10] sm:$0xf]
    %v4682 = vld [vmem:[%s4676 + $0x14] sm:$0xf]
    %v4683 = vld [vmem:[%s4676 + $0x18] sm:$0xf]
    %v4684 = vld [vmem:[%s4676 + $0x1c] sm:$0xf]
    %v4685 = vld [vmem:[%s4676 + $0x20] sm:$0xf]
    %v4686 = vld [vmem:[%s4676 + $0x24] sm:$0xf]
    %v4687 = vld [vmem:[%s4676 + $0x28] sm:$0xf]
    %v4688 = vld [vmem:[%s4676 + $0x2c] sm:$0xf]
    %v4689 = vld [vmem:[%s4676 + $0x30] sm:$0xf]
    %v4690 = vld [vmem:[%s4676 + $0x34] sm:$0xf]
    %v4691 = vld [vmem:[%s4676 + $0x38] sm:$0xf]
    %v4692 = vld [vmem:[%s4676 + $0x3c] sm:$0xf]
    %s4693 = scalar_lea.vmem %s13, 4
    %v4694 = vld [vmem:[%s4693] sm:$0x1]
    %v4696 = vlaneseq
    %v4697 = vshrl.u32 %v4696, 7
    %v4698 = vsub.s32 0, %v4697
    %v4699 = vrot.slane %v4694, %v4698
    %v4717 = vunpack.c.l.b16 %v4677
    %v4718 = vunpack.c.l.b16 %v4678
    %v4719 = vunpack.c.l.b16 %v4679
    %v4720 = vunpack.c.l.b16 %v4680
    %v4721 = vunpack.c.l.b16 %v4681
    %v4722 = vunpack.c.l.b16 %v4682
    %v4723 = vunpack.c.l.b16 %v4683
    %v4724 = vunpack.c.l.b16 %v4684
    %v4725 = vunpack.c.l.b16 %v4685
    %v4726 = vunpack.c.l.b16 %v4686
    %v4727 = vunpack.c.l.b16 %v4687
    %v4728 = vunpack.c.l.b16 %v4688
    %v4729 = vunpack.c.l.b16 %v4689
    %v4730 = vunpack.c.l.b16 %v4690
    %v4731 = vunpack.c.l.b16 %v4691
    %v4732 = vunpack.c.l.b16 %v4692
    %v4733 = vpack.c.b16 %v4718, %v4717
    %v4734 = vpack.c.b16 %v4720, %v4719
    %v4735 = vpack.c.b16 %v4722, %v4721
    %v4736 = vpack.c.b16 %v4724, %v4723
    %v4737 = vpack.c.b16 %v4726, %v4725
    %v4738 = vpack.c.b16 %v4728, %v4727
    %v4739 = vpack.c.b16 %v4730, %v4729
    %v4740 = vpack.c.b16 %v4732, %v4731
    %4749 = vmatprep.subr.bf16.mxu0 0
    %4750 = vmatpush1.bf16.msra.mxu0 %v4740
    %4751 = vmatprep.subr.bf16.mxu0 0
    %4752 = vmatpush1.bf16.msra.mxu0 %v4739
    %4753 = vmatprep.subr.bf16.mxu0 0
    %4754 = vmatpush1.bf16.msra.mxu0 %v4738
    %4755 = vmatprep.subr.bf16.mxu0 0
    %4756 = vmatpush1.bf16.msra.mxu0 %v4737
    %4757 = vmatprep.subr.bf16.mxu0 0
    %4758 = vmatpush1.bf16.msra.mxu0 %v4736
    %4759 = vmatprep.subr.bf16.mxu0 0
    %4760 = vmatpush1.bf16.msra.mxu0 %v4735
    %4761 = vmatprep.subr.bf16.mxu0 0
    %4762 = vmatpush1.bf16.msra.mxu0 %v4734
    %4763 = vmatprep.subr.bf16.mxu0 0
    %4764 = vmatpush1.bf16.msra.mxu0 %v4733
    %4765 = vmatprep.subr.bf16.mxu0 0
    %4766 = vmatpush2.bf16.msra.mxu0 0
    %4767 = vmatprep.subr.bf16.mxu0 0
    %4768 = vmatpush2.bf16.msra.mxu0 0
    %4769 = vmatprep.subr.bf16.mxu0 0
    %4770 = vmatpush2.bf16.msra.mxu0 0
    %4771 = vmatprep.subr.bf16.mxu0 0
    %4772 = vmatpush2.bf16.msra.mxu0 0
    %4773 = vmatprep.subr.bf16.mxu0 0
    %4774 = vmatpush2.bf16.msra.mxu0 0
    %4775 = vmatprep.subr.bf16.mxu0 0
    %4776 = vmatpush2.bf16.msra.mxu0 0
    %4777 = vmatprep.subr.bf16.mxu0 0
    %4778 = vmatpush2.bf16.msra.mxu0 0
    %4779 = vmatprep.subr.bf16.mxu0 0
    %4780 = vmatpush2.bf16.msra.mxu0 0
    %4781 = vmatprep.mubr.bf16.mxu0 0
    %4782 = vmatmul.mubr.bf16.gmra.mxu0 %v4675
    %v4783 = vpop.f32.mrf.mxu0
    %v4784 = vadd.f32 %v4699, %v4783
    %v4785 = vpop.f32.mrf.mxu0
    %v4786 = vpop.f32.mrf.mxu0
    %v4787 = vadd.f32 %v4699, %v4786
    %v4788 = vpop.f32.mrf.mxu0
    %4789 = vdwg.mxu0
    %v4790 = vadd.f32 %v4539, %v4784
    %v4791 = vadd.f32 %v4540, %v4787
    %s4792 = scalar_lea.vmem %s2, 5
    %v4793 = vld [vmem:[%s4792] sm:$0x1]
    %s4794 = scalar_lea.vmem %s3, 5
    %v4795 = vld [vmem:[%s4794] sm:$0x1]
    %v4797 = vlaneseq
    %v4798 = vshrl.u32 %v4797, 7
    %v4799 = vsub.s32 0, %v4798
    %v4800 = vrot.slane %v4793, %v4799
    %v4802 = vmul.f32 %v2001, %v4800
    %v4803 = vmul.f32 %v2002, %v4800
    %v4805 = vlaneseq
    %v4806 = vshrl.u32 %v4805, 7
    %v4807 = vsub.s32 0, %v4806
    %v4808 = vrot.slane %v4795, %v4807
    %v4810 = vadd.f32 %v4802, %v4808
    %v4811 = vadd.f32 %v4803, %v4808
    %v4812 = vpack.c.bf16 %v4811, %v4810
    %s4813 = scalar_lea.vmem %s4, 80
    %v4814 = vld [vmem:[%s4813] sm:$0xf]
    %v4815 = vld [vmem:[%s4813 + $0x4] sm:$0xf]
    %v4816 = vld [vmem:[%s4813 + $0x8] sm:$0xf]
    %v4817 = vld [vmem:[%s4813 + $0xc] sm:$0xf]
    %s4818 = scalar_lea.vmem %s5, 5
    %v4819 = vld [vmem:[%s4818] sm:$0x1]
    %v4821 = vlaneseq
    %v4822 = vshrl.u32 %v4821, 7
    %v4823 = vsub.s32 0, %v4822
    %v4824 = vrot.slane %v4819, %v4823
    %v4830 = vunpack.c.l.b16 %v4814
    %v4831 = vunpack.c.l.b16 %v4815
    %v4832 = vunpack.c.l.b16 %v4816
    %v4833 = vunpack.c.l.b16 %v4817
    %v4834 = vpack.c.b16 %v4831, %v4830
    %v4835 = vpack.c.b16 %v4833, %v4832
    %v4839 = vsel %vm66, %v4812, 0
    %4841 = vmatprep.subr.bf16.mxu0 0
    %4842 = vmatpush1.bf16.msra.mxu0 0
    %4843 = vmatprep.subr.bf16.mxu0 0
    %4844 = vmatpush1.bf16.msra.mxu0 0
    %4845 = vmatprep.subr.bf16.mxu0 0
    %4846 = vmatpush1.bf16.msra.mxu0 0
    %4847 = vmatprep.subr.bf16.mxu0 0
    %4848 = vmatpush1.bf16.msra.mxu0 0
    %4849 = vmatprep.subr.bf16.mxu0 0
    %4850 = vmatpush1.bf16.msra.mxu0 0
    %4851 = vmatprep.subr.bf16.mxu0 0
    %4852 = vmatpush1.bf16.msra.mxu0 0
    %4853 = vmatprep.subr.bf16.mxu0 0
    %4854 = vmatpush1.bf16.msra.mxu0 %v4835
    %4855 = vmatprep.subr.bf16.mxu0 0
    %4856 = vmatpush1.bf16.msra.mxu0 %v4834
    %4857 = vmatprep.subr.bf16.mxu0 0
    %4858 = vmatpush2.bf16.msra.mxu0 0
    %4859 = vmatprep.subr.bf16.mxu0 0
    %4860 = vmatpush2.bf16.msra.mxu0 0
    %4861 = vmatprep.subr.bf16.mxu0 0
    %4862 = vmatpush2.bf16.msra.mxu0 0
    %4863 = vmatprep.subr.bf16.mxu0 0
    %4864 = vmatpush2.bf16.msra.mxu0 0
    %4865 = vmatprep.subr.bf16.mxu0 0
    %4866 = vmatpush2.bf16.msra.mxu0 0
    %4867 = vmatprep.subr.bf16.mxu0 0
    %4868 = vmatpush2.bf16.msra.mxu0 0
    %4869 = vmatprep.subr.bf16.mxu0 0
    %4870 = vmatpush2.bf16.msra.mxu0 0
    %4871 = vmatprep.subr.bf16.mxu0 0
    %4872 = vmatpush2.bf16.msra.mxu0 0
    %4873 = vmatprep.mubr.bf16.mxu0 0
    %4874 = vmatmul.mubr.bf16.gmra.mxu0 %v4839
    %v4875 = vpop.f32.mrf.mxu0
    %v4876 = vadd.f32 %v4824, %v4875
    %v4877 = vpop.f32.mrf.mxu0
    %v4878 = vpop.f32.mrf.mxu0
    %v4879 = vadd.f32 %v4824, %v4878
    %v4880 = vpop.f32.mrf.mxu0
    %4881 = vdwg.mxu0
    %v4882 = vmul.f32 %v4876, 0.35355338
    %v4883 = vmul.f32 %v4879, 0.35355338
    %v4884 = vpack.c.bf16 %v4883, %v4882
    %v4885 = vpack.c.bf16 %v4879, %v4876
    %4887 = vrot.lane.b32.xlu0 %v4885, 96
    %v4888 = vpop.permute.xlu0 %4887
    %v4890 = vsel %vm185, %v4884, 0
    %v4893 = vsel %vm185, %v4888, 0
    %4895 = vmatprep.subr.bf16.mxu0 0
    %4896 = vmatpush1.bf16.xpose.msra.mxu0 0
    %4897 = vmatprep.subr.bf16.mxu0 0
    %4898 = vmatpush1.bf16.xpose.msra.mxu0 0
    %4899 = vmatprep.subr.bf16.mxu0 0
    %4900 = vmatpush1.bf16.xpose.msra.mxu0 0
    %4901 = vmatprep.subr.bf16.mxu0 0
    %4902 = vmatpush1.bf16.xpose.msra.mxu0 0
    %4903 = vmatprep.subr.bf16.mxu0 0
    %4904 = vmatpush1.bf16.xpose.msra.mxu0 0
    %4905 = vmatprep.subr.bf16.mxu0 0
    %4906 = vmatpush1.bf16.xpose.msra.mxu0 0
    %4907 = vmatprep.subr.bf16.mxu0 0
    %4908 = vmatpush1.bf16.xpose.msra.mxu0 0
    %4909 = vmatprep.subr.bf16.mxu0 0
    %4910 = vmatpush1.bf16.xpose.msra.mxu0 %v4893
    %4911 = vmatprep.subr.bf16.mxu0 0
    %4912 = vmatpush2.bf16.xpose.msra.mxu0 0
    %4913 = vmatprep.subr.bf16.mxu0 0
    %4914 = vmatpush2.bf16.xpose.msra.mxu0 0
    %4915 = vmatprep.subr.bf16.mxu0 0
    %4916 = vmatpush2.bf16.xpose.msra.mxu0 0
    %4917 = vmatprep.subr.bf16.mxu0 0
    %4918 = vmatpush2.bf16.xpose.msra.mxu0 0
    %4919 = vmatprep.subr.bf16.mxu0 0
    %4920 = vmatpush2.bf16.xpose.msra.mxu0 0
    %4921 = vmatprep.subr.bf16.mxu0 0
    %4922 = vmatpush2.bf16.xpose.msra.mxu0 0
    %4923 = vmatprep.subr.bf16.mxu0 0
    %4924 = vmatpush2.bf16.xpose.msra.mxu0 0
    %4925 = vmatprep.subr.bf16.mxu0 0
    %4926 = vmatpush2.bf16.xpose.msra.mxu0 0
    %4927 = vmatprep.mubr.bf16.mxu0 0
    %4928 = vmatmul.mubr.bf16.gmra.mxu0 %v4890
    %v4929 = vpop.f32.mrf.mxu0
    %v4930 = vadd.f32 %v62, %v4929
    %v4931 = vpop.f32.mrf.mxu0
    %v4932 = vpop.f32.mrf.mxu0
    %v4933 = vadd.f32 %v63, %v4932
    %v4934 = vpop.f32.mrf.mxu0
    %4935 = vdwg.mxu0
    %4937 = vrot.lane.b32.xlu0 %v4884, 120
    %v4938 = vpop.permute.xlu0 %4937
    %4939 = vrot.lane.b32.xlu0 %v4885, 88
    %v4940 = vpop.permute.xlu0 %4939
    %v4942 = vsel %vm185, %v4938, 0
    %v4945 = vsel %vm185, %v4940, 0
    %4947 = vmatprep.subr.bf16.mxu0 0
    %4948 = vmatpush1.bf16.xpose.msra.mxu0 0
    %4949 = vmatprep.subr.bf16.mxu0 0
    %4950 = vmatpush1.bf16.xpose.msra.mxu0 0
    %4951 = vmatprep.subr.bf16.mxu0 0
    %4952 = vmatpush1.bf16.xpose.msra.mxu0 0
    %4953 = vmatprep.subr.bf16.mxu0 0
    %4954 = vmatpush1.bf16.xpose.msra.mxu0 0
    %4955 = vmatprep.subr.bf16.mxu0 0
    %4956 = vmatpush1.bf16.xpose.msra.mxu0 0
    %4957 = vmatprep.subr.bf16.mxu0 0
    %4958 = vmatpush1.bf16.xpose.msra.mxu0 0
    %4959 = vmatprep.subr.bf16.mxu0 0
    %4960 = vmatpush1.bf16.xpose.msra.mxu0 0
    %4961 = vmatprep.subr.bf16.mxu0 0
    %4962 = vmatpush1.bf16.xpose.msra.mxu0 %v4945
    %4963 = vmatprep.subr.bf16.mxu0 0
    %4964 = vmatpush2.bf16.xpose.msra.mxu0 0
    %4965 = vmatprep.subr.bf16.mxu0 0
    %4966 = vmatpush2.bf16.xpose.msra.mxu0 0
    %4967 = vmatprep.subr.bf16.mxu0 0
    %4968 = vmatpush2.bf16.xpose.msra.mxu0 0
    %4969 = vmatprep.subr.bf16.mxu0 0
    %4970 = vmatpush2.bf16.xpose.msra.mxu0 0
    %4971 = vmatprep.subr.bf16.mxu0 0
    %4972 = vmatpush2.bf16.xpose.msra.mxu0 0
    %4973 = vmatprep.subr.bf16.mxu0 0
    %4974 = vmatpush2.bf16.xpose.msra.mxu0 0
    %4975 = vmatprep.subr.bf16.mxu0 0
    %4976 = vmatpush2.bf16.xpose.msra.mxu0 0
    %4977 = vmatprep.subr.bf16.mxu0 0
    %4978 = vmatpush2.bf16.xpose.msra.mxu0 0
    %4979 = vmatprep.mubr.bf16.mxu0 0
    %4980 = vmatmul.mubr.bf16.gmra.mxu0 %v4942
    %v4981 = vpop.f32.mrf.mxu0
    %v4982 = vadd.f32 %v62, %v4981
    %v4983 = vpop.f32.mrf.mxu0
    %v4984 = vpop.f32.mrf.mxu0
    %v4985 = vadd.f32 %v63, %v4984
    %v4986 = vpop.f32.mrf.mxu0
    %4987 = vdwg.mxu0
    %4988 = vrot.lane.b32.xlu0 %v4884, 112
    %v4989 = vpop.permute.xlu0 %4988
    %4990 = vrot.lane.b32.xlu0 %v4885, 80
    %v4991 = vpop.permute.xlu0 %4990
    %v4993 = vsel %vm185, %v4989, 0
    %v4996 = vsel %vm185, %v4991, 0
    %4998 = vmatprep.subr.bf16.mxu0 0
    %4999 = vmatpush1.bf16.xpose.msra.mxu0 0
    %5000 = vmatprep.subr.bf16.mxu0 0
    %5001 = vmatpush1.bf16.xpose.msra.mxu0 0
    %5002 = vmatprep.subr.bf16.mxu0 0
    %5003 = vmatpush1.bf16.xpose.msra.mxu0 0
    %5004 = vmatprep.subr.bf16.mxu0 0
    %5005 = vmatpush1.bf16.xpose.msra.mxu0 0
    %5006 = vmatprep.subr.bf16.mxu0 0
    %5007 = vmatpush1.bf16.xpose.msra.mxu0 0
    %5008 = vmatprep.subr.bf16.mxu0 0
    %5009 = vmatpush1.bf16.xpose.msra.mxu0 0
    %5010 = vmatprep.subr.bf16.mxu0 0
    %5011 = vmatpush1.bf16.xpose.msra.mxu0 0
    %5012 = vmatprep.subr.bf16.mxu0 0
    %5013 = vmatpush1.bf16.xpose.msra.mxu0 %v4996
    %5014 = vmatprep.subr.bf16.mxu0 0
    %5015 = vmatpush2.bf16.xpose.msra.mxu0 0
    %5016 = vmatprep.subr.bf16.mxu0 0
    %5017 = vmatpush2.bf16.xpose.msra.mxu0 0
    %5018 = vmatprep.subr.bf16.mxu0 0
    %5019 = vmatpush2.bf16.xpose.msra.mxu0 0
    %5020 = vmatprep.subr.bf16.mxu0 0
    %5021 = vmatpush2.bf16.xpose.msra.mxu0 0
    %5022 = vmatprep.subr.bf16.mxu0 0
    %5023 = vmatpush2.bf16.xpose.msra.mxu0 0
    %5024 = vmatprep.subr.bf16.mxu0 0
    %5025 = vmatpush2.bf16.xpose.msra.mxu0 0
    %5026 = vmatprep.subr.bf16.mxu0 0
    %5027 = vmatpush2.bf16.xpose.msra.mxu0 0
    %5028 = vmatprep.subr.bf16.mxu0 0
    %5029 = vmatpush2.bf16.xpose.msra.mxu0 0
    %5030 = vmatprep.mubr.bf16.mxu0 0
    %5031 = vmatmul.mubr.bf16.gmra.mxu0 %v4993
    %v5032 = vpop.f32.mrf.mxu0
    %v5033 = vadd.f32 %v62, %v5032
    %v5034 = vpop.f32.mrf.mxu0
    %v5035 = vpop.f32.mrf.mxu0
    %v5036 = vadd.f32 %v63, %v5035
    %v5037 = vpop.f32.mrf.mxu0
    %5038 = vdwg.mxu0
    %5039 = vrot.lane.b32.xlu0 %v4884, 104
    %v5040 = vpop.permute.xlu0 %5039
    %5041 = vrot.lane.b32.xlu0 %v4885, 72
    %v5042 = vpop.permute.xlu0 %5041
    %v5044 = vsel %vm185, %v5040, 0
    %v5047 = vsel %vm185, %v5042, 0
    %5049 = vmatprep.subr.bf16.mxu0 0
    %5050 = vmatpush1.bf16.xpose.msra.mxu0 0
    %5051 = vmatprep.subr.bf16.mxu0 0
    %5052 = vmatpush1.bf16.xpose.msra.mxu0 0
    %5053 = vmatprep.subr.bf16.mxu0 0
    %5054 = vmatpush1.bf16.xpose.msra.mxu0 0
    %5055 = vmatprep.subr.bf16.mxu0 0
    %5056 = vmatpush1.bf16.xpose.msra.mxu0 0
    %5057 = vmatprep.subr.bf16.mxu0 0
    %5058 = vmatpush1.bf16.xpose.msra.mxu0 0
    %5059 = vmatprep.subr.bf16.mxu0 0
    %5060 = vmatpush1.bf16.xpose.msra.mxu0 0
    %5061 = vmatprep.subr.bf16.mxu0 0
    %5062 = vmatpush1.bf16.xpose.msra.mxu0 0
    %5063 = vmatprep.subr.bf16.mxu0 0
    %5064 = vmatpush1.bf16.xpose.msra.mxu0 %v5047
    %5065 = vmatprep.subr.bf16.mxu0 0
    %5066 = vmatpush2.bf16.xpose.msra.mxu0 0
    %5067 = vmatprep.subr.bf16.mxu0 0
    %5068 = vmatpush2.bf16.xpose.msra.mxu0 0
    %5069 = vmatprep.subr.bf16.mxu0 0
    %5070 = vmatpush2.bf16.xpose.msra.mxu0 0
    %5071 = vmatprep.subr.bf16.mxu0 0
    %5072 = vmatpush2.bf16.xpose.msra.mxu0 0
    %5073 = vmatprep.subr.bf16.mxu0 0
    %5074 = vmatpush2.bf16.xpose.msra.mxu0 0
    %5075 = vmatprep.subr.bf16.mxu0 0
    %5076 = vmatpush2.bf16.xpose.msra.mxu0 0
    %5077 = vmatprep.subr.bf16.mxu0 0
    %5078 = vmatpush2.bf16.xpose.msra.mxu0 0
    %5079 = vmatprep.subr.bf16.mxu0 0
    %5080 = vmatpush2.bf16.xpose.msra.mxu0 0
    %5081 = vmatprep.mubr.bf16.mxu0 0
    %5082 = vmatmul.mubr.bf16.gmra.mxu0 %v5044
    %v5083 = vpop.f32.mrf.mxu0
    %v5084 = vadd.f32 %v62, %v5083
    %v5085 = vpop.f32.mrf.mxu0
    %v5086 = vpop.f32.mrf.mxu0
    %v5087 = vadd.f32 %v63, %v5086
    %v5088 = vpop.f32.mrf.mxu0
    %5089 = vdwg.mxu0
    %v5090 = vsel %vm387, %v4930, -inf
    %5091 = vmax.xlane.f32.xlu0 %v5090
    %v5092 = vpop.xlane.xlu0 %5091
    %v5093 = vsel %vm387, %v4933, -inf
    %5094 = vmax.xlane.f32.xlu0 %v5093
    %v5095 = vpop.xlane.xlu0 %5094
    %v5096 = vsel %vm387, %v4982, -inf
    %5097 = vmax.xlane.f32.xlu0 %v5096
    %v5098 = vpop.xlane.xlu0 %5097
    %v5099 = vsel %vm387, %v4985, -inf
    %5100 = vmax.xlane.f32.xlu0 %v5099
    %v5101 = vpop.xlane.xlu0 %5100
    %v5102 = vsel %vm387, %v5033, -inf
    %5103 = vmax.xlane.f32.xlu0 %v5102
    %v5104 = vpop.xlane.xlu0 %5103
    %v5105 = vsel %vm387, %v5036, -inf
    %5106 = vmax.xlane.f32.xlu0 %v5105
    %v5107 = vpop.xlane.xlu0 %5106
    %v5108 = vsel %vm387, %v5084, -inf
    %5109 = vmax.xlane.f32.xlu0 %v5108
    %v5110 = vpop.xlane.xlu0 %5109
    %v5111 = vsel %vm387, %v5087, -inf
    %5112 = vmax.xlane.f32.xlu0 %v5111
    %v5113 = vpop.xlane.xlu0 %5112
    %v5114 = vsub.f32 %v4930, %v5092
    %v5115 = vsub.f32 %v4933, %v5095
    %v5116 = vsub.f32 %v4982, %v5098
    %v5117 = vsub.f32 %v4985, %v5101
    %v5118 = vsub.f32 %v5033, %v5104
    %v5119 = vsub.f32 %v5036, %v5107
    %v5120 = vsub.f32 %v5084, %v5110
    %v5121 = vsub.f32 %v5087, %v5113
    %v5122 = vmul.f32 %v5114, 1.442695
    %v5123 = vpow.pop %v5122
    %v5124 = vmul.f32 %v5115, 1.442695
    %v5125 = vpow.pop %v5124
    %v5126 = vmul.f32 %v5116, 1.442695
    %v5127 = vpow.pop %v5126
    %v5128 = vmul.f32 %v5117, 1.442695
    %v5129 = vpow.pop %v5128
    %v5130 = vmul.f32 %v5118, 1.442695
    %v5131 = vpow.pop %v5130
    %v5132 = vmul.f32 %v5119, 1.442695
    %v5133 = vpow.pop %v5132
    %v5134 = vmul.f32 %v5120, 1.442695
    %v5135 = vpow.pop %v5134
    %v5136 = vmul.f32 %v5121, 1.442695
    %v5137 = vpow.pop %v5136
    %v5138 = vsel %vm387, %v5123, 0.0
    %5139 = vadd.xlane.f32.xlu0 %v5138
    %v5140 = vpop.xlane.xlu0 %5139
    %v5141 = vsel %vm387, %v5125, 0.0
    %5142 = vadd.xlane.f32.xlu0 %v5141
    %v5143 = vpop.xlane.xlu0 %5142
    %v5144 = vsel %vm387, %v5127, 0.0
    %5145 = vadd.xlane.f32.xlu0 %v5144
    %v5146 = vpop.xlane.xlu0 %5145
    %v5147 = vsel %vm387, %v5129, 0.0
    %5148 = vadd.xlane.f32.xlu0 %v5147
    %v5149 = vpop.xlane.xlu0 %5148
    %v5150 = vsel %vm387, %v5131, 0.0
    %5151 = vadd.xlane.f32.xlu0 %v5150
    %v5152 = vpop.xlane.xlu0 %5151
    %v5153 = vsel %vm387, %v5133, 0.0
    %5154 = vadd.xlane.f32.xlu0 %v5153
    %v5155 = vpop.xlane.xlu0 %5154
    %v5156 = vsel %vm387, %v5135, 0.0
    %5157 = vadd.xlane.f32.xlu0 %v5156
    %v5158 = vpop.xlane.xlu0 %5157
    %v5159 = vsel %vm387, %v5137, 0.0
    %5160 = vadd.xlane.f32.xlu0 %v5159
    %v5161 = vpop.xlane.xlu0 %5160
    %v5162 = vrcp.pop %v5140
    %v5163 = vrcp.pop %v5143
    %v5164 = vrcp.pop %v5146
    %v5165 = vrcp.pop %v5149
    %v5166 = vrcp.pop %v5152
    %v5167 = vrcp.pop %v5155
    %v5168 = vrcp.pop %v5158
    %v5169 = vrcp.pop %v5161
    %v5170 = vpack.c.bf16 %v5125, %v5123
    %5171 = vrot.lane.b32.xlu0 %v4885, 64
    %v5172 = vpop.permute.xlu0 %5171
    %v5175 = vsel %vm387, %v5170, 0
    %5177 = vmatprep.subr.bf16.mxu0 0
    %5178 = vmatpush1.bf16.msra.mxu0 0
    %5179 = vmatprep.subr.bf16.mxu0 0
    %5180 = vmatpush1.bf16.msra.mxu0 0
    %5181 = vmatprep.subr.bf16.mxu0 0
    %5182 = vmatpush1.bf16.msra.mxu0 0
    %5183 = vmatprep.subr.bf16.mxu0 0
    %5184 = vmatpush1.bf16.msra.mxu0 0
    %5185 = vmatprep.subr.bf16.mxu0 0
    %5186 = vmatpush1.bf16.msra.mxu0 0
    %5187 = vmatprep.subr.bf16.mxu0 0
    %5188 = vmatpush1.bf16.msra.mxu0 0
    %5189 = vmatprep.subr.bf16.mxu0 0
    %5190 = vmatpush1.bf16.msra.mxu0 0
    %5191 = vmatprep.subr.bf16.mxu0 0
    %5192 = vmatpush1.bf16.msra.mxu0 %v5172
    %5193 = vmatprep.subr.bf16.mxu0 0
    %5194 = vmatpush2.bf16.msra.mxu0 0
    %5195 = vmatprep.subr.bf16.mxu0 0
    %5196 = vmatpush2.bf16.msra.mxu0 0
    %5197 = vmatprep.subr.bf16.mxu0 0
    %5198 = vmatpush2.bf16.msra.mxu0 0
    %5199 = vmatprep.subr.bf16.mxu0 0
    %5200 = vmatpush2.bf16.msra.mxu0 0
    %5201 = vmatprep.subr.bf16.mxu0 0
    %5202 = vmatpush2.bf16.msra.mxu0 0
    %5203 = vmatprep.subr.bf16.mxu0 0
    %5204 = vmatpush2.bf16.msra.mxu0 0
    %5205 = vmatprep.subr.bf16.mxu0 0
    %5206 = vmatpush2.bf16.msra.mxu0 0
    %5207 = vmatprep.subr.bf16.mxu0 0
    %5208 = vmatpush2.bf16.msra.mxu0 0
    %5209 = vmatprep.mubr.bf16.mxu0 0
    %5210 = vmatmul.mubr.bf16.gmra.mxu0 %v5175
    %v5211 = vpop.f32.mrf.mxu0
    %v5212 = vadd.f32 0.0, %v5211
    %v5213 = vpop.f32.mrf.mxu0
    %v5214 = vpop.f32.mrf.mxu0
    %v5215 = vadd.f32 0.0, %v5214
    %v5216 = vpop.f32.mrf.mxu0
    %5217 = vdwg.mxu0
    %v5218 = vmul.f32 %v5212, %v5162
    %v5219 = vmul.f32 %v5215, %v5163
    %v5220 = vpack.c.bf16 %v5129, %v5127
    %5221 = vrot.lane.b32.xlu0 %v4885, 56
    %v5222 = vpop.permute.xlu0 %5221
    %v5225 = vsel %vm387, %v5220, 0
    %5227 = vmatprep.subr.bf16.mxu0 0
    %5228 = vmatpush1.bf16.msra.mxu0 0
    %5229 = vmatprep.subr.bf16.mxu0 0
    %5230 = vmatpush1.bf16.msra.mxu0 0
    %5231 = vmatprep.subr.bf16.mxu0 0
    %5232 = vmatpush1.bf16.msra.mxu0 0
    %5233 = vmatprep.subr.bf16.mxu0 0
    %5234 = vmatpush1.bf16.msra.mxu0 0
    %5235 = vmatprep.subr.bf16.mxu0 0
    %5236 = vmatpush1.bf16.msra.mxu0 0
    %5237 = vmatprep.subr.bf16.mxu0 0
    %5238 = vmatpush1.bf16.msra.mxu0 0
    %5239 = vmatprep.subr.bf16.mxu0 0
    %5240 = vmatpush1.bf16.msra.mxu0 0
    %5241 = vmatprep.subr.bf16.mxu0 0
    %5242 = vmatpush1.bf16.msra.mxu0 %v5222
    %5243 = vmatprep.subr.bf16.mxu0 0
    %5244 = vmatpush2.bf16.msra.mxu0 0
    %5245 = vmatprep.subr.bf16.mxu0 0
    %5246 = vmatpush2.bf16.msra.mxu0 0
    %5247 = vmatprep.subr.bf16.mxu0 0
    %5248 = vmatpush2.bf16.msra.mxu0 0
    %5249 = vmatprep.subr.bf16.mxu0 0
    %5250 = vmatpush2.bf16.msra.mxu0 0
    %5251 = vmatprep.subr.bf16.mxu0 0
    %5252 = vmatpush2.bf16.msra.mxu0 0
    %5253 = vmatprep.subr.bf16.mxu0 0
    %5254 = vmatpush2.bf16.msra.mxu0 0
    %5255 = vmatprep.subr.bf16.mxu0 0
    %5256 = vmatpush2.bf16.msra.mxu0 0
    %5257 = vmatprep.subr.bf16.mxu0 0
    %5258 = vmatpush2.bf16.msra.mxu0 0
    %5259 = vmatprep.mubr.bf16.mxu0 0
    %5260 = vmatmul.mubr.bf16.gmra.mxu0 %v5225
    %v5261 = vpop.f32.mrf.mxu0
    %v5262 = vadd.f32 0.0, %v5261
    %v5263 = vpop.f32.mrf.mxu0
    %v5264 = vpop.f32.mrf.mxu0
    %v5265 = vadd.f32 0.0, %v5264
    %v5266 = vpop.f32.mrf.mxu0
    %5267 = vdwg.mxu0
    %v5268 = vmul.f32 %v5262, %v5164
    %v5269 = vmul.f32 %v5265, %v5165
    %v5270 = vpack.c.bf16 %v5133, %v5131
    %5271 = vrot.lane.b32.xlu0 %v4885, 48
    %v5272 = vpop.permute.xlu0 %5271
    %v5275 = vsel %vm387, %v5270, 0
    %5277 = vmatprep.subr.bf16.mxu0 0
    %5278 = vmatpush1.bf16.msra.mxu0 0
    %5279 = vmatprep.subr.bf16.mxu0 0
    %5280 = vmatpush1.bf16.msra.mxu0 0
    %5281 = vmatprep.subr.bf16.mxu0 0
    %5282 = vmatpush1.bf16.msra.mxu0 0
    %5283 = vmatprep.subr.bf16.mxu0 0
    %5284 = vmatpush1.bf16.msra.mxu0 0
    %5285 = vmatprep.subr.bf16.mxu0 0
    %5286 = vmatpush1.bf16.msra.mxu0 0
    %5287 = vmatprep.subr.bf16.mxu0 0
    %5288 = vmatpush1.bf16.msra.mxu0 0
    %5289 = vmatprep.subr.bf16.mxu0 0
    %5290 = vmatpush1.bf16.msra.mxu0 0
    %5291 = vmatprep.subr.bf16.mxu0 0
    %5292 = vmatpush1.bf16.msra.mxu0 %v5272
    %5293 = vmatprep.subr.bf16.mxu0 0
    %5294 = vmatpush2.bf16.msra.mxu0 0
    %5295 = vmatprep.subr.bf16.mxu0 0
    %5296 = vmatpush2.bf16.msra.mxu0 0
    %5297 = vmatprep.subr.bf16.mxu0 0
    %5298 = vmatpush2.bf16.msra.mxu0 0
    %5299 = vmatprep.subr.bf16.mxu0 0
    %5300 = vmatpush2.bf16.msra.mxu0 0
    %5301 = vmatprep.subr.bf16.mxu0 0
    %5302 = vmatpush2.bf16.msra.mxu0 0
    %5303 = vmatprep.subr.bf16.mxu0 0
    %5304 = vmatpush2.bf16.msra.mxu0 0
    %5305 = vmatprep.subr.bf16.mxu0 0
    %5306 = vmatpush2.bf16.msra.mxu0 0
    %5307 = vmatprep.subr.bf16.mxu0 0
    %5308 = vmatpush2.bf16.msra.mxu0 0
    %5309 = vmatprep.mubr.bf16.mxu0 0
    %5310 = vmatmul.mubr.bf16.gmra.mxu0 %v5275
    %v5311 = vpop.f32.mrf.mxu0
    %v5312 = vadd.f32 0.0, %v5311
    %v5313 = vpop.f32.mrf.mxu0
    %v5314 = vpop.f32.mrf.mxu0
    %v5315 = vadd.f32 0.0, %v5314
    %v5316 = vpop.f32.mrf.mxu0
    %5317 = vdwg.mxu0
    %v5318 = vmul.f32 %v5312, %v5166
    %v5319 = vmul.f32 %v5315, %v5167
    %v5320 = vpack.c.bf16 %v5137, %v5135
    %5321 = vrot.lane.b32.xlu0 %v4885, 40
    %v5322 = vpop.permute.xlu0 %5321
    %v5325 = vsel %vm387, %v5320, 0
    %5327 = vmatprep.subr.bf16.mxu0 0
    %5328 = vmatpush1.bf16.msra.mxu0 0
    %5329 = vmatprep.subr.bf16.mxu0 0
    %5330 = vmatpush1.bf16.msra.mxu0 0
    %5331 = vmatprep.subr.bf16.mxu0 0
    %5332 = vmatpush1.bf16.msra.mxu0 0
    %5333 = vmatprep.subr.bf16.mxu0 0
    %5334 = vmatpush1.bf16.msra.mxu0 0
    %5335 = vmatprep.subr.bf16.mxu0 0
    %5336 = vmatpush1.bf16.msra.mxu0 0
    %5337 = vmatprep.subr.bf16.mxu0 0
    %5338 = vmatpush1.bf16.msra.mxu0 0
    %5339 = vmatprep.subr.bf16.mxu0 0
    %5340 = vmatpush1.bf16.msra.mxu0 0
    %5341 = vmatprep.subr.bf16.mxu0 0
    %5342 = vmatpush1.bf16.msra.mxu0 %v5322
    %5343 = vmatprep.subr.bf16.mxu0 0
    %5344 = vmatpush2.bf16.msra.mxu0 0
    %5345 = vmatprep.subr.bf16.mxu0 0
    %5346 = vmatpush2.bf16.msra.mxu0 0
    %5347 = vmatprep.subr.bf16.mxu0 0
    %5348 = vmatpush2.bf16.msra.mxu0 0
    %5349 = vmatprep.subr.bf16.mxu0 0
    %5350 = vmatpush2.bf16.msra.mxu0 0
    %5351 = vmatprep.subr.bf16.mxu0 0
    %5352 = vmatpush2.bf16.msra.mxu0 0
    %5353 = vmatprep.subr.bf16.mxu0 0
    %5354 = vmatpush2.bf16.msra.mxu0 0
    %5355 = vmatprep.subr.bf16.mxu0 0
    %5356 = vmatpush2.bf16.msra.mxu0 0
    %5357 = vmatprep.subr.bf16.mxu0 0
    %5358 = vmatpush2.bf16.msra.mxu0 0
    %5359 = vmatprep.mubr.bf16.mxu0 0
    %5360 = vmatmul.mubr.bf16.gmra.mxu0 %v5325
    %v5361 = vpop.f32.mrf.mxu0
    %v5362 = vadd.f32 0.0, %v5361
    %v5363 = vpop.f32.mrf.mxu0
    %v5364 = vpop.f32.mrf.mxu0
    %v5365 = vadd.f32 0.0, %v5364
    %v5366 = vpop.f32.mrf.mxu0
    %5367 = vdwg.mxu0
    %v5368 = vmul.f32 %v5362, %v5168
    %v5369 = vmul.f32 %v5365, %v5169
    %5372 = vrot.lane.b32.xlu0 %v5268, 8
    %v5373 = vpop.permute.xlu0 %5372
    %5374 = vrot.lane.b32.xlu0 %v5269, 8
    %v5375 = vpop.permute.xlu0 %5374
    %5380 = vrot.lane.b32.xlu0 %v5318, 16
    %v5381 = vpop.permute.xlu0 %5380
    %5382 = vrot.lane.b32.xlu0 %v5319, 16
    %v5383 = vpop.permute.xlu0 %5382
    %5388 = vrot.lane.b32.xlu0 %v5368, 24
    %v5389 = vpop.permute.xlu0 %5388
    %5390 = vrot.lane.b32.xlu0 %v5369, 24
    %v5391 = vpop.permute.xlu0 %5390
    %v5394 = vsel %vm185, %v5218, %v5373
    %v5395 = vsel %vm185, %v5219, %v5375
    %v5396 = vsel %vm387, %v5394, %v5381
    %v5397 = vsel %vm387, %v5395, %v5383
    %v5398 = vsel %vm696, %v5396, %v5389
    %v5399 = vsel %vm696, %v5397, %v5391
    %v5400 = vpack.c.bf16 %v5399, %v5398
    %s5401 = scalar_lea.vmem %s6, 80
    %v5402 = vld [vmem:[%s5401] sm:$0xf]
    %v5403 = vld [vmem:[%s5401 + $0x4] sm:$0xf]
    %v5404 = vld [vmem:[%s5401 + $0x8] sm:$0xf]
    %v5405 = vld [vmem:[%s5401 + $0xc] sm:$0xf]
    %s5406 = scalar_lea.vmem %s7, 5
    %v5407 = vld [vmem:[%s5406] sm:$0x1]
    %v5409 = vlaneseq
    %v5410 = vshrl.u32 %v5409, 7
    %v5411 = vsub.s32 0, %v5410
    %v5412 = vrot.slane %v5407, %v5411
    %v5418 = vunpack.c.l.b16 %v5402
    %v5419 = vunpack.c.l.b16 %v5403
    %v5420 = vunpack.c.l.b16 %v5404
    %v5421 = vunpack.c.l.b16 %v5405
    %v5422 = vpack.c.b16 %v5419, %v5418
    %v5423 = vpack.c.b16 %v5421, %v5420
    %v5427 = vsel %vm66, %v5400, 0
    %5429 = vmatprep.subr.bf16.mxu0 0
    %5430 = vmatpush1.bf16.msra.mxu0 0
    %5431 = vmatprep.subr.bf16.mxu0 0
    %5432 = vmatpush1.bf16.msra.mxu0 0
    %5433 = vmatprep.subr.bf16.mxu0 0
    %5434 = vmatpush1.bf16.msra.mxu0 0
    %5435 = vmatprep.subr.bf16.mxu0 0
    %5436 = vmatpush1.bf16.msra.mxu0 0
    %5437 = vmatprep.subr.bf16.mxu0 0
    %5438 = vmatpush1.bf16.msra.mxu0 0
    %5439 = vmatprep.subr.bf16.mxu0 0
    %5440 = vmatpush1.bf16.msra.mxu0 0
    %5441 = vmatprep.subr.bf16.mxu0 0
    %5442 = vmatpush1.bf16.msra.mxu0 %v5423
    %5443 = vmatprep.subr.bf16.mxu0 0
    %5444 = vmatpush1.bf16.msra.mxu0 %v5422
    %5445 = vmatprep.subr.bf16.mxu0 0
    %5446 = vmatpush2.bf16.msra.mxu0 0
    %5447 = vmatprep.subr.bf16.mxu0 0
    %5448 = vmatpush2.bf16.msra.mxu0 0
    %5449 = vmatprep.subr.bf16.mxu0 0
    %5450 = vmatpush2.bf16.msra.mxu0 0
    %5451 = vmatprep.subr.bf16.mxu0 0
    %5452 = vmatpush2.bf16.msra.mxu0 0
    %5453 = vmatprep.subr.bf16.mxu0 0
    %5454 = vmatpush2.bf16.msra.mxu0 0
    %5455 = vmatprep.subr.bf16.mxu0 0
    %5456 = vmatpush2.bf16.msra.mxu0 0
    %5457 = vmatprep.subr.bf16.mxu0 0
    %5458 = vmatpush2.bf16.msra.mxu0 0
    %5459 = vmatprep.subr.bf16.mxu0 0
    %5460 = vmatpush2.bf16.msra.mxu0 0
    %5461 = vmatprep.mubr.bf16.mxu0 0
    %5462 = vmatmul.mubr.bf16.gmra.mxu0 %v5427
    %v5463 = vpop.f32.mrf.mxu0
    %v5464 = vadd.f32 %v5412, %v5463
    %v5465 = vpop.f32.mrf.mxu0
    %v5466 = vpop.f32.mrf.mxu0
    %v5467 = vadd.f32 %v5412, %v5466
    %v5468 = vpop.f32.mrf.mxu0
    %5469 = vdwg.mxu0
    %v5470 = vadd.f32 %v1969, %v5464
    %v5471 = vadd.f32 %v1970, %v5467
    %s5472 = scalar_lea.vmem %s8, 5
    %v5473 = vld [vmem:[%s5472] sm:$0x1]
    %s5474 = scalar_lea.vmem %s9, 5
    %v5475 = vld [vmem:[%s5474] sm:$0x1]
    %v5476 = vsel %vm66, %v5470, 0.0
    %5477 = vadd.xlane.f32.xlu0 %v5476
    %v5478 = vpop.xlane.xlu0 %5477
    %v5479 = vsel %vm66, %v5471, 0.0
    %5480 = vadd.xlane.f32.xlu0 %v5479
    %v5481 = vpop.xlane.xlu0 %5480
    %v5482 = vmul.f32 %v5478, %v73
    %v5483 = vmul.f32 %v5481, %v73
    %v5484 = vsub.f32 %v5470, %v5482
    %v5485 = vsub.f32 %v5471, %v5483
    %v5486 = vmul.f32 %v5484, %v5484
    %v5487 = vmul.f32 %v5485, %v5485
    %v5488 = vsel %vm66, %v5486, 0.0
    %5489 = vadd.xlane.f32.xlu0 %v5488
    %v5490 = vpop.xlane.xlu0 %5489
    %v5491 = vsel %vm66, %v5487, 0.0
    %5492 = vadd.xlane.f32.xlu0 %v5491
    %v5493 = vpop.xlane.xlu0 %5492
    %v5494 = vmul.f32 %v5490, %v73
    %v5495 = vmul.f32 %v5493, %v73
    %v5496 = vadd.f32 %v5494, 1e-05
    %v5497 = vadd.f32 %v5495, 1e-05
    %v5498 = vrsqrt.pop %v5496
    %v5499 = vrsqrt.pop %v5497
    %v5500 = vmul.f32 %v5484, %v5498
    %v5501 = vmul.f32 %v5485, %v5499
    %v5503 = vlaneseq
    %v5504 = vshrl.u32 %v5503, 7
    %v5505 = vsub.s32 0, %v5504
    %v5506 = vrot.slane %v5473, %v5505
    %v5508 = vmul.f32 %v5500, %v5506
    %v5509 = vmul.f32 %v5501, %v5506
    %v5511 = vlaneseq
    %v5512 = vshrl.u32 %v5511, 7
    %v5513 = vsub.s32 0, %v5512
    %v5514 = vrot.slane %v5475, %v5513
    %v5516 = vadd.f32 %v5508, %v5514
    %v5517 = vadd.f32 %v5509, %v5514
    %v5518 = vpack.c.bf16 %v5517, %v5516
    %s5519 = scalar_lea.vmem %s10, 80
    %v5520 = vld [vmem:[%s5519] sm:$0xf]
    %v5521 = vld [vmem:[%s5519 + $0x4] sm:$0xf]
    %v5522 = vld [vmem:[%s5519 + $0x8] sm:$0xf]
    %v5523 = vld [vmem:[%s5519 + $0xc] sm:$0xf]
    %s5524 = scalar_lea.vmem %s11, 5
    %v5525 = vld [vmem:[%s5524] sm:$0x1]
    %v5527 = vlaneseq
    %v5528 = vshrl.u32 %v5527, 7
    %v5529 = vsub.s32 0, %v5528
    %v5530 = vrot.slane %v5525, %v5529
    %v5536 = vunpack.c.l.b16 %v5520
    %v5537 = vunpack.c.l.b16 %v5521
    %v5538 = vunpack.c.l.b16 %v5522
    %v5539 = vunpack.c.l.b16 %v5523
    %v5540 = vpack.c.b16 %v5537, %v5536
    %v5541 = vpack.c.b16 %v5539, %v5538
    %v5545 = vsel %vm66, %v5518, 0
    %5547 = vmatprep.subr.bf16.mxu0 0
    %5548 = vmatpush1.bf16.msra.mxu0 0
    %5549 = vmatprep.subr.bf16.mxu0 0
    %5550 = vmatpush1.bf16.msra.mxu0 0
    %5551 = vmatprep.subr.bf16.mxu0 0
    %5552 = vmatpush1.bf16.msra.mxu0 0
    %5553 = vmatprep.subr.bf16.mxu0 0
    %5554 = vmatpush1.bf16.msra.mxu0 0
    %5555 = vmatprep.subr.bf16.mxu0 0
    %5556 = vmatpush1.bf16.msra.mxu0 0
    %5557 = vmatprep.subr.bf16.mxu0 0
    %5558 = vmatpush1.bf16.msra.mxu0 0
    %5559 = vmatprep.subr.bf16.mxu0 0
    %5560 = vmatpush1.bf16.msra.mxu0 %v5541
    %5561 = vmatprep.subr.bf16.mxu0 0
    %5562 = vmatpush1.bf16.msra.mxu0 %v5540
    %5563 = vmatprep.subr.bf16.mxu0 0
    %5564 = vmatpush2.bf16.msra.mxu0 0
    %5565 = vmatprep.subr.bf16.mxu0 0
    %5566 = vmatpush2.bf16.msra.mxu0 0
    %5567 = vmatprep.subr.bf16.mxu0 0
    %5568 = vmatpush2.bf16.msra.mxu0 0
    %5569 = vmatprep.subr.bf16.mxu0 0
    %5570 = vmatpush2.bf16.msra.mxu0 0
    %5571 = vmatprep.subr.bf16.mxu0 0
    %5572 = vmatpush2.bf16.msra.mxu0 0
    %5573 = vmatprep.subr.bf16.mxu0 0
    %5574 = vmatpush2.bf16.msra.mxu0 0
    %5575 = vmatprep.subr.bf16.mxu0 0
    %5576 = vmatpush2.bf16.msra.mxu0 0
    %5577 = vmatprep.subr.bf16.mxu0 0
    %5578 = vmatpush2.bf16.msra.mxu0 0
    %5579 = vmatprep.mubr.bf16.mxu0 0
    %5580 = vmatmul.mubr.bf16.gmra.mxu0 %v5545
    %v5581 = vpop.f32.mrf.mxu0
    %v5582 = vadd.f32 %v5530, %v5581
    %v5583 = vpop.f32.mrf.mxu0
    %v5584 = vpop.f32.mrf.mxu0
    %v5585 = vadd.f32 %v5530, %v5584
    %v5586 = vpop.f32.mrf.mxu0
    %5587 = vdwg.mxu0
    %v5588 = vmul.f32 %v5582, 0.5
    %v5589 = vmul.f32 %v5585, 0.5
    %v5590 = vmul.f32 %v5582, 0.044715
    %v5591 = vmul.f32 %v5585, 0.044715
    %v5592 = vmul.f32 %v5590, %v5582
    %v5593 = vmul.f32 %v5591, %v5585
    %v5594 = vmul.f32 %v5592, %v5582
    %v5595 = vmul.f32 %v5593, %v5585
    %v5596 = vadd.f32 %v5582, %v5594
    %v5597 = vadd.f32 %v5585, %v5595
    %v5598 = vmul.f32 %v5596, 0.7978846
    %v5599 = vmul.f32 %v5597, 0.7978846
    %v5600 = vtanh.pop %v5598
    %v5601 = vtanh.pop %v5599
    %v5602 = vadd.f32 %v5600, 1.0
    %v5603 = vadd.f32 %v5601, 1.0
    %v5604 = vmul.f32 %v5588, %v5602
    %v5605 = vmul.f32 %v5589, %v5603
    %v5606 = vpack.c.bf16 %v5605, %v5604
    %s5607 = scalar_lea.vmem %s12, 320
    %v5608 = vld [vmem:[%s5607] sm:$0xf]
    %v5609 = vld [vmem:[%s5607 + $0x4] sm:$0xf]
    %v5610 = vld [vmem:[%s5607 + $0x8] sm:$0xf]
    %v5611 = vld [vmem:[%s5607 + $0xc] sm:$0xf]
    %v5612 = vld [vmem:[%s5607 + $0x10] sm:$0xf]
    %v5613 = vld [vmem:[%s5607 + $0x14] sm:$0xf]
    %v5614 = vld [vmem:[%s5607 + $0x18] sm:$0xf]
    %v5615 = vld [vmem:[%s5607 + $0x1c] sm:$0xf]
    %v5616 = vld [vmem:[%s5607 + $0x20] sm:$0xf]
    %v5617 = vld [vmem:[%s5607 + $0x24] sm:$0xf]
    %v5618 = vld [vmem:[%s5607 + $0x28] sm:$0xf]
    %v5619 = vld [vmem:[%s5607 + $0x2c] sm:$0xf]
    %v5620 = vld [vmem:[%s5607 + $0x30] sm:$0xf]
    %v5621 = vld [vmem:[%s5607 + $0x34] sm:$0xf]
    %v5622 = vld [vmem:[%s5607 + $0x38] sm:$0xf]
    %v5623 = vld [vmem:[%s5607 + $0x3c] sm:$0xf]
    %s5624 = scalar_lea.vmem %s13, 5
    %v5625 = vld [vmem:[%s5624] sm:$0x1]
    %v5627 = vlaneseq
    %v5628 = vshrl.u32 %v5627, 7
    %v5629 = vsub.s32 0, %v5628
    %v5630 = vrot.slane %v5625, %v5629
    %v5648 = vunpack.c.l.b16 %v5608
    %v5649 = vunpack.c.l.b16 %v5609
    %v5650 = vunpack.c.l.b16 %v5610
    %v5651 = vunpack.c.l.b16 %v5611
    %v5652 = vunpack.c.l.b16 %v5612
    %v5653 = vunpack.c.l.b16 %v5613
    %v5654 = vunpack.c.l.b16 %v5614
    %v5655 = vunpack.c.l.b16 %v5615
    %v5656 = vunpack.c.l.b16 %v5616
    %v5657 = vunpack.c.l.b16 %v5617
    %v5658 = vunpack.c.l.b16 %v5618
    %v5659 = vunpack.c.l.b16 %v5619
    %v5660 = vunpack.c.l.b16 %v5620
    %v5661 = vunpack.c.l.b16 %v5621
    %v5662 = vunpack.c.l.b16 %v5622
    %v5663 = vunpack.c.l.b16 %v5623
    %v5664 = vpack.c.b16 %v5649, %v5648
    %v5665 = vpack.c.b16 %v5651, %v5650
    %v5666 = vpack.c.b16 %v5653, %v5652
    %v5667 = vpack.c.b16 %v5655, %v5654
    %v5668 = vpack.c.b16 %v5657, %v5656
    %v5669 = vpack.c.b16 %v5659, %v5658
    %v5670 = vpack.c.b16 %v5661, %v5660
    %v5671 = vpack.c.b16 %v5663, %v5662
    %5680 = vmatprep.subr.bf16.mxu0 0
    %5681 = vmatpush1.bf16.msra.mxu0 %v5671
    %5682 = vmatprep.subr.bf16.mxu0 0
    %5683 = vmatpush1.bf16.msra.mxu0 %v5670
    %5684 = vmatprep.subr.bf16.mxu0 0
    %5685 = vmatpush1.bf16.msra.mxu0 %v5669
    %5686 = vmatprep.subr.bf16.mxu0 0
    %5687 = vmatpush1.bf16.msra.mxu0 %v5668
    %5688 = vmatprep.subr.bf16.mxu0 0
    %5689 = vmatpush1.bf16.msra.mxu0 %v5667
    %5690 = vmatprep.subr.bf16.mxu0 0
    %5691 = vmatpush1.bf16.msra.mxu0 %v5666
    %5692 = vmatprep.subr.bf16.mxu0 0
    %5693 = vmatpush1.bf16.msra.mxu0 %v5665
    %5694 = vmatprep.subr.bf16.mxu0 0
    %5695 = vmatpush1.bf16.msra.mxu0 %v5664
    %5696 = vmatprep.subr.bf16.mxu0 0
    %5697 = vmatpush2.bf16.msra.mxu0 0
    %5698 = vmatprep.subr.bf16.mxu0 0
    %5699 = vmatpush2.bf16.msra.mxu0 0
    %5700 = vmatprep.subr.bf16.mxu0 0
    %5701 = vmatpush2.bf16.msra.mxu0 0
    %5702 = vmatprep.subr.bf16.mxu0 0
    %5703 = vmatpush2.bf16.msra.mxu0 0
    %5704 = vmatprep.subr.bf16.mxu0 0
    %5705 = vmatpush2.bf16.msra.mxu0 0
    %5706 = vmatprep.subr.bf16.mxu0 0
    %5707 = vmatpush2.bf16.msra.mxu0 0
    %5708 = vmatprep.subr.bf16.mxu0 0
    %5709 = vmatpush2.bf16.msra.mxu0 0
    %5710 = vmatprep.subr.bf16.mxu0 0
    %5711 = vmatpush2.bf16.msra.mxu0 0
    %5712 = vmatprep.mubr.bf16.mxu0 0
    %5713 = vmatmul.mubr.bf16.gmra.mxu0 %v5606
    %v5714 = vpop.f32.mrf.mxu0
    %v5715 = vadd.f32 %v5630, %v5714
    %v5716 = vpop.f32.mrf.mxu0
    %v5717 = vpop.f32.mrf.mxu0
    %v5718 = vadd.f32 %v5630, %v5717
    %v5719 = vpop.f32.mrf.mxu0
    %5720 = vdwg.mxu0
    %v5721 = vadd.f32 %v5470, %v5715
    %v5722 = vadd.f32 %v5471, %v5718
    %v5723 = vld [vmem:[%s14] sm:$0x1]
    %v5724 = vld [vmem:[%s15] sm:$0x1]
    %v5725 = vsel %vm66, %v2928, 0.0
    %5726 = vadd.xlane.f32.xlu0 %v5725
    %v5727 = vpop.xlane.xlu0 %5726
    %v5728 = vsel %vm66, %v2929, 0.0
    %5729 = vadd.xlane.f32.xlu0 %v5728
    %v5730 = vpop.xlane.xlu0 %5729
    %v5731 = vsel %vm66, %v3859, 0.0
    %5732 = vadd.xlane.f32.xlu0 %v5731
    %v5733 = vpop.xlane.xlu0 %5732
    %v5734 = vsel %vm66, %v3860, 0.0
    %5735 = vadd.xlane.f32.xlu0 %v5734
    %v5736 = vpop.xlane.xlu0 %5735
    %v5737 = vsel %vm66, %v4790, 0.0
    %5738 = vadd.xlane.f32.xlu0 %v5737
    %v5739 = vpop.xlane.xlu0 %5738
    %v5740 = vsel %vm66, %v4791, 0.0
    %5741 = vadd.xlane.f32.xlu0 %v5740
    %v5742 = vpop.xlane.xlu0 %5741
    %v5743 = vsel %vm66, %v5721, 0.0
    %5744 = vadd.xlane.f32.xlu0 %v5743
    %v5745 = vpop.xlane.xlu0 %5744
    %v5746 = vsel %vm66, %v5722, 0.0
    %5747 = vadd.xlane.f32.xlu0 %v5746
    %v5748 = vpop.xlane.xlu0 %5747
    %v5749 = vmul.f32 %v5727, %v73
    %v5750 = vmul.f32 %v5730, %v73
    %v5751 = vmul.f32 %v5733, %v73
    %v5752 = vmul.f32 %v5736, %v73
    %v5753 = vmul.f32 %v5739, %v73
    %v5754 = vmul.f32 %v5742, %v73
    %v5755 = vmul.f32 %v5745, %v73
    %v5756 = vmul.f32 %v5748, %v73
    %v5757 = vsub.f32 %v2928, %v5749
    %v5758 = vsub.f32 %v2929, %v5750
    %v5759 = vsub.f32 %v3859, %v5751
    %v5760 = vsub.f32 %v3860, %v5752
    %v5761 = vsub.f32 %v4790, %v5753
    %v5762 = vsub.f32 %v4791, %v5754
    %v5763 = vsub.f32 %v5721, %v5755
    %v5764 = vsub.f32 %v5722, %v5756
    %v5765 = vmul.f32 %v5757, %v5757
    %v5766 = vmul.f32 %v5758, %v5758
    %v5767 = vmul.f32 %v5759, %v5759
    %v5768 = vmul.f32 %v5760, %v5760
    %v5769 = vmul.f32 %v5761, %v5761
    %v5770 = vmul.f32 %v5762, %v5762
    %v5771 = vmul.f32 %v5763, %v5763
    %v5772 = vmul.f32 %v5764, %v5764
    %v5773 = vsel %vm66, %v5765, 0.0
    %5774 = vadd.xlane.f32.xlu0 %v5773
    %v5775 = vpop.xlane.xlu0 %5774
    %v5776 = vsel %vm66, %v5766, 0.0
    %5777 = vadd.xlane.f32.xlu0 %v5776
    %v5778 = vpop.xlane.xlu0 %5777
    %v5779 = vsel %vm66, %v5767, 0.0
    %5780 = vadd.xlane.f32.xlu0 %v5779
    %v5781 = vpop.xlane.xlu0 %5780
    %v5782 = vsel %vm66, %v5768, 0.0
    %5783 = vadd.xlane.f32.xlu0 %v5782
    %v5784 = vpop.xlane.xlu0 %5783
    %v5785 = vsel %vm66, %v5769, 0.0
    %5786 = vadd.xlane.f32.xlu0 %v5785
    %v5787 = vpop.xlane.xlu0 %5786
    %v5788 = vsel %vm66, %v5770, 0.0
    %5789 = vadd.xlane.f32.xlu0 %v5788
    %v5790 = vpop.xlane.xlu0 %5789
    %v5791 = vsel %vm66, %v5771, 0.0
    %5792 = vadd.xlane.f32.xlu0 %v5791
    %v5793 = vpop.xlane.xlu0 %5792
    %v5794 = vsel %vm66, %v5772, 0.0
    %5795 = vadd.xlane.f32.xlu0 %v5794
    %v5796 = vpop.xlane.xlu0 %5795
    %v5797 = vmul.f32 %v5775, %v73
    %v5798 = vmul.f32 %v5778, %v73
    %v5799 = vmul.f32 %v5781, %v73
    %v5800 = vmul.f32 %v5784, %v73
    %v5801 = vmul.f32 %v5787, %v73
    %v5802 = vmul.f32 %v5790, %v73
    %v5803 = vmul.f32 %v5793, %v73
    %v5804 = vmul.f32 %v5796, %v73
    %v5805 = vadd.f32 %v5797, 1e-05
    %v5806 = vadd.f32 %v5798, 1e-05
    %v5807 = vadd.f32 %v5799, 1e-05
    %v5808 = vadd.f32 %v5800, 1e-05
    %v5809 = vadd.f32 %v5801, 1e-05
    %v5810 = vadd.f32 %v5802, 1e-05
    %v5811 = vadd.f32 %v5803, 1e-05
    %v5812 = vadd.f32 %v5804, 1e-05
    %v5813 = vrsqrt.pop %v5805
    %v5814 = vrsqrt.pop %v5806
    %v5815 = vrsqrt.pop %v5807
    %v5816 = vrsqrt.pop %v5808
    %v5817 = vrsqrt.pop %v5809
    %v5818 = vrsqrt.pop %v5810
    %v5819 = vrsqrt.pop %v5811
    %v5820 = vrsqrt.pop %v5812
    %v5821 = vmul.f32 %v5757, %v5813
    %v5822 = vmul.f32 %v5758, %v5814
    %v5823 = vmul.f32 %v5759, %v5815
    %v5824 = vmul.f32 %v5760, %v5816
    %v5825 = vmul.f32 %v5761, %v5817
    %v5826 = vmul.f32 %v5762, %v5818
    %v5827 = vmul.f32 %v5763, %v5819
    %v5828 = vmul.f32 %v5764, %v5820
    %v5830 = vlaneseq
    %v5831 = vshrl.u32 %v5830, 7
    %v5832 = vsub.s32 0, %v5831
    %v5833 = vrot.slane %v5723, %v5832
    %v5835 = vmul.f32 %v5821, %v5833
    %v5836 = vmul.f32 %v5822, %v5833
    %v5837 = vmul.f32 %v5823, %v5833
    %v5838 = vmul.f32 %v5824, %v5833
    %v5839 = vmul.f32 %v5825, %v5833
    %v5840 = vmul.f32 %v5826, %v5833
    %v5841 = vmul.f32 %v5827, %v5833
    %v5842 = vmul.f32 %v5828, %v5833
    %v5844 = vlaneseq
    %v5845 = vshrl.u32 %v5844, 7
    %v5846 = vsub.s32 0, %v5845
    %v5847 = vrot.slane %v5724, %v5846
    %v5849 = vadd.f32 %v5835, %v5847
    %v5850 = vadd.f32 %v5836, %v5847
    %v5851 = vadd.f32 %v5837, %v5847
    %v5852 = vadd.f32 %v5838, %v5847
    %v5853 = vadd.f32 %v5839, %v5847
    %v5854 = vadd.f32 %v5840, %v5847
    %v5855 = vadd.f32 %v5841, %v5847
    %v5856 = vadd.f32 %v5842, %v5847
    %v5857 = vpack.c.bf16 %v5850, %v5849
    %v5858 = vpack.c.bf16 %v5852, %v5851
    %v5859 = vpack.c.bf16 %v5854, %v5853
    %v5860 = vpack.c.bf16 %v5856, %v5855
    %v5861 = vld [vmem:[%s16] sm:$0xf]
    %v5862 = vld [vmem:[%s16 + $0x4] sm:$0xf]
    %v5863 = vld [vmem:[%s16 + $0x8] sm:$0xf]
    %v5864 = vld [vmem:[%s16 + $0xc] sm:$0xf]
    %v5869 = vunpack.c.l.b16 %v5861
    %v5870 = vunpack.c.l.b16 %v5862
    %v5871 = vunpack.c.l.b16 %v5863
    %v5872 = vunpack.c.l.b16 %v5864
    %v5873 = vpack.c.b16 %v5870, %v5869
    %v5874 = vpack.c.b16 %v5872, %v5871
    %v5878 = vsel %vm66, %v5857, 0
    %v5881 = vsel %vm66, %v5858, 0
    %v5884 = vsel %vm66, %v5859, 0
    %v5887 = vsel %vm66, %v5860, 0
    %5889 = vmatprep.subr.bf16.mxu0 0
    %5890 = vmatpush1.bf16.msra.mxu0 0
    %5891 = vmatprep.subr.bf16.mxu0 0
    %5892 = vmatpush1.bf16.msra.mxu0 0
    %5893 = vmatprep.subr.bf16.mxu0 0
    %5894 = vmatpush1.bf16.msra.mxu0 0
    %5895 = vmatprep.subr.bf16.mxu0 0
    %5896 = vmatpush1.bf16.msra.mxu0 0
    %5897 = vmatprep.subr.bf16.mxu0 0
    %5898 = vmatpush1.bf16.msra.mxu0 0
    %5899 = vmatprep.subr.bf16.mxu0 0
    %5900 = vmatpush1.bf16.msra.mxu0 0
    %5901 = vmatprep.subr.bf16.mxu0 0
    %5902 = vmatpush1.bf16.msra.mxu0 %v5874
    %5903 = vmatprep.subr.bf16.mxu0 0
    %5904 = vmatpush1.bf16.msra.mxu0 %v5873
    %5905 = vmatprep.subr.bf16.mxu0 0
    %5906 = vmatpush2.bf16.msra.mxu0 0
    %5907 = vmatprep.subr.bf16.mxu0 0
    %5908 = vmatpush2.bf16.msra.mxu0 0
    %5909 = vmatprep.subr.bf16.mxu0 0
    %5910 = vmatpush2.bf16.msra.mxu0 0
    %5911 = vmatprep.subr.bf16.mxu0 0
    %5912 = vmatpush2.bf16.msra.mxu0 0
    %5913 = vmatprep.subr.bf16.mxu0 0
    %5914 = vmatpush2.bf16.msra.mxu0 0
    %5915 = vmatprep.subr.bf16.mxu0 0
    %5916 = vmatpush2.bf16.msra.mxu0 0
    %5917 = vmatprep.subr.bf16.mxu0 0
    %5918 = vmatpush2.bf16.msra.mxu0 0
    %5919 = vmatprep.subr.bf16.mxu0 0
    %5920 = vmatpush2.bf16.msra.mxu0 0
    %5921 = vmatprep.mubr.bf16.mxu0 0
    %5922 = vmatmul.mubr.bf16.gmra.mxu0 %v5878
    %v5923 = vpop.f32.mrf.mxu0
    %v5924 = vadd.f32 0.0, %v5923
    %v5925 = vpop.f32.mrf.mxu0
    %v5926 = vpop.f32.mrf.mxu0
    %v5927 = vadd.f32 0.0, %v5926
    %v5928 = vpop.f32.mrf.mxu0
    %5929 = vmatprep.mubr.bf16.mxu0 0
    %5930 = vmatmul.mubr.bf16.gmra.mxu0 %v5881
    %v5931 = vpop.f32.mrf.mxu0
    %v5932 = vadd.f32 0.0, %v5931
    %v5933 = vpop.f32.mrf.mxu0
    %v5934 = vpop.f32.mrf.mxu0
    %v5935 = vadd.f32 0.0, %v5934
    %v5936 = vpop.f32.mrf.mxu0
    %5937 = vmatprep.mubr.bf16.mxu0 0
    %5938 = vmatmul.mubr.bf16.gmra.mxu0 %v5884
    %v5939 = vpop.f32.mrf.mxu0
    %v5940 = vadd.f32 0.0, %v5939
    %v5941 = vpop.f32.mrf.mxu0
    %v5942 = vpop.f32.mrf.mxu0
    %v5943 = vadd.f32 0.0, %v5942
    %v5944 = vpop.f32.mrf.mxu0
    %5945 = vmatprep.mubr.bf16.mxu0 0
    %5946 = vmatmul.mubr.bf16.gmra.mxu0 %v5887
    %v5947 = vpop.f32.mrf.mxu0
    %v5948 = vadd.f32 0.0, %v5947
    %v5949 = vpop.f32.mrf.mxu0
    %v5950 = vpop.f32.mrf.mxu0
    %v5951 = vadd.f32 0.0, %v5950
    %v5952 = vpop.f32.mrf.mxu0
    %5953 = vdwg.mxu0
    %5954 = vst [vmem:[%s17] sm:$0xff] %v5924
    %5955 = vst [vmem:[%s17 + $0x8] sm:$0xff] %v5927
    %5956 = vst [vmem:[%s17 + $0x10] sm:$0xff] %v5932
    %5957 = vst [vmem:[%s17 + $0x18] sm:$0xff] %v5935
    %5958 = vst [vmem:[%s17 + $0x20] sm:$0xff] %v5940
    %5959 = vst [vmem:[%s17 + $0x28] sm:$0xff] %v5943
    %5960 = vst [vmem:[%s17 + $0x30] sm:$0xff] %v5948
    %5961 = vst [vmem:[%s17 + $0x38] sm:$0xff] %v5951
    // Predicated region
    $region70: #{multi_token_gpt2_forward.1} parent=1 // pred_check
      _
    $region71: #{multi_token_gpt2_forward.1} parent=1 // pred_check_branch
      %5963 = sbr.rel (0) target = $region73
    $region72: #{multi_token_gpt2_forward.1} parent=1 // pred_region
      _
    $region73: #{multi_token_gpt2_forward.1} parent=1 // pred_fallthru
      _
    // Predicated region
    $region74: #{multi_token_gpt2_forward.1} parent=1 // pred_check
      _
    $region75: #{multi_token_gpt2_forward.1} parent=1 // pred_check_branch
      %5965 = sbr.rel (0) target = $region77
    $region76: #{multi_token_gpt2_forward.1} parent=1 // pred_region
      %s5967 = ssub.s32 256, 256
      %5968 = vsyncadd [#allocation3], %s5967
      %s5969 = sshll.u32 [#allocation2], 4
      %s5970 = int_to_ptr.vmem [resolvable:$true] %s5969
      %5975 = dma.vmem_to_hbm [thread:$0]  %s5970, 256, %s18, [#allocation3], 128, 128, 8
    $region77: #{multi_token_gpt2_forward.1} parent=1 // pred_fallthru
      _
    // Predicated region
    $region78: #{multi_token_gpt2_forward.1} parent=1 // pred_check
      _
    $region79: #{multi_token_gpt2_forward.1} parent=1 // pred_check_branch
      %5977 = sbr.rel (0) target = $region81
    $region80: #{multi_token_gpt2_forward.1} parent=1 // pred_region
      _
    $region81: #{multi_token_gpt2_forward.1} parent=1 // pred_fallthru
      _
    // Predicated region
    $region82: #{multi_token_gpt2_forward.1} parent=1 // pred_check
      _
    $region83: #{multi_token_gpt2_forward.1} parent=1 // pred_check_branch
      %5979 = sbr.rel (0) target = $region85
    $region84: #{multi_token_gpt2_forward.1} parent=1 // pred_region
      %5980 = dma.done [#allocation3], 256
    $region85: #{multi_token_gpt2_forward.1} parent=1 // pred_fallthru
      _
    %5981 = vsyncpa [#allocation3], 1

</llo_original>
